<compile_context>
chip_gen: v7x
topology: tpu7x:2x2x1
jax: 0.10.0
libtpu: 0.0.40
codegen_flags: <defaults>
</compile_context>

<pallas_src>
import functools
import math

import jax
import jax.numpy as jnp
from jax.experimental import pallas as pl
from jax.experimental.pallas import tpu as pltpu


# ----------------------------- Pallas kernels ------------------------------

def _elu(v):
    # ELU(alpha=1); clamp exp arg so the dead branch cannot overflow.
    return jnp.where(v > 0, v, jnp.exp(jnp.minimum(v, 0.0)) - 1.0)


def _branch_kernel(x_ref, sc1_ref, sh1_ref,
                   w1_ref, c1_ref, w2_ref, c2_ref, w3_ref, c3_ref,
                   w4_ref, c4_ref, w5_ref, c5_ref, w6_ref, c6_ref,
                   p1_ref, p2_ref, g2_ref, be2_ref, s2_ref, s2t_ref,
                   o_ref, *, n_img, ohs, ohf, owf, fmaps, eps):
    """One (branch, pass) grid point: the full conv stack for n_img images.

    Activations are lane-dense (rows, W*C) f32 slabs living entirely in VMEM.
    Each 5x5 conv = 5 bf16 matmuls against banded weights (with the W half of
    a following AvgPool2d pre-folded); the H half of the pool is a matmul with
    a constant (PH, OH) averaging matrix.
    """
    oh1, oh2, oh3, oh4, oh5, oh6 = ohs

    def conv(h, w_ref, bias_ref, oh):
        hb = h.astype(w_ref.dtype)
        acc = jnp.dot(hb[0:oh], w_ref[0], preferred_element_type=jnp.float32)
        for dy in range(1, 5):
            acc = acc + jnp.dot(hb[dy:dy + oh], w_ref[dy],
                                preferred_element_type=jnp.float32)
        return acc + bias_ref[...]

    feats = []
    csum = jnp.zeros((1, owf * fmaps), jnp.float32)
    csq = jnp.zeros((1, owf * fmaps), jnp.float32)
    for n in range(n_img):
        # fc1{a,b}: BN1 (folded scale/shift) -> conv1(+Wpool) -> Hpool -> ELU
        #           -> conv2 -> ELU -> conv3 ; then F.elu
        h = x_ref[n] * sc1_ref[...] + sh1_ref[...]
        h = conv(h, w1_ref, c1_ref, oh1)
        h = _elu(jnp.dot(p1_ref[...], h, preferred_element_type=jnp.float32))
        h = _elu(conv(h, w2_ref, c2_ref, oh2))
        h = _elu(conv(h, w3_ref, c3_ref, oh3))
        # fc2{a,b}: conv4(+Wpool) -> Hpool -> ELU -> conv5 -> ELU -> conv6 ->
        #           BN2 ; then F.elu (BN2 + ELU applied after batch stats).
        h = conv(h, w4_ref, c4_ref, oh4)
        h = _elu(jnp.dot(p2_ref[...], h, preferred_element_type=jnp.float32))
        h = _elu(conv(h, w5_ref, c5_ref, oh5))
        h = conv(h, w6_ref, c6_ref, oh6)                 # (OHf, OWf*F)
        feats.append(h)
        csum = csum + jnp.sum(h, axis=0, keepdims=True)
        csq = csq + jnp.sum(h * h, axis=0, keepdims=True)

    # BatchNorm2d (training-mode stats over this pass's batch, biased var).
    cnt = float(n_img * ohf * owf)
    mean = jnp.dot(csum, s2_ref[...], preferred_element_type=jnp.float32) / cnt
    msq = jnp.dot(csq, s2_ref[...], preferred_element_type=jnp.float32) / cnt
    var = msq - mean * mean
    scale = g2_ref[...] * jax.lax.rsqrt(var + eps)
    shift = be2_ref[...] - mean * scale
    scale_t = jnp.dot(scale, s2t_ref[...], preferred_element_type=jnp.float32)
    shift_t = jnp.dot(shift, s2t_ref[...], preferred_element_type=jnp.float32)
    for n in range(n_img):
        o_ref[n] = _elu(feats[n] * scale_t + shift_t).astype(o_ref.dtype)


def _head_kernel(bo_ref, s_ref, w3_ref, b3_ref, w4_ref, b4_ref, o_ref, *,
                 inv_spatial):
    # (outA * outB).mean(spatial) -> fc3 + ELU -> fc4, for one pass.
    prod = bo_ref[0] * bo_ref[1]                         # (N, OHf, OWf*F)
    sums = jnp.sum(prod, axis=1)                         # (N, OWf*F)
    feat = jnp.dot(sums, s_ref[...],
                   preferred_element_type=jnp.float32) * inv_spatial
    h1 = _elu(jnp.dot(feat, w3_ref[...],
                      preferred_element_type=jnp.float32) + b3_ref[...])
    out = jnp.dot(h1, w4_ref[...],
                  preferred_element_type=jnp.float32) + b4_ref[...]
    o_ref[...] = out.astype(o_ref.dtype)


# --------------------- wrapper-side weight preparation ----------------------

def _band_conv_weight(w, w_in, pool_w):
    """(k,k,Cin,Cout) conv weight -> banded (k, W_in*Cin, OWeff*Cout) matrix.

    band[dy, iw*Cin+ci, ow*Cout+co] = w[dy, iw-ow, ci, co] for 0 <= iw-ow < k.
    If pool_w, the W half of a following AvgPool2d(2) is folded in (column
    pairs averaged), so OWeff = OW // 2.
    """
    k, _, cin, cout = w.shape
    ow = w_in - k + 1
    iw = jnp.arange(w_in)[:, None]
    owi = jnp.arange(ow)[None, :]
    dx = iw - owi
    valid = (dx >= 0) & (dx < k)
    wg = w[:, jnp.clip(dx, 0, k - 1)]                    # (k, Win, OW, Cin, Cout)
    wg = jnp.where(valid[None, :, :, None, None], wg, 0.0)
    band = jnp.transpose(wg, (0, 1, 3, 2, 4)).reshape(k, w_in * cin, ow * cout)
    if pool_w:
        pw = ow // 2
        band = band[:, :, :pw * 2 * cout]
        band = band.reshape(k, w_in * cin, pw, 2, cout).mean(axis=3)
        band = band.reshape(k, w_in * cin, pw * cout)
    return band


def _hpool_matrix(oh):
    """Constant (OH//2, OH) matrix averaging adjacent row pairs (H pool half)."""
    ph = oh // 2
    r = jnp.arange(ph)[:, None]
    c = jnp.arange(oh)[None, :]
    return jnp.where((c == 2 * r) | (c == 2 * r + 1), 0.5, 0.0).astype(jnp.float32)


def _chan_selector(groups, c):
    """(groups*c, c) 0/1 matrix summing/selecting the lane-groups per channel."""
    idx = jnp.arange(groups * c) % c
    return (idx[:, None] == jnp.arange(c)[None, :]).astype(jnp.float32)


# ------------------------------ Mine forward -------------------------------

def mine_forward(joint, marginal, p, ca, fmaps, hidden, fdiv=False, eps=1e-5):
    """Forward of the conv-branch Mine module. joint/marginal: (N, ca+cb, H, W)."""
    N, ctot, H, W = joint.shape
    cb = ctot - ca
    # TODO(synk): ca != cb would need separate (unstacked) per-branch calls.
    assert ca == cb, "optimized stacked-branch path assumes ca == cb"
    F = fmaps

    # Spatial chain of the stack: conv5, pool2, conv5, conv5, conv5, pool2, conv5, conv5.
    OH1, OW1 = H - 4, W - 4
    PH1, PW1 = OH1 // 2, OW1 // 2
    OH2, OW2 = PH1 - 4, PW1 - 4
    OH3, OW3 = OH2 - 4, OW2 - 4
    OH4, OW4 = OH3 - 4, OW3 - 4
    PH4, PW4 = OH4 // 2, OW4 // 2
    OH5, OW5 = PH4 - 4, PW4 - 4
    OH6, OW6 = OH5 - 4, OW5 - 4
    assert OH6 >= 1 and OW6 >= 1, "input spatial size too small for the stack"

    # --- input prep (XLA glue): NCHW -> lane-dense (pass*branch, N, H, W*Cin) ---
    x = jnp.stack([joint, marginal], axis=0)              # (2, N, C, H, W)
    xb = jnp.stack([x[:, :, :ca], x[:, :, ca:]], axis=1)  # (2, 2, N, ca, H, W)
    x_nhwc = jnp.transpose(xb, (0, 1, 2, 4, 5, 3))        # (2, 2, N, H, W, ca)
    x_slab = x_nhwc.reshape(4, N, H, W * ca)              # row index = pass*2+branch

    # --- BN1: training-mode batch stats computed at runtime (per pass & branch),
    #     folded into a per-lane scale/shift applied inside the kernel. ---
    mean1 = jnp.mean(x_nhwc, axis=(2, 3, 4))               # (2, 2, ca)
    var1 = jnp.var(x_nhwc, axis=(2, 3, 4))                 # biased (PyTorch train)
    g1 = jnp.stack([p['a_bn1_g'], p['b_bn1_g']])[None]     # (1, 2, ca)
    b1 = jnp.stack([p['a_bn1_b'], p['b_bn1_b']])[None]
    scale1 = g1 * jax.lax.rsqrt(var1 + eps)                # (2, 2, ca)
    shift1 = b1 - mean1 * scale1
    sc1 = jnp.tile(scale1, (1, 1, W)).reshape(4, 1, W * ca)
    sh1 = jnp.tile(shift1, (1, 1, W)).reshape(4, 1, W * ca)

    # --- banded conv weights (bf16), W-pool folded where an AvgPool follows ---
    layer_specs = [('c1', W, True), ('c2', PW1, False), ('c3', OW2, False),
                   ('c4', OW3, True), ('c5', PW4, False), ('c6', OW5, False)]
    bands, biases = [], []
    for name, win, poolw in layer_specs:
        band = jnp.stack([_band_conv_weight(p[f'a_{name}_w'], win, poolw),
                          _band_conv_weight(p[f'b_{name}_w'], win, poolw)])
        reps = band.shape[-1] // F
        bias = jnp.stack([jnp.tile(p[f'a_{name}_b'], reps)[None],
                          jnp.tile(p[f'b_{name}_b'], reps)[None]])
        bands.append(band.astype(jnp.bfloat16))
        biases.append(bias.astype(jnp.float32))

    P1 = _hpool_matrix(OH1)                                # (PH1, OH1)
    P2 = _hpool_matrix(OH4)                                # (PH4, OH4)
    S2 = _chan_selector(OW6, F)                            # (OW6*F, F)
    S2T = jnp.transpose(S2)
    g2 = jnp.stack([p['a_bn2_g'], p['b_bn2_g']])[:, None, :]   # (2, 1, F)
    be2 = jnp.stack([p['a_bn2_b'], p['b_bn2_b']])[:, None, :]

    # --- fused branch kernel: grid (branch, pass), both parallel (megacore) ---
    kernel = functools.partial(
        _branch_kernel, n_img=N, ohs=(OH1, OH2, OH3, OH4, OH5, OH6),
        ohf=OH6, owf=OW6, fmaps=F, eps=eps)

    def io4(bi, pi):
        return (pi * 2 + bi, 0, 0, 0)

    def io3(bi, pi):
        return (pi * 2 + bi, 0, 0)

    def wmap4(bi, pi):
        return (bi, 0, 0, 0)

    def wmap3(bi, pi):
        return (bi, 0, 0)

    def cmap(bi, pi):
        return (0, 0)

    in_specs = [pl.BlockSpec((None, N, H, W * ca), io4),
                pl.BlockSpec((None, 1, W * ca), io3),
                pl.BlockSpec((None, 1, W * ca), io3)]
    args = [x_slab, sc1, sh1]
    for band, bias in zip(bands, biases):
        in_specs.append(pl.BlockSpec((None,) + band.shape[1:], wmap4))
        in_specs.append(pl.BlockSpec((None,) + bias.shape[1:], wmap3))
        args += [band, bias]
    in_specs += [pl.BlockSpec(P1.shape, cmap),
                 pl.BlockSpec(P2.shape, cmap),
                 pl.BlockSpec((None, 1, F), wmap3),
                 pl.BlockSpec((None, 1, F), wmap3),
                 pl.BlockSpec(S2.shape, cmap),
                 pl.BlockSpec(S2T.shape, cmap)]
    args += [P1, P2, g2, be2, S2, S2T]

    branch_out = pl.pallas_call(
        kernel,
        out_shape=jax.ShapeDtypeStruct((4, N, OH6, OW6 * F), jnp.float32),
        grid=(2, 2),
        in_specs=in_specs,
        out_specs=pl.BlockSpec((None, N, OH6, OW6 * F), io4),
        compiler_params=pltpu.CompilerParams(
            dimension_semantics=("parallel", "parallel")),
    )(*args)

    # --- head: (A*B).mean(spatial) -> fc3 + ELU -> fc4, grid over passes ---
    w3 = p['fc3_w']
    b3 = p['fc3_b'].reshape(1, hidden)
    w4 = p['fc4_w']
    b4 = p['fc4_b'].reshape(1, 1)
    head = functools.partial(_head_kernel, inv_spatial=1.0 / (OH6 * OW6))
    head_out = pl.pallas_call(
        head,
        out_shape=jax.ShapeDtypeStruct((2, N, 1), jnp.float32),
        grid=(2,),
        in_specs=[pl.BlockSpec((2, N, OH6, OW6 * F), lambda pi: (pi, 0, 0, 0)),
                  pl.BlockSpec(S2.shape, lambda pi: (0, 0)),
                  pl.BlockSpec(w3.shape, lambda pi: (0, 0)),
                  pl.BlockSpec(b3.shape, lambda pi: (0, 0)),
                  pl.BlockSpec(w4.shape, lambda pi: (0, 0)),
                  pl.BlockSpec(b4.shape, lambda pi: (0, 0))],
        out_specs=pl.BlockSpec((None, N, 1), lambda pi: (pi, 0, 0)),
        compiler_params=pltpu.CompilerParams(
            dimension_semantics=("parallel",)),
    )(branch_out, S2, w3, b3, w4, b4)

    j = head_out[0]                                         # (N, 1)
    m = head_out[1]                                         # (N, 1)
    et = jnp.exp(m - 1.0) if fdiv else jnp.exp(m)
    mi_lb = jnp.mean(j) - jnp.log(jnp.mean(et))
    return mi_lb, j, et, m


# ------------------------------- parameters --------------------------------

def init_params(key, ca, cb, fmaps, hidden, init_scale=0.02):
    ks = iter(jax.random.split(key, 32))
    p = {}

    def conv(cin, cout):
        k = 5
        std = 1.0 / math.sqrt(k * k * cin)
        w = jax.random.normal(next(ks), (k, k, cin, cout), jnp.float32) * std
        b = jax.random.normal(next(ks), (cout,), jnp.float32) * std
        return w, b

    for pre, cin0 in (('a', ca), ('b', cb)):
        p[f'{pre}_bn1_g'] = jnp.ones((cin0,), jnp.float32)
        p[f'{pre}_bn1_b'] = jnp.zeros((cin0,), jnp.float32)
        p[f'{pre}_c1_w'], p[f'{pre}_c1_b'] = conv(cin0, fmaps)
        for i in range(2, 7):
            p[f'{pre}_c{i}_w'], p[f'{pre}_c{i}_b'] = conv(fmaps, fmaps)
        p[f'{pre}_bn2_g'] = jnp.ones((fmaps,), jnp.float32)
        p[f'{pre}_bn2_b'] = jnp.zeros((fmaps,), jnp.float32)

    p['fc3_w'] = jax.random.normal(next(ks), (fmaps, hidden), jnp.float32) * init_scale
    p['fc3_b'] = jnp.zeros((hidden,), jnp.float32)
    p['fc4_w'] = jax.random.normal(next(ks), (hidden, 1), jnp.float32) * init_scale
    p['fc4_b'] = jnp.zeros((1,), jnp.float32)
    return p


# ---------------------------------- main ------------------------------------

if __name__ == "__main__":
    # Smallest spatial size compatible with the 6x conv5 + 2x pool2 stack is 64.
    N, ca, cb, H, W = 2, 1, 1, 64, 64
    fmaps, hidden = 8, 32

    key = jax.random.PRNGKey(0)
    kp, kj, km = jax.random.split(key, 3)
    params = init_params(kp, ca, cb, fmaps, hidden)

    joint = jax.random.normal(kj, (N, ca + cb, H, W), jnp.float32)
    marginal = jax.random.normal(km, (N, ca + cb, H, W), jnp.float32)

    fwd = jax.jit(lambda jt, mg: mine_forward(jt, mg, params, ca, fmaps,
                                              hidden, fdiv=False))
    mi_lb, j, et, m = fwd(joint, marginal)
    jax.block_until_ready((mi_lb, j, et, m))

    assert j.shape == (N, 1) and m.shape == (N, 1) and et.shape == (N, 1)
    assert mi_lb.shape == ()
    assert bool(jnp.all(jnp.isfinite(j))) and bool(jnp.all(jnp.isfinite(m)))
    print("KERNEL_OK")
</pallas_src>

<mosaic_0001>
module attributes {stable_mosaic.version = 11 : i64} {
  func.func @_head_kernel(%arg0: i32, %arg1: memref<2x2x1x8xf32, #tpu.memory_space<vmem>>, %arg2: memref<8x8xf32, #tpu.memory_space<vmem>>, %arg3: memref<8x32xf32, #tpu.memory_space<vmem>>, %arg4: memref<1x32xf32, #tpu.memory_space<vmem>>, %arg5: memref<32x1xf32, #tpu.memory_space<vmem>>, %arg6: memref<1x1xf32, #tpu.memory_space<vmem>>, %arg7: memref<1x2x1xf32, #tpu.memory_space<vmem>>) attributes {dimension_semantics = [#tpu.dimension_semantics<parallel>], iteration_bounds = array<i64: 2>, scalar_prefetch = 0 : i64, scratch_operands = 0 : i64, tpu.core_type = #tpu.core_type<tc>, window_params = [{transform_indices = @transform_0, window_bounds = array<i64: 2, 2, 1, 8>}, {pipeline_mode = #tpu.pipeline_mode<synchronous>, transform_indices = @transform_1, window_bounds = array<i64: 8, 8>}, {pipeline_mode = #tpu.pipeline_mode<synchronous>, transform_indices = @transform_2, window_bounds = array<i64: 8, 32>}, {pipeline_mode = #tpu.pipeline_mode<synchronous>, transform_indices = @transform_3, window_bounds = array<i64: 1, 32>}, {pipeline_mode = #tpu.pipeline_mode<synchronous>, transform_indices = @transform_4, window_bounds = array<i64: 32, 1>}, {pipeline_mode = #tpu.pipeline_mode<synchronous>, transform_indices = @transform_5, window_bounds = array<i64: 1, 1>}, {transform_indices = @transform_6, window_bounds = array<i64: 1, 2, 1>}]} {
    %c0 = arith.constant 0 : index
    %c0_0 = arith.constant 0 : index
    %c0_1 = arith.constant 0 : index
    %c0_2 = arith.constant 0 : index
    %0 = vector.load %arg1[%c0, %c0_0, %c0_1, %c0_2] : memref<2x2x1x8xf32, #tpu.memory_space<vmem>>, vector<1x2x1x8xf32>
    %1 = vector.shape_cast %0 : vector<1x2x1x8xf32> to vector<2x1x8xf32>
    %c1 = arith.constant 1 : index
    %c0_3 = arith.constant 0 : index
    %c0_4 = arith.constant 0 : index
    %c0_5 = arith.constant 0 : index
    %2 = vector.load %arg1[%c1, %c0_3, %c0_4, %c0_5] : memref<2x2x1x8xf32, #tpu.memory_space<vmem>>, vector<1x2x1x8xf32>
    %3 = vector.shape_cast %2 : vector<1x2x1x8xf32> to vector<2x1x8xf32>
    %4 = arith.mulf %1, %3 : vector<2x1x8xf32>
    %cst = arith.constant dense<0.000000e+00> : vector<2x8xf32>
    %5 = vector.multi_reduction <add>, %4, %cst [1] : vector<2x1x8xf32> to vector<2x8xf32>
    %c0_6 = arith.constant 0 : index
    %c0_7 = arith.constant 0 : index
    %6 = vector.load %arg2[%c0_6, %c0_7] : memref<8x8xf32, #tpu.memory_space<vmem>>, vector<8x8xf32>
    %cst_8 = arith.constant dense<0.000000e+00> : vector<2x8xf32>
    %7 = tpu.matmul %5, %6, %cst_8 {dimension_numbers = #tpu.dot_dimension_numbers<[1], [0], [0], [1], [0, 0, 1, 1], [], []>} : vector<2x8xf32>, vector<8x8xf32>, vector<2x8xf32> -> vector<2x8xf32>
    %cst_9 = arith.constant 1.000000e+00 : f32
    %8 = vector.broadcast %cst_9 : f32 to vector<2x8xf32>
    %9 = arith.mulf %7, %8 : vector<2x8xf32>
    %c0_10 = arith.constant 0 : index
    %c0_11 = arith.constant 0 : index
    %10 = vector.load %arg3[%c0_10, %c0_11] : memref<8x32xf32, #tpu.memory_space<vmem>>, vector<8x32xf32>
    %cst_12 = arith.constant dense<0.000000e+00> : vector<2x32xf32>
    %11 = tpu.matmul %9, %10, %cst_12 {dimension_numbers = #tpu.dot_dimension_numbers<[1], [0], [0], [1], [0, 0, 1, 1], [], []>} : vector<2x8xf32>, vector<8x32xf32>, vector<2x32xf32> -> vector<2x32xf32>
    %c0_13 = arith.constant 0 : index
    %c0_14 = arith.constant 0 : index
    %12 = vector.load %arg4[%c0_13, %c0_14] : memref<1x32xf32, #tpu.memory_space<vmem>>, vector<1x32xf32>
    %13 = vector.broadcast %12 : vector<1x32xf32> to vector<2x32xf32>
    %14 = arith.addf %11, %13 : vector<2x32xf32>
    %cst_15 = arith.constant 0.000000e+00 : f32
    %15 = vector.broadcast %cst_15 : f32 to vector<2x32xf32>
    %16 = arith.cmpf ogt, %14, %15 : vector<2x32xf32>
    %cst_16 = arith.constant 0.000000e+00 : f32
    %17 = vector.broadcast %cst_16 : f32 to vector<2x32xf32>
    %18 = arith.minimumf %14, %17 : vector<2x32xf32>
    %19 = math.exp %18 : vector<2x32xf32>
    %cst_17 = arith.constant 1.000000e+00 : f32
    %20 = vector.broadcast %cst_17 : f32 to vector<2x32xf32>
    %21 = arith.subf %19, %20 : vector<2x32xf32>
    %22 = arith.select %16, %14, %21 : vector<2x32xi1>, vector<2x32xf32>
    %c0_18 = arith.constant 0 : index
    %c0_19 = arith.constant 0 : index
    %23 = vector.load %arg5[%c0_18, %c0_19] : memref<32x1xf32, #tpu.memory_space<vmem>>, vector<32x1xf32>
    %cst_20 = arith.constant dense<0.000000e+00> : vector<2x1xf32>
    %24 = tpu.matmul %22, %23, %cst_20 {dimension_numbers = #tpu.dot_dimension_numbers<[1], [0], [0], [1], [0, 0, 1, 1], [], []>} : vector<2x32xf32>, vector<32x1xf32>, vector<2x1xf32> -> vector<2x1xf32>
    %c0_21 = arith.constant 0 : index
    %c0_22 = arith.constant 0 : index
    %25 = vector.load %arg6[%c0_21, %c0_22] : memref<1x1xf32, #tpu.memory_space<vmem>>, vector<1x1xf32>
    %26 = vector.broadcast %25 : vector<1x1xf32> to vector<2x1xf32>
    %27 = arith.addf %24, %26 : vector<2x1xf32>
    %c0_23 = arith.constant 0 : index
    %c0_24 = arith.constant 0 : index
    %c0_25 = arith.constant 0 : index
    %28 = vector.load %arg7[%c0_23, %c0_24, %c0_25] : memref<1x2x1xf32, #tpu.memory_space<vmem>>, vector<1x2x1xf32>
    %29 = vector.shape_cast %28 : vector<1x2x1xf32> to vector<2x1xf32>
    %30 = vector.shape_cast %27 : vector<2x1xf32> to vector<1x2x1xf32>
    tpu.vector_store %arg7[%c0_23, %c0_24, %c0_25], %30 {strides = array<i32>} : memref<1x2x1xf32, #tpu.memory_space<vmem>>, vector<1x2x1xf32>,
    return
  }
  func.func @transform_0(%arg0: i32) -> (i32, i32, i32, i32) {
    %c0_i32 = arith.constant 0 : i32
    %c0_i32_0 = arith.constant 0 : i32
    %c0_i32_1 = arith.constant 0 : i32
    %c0_i32_2 = arith.constant 0 : i32
    return %arg0, %c0_i32, %c0_i32_0, %c0_i32_1 : i32, i32, i32, i32
  }
  func.func @transform_1(%arg0: i32) -> (i32, i32) {
    %c0_i32 = arith.constant 0 : i32
    %c0_i32_0 = arith.constant 0 : i32
    %c0_i32_1 = arith.constant 0 : i32
    return %c0_i32, %c0_i32_0 : i32, i32
  }
  func.func @transform_2(%arg0: i32) -> (i32, i32) {
    %c0_i32 = arith.constant 0 : i32
    %c0_i32_0 = arith.constant 0 : i32
    %c0_i32_1 = arith.constant 0 : i32
    return %c0_i32, %c0_i32_0 : i32, i32
  }
  func.func @transform_3(%arg0: i32) -> (i32, i32) {
    %c0_i32 = arith.constant 0 : i32
    %c0_i32_0 = arith.constant 0 : i32
    %c0_i32_1 = arith.constant 0 : i32
    return %c0_i32, %c0_i32_0 : i32, i32
  }
  func.func @transform_4(%arg0: i32) -> (i32, i32) {
    %c0_i32 = arith.constant 0 : i32
    %c0_i32_0 = arith.constant 0 : i32
    %c0_i32_1 = arith.constant 0 : i32
    return %c0_i32, %c0_i32_0 : i32, i32
  }
  func.func @transform_5(%arg0: i32) -> (i32, i32) {
    %c0_i32 = arith.constant 0 : i32
    %c0_i32_0 = arith.constant 0 : i32
    %c0_i32_1 = arith.constant 0 : i32
    return %c0_i32, %c0_i32_0 : i32, i32
  }
  func.func @transform_6(%arg0: i32) -> (i32, i32, i32) {
    %c0_i32 = arith.constant 0 : i32
    %c0_i32_0 = arith.constant 0 : i32
    %c0_i32_1 = arith.constant 0 : i32
    return %arg0, %c0_i32, %c0_i32_0 : i32, i32, i32
  }
}

module attributes {stable_mosaic.version = 11 : i64} {
  func.func @_branch_kernel(%arg0: i32, %arg1: i32, %arg2: memref<1x2x64x64xf32, #tpu.memory_space<vmem>>, %arg3: memref<1x1x64xf32, #tpu.memory_space<vmem>>, %arg4: memref<1x1x64xf32, #tpu.memory_space<vmem>>, %arg5: memref<1x5x64x240xbf16, #tpu.memory_space<vmem>>, %arg6: memref<1x1x240xf32, #tpu.memory_space<vmem>>, %arg7: memref<1x5x240x208xbf16, #tpu.memory_space<vmem>>, %arg8: memref<1x1x208xf32, #tpu.memory_space<vmem>>, %arg9: memref<1x5x208x176xbf16, #tpu.memory_space<vmem>>, %arg10: memref<1x1x176xf32, #tpu.memory_space<vmem>>, %arg11: memref<1x5x176x72xbf16, #tpu.memory_space<vmem>>, %arg12: memref<1x1x72xf32, #tpu.memory_space<vmem>>, %arg13: memref<1x5x72x40xbf16, #tpu.memory_space<vmem>>, %arg14: memref<1x1x40xf32, #tpu.memory_space<vmem>>, %arg15: memref<1x5x40x8xbf16, #tpu.memory_space<vmem>>, %arg16: memref<1x1x8xf32, #tpu.memory_space<vmem>>, %arg17: memref<30x60xf32, #tpu.memory_space<vmem>>, %arg18: memref<9x18xf32, #tpu.memory_space<vmem>>, %arg19: memref<1x1x8xf32, #tpu.memory_space<vmem>>, %arg20: memref<1x1x8xf32, #tpu.memory_space<vmem>>, %arg21: memref<8x8xf32, #tpu.memory_space<vmem>>, %arg22: memref<8x8xf32, #tpu.memory_space<vmem>>, %arg23: memref<1x2x1x8xf32, #tpu.memory_space<vmem>>) attributes {dimension_semantics = [#tpu.dimension_semantics<parallel>, #tpu.dimension_semantics<parallel>], iteration_bounds = array<i64: 2, 2>, scalar_prefetch = 0 : i64, scratch_operands = 0 : i64, tpu.core_type = #tpu.core_type<tc>, window_params = [{transform_indices = @transform_0, window_bounds = array<i64: 1, 2, 64, 64>}, {transform_indices = @transform_1, window_bounds = array<i64: 1, 1, 64>}, {transform_indices = @transform_2, window_bounds = array<i64: 1, 1, 64>}, {transform_indices = @transform_3, window_bounds = array<i64: 1, 5, 64, 240>}, {transform_indices = @transform_4, window_bounds = array<i64: 1, 1, 240>}, {transform_indices = @transform_5, window_bounds = array<i64: 1, 5, 240, 208>}, {transform_indices = @transform_6, window_bounds = array<i64: 1, 1, 208>}, {transform_indices = @transform_7, window_bounds = array<i64: 1, 5, 208, 176>}, {transform_indices = @transform_8, window_bounds = array<i64: 1, 1, 176>}, {transform_indices = @transform_9, window_bounds = array<i64: 1, 5, 176, 72>}, {transform_indices = @transform_10, window_bounds = array<i64: 1, 1, 72>}, {transform_indices = @transform_11, window_bounds = array<i64: 1, 5, 72, 40>}, {transform_indices = @transform_12, window_bounds = array<i64: 1, 1, 40>}, {transform_indices = @transform_13, window_bounds = array<i64: 1, 5, 40, 8>}, {transform_indices = @transform_14, window_bounds = array<i64: 1, 1, 8>}, {pipeline_mode = #tpu.pipeline_mode<synchronous>, transform_indices = @transform_15, window_bounds = array<i64: 30, 60>}, {pipeline_mode = #tpu.pipeline_mode<synchronous>, transform_indices = @transform_16, window_bounds = array<i64: 9, 18>}, {transform_indices = @transform_17, window_bounds = array<i64: 1, 1, 8>}, {transform_indices = @transform_18, window_bounds = array<i64: 1, 1, 8>}, {pipeline_mode = #tpu.pipeline_mode<synchronous>, transform_indices = @transform_19, window_bounds = array<i64: 8, 8>}, {pipeline_mode = #tpu.pipeline_mode<synchronous>, transform_indices = @transform_20, window_bounds = array<i64: 8, 8>}, {transform_indices = @transform_21, window_bounds = array<i64: 1, 2, 1, 8>}]} {
    %cst = arith.constant 0.000000e+00 : f32
    %0 = vector.broadcast %cst : f32 to vector<1x8xf32>
    %cst_0 = arith.constant 0.000000e+00 : f32
    %1 = vector.broadcast %cst_0 : f32 to vector<1x8xf32>
    %c0 = arith.constant 0 : index
    %c0_1 = arith.constant 0 : index
    %c0_2 = arith.constant 0 : index
    %c0_3 = arith.constant 0 : index
    %2 = vector.load %arg2[%c0, %c0_1, %c0_2, %c0_3] : memref<1x2x64x64xf32, #tpu.memory_space<vmem>>, vector<1x1x64x64xf32>
    %3 = vector.shape_cast %2 : vector<1x1x64x64xf32> to vector<64x64xf32>
    %c0_4 = arith.constant 0 : index
    %c0_5 = arith.constant 0 : index
    %c0_6 = arith.constant 0 : index
    %4 = vector.load %arg3[%c0_4, %c0_5, %c0_6] : memref<1x1x64xf32, #tpu.memory_space<vmem>>, vector<1x1x64xf32>
    %5 = vector.shape_cast %4 : vector<1x1x64xf32> to vector<1x64xf32>
    %6 = vector.broadcast %5 : vector<1x64xf32> to vector<64x64xf32>
    %7 = arith.mulf %3, %6 : vector<64x64xf32>
    %c0_7 = arith.constant 0 : index
    %c0_8 = arith.constant 0 : index
    %c0_9 = arith.constant 0 : index
    %8 = vector.load %arg4[%c0_7, %c0_8, %c0_9] : memref<1x1x64xf32, #tpu.memory_space<vmem>>, vector<1x1x64xf32>
    %9 = vector.shape_cast %8 : vector<1x1x64xf32> to vector<1x64xf32>
    %10 = vector.broadcast %9 : vector<1x64xf32> to vector<64x64xf32>
    %11 = arith.addf %7, %10 : vector<64x64xf32>
    %12 = arith.truncf %11 : vector<64x64xf32> to vector<64x64xbf16>
    %13 = vector.extract_strided_slice %12 {offsets = [0, 0], sizes = [60, 64], strides = [1, 1]} : vector<64x64xbf16> to vector<60x64xbf16>
    %c0_10 = arith.constant 0 : index
    %c0_11 = arith.constant 0 : index
    %c0_12 = arith.constant 0 : index
    %c0_13 = arith.constant 0 : index
    %14 = vector.load %arg5[%c0_10, %c0_11, %c0_12, %c0_13] : memref<1x5x64x240xbf16, #tpu.memory_space<vmem>>, vector<1x1x64x240xbf16>
    %15 = vector.shape_cast %14 : vector<1x1x64x240xbf16> to vector<64x240xbf16>
    %cst_14 = arith.constant dense<0.000000e+00> : vector<60x240xf32>
    %16 = tpu.matmul %13, %15, %cst_14 {dimension_numbers = #tpu.dot_dimension_numbers<[1], [0], [0], [1], [0, 0, 1, 1], [], []>} : vector<60x64xbf16>, vector<64x240xbf16>, vector<60x240xf32> -> vector<60x240xf32>
    %17 = vector.extract_strided_slice %12 {offsets = [1, 0], sizes = [60, 64], strides = [1, 1]} : vector<64x64xbf16> to vector<60x64xbf16>
    %c0_15 = arith.constant 0 : index
    %c1 = arith.constant 1 : index
    %c0_16 = arith.constant 0 : index
    %c0_17 = arith.constant 0 : index
    %18 = vector.load %arg5[%c0_15, %c1, %c0_16, %c0_17] : memref<1x5x64x240xbf16, #tpu.memory_space<vmem>>, vector<1x1x64x240xbf16>
    %19 = vector.shape_cast %18 : vector<1x1x64x240xbf16> to vector<64x240xbf16>
    %cst_18 = arith.constant dense<0.000000e+00> : vector<60x240xf32>
    %20 = tpu.matmul %17, %19, %cst_18 {dimension_numbers = #tpu.dot_dimension_numbers<[1], [0], [0], [1], [0, 0, 1, 1], [], []>} : vector<60x64xbf16>, vector<64x240xbf16>, vector<60x240xf32> -> vector<60x240xf32>
    %21 = arith.addf %16, %20 : vector<60x240xf32>
    %22 = vector.extract_strided_slice %12 {offsets = [2, 0], sizes = [60, 64], strides = [1, 1]} : vector<64x64xbf16> to vector<60x64xbf16>
    %c0_19 = arith.constant 0 : index
    %c2 = arith.constant 2 : index
    %c0_20 = arith.constant 0 : index
    %c0_21 = arith.constant 0 : index
    %23 = vector.load %arg5[%c0_19, %c2, %c0_20, %c0_21] : memref<1x5x64x240xbf16, #tpu.memory_space<vmem>>, vector<1x1x64x240xbf16>
    %24 = vector.shape_cast %23 : vector<1x1x64x240xbf16> to vector<64x240xbf16>
    %cst_22 = arith.constant dense<0.000000e+00> : vector<60x240xf32>
    %25 = tpu.matmul %22, %24, %cst_22 {dimension_numbers = #tpu.dot_dimension_numbers<[1], [0], [0], [1], [0, 0, 1, 1], [], []>} : vector<60x64xbf16>, vector<64x240xbf16>, vector<60x240xf32> -> vector<60x240xf32>
    %26 = arith.addf %21, %25 : vector<60x240xf32>
    %27 = vector.extract_strided_slice %12 {offsets = [3, 0], sizes = [60, 64], strides = [1, 1]} : vector<64x64xbf16> to vector<60x64xbf16>
    %c0_23 = arith.constant 0 : index
    %c3 = arith.constant 3 : index
    %c0_24 = arith.constant 0 : index
    %c0_25 = arith.constant 0 : index
    %28 = vector.load %arg5[%c0_23, %c3, %c0_24, %c0_25] : memref<1x5x64x240xbf16, #tpu.memory_space<vmem>>, vector<1x1x64x240xbf16>
    %29 = vector.shape_cast %28 : vector<1x1x64x240xbf16> to vector<64x240xbf16>
    %cst_26 = arith.constant dense<0.000000e+00> : vector<60x240xf32>
    %30 = tpu.matmul %27, %29, %cst_26 {dimension_numbers = #tpu.dot_dimension_numbers<[1], [0], [0], [1], [0, 0, 1, 1], [], []>} : vector<60x64xbf16>, vector<64x240xbf16>, vector<60x240xf32> -> vector<60x240xf32>
    %31 = arith.addf %26, %30 : vector<60x240xf32>
    %32 = vector.extract_strided_slice %12 {offsets = [4, 0], sizes = [60, 64], strides = [1, 1]} : vector<64x64xbf16> to vector<60x64xbf16>
    %c0_27 = arith.constant 0 : index
    %c4 = arith.constant 4 : index
    %c0_28 = arith.constant 0 : index
    %c0_29 = arith.constant 0 : index
    %33 = vector.load %arg5[%c0_27, %c4, %c0_28, %c0_29] : memref<1x5x64x240xbf16, #tpu.memory_space<vmem>>, vector<1x1x64x240xbf16>
    %34 = vector.shape_cast %33 : vector<1x1x64x240xbf16> to vector<64x240xbf16>
    %cst_30 = arith.constant dense<0.000000e+00> : vector<60x240xf32>
    %35 = tpu.matmul %32, %34, %cst_30 {dimension_numbers = #tpu.dot_dimension_numbers<[1], [0], [0], [1], [0, 0, 1, 1], [], []>} : vector<60x64xbf16>, vector<64x240xbf16>, vector<60x240xf32> -> vector<60x240xf32>
    %36 = arith.addf %31, %35 : vector<60x240xf32>
    %c0_31 = arith.constant 0 : index
    %c0_32 = arith.constant 0 : index
    %c0_33 = arith.constant 0 : index
    %37 = vector.load %arg6[%c0_31, %c0_32, %c0_33] : memref<1x1x240xf32, #tpu.memory_space<vmem>>, vector<1x1x240xf32>
    %38 = vector.shape_cast %37 : vector<1x1x240xf32> to vector<1x240xf32>
    %39 = vector.broadcast %38 : vector<1x240xf32> to vector<60x240xf32>
    %40 = arith.addf %36, %39 : vector<60x240xf32>
    %c0_34 = arith.constant 0 : index
    %c0_35 = arith.constant 0 : index
    %41 = vector.load %arg17[%c0_34, %c0_35] : memref<30x60xf32, #tpu.memory_space<vmem>>, vector<30x60xf32>
    %cst_36 = arith.constant dense<0.000000e+00> : vector<30x240xf32>
    %42 = tpu.matmul %41, %40, %cst_36 {dimension_numbers = #tpu.dot_dimension_numbers<[1], [0], [0], [1], [0, 0, 1, 1], [], []>} : vector<30x60xf32>, vector<60x240xf32>, vector<30x240xf32> -> vector<30x240xf32>
    %cst_37 = arith.constant 0.000000e+00 : f32
    %43 = vector.broadcast %cst_37 : f32 to vector<30x240xf32>
    %44 = arith.cmpf ogt, %42, %43 : vector<30x240xf32>
    %cst_38 = arith.constant 0.000000e+00 : f32
    %45 = vector.broadcast %cst_38 : f32 to vector<30x240xf32>
    %46 = arith.minimumf %42, %45 : vector<30x240xf32>
    %47 = math.exp %46 : vector<30x240xf32>
    %cst_39 = arith.constant 1.000000e+00 : f32
    %48 = vector.broadcast %cst_39 : f32 to vector<30x240xf32>
    %49 = arith.subf %47, %48 : vector<30x240xf32>
    %50 = arith.select %44, %42, %49 : vector<30x240xi1>, vector<30x240xf32>
    %51 = arith.truncf %50 : vector<30x240xf32> to vector<30x240xbf16>
    %52 = vector.extract_strided_slice %51 {offsets = [0, 0], sizes = [26, 240], strides = [1, 1]} : vector<30x240xbf16> to vector<26x240xbf16>
    %c0_40 = arith.constant 0 : index
    %c0_41 = arith.constant 0 : index
    %c0_42 = arith.constant 0 : index
    %c0_43 = arith.constant 0 : index
    %53 = vector.load %arg7[%c0_40, %c0_41, %c0_42, %c0_43] : memref<1x5x240x208xbf16, #tpu.memory_space<vmem>>, vector<1x1x240x208xbf16>
    %54 = vector.shape_cast %53 : vector<1x1x240x208xbf16> to vector<240x208xbf16>
    %cst_44 = arith.constant dense<0.000000e+00> : vector<26x208xf32>
    %55 = tpu.matmul %52, %54, %cst_44 {dimension_numbers = #tpu.dot_dimension_numbers<[1], [0], [0], [1], [0, 0, 1, 1], [], []>} : vector<26x240xbf16>, vector<240x208xbf16>, vector<26x208xf32> -> vector<26x208xf32>
    %56 = vector.extract_strided_slice %51 {offsets = [1, 0], sizes = [26, 240], strides = [1, 1]} : vector<30x240xbf16> to vector<26x240xbf16>
    %c0_45 = arith.constant 0 : index
    %c1_46 = arith.constant 1 : index
    %c0_47 = arith.constant 0 : index
    %c0_48 = arith.constant 0 : index
    %57 = vector.load %arg7[%c0_45, %c1_46, %c0_47, %c0_48] : memref<1x5x240x208xbf16, #tpu.memory_space<vmem>>, vector<1x1x240x208xbf16>
    %58 = vector.shape_cast %57 : vector<1x1x240x208xbf16> to vector<240x208xbf16>
    %cst_49 = arith.constant dense<0.000000e+00> : vector<26x208xf32>
    %59 = tpu.matmul %56, %58, %cst_49 {dimension_numbers = #tpu.dot_dimension_numbers<[1], [0], [0], [1], [0, 0, 1, 1], [], []>} : vector<26x240xbf16>, vector<240x208xbf16>, vector<26x208xf32> -> vector<26x208xf32>
    %60 = arith.addf %55, %59 : vector<26x208xf32>
    %61 = vector.extract_strided_slice %51 {offsets = [2, 0], sizes = [26, 240], strides = [1, 1]} : vector<30x240xbf16> to vector<26x240xbf16>
    %c0_50 = arith.constant 0 : index
    %c2_51 = arith.constant 2 : index
    %c0_52 = arith.constant 0 : index
    %c0_53 = arith.constant 0 : index
    %62 = vector.load %arg7[%c0_50, %c2_51, %c0_52, %c0_53] : memref<1x5x240x208xbf16, #tpu.memory_space<vmem>>, vector<1x1x240x208xbf16>
    %63 = vector.shape_cast %62 : vector<1x1x240x208xbf16> to vector<240x208xbf16>
    %cst_54 = arith.constant dense<0.000000e+00> : vector<26x208xf32>
    %64 = tpu.matmul %61, %63, %cst_54 {dimension_numbers = #tpu.dot_dimension_numbers<[1], [0], [0], [1], [0, 0, 1, 1], [], []>} : vector<26x240xbf16>, vector<240x208xbf16>, vector<26x208xf32> -> vector<26x208xf32>
    %65 = arith.addf %60, %64 : vector<26x208xf32>
    %66 = vector.extract_strided_slice %51 {offsets = [3, 0], sizes = [26, 240], strides = [1, 1]} : vector<30x240xbf16> to vector<26x240xbf16>
    %c0_55 = arith.constant 0 : index
    %c3_56 = arith.constant 3 : index
    %c0_57 = arith.constant 0 : index
    %c0_58 = arith.constant 0 : index
    %67 = vector.load %arg7[%c0_55, %c3_56, %c0_57, %c0_58] : memref<1x5x240x208xbf16, #tpu.memory_space<vmem>>, vector<1x1x240x208xbf16>
    %68 = vector.shape_cast %67 : vector<1x1x240x208xbf16> to vector<240x208xbf16>
    %cst_59 = arith.constant dense<0.000000e+00> : vector<26x208xf32>
    %69 = tpu.matmul %66, %68, %cst_59 {dimension_numbers = #tpu.dot_dimension_numbers<[1], [0], [0], [1], [0, 0, 1, 1], [], []>} : vector<26x240xbf16>, vector<240x208xbf16>, vector<26x208xf32> -> vector<26x208xf32>
    %70 = arith.addf %65, %69 : vector<26x208xf32>
    %71 = vector.extract_strided_slice %51 {offsets = [4, 0], sizes = [26, 240], strides = [1, 1]} : vector<30x240xbf16> to vector<26x240xbf16>
    %c0_60 = arith.constant 0 : index
    %c4_61 = arith.constant 4 : index
    %c0_62 = arith.constant 0 : index
    %c0_63 = arith.constant 0 : index
    %72 = vector.load %arg7[%c0_60, %c4_61, %c0_62, %c0_63] : memref<1x5x240x208xbf16, #tpu.memory_space<vmem>>, vector<1x1x240x208xbf16>
    %73 = vector.shape_cast %72 : vector<1x1x240x208xbf16> to vector<240x208xbf16>
    %cst_64 = arith.constant dense<0.000000e+00> : vector<26x208xf32>
    %74 = tpu.matmul %71, %73, %cst_64 {dimension_numbers = #tpu.dot_dimension_numbers<[1], [0], [0], [1], [0, 0, 1, 1], [], []>} : vector<26x240xbf16>, vector<240x208xbf16>, vector<26x208xf32> -> vector<26x208xf32>
    %75 = arith.addf %70, %74 : vector<26x208xf32>
    %c0_65 = arith.constant 0 : index
    %c0_66 = arith.constant 0 : index
    %c0_67 = arith.constant 0 : index
    %76 = vector.load %arg8[%c0_65, %c0_66, %c0_67] : memref<1x1x208xf32, #tpu.memory_space<vmem>>, vector<1x1x208xf32>
    %77 = vector.shape_cast %76 : vector<1x1x208xf32> to vector<1x208xf32>
    %78 = vector.broadcast %77 : vector<1x208xf32> to vector<26x208xf32>
    %79 = arith.addf %75, %78 : vector<26x208xf32>
    %cst_68 = arith.constant 0.000000e+00 : f32
    %80 = vector.broadcast %cst_68 : f32 to vector<26x208xf32>
    %81 = arith.cmpf ogt, %79, %80 : vector<26x208xf32>
    %cst_69 = arith.constant 0.000000e+00 : f32
    %82 = vector.broadcast %cst_69 : f32 to vector<26x208xf32>
    %83 = arith.minimumf %79, %82 : vector<26x208xf32>
    %84 = math.exp %83 : vector<26x208xf32>
    %cst_70 = arith.constant 1.000000e+00 : f32
    %85 = vector.broadcast %cst_70 : f32 to vector<26x208xf32>
    %86 = arith.subf %84, %85 : vector<26x208xf32>
    %87 = arith.select %81, %79, %86 : vector<26x208xi1>, vector<26x208xf32>
    %88 = arith.truncf %87 : vector<26x208xf32> to vector<26x208xbf16>
    %89 = vector.extract_strided_slice %88 {offsets = [0, 0], sizes = [22, 208], strides = [1, 1]} : vector<26x208xbf16> to vector<22x208xbf16>
    %c0_71 = arith.constant 0 : index
    %c0_72 = arith.constant 0 : index
    %c0_73 = arith.constant 0 : index
    %c0_74 = arith.constant 0 : index
    %90 = vector.load %arg9[%c0_71, %c0_72, %c0_73, %c0_74] : memref<1x5x208x176xbf16, #tpu.memory_space<vmem>>, vector<1x1x208x176xbf16>
    %91 = vector.shape_cast %90 : vector<1x1x208x176xbf16> to vector<208x176xbf16>
    %cst_75 = arith.constant dense<0.000000e+00> : vector<22x176xf32>
    %92 = tpu.matmul %89, %91, %cst_75 {dimension_numbers = #tpu.dot_dimension_numbers<[1], [0], [0], [1], [0, 0, 1, 1], [], []>} : vector<22x208xbf16>, vector<208x176xbf16>, vector<22x176xf32> -> vector<22x176xf32>
    %93 = vector.extract_strided_slice %88 {offsets = [1, 0], sizes = [22, 208], strides = [1, 1]} : vector<26x208xbf16> to vector<22x208xbf16>
    %c0_76 = arith.constant 0 : index
    %c1_77 = arith.constant 1 : index
    %c0_78 = arith.constant 0 : index
    %c0_79 = arith.constant 0 : index
    %94 = vector.load %arg9[%c0_76, %c1_77, %c0_78, %c0_79] : memref<1x5x208x176xbf16, #tpu.memory_space<vmem>>, vector<1x1x208x176xbf16>
    %95 = vector.shape_cast %94 : vector<1x1x208x176xbf16> to vector<208x176xbf16>
    %cst_80 = arith.constant dense<0.000000e+00> : vector<22x176xf32>
    %96 = tpu.matmul %93, %95, %cst_80 {dimension_numbers = #tpu.dot_dimension_numbers<[1], [0], [0], [1], [0, 0, 1, 1], [], []>} : vector<22x208xbf16>, vector<208x176xbf16>, vector<22x176xf32> -> vector<22x176xf32>
    %97 = arith.addf %92, %96 : vector<22x176xf32>
    %98 = vector.extract_strided_slice %88 {offsets = [2, 0], sizes = [22, 208], strides = [1, 1]} : vector<26x208xbf16> to vector<22x208xbf16>
    %c0_81 = arith.constant 0 : index
    %c2_82 = arith.constant 2 : index
    %c0_83 = arith.constant 0 : index
    %c0_84 = arith.constant 0 : index
    %99 = vector.load %arg9[%c0_81, %c2_82, %c0_83, %c0_84] : memref<1x5x208x176xbf16, #tpu.memory_space<vmem>>, vector<1x1x208x176xbf16>
    %100 = vector.shape_cast %99 : vector<1x1x208x176xbf16> to vector<208x176xbf16>
    %cst_85 = arith.constant dense<0.000000e+00> : vector<22x176xf32>
    %101 = tpu.matmul %98, %100, %cst_85 {dimension_numbers = #tpu.dot_dimension_numbers<[1], [0], [0], [1], [0, 0, 1, 1], [], []>} : vector<22x208xbf16>, vector<208x176xbf16>, vector<22x176xf32> -> vector<22x176xf32>
    %102 = arith.addf %97, %101 : vector<22x176xf32>
    %103 = vector.extract_strided_slice %88 {offsets = [3, 0], sizes = [22, 208], strides = [1, 1]} : vector<26x208xbf16> to vector<22x208xbf16>
    %c0_86 = arith.constant 0 : index
    %c3_87 = arith.constant 3 : index
    %c0_88 = arith.constant 0 : index
    %c0_89 = arith.constant 0 : index
    %104 = vector.load %arg9[%c0_86, %c3_87, %c0_88, %c0_89] : memref<1x5x208x176xbf16, #tpu.memory_space<vmem>>, vector<1x1x208x176xbf16>
    %105 = vector.shape_cast %104 : vector<1x1x208x176xbf16> to vector<208x176xbf16>
    %cst_90 = arith.constant dense<0.000000e+00> : vector<22x176xf32>
    %106 = tpu.matmul %103, %105, %cst_90 {dimension_numbers = #tpu.dot_dimension_numbers<[1], [0], [0], [1], [0, 0, 1, 1], [], []>} : vector<22x208xbf16>, vector<208x176xbf16>, vector<22x176xf32> -> vector<22x176xf32>
    %107 = arith.addf %102, %106 : vector<22x176xf32>
    %108 = vector.extract_strided_slice %88 {offsets = [4, 0], sizes = [22, 208], strides = [1, 1]} : vector<26x208xbf16> to vector<22x208xbf16>
    %c0_91 = arith.constant 0 : index
    %c4_92 = arith.constant 4 : index
    %c0_93 = arith.constant 0 : index
    %c0_94 = arith.constant 0 : index
    %109 = vector.load %arg9[%c0_91, %c4_92, %c0_93, %c0_94] : memref<1x5x208x176xbf16, #tpu.memory_space<vmem>>, vector<1x1x208x176xbf16>
    %110 = vector.shape_cast %109 : vector<1x1x208x176xbf16> to vector<208x176xbf16>
    %cst_95 = arith.constant dense<0.000000e+00> : vector<22x176xf32>
    %111 = tpu.matmul %108, %110, %cst_95 {dimension_numbers = #tpu.dot_dimension_numbers<[1], [0], [0], [1], [0, 0, 1, 1], [], []>} : vector<22x208xbf16>, vector<208x176xbf16>, vector<22x176xf32> -> vector<22x176xf32>
    %112 = arith.addf %107, %111 : vector<22x176xf32>
    %c0_96 = arith.constant 0 : index
    %c0_97 = arith.constant 0 : index
    %c0_98 = arith.constant 0 : index
    %113 = vector.load %arg10[%c0_96, %c0_97, %c0_98] : memref<1x1x176xf32, #tpu.memory_space<vmem>>, vector<1x1x176xf32>
    %114 = vector.shape_cast %113 : vector<1x1x176xf32> to vector<1x176xf32>
    %115 = vector.broadcast %114 : vector<1x176xf32> to vector<22x176xf32>
    %116 = arith.addf %112, %115 : vector<22x176xf32>
    %cst_99 = arith.constant 0.000000e+00 : f32
    %117 = vector.broadcast %cst_99 : f32 to vector<22x176xf32>
    %118 = arith.cmpf ogt, %116, %117 : vector<22x176xf32>
    %cst_100 = arith.constant 0.000000e+00 : f32
    %119 = vector.broadcast %cst_100 : f32 to vector<22x176xf32>
    %120 = arith.minimumf %116, %119 : vector<22x176xf32>
    %121 = math.exp %120 : vector<22x176xf32>
    %cst_101 = arith.constant 1.000000e+00 : f32
    %122 = vector.broadcast %cst_101 : f32 to vector<22x176xf32>
    %123 = arith.subf %121, %122 : vector<22x176xf32>
    %124 = arith.select %118, %116, %123 : vector<22x176xi1>, vector<22x176xf32>
    %125 = arith.truncf %124 : vector<22x176xf32> to vector<22x176xbf16>
    %126 = vector.extract_strided_slice %125 {offsets = [0, 0], sizes = [18, 176], strides = [1, 1]} : vector<22x176xbf16> to vector<18x176xbf16>
    %c0_102 = arith.constant 0 : index
    %c0_103 = arith.constant 0 : index
    %c0_104 = arith.constant 0 : index
    %c0_105 = arith.constant 0 : index
    %127 = vector.load %arg11[%c0_102, %c0_103, %c0_104, %c0_105] : memref<1x5x176x72xbf16, #tpu.memory_space<vmem>>, vector<1x1x176x72xbf16>
    %128 = vector.shape_cast %127 : vector<1x1x176x72xbf16> to vector<176x72xbf16>
    %cst_106 = arith.constant dense<0.000000e+00> : vector<18x72xf32>
    %129 = tpu.matmul %126, %128, %cst_106 {dimension_numbers = #tpu.dot_dimension_numbers<[1], [0], [0], [1], [0, 0, 1, 1], [], []>} : vector<18x176xbf16>, vector<176x72xbf16>, vector<18x72xf32> -> vector<18x72xf32>
    %130 = vector.extract_strided_slice %125 {offsets = [1, 0], sizes = [18, 176], strides = [1, 1]} : vector<22x176xbf16> to vector<18x176xbf16>
    %c0_107 = arith.constant 0 : index
    %c1_108 = arith.constant 1 : index
    %c0_109 = arith.constant 0 : index
    %c0_110 = arith.constant 0 : index
    %131 = vector.load %arg11[%c0_107, %c1_108, %c0_109, %c0_110] : memref<1x5x176x72xbf16, #tpu.memory_space<vmem>>, vector<1x1x176x72xbf16>
    %132 = vector.shape_cast %131 : vector<1x1x176x72xbf16> to vector<176x72xbf16>
    %cst_111 = arith.constant dense<0.000000e+00> : vector<18x72xf32>
    %133 = tpu.matmul %130, %132, %cst_111 {dimension_numbers = #tpu.dot_dimension_numbers<[1], [0], [0], [1], [0, 0, 1, 1], [], []>} : vector<18x176xbf16>, vector<176x72xbf16>, vector<18x72xf32> -> vector<18x72xf32>
    %134 = arith.addf %129, %133 : vector<18x72xf32>
    %135 = vector.extract_strided_slice %125 {offsets = [2, 0], sizes = [18, 176], strides = [1, 1]} : vector<22x176xbf16> to vector<18x176xbf16>
    %c0_112 = arith.constant 0 : index
    %c2_113 = arith.constant 2 : index
    %c0_114 = arith.constant 0 : index
    %c0_115 = arith.constant 0 : index
    %136 = vector.load %arg11[%c0_112, %c2_113, %c0_114, %c0_115] : memref<1x5x176x72xbf16, #tpu.memory_space<vmem>>, vector<1x1x176x72xbf16>
    %137 = vector.shape_cast %136 : vector<1x1x176x72xbf16> to vector<176x72xbf16>
    %cst_116 = arith.constant dense<0.000000e+00> : vector<18x72xf32>
    %138 = tpu.matmul %135, %137, %cst_116 {dimension_numbers = #tpu.dot_dimension_numbers<[1], [0], [0], [1], [0, 0, 1, 1], [], []>} : vector<18x176xbf16>, vector<176x72xbf16>, vector<18x72xf32> -> vector<18x72xf32>
    %139 = arith.addf %134, %138 : vector<18x72xf32>
    %140 = vector.extract_strided_slice %125 {offsets = [3, 0], sizes = [18, 176], strides = [1, 1]} : vector<22x176xbf16> to vector<18x176xbf16>
    %c0_117 = arith.constant 0 : index
    %c3_118 = arith.constant 3 : index
    %c0_119 = arith.constant 0 : index
    %c0_120 = arith.constant 0 : index
    %141 = vector.load %arg11[%c0_117, %c3_118, %c0_119, %c0_120] : memref<1x5x176x72xbf16, #tpu.memory_space<vmem>>, vector<1x1x176x72xbf16>
    %142 = vector.shape_cast %141 : vector<1x1x176x72xbf16> to vector<176x72xbf16>
    %cst_121 = arith.constant dense<0.000000e+00> : vector<18x72xf32>
    %143 = tpu.matmul %140, %142, %cst_121 {dimension_numbers = #tpu.dot_dimension_numbers<[1], [0], [0], [1], [0, 0, 1, 1], [], []>} : vector<18x176xbf16>, vector<176x72xbf16>, vector<18x72xf32> -> vector<18x72xf32>
    %144 = arith.addf %139, %143 : vector<18x72xf32>
    %145 = vector.extract_strided_slice %125 {offsets = [4, 0], sizes = [18, 176], strides = [1, 1]} : vector<22x176xbf16> to vector<18x176xbf16>
    %c0_122 = arith.constant 0 : index
    %c4_123 = arith.constant 4 : index
    %c0_124 = arith.constant 0 : index
    %c0_125 = arith.constant 0 : index
    %146 = vector.load %arg11[%c0_122, %c4_123, %c0_124, %c0_125] : memref<1x5x176x72xbf16, #tpu.memory_space<vmem>>, vector<1x1x176x72xbf16>
    %147 = vector.shape_cast %146 : vector<1x1x176x72xbf16> to vector<176x72xbf16>
    %cst_126 = arith.constant dense<0.000000e+00> : vector<18x72xf32>
    %148 = tpu.matmul %145, %147, %cst_126 {dimension_numbers = #tpu.dot_dimension_numbers<[1], [0], [0], [1], [0, 0, 1, 1], [], []>} : vector<18x176xbf16>, vector<176x72xbf16>, vector<18x72xf32> -> vector<18x72xf32>
    %149 = arith.addf %144, %148 : vector<18x72xf32>
    %c0_127 = arith.constant 0 : index
    %c0_128 = arith.constant 0 : index
    %c0_129 = arith.constant 0 : index
    %150 = vector.load %arg12[%c0_127, %c0_128, %c0_129] : memref<1x1x72xf32, #tpu.memory_space<vmem>>, vector<1x1x72xf32>
    %151 = vector.shape_cast %150 : vector<1x1x72xf32> to vector<1x72xf32>
    %152 = vector.broadcast %151 : vector<1x72xf32> to vector<18x72xf32>
    %153 = arith.addf %149, %152 : vector<18x72xf32>
    %c0_130 = arith.constant 0 : index
    %c0_131 = arith.constant 0 : index
    %154 = vector.load %arg18[%c0_130, %c0_131] : memref<9x18xf32, #tpu.memory_space<vmem>>, vector<9x18xf32>
    %cst_132 = arith.constant dense<0.000000e+00> : vector<9x72xf32>
    %155 = tpu.matmul %154, %153, %cst_132 {dimension_numbers = #tpu.dot_dimension_numbers<[1], [0], [0], [1], [0, 0, 1, 1], [], []>} : vector<9x18xf32>, vector<18x72xf32>, vector<9x72xf32> -> vector<9x72xf32>
    %cst_133 = arith.constant 0.000000e+00 : f32
    %156 = vector.broadcast %cst_133 : f32 to vector<9x72xf32>
    %157 = arith.cmpf ogt, %155, %156 : vector<9x72xf32>
    %cst_134 = arith.constant 0.000000e+00 : f32
    %158 = vector.broadcast %cst_134 : f32 to vector<9x72xf32>
    %159 = arith.minimumf %155, %158 : vector<9x72xf32>
    %160 = math.exp %159 : vector<9x72xf32>
    %cst_135 = arith.constant 1.000000e+00 : f32
    %161 = vector.broadcast %cst_135 : f32 to vector<9x72xf32>
    %162 = arith.subf %160, %161 : vector<9x72xf32>
    %163 = arith.select %157, %155, %162 : vector<9x72xi1>, vector<9x72xf32>
    %164 = arith.truncf %163 : vector<9x72xf32> to vector<9x72xbf16>
    %165 = vector.extract_strided_slice %164 {offsets = [0, 0], sizes = [5, 72], strides = [1, 1]} : vector<9x72xbf16> to vector<5x72xbf16>
    %c0_136 = arith.constant 0 : index
    %c0_137 = arith.constant 0 : index
    %c0_138 = arith.constant 0 : index
    %c0_139 = arith.constant 0 : index
    %166 = vector.load %arg13[%c0_136, %c0_137, %c0_138, %c0_139] : memref<1x5x72x40xbf16, #tpu.memory_space<vmem>>, vector<1x1x72x40xbf16>
    %167 = vector.shape_cast %166 : vector<1x1x72x40xbf16> to vector<72x40xbf16>
    %cst_140 = arith.constant dense<0.000000e+00> : vector<5x40xf32>
    %168 = tpu.matmul %165, %167, %cst_140 {dimension_numbers = #tpu.dot_dimension_numbers<[1], [0], [0], [1], [0, 0, 1, 1], [], []>} : vector<5x72xbf16>, vector<72x40xbf16>, vector<5x40xf32> -> vector<5x40xf32>
    %169 = vector.extract_strided_slice %164 {offsets = [1, 0], sizes = [5, 72], strides = [1, 1]} : vector<9x72xbf16> to vector<5x72xbf16>
    %c0_141 = arith.constant 0 : index
    %c1_142 = arith.constant 1 : index
    %c0_143 = arith.constant 0 : index
    %c0_144 = arith.constant 0 : index
    %170 = vector.load %arg13[%c0_141, %c1_142, %c0_143, %c0_144] : memref<1x5x72x40xbf16, #tpu.memory_space<vmem>>, vector<1x1x72x40xbf16>
    %171 = vector.shape_cast %170 : vector<1x1x72x40xbf16> to vector<72x40xbf16>
    %cst_145 = arith.constant dense<0.000000e+00> : vector<5x40xf32>
    %172 = tpu.matmul %169, %171, %cst_145 {dimension_numbers = #tpu.dot_dimension_numbers<[1], [0], [0], [1], [0, 0, 1, 1], [], []>} : vector<5x72xbf16>, vector<72x40xbf16>, vector<5x40xf32> -> vector<5x40xf32>
    %173 = arith.addf %168, %172 : vector<5x40xf32>
    %174 = vector.extract_strided_slice %164 {offsets = [2, 0], sizes = [5, 72], strides = [1, 1]} : vector<9x72xbf16> to vector<5x72xbf16>
    %c0_146 = arith.constant 0 : index
    %c2_147 = arith.constant 2 : index
    %c0_148 = arith.constant 0 : index
    %c0_149 = arith.constant 0 : index
    %175 = vector.load %arg13[%c0_146, %c2_147, %c0_148, %c0_149] : memref<1x5x72x40xbf16, #tpu.memory_space<vmem>>, vector<1x1x72x40xbf16>
    %176 = vector.shape_cast %175 : vector<1x1x72x40xbf16> to vector<72x40xbf16>
    %cst_150 = arith.constant dense<0.000000e+00> : vector<5x40xf32>
    %177 = tpu.matmul %174, %176, %cst_150 {dimension_numbers = #tpu.dot_dimension_numbers<[1], [0], [0], [1], [0, 0, 1, 1], [], []>} : vector<5x72xbf16>, vector<72x40xbf16>, vector<5x40xf32> -> vector<5x40xf32>
    %178 = arith.addf %173, %177 : vector<5x40xf32>
    %179 = vector.extract_strided_slice %164 {offsets = [3, 0], sizes = [5, 72], strides = [1, 1]} : vector<9x72xbf16> to vector<5x72xbf16>
    %c0_151 = arith.constant 0 : index
    %c3_152 = arith.constant 3 : index
    %c0_153 = arith.constant 0 : index
    %c0_154 = arith.constant 0 : index
    %180 = vector.load %arg13[%c0_151, %c3_152, %c0_153, %c0_154] : memref<1x5x72x40xbf16, #tpu.memory_space<vmem>>, vector<1x1x72x40xbf16>
    %181 = vector.shape_cast %180 : vector<1x1x72x40xbf16> to vector<72x40xbf16>
    %cst_155 = arith.constant dense<0.000000e+00> : vector<5x40xf32>
    %182 = tpu.matmul %179, %181, %cst_155 {dimension_numbers = #tpu.dot_dimension_numbers<[1], [0], [0], [1], [0, 0, 1, 1], [], []>} : vector<5x72xbf16>, vector<72x40xbf16>, vector<5x40xf32> -> vector<5x40xf32>
    %183 = arith.addf %178, %182 : vector<5x40xf32>
    %184 = vector.extract_strided_slice %164 {offsets = [4, 0], sizes = [5, 72], strides = [1, 1]} : vector<9x72xbf16> to vector<5x72xbf16>
    %c0_156 = arith.constant 0 : index
    %c4_157 = arith.constant 4 : index
    %c0_158 = arith.constant 0 : index
    %c0_159 = arith.constant 0 : index
    %185 = vector.load %arg13[%c0_156, %c4_157, %c0_158, %c0_159] : memref<1x5x72x40xbf16, #tpu.memory_space<vmem>>, vector<1x1x72x40xbf16>
    %186 = vector.shape_cast %185 : vector<1x1x72x40xbf16> to vector<72x40xbf16>
    %cst_160 = arith.constant dense<0.000000e+00> : vector<5x40xf32>
    %187 = tpu.matmul %184, %186, %cst_160 {dimension_numbers = #tpu.dot_dimension_numbers<[1], [0], [0], [1], [0, 0, 1, 1], [], []>} : vector<5x72xbf16>, vector<72x40xbf16>, vector<5x40xf32> -> vector<5x40xf32>
    %188 = arith.addf %183, %187 : vector<5x40xf32>
    %c0_161 = arith.constant 0 : index
    %c0_162 = arith.constant 0 : index
    %c0_163 = arith.constant 0 : index
    %189 = vector.load %arg14[%c0_161, %c0_162, %c0_163] : memref<1x1x40xf32, #tpu.memory_space<vmem>>, vector<1x1x40xf32>
    %190 = vector.shape_cast %189 : vector<1x1x40xf32> to vector<1x40xf32>
    %191 = vector.broadcast %190 : vector<1x40xf32> to vector<5x40xf32>
    %192 = arith.addf %188, %191 : vector<5x40xf32>
    %cst_164 = arith.constant 0.000000e+00 : f32
    %193 = vector.broadcast %cst_164 : f32 to vector<5x40xf32>
    %194 = arith.cmpf ogt, %192, %193 : vector<5x40xf32>
    %cst_165 = arith.constant 0.000000e+00 : f32
    %195 = vector.broadcast %cst_165 : f32 to vector<5x40xf32>
    %196 = arith.minimumf %192, %195 : vector<5x40xf32>
    %197 = math.exp %196 : vector<5x40xf32>
    %cst_166 = arith.constant 1.000000e+00 : f32
    %198 = vector.broadcast %cst_166 : f32 to vector<5x40xf32>
    %199 = arith.subf %197, %198 : vector<5x40xf32>
    %200 = arith.select %194, %192, %199 : vector<5x40xi1>, vector<5x40xf32>
    %201 = arith.truncf %200 : vector<5x40xf32> to vector<5x40xbf16>
    %202 = vector.extract_strided_slice %201 {offsets = [0, 0], sizes = [1, 40], strides = [1, 1]} : vector<5x40xbf16> to vector<1x40xbf16>
    %c0_167 = arith.constant 0 : index
    %c0_168 = arith.constant 0 : index
    %c0_169 = arith.constant 0 : index
    %c0_170 = arith.constant 0 : index
    %203 = vector.load %arg15[%c0_167, %c0_168, %c0_169, %c0_170] : memref<1x5x40x8xbf16, #tpu.memory_space<vmem>>, vector<1x1x40x8xbf16>
    %204 = vector.shape_cast %203 : vector<1x1x40x8xbf16> to vector<40x8xbf16>
    %cst_171 = arith.constant dense<0.000000e+00> : vector<1x8xf32>
    %205 = tpu.matmul %202, %204, %cst_171 {dimension_numbers = #tpu.dot_dimension_numbers<[1], [0], [0], [1], [0, 0, 1, 1], [], []>} : vector<1x40xbf16>, vector<40x8xbf16>, vector<1x8xf32> -> vector<1x8xf32>
    %206 = vector.extract_strided_slice %201 {offsets = [1, 0], sizes = [1, 40], strides = [1, 1]} : vector<5x40xbf16> to vector<1x40xbf16>
    %c0_172 = arith.constant 0 : index
    %c1_173 = arith.constant 1 : index
    %c0_174 = arith.constant 0 : index
    %c0_175 = arith.constant 0 : index
    %207 = vector.load %arg15[%c0_172, %c1_173, %c0_174, %c0_175] : memref<1x5x40x8xbf16, #tpu.memory_space<vmem>>, vector<1x1x40x8xbf16>
    %208 = vector.shape_cast %207 : vector<1x1x40x8xbf16> to vector<40x8xbf16>
    %cst_176 = arith.constant dense<0.000000e+00> : vector<1x8xf32>
    %209 = tpu.matmul %206, %208, %cst_176 {dimension_numbers = #tpu.dot_dimension_numbers<[1], [0], [0], [1], [0, 0, 1, 1], [], []>} : vector<1x40xbf16>, vector<40x8xbf16>, vector<1x8xf32> -> vector<1x8xf32>
    %210 = arith.addf %205, %209 : vector<1x8xf32>
    %211 = vector.extract_strided_slice %201 {offsets = [2, 0], sizes = [1, 40], strides = [1, 1]} : vector<5x40xbf16> to vector<1x40xbf16>
    %c0_177 = arith.constant 0 : index
    %c2_178 = arith.constant 2 : index
    %c0_179 = arith.constant 0 : index
    %c0_180 = arith.constant 0 : index
    %212 = vector.load %arg15[%c0_177, %c2_178, %c0_179, %c0_180] : memref<1x5x40x8xbf16, #tpu.memory_space<vmem>>, vector<1x1x40x8xbf16>
    %213 = vector.shape_cast %212 : vector<1x1x40x8xbf16> to vector<40x8xbf16>
    %cst_181 = arith.constant dense<0.000000e+00> : vector<1x8xf32>
    %214 = tpu.matmul %211, %213, %cst_181 {dimension_numbers = #tpu.dot_dimension_numbers<[1], [0], [0], [1], [0, 0, 1, 1], [], []>} : vector<1x40xbf16>, vector<40x8xbf16>, vector<1x8xf32> -> vector<1x8xf32>
    %215 = arith.addf %210, %214 : vector<1x8xf32>
    %216 = vector.extract_strided_slice %201 {offsets = [3, 0], sizes = [1, 40], strides = [1, 1]} : vector<5x40xbf16> to vector<1x40xbf16>
    %c0_182 = arith.constant 0 : index
    %c3_183 = arith.constant 3 : index
    %c0_184 = arith.constant 0 : index
    %c0_185 = arith.constant 0 : index
    %217 = vector.load %arg15[%c0_182, %c3_183, %c0_184, %c0_185] : memref<1x5x40x8xbf16, #tpu.memory_space<vmem>>, vector<1x1x40x8xbf16>
    %218 = vector.shape_cast %217 : vector<1x1x40x8xbf16> to vector<40x8xbf16>
    %cst_186 = arith.constant dense<0.000000e+00> : vector<1x8xf32>
    %219 = tpu.matmul %216, %218, %cst_186 {dimension_numbers = #tpu.dot_dimension_numbers<[1], [0], [0], [1], [0, 0, 1, 1], [], []>} : vector<1x40xbf16>, vector<40x8xbf16>, vector<1x8xf32> -> vector<1x8xf32>
    %220 = arith.addf %215, %219 : vector<1x8xf32>
    %221 = vector.extract_strided_slice %201 {offsets = [4, 0], sizes = [1, 40], strides = [1, 1]} : vector<5x40xbf16> to vector<1x40xbf16>
    %c0_187 = arith.constant 0 : index
    %c4_188 = arith.constant 4 : index
    %c0_189 = arith.constant 0 : index
    %c0_190 = arith.constant 0 : index
    %222 = vector.load %arg15[%c0_187, %c4_188, %c0_189, %c0_190] : memref<1x5x40x8xbf16, #tpu.memory_space<vmem>>, vector<1x1x40x8xbf16>
    %223 = vector.shape_cast %222 : vector<1x1x40x8xbf16> to vector<40x8xbf16>
    %cst_191 = arith.constant dense<0.000000e+00> : vector<1x8xf32>
    %224 = tpu.matmul %221, %223, %cst_191 {dimension_numbers = #tpu.dot_dimension_numbers<[1], [0], [0], [1], [0, 0, 1, 1], [], []>} : vector<1x40xbf16>, vector<40x8xbf16>, vector<1x8xf32> -> vector<1x8xf32>
    %225 = arith.addf %220, %224 : vector<1x8xf32>
    %c0_192 = arith.constant 0 : index
    %c0_193 = arith.constant 0 : index
    %c0_194 = arith.constant 0 : index
    %226 = vector.load %arg16[%c0_192, %c0_193, %c0_194] : memref<1x1x8xf32, #tpu.memory_space<vmem>>, vector<1x1x8xf32>
    %227 = vector.shape_cast %226 : vector<1x1x8xf32> to vector<1x8xf32>
    %228 = arith.addf %225, %227 : vector<1x8xf32>
    %cst_195 = arith.constant dense<0.000000e+00> : vector<8xf32>
    %229 = vector.multi_reduction <add>, %228, %cst_195 [0] : vector<1x8xf32> to vector<8xf32>
    %230 = vector.shape_cast %229 : vector<8xf32> to vector<1x8xf32>
    %231 = arith.addf %0, %230 : vector<1x8xf32>
    %232 = arith.mulf %228, %228 : vector<1x8xf32>
    %cst_196 = arith.constant dense<0.000000e+00> : vector<8xf32>
    %233 = vector.multi_reduction <add>, %232, %cst_196 [0] : vector<1x8xf32> to vector<8xf32>
    %234 = vector.shape_cast %233 : vector<8xf32> to vector<1x8xf32>
    %235 = arith.addf %1, %234 : vector<1x8xf32>
    %c0_197 = arith.constant 0 : index
    %c1_198 = arith.constant 1 : index
    %c0_199 = arith.constant 0 : index
    %c0_200 = arith.constant 0 : index
    %236 = vector.load %arg2[%c0_197, %c1_198, %c0_199, %c0_200] : memref<1x2x64x64xf32, #tpu.memory_space<vmem>>, vector<1x1x64x64xf32>
    %237 = vector.shape_cast %236 : vector<1x1x64x64xf32> to vector<64x64xf32>
    %c0_201 = arith.constant 0 : index
    %c0_202 = arith.constant 0 : index
    %c0_203 = arith.constant 0 : index
    %238 = vector.load %arg3[%c0_201, %c0_202, %c0_203] : memref<1x1x64xf32, #tpu.memory_space<vmem>>, vector<1x1x64xf32>
    %239 = vector.shape_cast %238 : vector<1x1x64xf32> to vector<1x64xf32>
    %240 = vector.broadcast %239 : vector<1x64xf32> to vector<64x64xf32>
    %241 = arith.mulf %237, %240 : vector<64x64xf32>
    %c0_204 = arith.constant 0 : index
    %c0_205 = arith.constant 0 : index
    %c0_206 = arith.constant 0 : index
    %242 = vector.load %arg4[%c0_204, %c0_205, %c0_206] : memref<1x1x64xf32, #tpu.memory_space<vmem>>, vector<1x1x64xf32>
    %243 = vector.shape_cast %242 : vector<1x1x64xf32> to vector<1x64xf32>
    %244 = vector.broadcast %243 : vector<1x64xf32> to vector<64x64xf32>
    %245 = arith.addf %241, %244 : vector<64x64xf32>
    %246 = arith.truncf %245 : vector<64x64xf32> to vector<64x64xbf16>
    %247 = vector.extract_strided_slice %246 {offsets = [0, 0], sizes = [60, 64], strides = [1, 1]} : vector<64x64xbf16> to vector<60x64xbf16>
    %c0_207 = arith.constant 0 : index
    %c0_208 = arith.constant 0 : index
    %c0_209 = arith.constant 0 : index
    %c0_210 = arith.constant 0 : index
    %248 = vector.load %arg5[%c0_207, %c0_208, %c0_209, %c0_210] : memref<1x5x64x240xbf16, #tpu.memory_space<vmem>>, vector<1x1x64x240xbf16>
    %249 = vector.shape_cast %248 : vector<1x1x64x240xbf16> to vector<64x240xbf16>
    %cst_211 = arith.constant dense<0.000000e+00> : vector<60x240xf32>
    %250 = tpu.matmul %247, %249, %cst_211 {dimension_numbers = #tpu.dot_dimension_numbers<[1], [0], [0], [1], [0, 0, 1, 1], [], []>} : vector<60x64xbf16>, vector<64x240xbf16>, vector<60x240xf32> -> vector<60x240xf32>
    %251 = vector.extract_strided_slice %246 {offsets = [1, 0], sizes = [60, 64], strides = [1, 1]} : vector<64x64xbf16> to vector<60x64xbf16>
    %c0_212 = arith.constant 0 : index
    %c1_213 = arith.constant 1 : index
    %c0_214 = arith.constant 0 : index
    %c0_215 = arith.constant 0 : index
    %252 = vector.load %arg5[%c0_212, %c1_213, %c0_214, %c0_215] : memref<1x5x64x240xbf16, #tpu.memory_space<vmem>>, vector<1x1x64x240xbf16>
    %253 = vector.shape_cast %252 : vector<1x1x64x240xbf16> to vector<64x240xbf16>
    %cst_216 = arith.constant dense<0.000000e+00> : vector<60x240xf32>
    %254 = tpu.matmul %251, %253, %cst_216 {dimension_numbers = #tpu.dot_dimension_numbers<[1], [0], [0], [1], [0, 0, 1, 1], [], []>} : vector<60x64xbf16>, vector<64x240xbf16>, vector<60x240xf32> -> vector<60x240xf32>
    %255 = arith.addf %250, %254 : vector<60x240xf32>
    %256 = vector.extract_strided_slice %246 {offsets = [2, 0], sizes = [60, 64], strides = [1, 1]} : vector<64x64xbf16> to vector<60x64xbf16>
    %c0_217 = arith.constant 0 : index
    %c2_218 = arith.constant 2 : index
    %c0_219 = arith.constant 0 : index
    %c0_220 = arith.constant 0 : index
    %257 = vector.load %arg5[%c0_217, %c2_218, %c0_219, %c0_220] : memref<1x5x64x240xbf16, #tpu.memory_space<vmem>>, vector<1x1x64x240xbf16>
    %258 = vector.shape_cast %257 : vector<1x1x64x240xbf16> to vector<64x240xbf16>
    %cst_221 = arith.constant dense<0.000000e+00> : vector<60x240xf32>
    %259 = tpu.matmul %256, %258, %cst_221 {dimension_numbers = #tpu.dot_dimension_numbers<[1], [0], [0], [1], [0, 0, 1, 1], [], []>} : vector<60x64xbf16>, vector<64x240xbf16>, vector<60x240xf32> -> vector<60x240xf32>
    %260 = arith.addf %255, %259 : vector<60x240xf32>
    %261 = vector.extract_strided_slice %246 {offsets = [3, 0], sizes = [60, 64], strides = [1, 1]} : vector<64x64xbf16> to vector<60x64xbf16>
    %c0_222 = arith.constant 0 : index
    %c3_223 = arith.constant 3 : index
    %c0_224 = arith.constant 0 : index
    %c0_225 = arith.constant 0 : index
    %262 = vector.load %arg5[%c0_222, %c3_223, %c0_224, %c0_225] : memref<1x5x64x240xbf16, #tpu.memory_space<vmem>>, vector<1x1x64x240xbf16>
    %263 = vector.shape_cast %262 : vector<1x1x64x240xbf16> to vector<64x240xbf16>
    %cst_226 = arith.constant dense<0.000000e+00> : vector<60x240xf32>
    %264 = tpu.matmul %261, %263, %cst_226 {dimension_numbers = #tpu.dot_dimension_numbers<[1], [0], [0], [1], [0, 0, 1, 1], [], []>} : vector<60x64xbf16>, vector<64x240xbf16>, vector<60x240xf32> -> vector<60x240xf32>
    %265 = arith.addf %260, %264 : vector<60x240xf32>
    %266 = vector.extract_strided_slice %246 {offsets = [4, 0], sizes = [60, 64], strides = [1, 1]} : vector<64x64xbf16> to vector<60x64xbf16>
    %c0_227 = arith.constant 0 : index
    %c4_228 = arith.constant 4 : index
    %c0_229 = arith.constant 0 : index
    %c0_230 = arith.constant 0 : index
    %267 = vector.load %arg5[%c0_227, %c4_228, %c0_229, %c0_230] : memref<1x5x64x240xbf16, #tpu.memory_space<vmem>>, vector<1x1x64x240xbf16>
    %268 = vector.shape_cast %267 : vector<1x1x64x240xbf16> to vector<64x240xbf16>
    %cst_231 = arith.constant dense<0.000000e+00> : vector<60x240xf32>
    %269 = tpu.matmul %266, %268, %cst_231 {dimension_numbers = #tpu.dot_dimension_numbers<[1], [0], [0], [1], [0, 0, 1, 1], [], []>} : vector<60x64xbf16>, vector<64x240xbf16>, vector<60x240xf32> -> vector<60x240xf32>
    %270 = arith.addf %265, %269 : vector<60x240xf32>
    %c0_232 = arith.constant 0 : index
    %c0_233 = arith.constant 0 : index
    %c0_234 = arith.constant 0 : index
    %271 = vector.load %arg6[%c0_232, %c0_233, %c0_234] : memref<1x1x240xf32, #tpu.memory_space<vmem>>, vector<1x1x240xf32>
    %272 = vector.shape_cast %271 : vector<1x1x240xf32> to vector<1x240xf32>
    %273 = vector.broadcast %272 : vector<1x240xf32> to vector<60x240xf32>
    %274 = arith.addf %270, %273 : vector<60x240xf32>
    %c0_235 = arith.constant 0 : index
    %c0_236 = arith.constant 0 : index
    %275 = vector.load %arg17[%c0_235, %c0_236] : memref<30x60xf32, #tpu.memory_space<vmem>>, vector<30x60xf32>
    %cst_237 = arith.constant dense<0.000000e+00> : vector<30x240xf32>
    %276 = tpu.matmul %275, %274, %cst_237 {dimension_numbers = #tpu.dot_dimension_numbers<[1], [0], [0], [1], [0, 0, 1, 1], [], []>} : vector<30x60xf32>, vector<60x240xf32>, vector<30x240xf32> -> vector<30x240xf32>
    %cst_238 = arith.constant 0.000000e+00 : f32
    %277 = vector.broadcast %cst_238 : f32 to vector<30x240xf32>
    %278 = arith.cmpf ogt, %276, %277 : vector<30x240xf32>
    %cst_239 = arith.constant 0.000000e+00 : f32
    %279 = vector.broadcast %cst_239 : f32 to vector<30x240xf32>
    %280 = arith.minimumf %276, %279 : vector<30x240xf32>
    %281 = math.exp %280 : vector<30x240xf32>
    %cst_240 = arith.constant 1.000000e+00 : f32
    %282 = vector.broadcast %cst_240 : f32 to vector<30x240xf32>
    %283 = arith.subf %281, %282 : vector<30x240xf32>
    %284 = arith.select %278, %276, %283 : vector<30x240xi1>, vector<30x240xf32>
    %285 = arith.truncf %284 : vector<30x240xf32> to vector<30x240xbf16>
    %286 = vector.extract_strided_slice %285 {offsets = [0, 0], sizes = [26, 240], strides = [1, 1]} : vector<30x240xbf16> to vector<26x240xbf16>
    %c0_241 = arith.constant 0 : index
    %c0_242 = arith.constant 0 : index
    %c0_243 = arith.constant 0 : index
    %c0_244 = arith.constant 0 : index
    %287 = vector.load %arg7[%c0_241, %c0_242, %c0_243, %c0_244] : memref<1x5x240x208xbf16, #tpu.memory_space<vmem>>, vector<1x1x240x208xbf16>
    %288 = vector.shape_cast %287 : vector<1x1x240x208xbf16> to vector<240x208xbf16>
    %cst_245 = arith.constant dense<0.000000e+00> : vector<26x208xf32>
    %289 = tpu.matmul %286, %288, %cst_245 {dimension_numbers = #tpu.dot_dimension_numbers<[1], [0], [0], [1], [0, 0, 1, 1], [], []>} : vector<26x240xbf16>, vector<240x208xbf16>, vector<26x208xf32> -> vector<26x208xf32>
    %290 = vector.extract_strided_slice %285 {offsets = [1, 0], sizes = [26, 240], strides = [1, 1]} : vector<30x240xbf16> to vector<26x240xbf16>
    %c0_246 = arith.constant 0 : index
    %c1_247 = arith.constant 1 : index
    %c0_248 = arith.constant 0 : index
    %c0_249 = arith.constant 0 : index
    %291 = vector.load %arg7[%c0_246, %c1_247, %c0_248, %c0_249] : memref<1x5x240x208xbf16, #tpu.memory_space<vmem>>, vector<1x1x240x208xbf16>
    %292 = vector.shape_cast %291 : vector<1x1x240x208xbf16> to vector<240x208xbf16>
    %cst_250 = arith.constant dense<0.000000e+00> : vector<26x208xf32>
    %293 = tpu.matmul %290, %292, %cst_250 {dimension_numbers = #tpu.dot_dimension_numbers<[1], [0], [0], [1], [0, 0, 1, 1], [], []>} : vector<26x240xbf16>, vector<240x208xbf16>, vector<26x208xf32> -> vector<26x208xf32>
    %294 = arith.addf %289, %293 : vector<26x208xf32>
    %295 = vector.extract_strided_slice %285 {offsets = [2, 0], sizes = [26, 240], strides = [1, 1]} : vector<30x240xbf16> to vector<26x240xbf16>
    %c0_251 = arith.constant 0 : index
    %c2_252 = arith.constant 2 : index
    %c0_253 = arith.constant 0 : index
    %c0_254 = arith.constant 0 : index
    %296 = vector.load %arg7[%c0_251, %c2_252, %c0_253, %c0_254] : memref<1x5x240x208xbf16, #tpu.memory_space<vmem>>, vector<1x1x240x208xbf16>
    %297 = vector.shape_cast %296 : vector<1x1x240x208xbf16> to vector<240x208xbf16>
    %cst_255 = arith.constant dense<0.000000e+00> : vector<26x208xf32>
    %298 = tpu.matmul %295, %297, %cst_255 {dimension_numbers = #tpu.dot_dimension_numbers<[1], [0], [0], [1], [0, 0, 1, 1], [], []>} : vector<26x240xbf16>, vector<240x208xbf16>, vector<26x208xf32> -> vector<26x208xf32>
    %299 = arith.addf %294, %298 : vector<26x208xf32>
    %300 = vector.extract_strided_slice %285 {offsets = [3, 0], sizes = [26, 240], strides = [1, 1]} : vector<30x240xbf16> to vector<26x240xbf16>
    %c0_256 = arith.constant 0 : index
    %c3_257 = arith.constant 3 : index
    %c0_258 = arith.constant 0 : index
    %c0_259 = arith.constant 0 : index
    %301 = vector.load %arg7[%c0_256, %c3_257, %c0_258, %c0_259] : memref<1x5x240x208xbf16, #tpu.memory_space<vmem>>, vector<1x1x240x208xbf16>
    %302 = vector.shape_cast %301 : vector<1x1x240x208xbf16> to vector<240x208xbf16>
    %cst_260 = arith.constant dense<0.000000e+00> : vector<26x208xf32>
    %303 = tpu.matmul %300, %302, %cst_260 {dimension_numbers = #tpu.dot_dimension_numbers<[1], [0], [0], [1], [0, 0, 1, 1], [], []>} : vector<26x240xbf16>, vector<240x208xbf16>, vector<26x208xf32> -> vector<26x208xf32>
    %304 = arith.addf %299, %303 : vector<26x208xf32>
    %305 = vector.extract_strided_slice %285 {offsets = [4, 0], sizes = [26, 240], strides = [1, 1]} : vector<30x240xbf16> to vector<26x240xbf16>
    %c0_261 = arith.constant 0 : index
    %c4_262 = arith.constant 4 : index
    %c0_263 = arith.constant 0 : index
    %c0_264 = arith.constant 0 : index
    %306 = vector.load %arg7[%c0_261, %c4_262, %c0_263, %c0_264] : memref<1x5x240x208xbf16, #tpu.memory_space<vmem>>, vector<1x1x240x208xbf16>
    %307 = vector.shape_cast %306 : vector<1x1x240x208xbf16> to vector<240x208xbf16>
    %cst_265 = arith.constant dense<0.000000e+00> : vector<26x208xf32>
    %308 = tpu.matmul %305, %307, %cst_265 {dimension_numbers = #tpu.dot_dimension_numbers<[1], [0], [0], [1], [0, 0, 1, 1], [], []>} : vector<26x240xbf16>, vector<240x208xbf16>, vector<26x208xf32> -> vector<26x208xf32>
    %309 = arith.addf %304, %308 : vector<26x208xf32>
    %c0_266 = arith.constant 0 : index
    %c0_267 = arith.constant 0 : index
    %c0_268 = arith.constant 0 : index
    %310 = vector.load %arg8[%c0_266, %c0_267, %c0_268] : memref<1x1x208xf32, #tpu.memory_space<vmem>>, vector<1x1x208xf32>
    %311 = vector.shape_cast %310 : vector<1x1x208xf32> to vector<1x208xf32>
    %312 = vector.broadcast %311 : vector<1x208xf32> to vector<26x208xf32>
    %313 = arith.addf %309, %312 : vector<26x208xf32>
    %cst_269 = arith.constant 0.000000e+00 : f32
    %314 = vector.broadcast %cst_269 : f32 to vector<26x208xf32>
    %315 = arith.cmpf ogt, %313, %314 : vector<26x208xf32>
    %cst_270 = arith.constant 0.000000e+00 : f32
    %316 = vector.broadcast %cst_270 : f32 to vector<26x208xf32>
    %317 = arith.minimumf %313, %316 : vector<26x208xf32>
    %318 = math.exp %317 : vector<26x208xf32>
    %cst_271 = arith.constant 1.000000e+00 : f32
    %319 = vector.broadcast %cst_271 : f32 to vector<26x208xf32>
    %320 = arith.subf %318, %319 : vector<26x208xf32>
    %321 = arith.select %315, %313, %320 : vector<26x208xi1>, vector<26x208xf32>
    %322 = arith.truncf %321 : vector<26x208xf32> to vector<26x208xbf16>
    %323 = vector.extract_strided_slice %322 {offsets = [0, 0], sizes = [22, 208], strides = [1, 1]} : vector<26x208xbf16> to vector<22x208xbf16>
    %c0_272 = arith.constant 0 : index
    %c0_273 = arith.constant 0 : index
    %c0_274 = arith.constant 0 : index
    %c0_275 = arith.constant 0 : index
    %324 = vector.load %arg9[%c0_272, %c0_273, %c0_274, %c0_275] : memref<1x5x208x176xbf16, #tpu.memory_space<vmem>>, vector<1x1x208x176xbf16>
    %325 = vector.shape_cast %324 : vector<1x1x208x176xbf16> to vector<208x176xbf16>
    %cst_276 = arith.constant dense<0.000000e+00> : vector<22x176xf32>
    %326 = tpu.matmul %323, %325, %cst_276 {dimension_numbers = #tpu.dot_dimension_numbers<[1], [0], [0], [1], [0, 0, 1, 1], [], []>} : vector<22x208xbf16>, vector<208x176xbf16>, vector<22x176xf32> -> vector<22x176xf32>
    %327 = vector.extract_strided_slice %322 {offsets = [1, 0], sizes = [22, 208], strides = [1, 1]} : vector<26x208xbf16> to vector<22x208xbf16>
    %c0_277 = arith.constant 0 : index
    %c1_278 = arith.constant 1 : index
    %c0_279 = arith.constant 0 : index
    %c0_280 = arith.constant 0 : index
    %328 = vector.load %arg9[%c0_277, %c1_278, %c0_279, %c0_280] : memref<1x5x208x176xbf16, #tpu.memory_space<vmem>>, vector<1x1x208x176xbf16>
    %329 = vector.shape_cast %328 : vector<1x1x208x176xbf16> to vector<208x176xbf16>
    %cst_281 = arith.constant dense<0.000000e+00> : vector<22x176xf32>
    %330 = tpu.matmul %327, %329, %cst_281 {dimension_numbers = #tpu.dot_dimension_numbers<[1], [0], [0], [1], [0, 0, 1, 1], [], []>} : vector<22x208xbf16>, vector<208x176xbf16>, vector<22x176xf32> -> vector<22x176xf32>
    %331 = arith.addf %326, %330 : vector<22x176xf32>
    %332 = vector.extract_strided_slice %322 {offsets = [2, 0], sizes = [22, 208], strides = [1, 1]} : vector<26x208xbf16> to vector<22x208xbf16>
    %c0_282 = arith.constant 0 : index
    %c2_283 = arith.constant 2 : index
    %c0_284 = arith.constant 0 : index
    %c0_285 = arith.constant 0 : index
    %333 = vector.load %arg9[%c0_282, %c2_283, %c0_284, %c0_285] : memref<1x5x208x176xbf16, #tpu.memory_space<vmem>>, vector<1x1x208x176xbf16>
    %334 = vector.shape_cast %333 : vector<1x1x208x176xbf16> to vector<208x176xbf16>
    %cst_286 = arith.constant dense<0.000000e+00> : vector<22x176xf32>
    %335 = tpu.matmul %332, %334, %cst_286 {dimension_numbers = #tpu.dot_dimension_numbers<[1], [0], [0], [1], [0, 0, 1, 1], [], []>} : vector<22x208xbf16>, vector<208x176xbf16>, vector<22x176xf32> -> vector<22x176xf32>
    %336 = arith.addf %331, %335 : vector<22x176xf32>
    %337 = vector.extract_strided_slice %322 {offsets = [3, 0], sizes = [22, 208], strides = [1, 1]} : vector<26x208xbf16> to vector<22x208xbf16>
    %c0_287 = arith.constant 0 : index
    %c3_288 = arith.constant 3 : index
    %c0_289 = arith.constant 0 : index
    %c0_290 = arith.constant 0 : index
    %338 = vector.load %arg9[%c0_287, %c3_288, %c0_289, %c0_290] : memref<1x5x208x176xbf16, #tpu.memory_space<vmem>>, vector<1x1x208x176xbf16>
    %339 = vector.shape_cast %338 : vector<1x1x208x176xbf16> to vector<208x176xbf16>
    %cst_291 = arith.constant dense<0.000000e+00> : vector<22x176xf32>
    %340 = tpu.matmul %337, %339, %cst_291 {dimension_numbers = #tpu.dot_dimension_numbers<[1], [0], [0], [1], [0, 0, 1, 1], [], []>} : vector<22x208xbf16>, vector<208x176xbf16>, vector<22x176xf32> -> vector<22x176xf32>
    %341 = arith.addf %336, %340 : vector<22x176xf32>
    %342 = vector.extract_strided_slice %322 {offsets = [4, 0], sizes = [22, 208], strides = [1, 1]} : vector<26x208xbf16> to vector<22x208xbf16>
    %c0_292 = arith.constant 0 : index
    %c4_293 = arith.constant 4 : index
    %c0_294 = arith.constant 0 : index
    %c0_295 = arith.constant 0 : index
    %343 = vector.load %arg9[%c0_292, %c4_293, %c0_294, %c0_295] : memref<1x5x208x176xbf16, #tpu.memory_space<vmem>>, vector<1x1x208x176xbf16>
    %344 = vector.shape_cast %343 : vector<1x1x208x176xbf16> to vector<208x176xbf16>
    %cst_296 = arith.constant dense<0.000000e+00> : vector<22x176xf32>
    %345 = tpu.matmul %342, %344, %cst_296 {dimension_numbers = #tpu.dot_dimension_numbers<[1], [0], [0], [1], [0, 0, 1, 1], [], []>} : vector<22x208xbf16>, vector<208x176xbf16>, vector<22x176xf32> -> vector<22x176xf32>
    %346 = arith.addf %341, %345 : vector<22x176xf32>
    %c0_297 = arith.constant 0 : index
    %c0_298 = arith.constant 0 : index
    %c0_299 = arith.constant 0 : index
    %347 = vector.load %arg10[%c0_297, %c0_298, %c0_299] : memref<1x1x176xf32, #tpu.memory_space<vmem>>, vector<1x1x176xf32>
    %348 = vector.shape_cast %347 : vector<1x1x176xf32> to vector<1x176xf32>
    %349 = vector.broadcast %348 : vector<1x176xf32> to vector<22x176xf32>
    %350 = arith.addf %346, %349 : vector<22x176xf32>
    %cst_300 = arith.constant 0.000000e+00 : f32
    %351 = vector.broadcast %cst_300 : f32 to vector<22x176xf32>
    %352 = arith.cmpf ogt, %350, %351 : vector<22x176xf32>
    %cst_301 = arith.constant 0.000000e+00 : f32
    %353 = vector.broadcast %cst_301 : f32 to vector<22x176xf32>
    %354 = arith.minimumf %350, %353 : vector<22x176xf32>
    %355 = math.exp %354 : vector<22x176xf32>
    %cst_302 = arith.constant 1.000000e+00 : f32
    %356 = vector.broadcast %cst_302 : f32 to vector<22x176xf32>
    %357 = arith.subf %355, %356 : vector<22x176xf32>
    %358 = arith.select %352, %350, %357 : vector<22x176xi1>, vector<22x176xf32>
    %359 = arith.truncf %358 : vector<22x176xf32> to vector<22x176xbf16>
    %360 = vector.extract_strided_slice %359 {offsets = [0, 0], sizes = [18, 176], strides = [1, 1]} : vector<22x176xbf16> to vector<18x176xbf16>
    %c0_303 = arith.constant 0 : index
    %c0_304 = arith.constant 0 : index
    %c0_305 = arith.constant 0 : index
    %c0_306 = arith.constant 0 : index
    %361 = vector.load %arg11[%c0_303, %c0_304, %c0_305, %c0_306] : memref<1x5x176x72xbf16, #tpu.memory_space<vmem>>, vector<1x1x176x72xbf16>
    %362 = vector.shape_cast %361 : vector<1x1x176x72xbf16> to vector<176x72xbf16>
    %cst_307 = arith.constant dense<0.000000e+00> : vector<18x72xf32>
    %363 = tpu.matmul %360, %362, %cst_307 {dimension_numbers = #tpu.dot_dimension_numbers<[1], [0], [0], [1], [0, 0, 1, 1], [], []>} : vector<18x176xbf16>, vector<176x72xbf16>, vector<18x72xf32> -> vector<18x72xf32>
    %364 = vector.extract_strided_slice %359 {offsets = [1, 0], sizes = [18, 176], strides = [1, 1]} : vector<22x176xbf16> to vector<18x176xbf16>
    %c0_308 = arith.constant 0 : index
    %c1_309 = arith.constant 1 : index
    %c0_310 = arith.constant 0 : index
    %c0_311 = arith.constant 0 : index
    %365 = vector.load %arg11[%c0_308, %c1_309, %c0_310, %c0_311] : memref<1x5x176x72xbf16, #tpu.memory_space<vmem>>, vector<1x1x176x72xbf16>
    %366 = vector.shape_cast %365 : vector<1x1x176x72xbf16> to vector<176x72xbf16>
    %cst_312 = arith.constant dense<0.000000e+00> : vector<18x72xf32>
    %367 = tpu.matmul %364, %366, %cst_312 {dimension_numbers = #tpu.dot_dimension_numbers<[1], [0], [0], [1], [0, 0, 1, 1], [], []>} : vector<18x176xbf16>, vector<176x72xbf16>, vector<18x72xf32> -> vector<18x72xf32>
    %368 = arith.addf %363, %367 : vector<18x72xf32>
    %369 = vector.extract_strided_slice %359 {offsets = [2, 0], sizes = [18, 176], strides = [1, 1]} : vector<22x176xbf16> to vector<18x176xbf16>
    %c0_313 = arith.constant 0 : index
    %c2_314 = arith.constant 2 : index
    %c0_315 = arith.constant 0 : index
    %c0_316 = arith.constant 0 : index
    %370 = vector.load %arg11[%c0_313, %c2_314, %c0_315, %c0_316] : memref<1x5x176x72xbf16, #tpu.memory_space<vmem>>, vector<1x1x176x72xbf16>
    %371 = vector.shape_cast %370 : vector<1x1x176x72xbf16> to vector<176x72xbf16>
    %cst_317 = arith.constant dense<0.000000e+00> : vector<18x72xf32>
    %372 = tpu.matmul %369, %371, %cst_317 {dimension_numbers = #tpu.dot_dimension_numbers<[1], [0], [0], [1], [0, 0, 1, 1], [], []>} : vector<18x176xbf16>, vector<176x72xbf16>, vector<18x72xf32> -> vector<18x72xf32>
    %373 = arith.addf %368, %372 : vector<18x72xf32>
    %374 = vector.extract_strided_slice %359 {offsets = [3, 0], sizes = [18, 176], strides = [1, 1]} : vector<22x176xbf16> to vector<18x176xbf16>
    %c0_318 = arith.constant 0 : index
    %c3_319 = arith.constant 3 : index
    %c0_320 = arith.constant 0 : index
    %c0_321 = arith.constant 0 : index
    %375 = vector.load %arg11[%c0_318, %c3_319, %c0_320, %c0_321] : memref<1x5x176x72xbf16, #tpu.memory_space<vmem>>, vector<1x1x176x72xbf16>
    %376 = vector.shape_cast %375 : vector<1x1x176x72xbf16> to vector<176x72xbf16>
    %cst_322 = arith.constant dense<0.000000e+00> : vector<18x72xf32>
    %377 = tpu.matmul %374, %376, %cst_322 {dimension_numbers = #tpu.dot_dimension_numbers<[1], [0], [0], [1], [0, 0, 1, 1], [], []>} : vector<18x176xbf16>, vector<176x72xbf16>, vector<18x72xf32> -> vector<18x72xf32>
    %378 = arith.addf %373, %377 : vector<18x72xf32>
    %379 = vector.extract_strided_slice %359 {offsets = [4, 0], sizes = [18, 176], strides = [1, 1]} : vector<22x176xbf16> to vector<18x176xbf16>
    %c0_323 = arith.constant 0 : index
    %c4_324 = arith.constant 4 : index
    %c0_325 = arith.constant 0 : index
    %c0_326 = arith.constant 0 : index
    %380 = vector.load %arg11[%c0_323, %c4_324, %c0_325, %c0_326] : memref<1x5x176x72xbf16, #tpu.memory_space<vmem>>, vector<1x1x176x72xbf16>
    %381 = vector.shape_cast %380 : vector<1x1x176x72xbf16> to vector<176x72xbf16>
    %cst_327 = arith.constant dense<0.000000e+00> : vector<18x72xf32>
    %382 = tpu.matmul %379, %381, %cst_327 {dimension_numbers = #tpu.dot_dimension_numbers<[1], [0], [0], [1], [0, 0, 1, 1], [], []>} : vector<18x176xbf16>, vector<176x72xbf16>, vector<18x72xf32> -> vector<18x72xf32>
    %383 = arith.addf %378, %382 : vector<18x72xf32>
    %c0_328 = arith.constant 0 : index
    %c0_329 = arith.constant 0 : index
    %c0_330 = arith.constant 0 : index
    %384 = vector.load %arg12[%c0_328, %c0_329, %c0_330] : memref<1x1x72xf32, #tpu.memory_space<vmem>>, vector<1x1x72xf32>
    %385 = vector.shape_cast %384 : vector<1x1x72xf32> to vector<1x72xf32>
    %386 = vector.broadcast %385 : vector<1x72xf32> to vector<18x72xf32>
    %387 = arith.addf %383, %386 : vector<18x72xf32>
    %c0_331 = arith.constant 0 : index
    %c0_332 = arith.constant 0 : index
    %388 = vector.load %arg18[%c0_331, %c0_332] : memref<9x18xf32, #tpu.memory_space<vmem>>, vector<9x18xf32>
    %cst_333 = arith.constant dense<0.000000e+00> : vector<9x72xf32>
    %389 = tpu.matmul %388, %387, %cst_333 {dimension_numbers = #tpu.dot_dimension_numbers<[1], [0], [0], [1], [0, 0, 1, 1], [], []>} : vector<9x18xf32>, vector<18x72xf32>, vector<9x72xf32> -> vector<9x72xf32>
    %cst_334 = arith.constant 0.000000e+00 : f32
    %390 = vector.broadcast %cst_334 : f32 to vector<9x72xf32>
    %391 = arith.cmpf ogt, %389, %390 : vector<9x72xf32>
    %cst_335 = arith.constant 0.000000e+00 : f32
    %392 = vector.broadcast %cst_335 : f32 to vector<9x72xf32>
    %393 = arith.minimumf %389, %392 : vector<9x72xf32>
    %394 = math.exp %393 : vector<9x72xf32>
    %cst_336 = arith.constant 1.000000e+00 : f32
    %395 = vector.broadcast %cst_336 : f32 to vector<9x72xf32>
    %396 = arith.subf %394, %395 : vector<9x72xf32>
    %397 = arith.select %391, %389, %396 : vector<9x72xi1>, vector<9x72xf32>
    %398 = arith.truncf %397 : vector<9x72xf32> to vector<9x72xbf16>
    %399 = vector.extract_strided_slice %398 {offsets = [0, 0], sizes = [5, 72], strides = [1, 1]} : vector<9x72xbf16> to vector<5x72xbf16>
    %c0_337 = arith.constant 0 : index
    %c0_338 = arith.constant 0 : index
    %c0_339 = arith.constant 0 : index
    %c0_340 = arith.constant 0 : index
    %400 = vector.load %arg13[%c0_337, %c0_338, %c0_339, %c0_340] : memref<1x5x72x40xbf16, #tpu.memory_space<vmem>>, vector<1x1x72x40xbf16>
    %401 = vector.shape_cast %400 : vector<1x1x72x40xbf16> to vector<72x40xbf16>
    %cst_341 = arith.constant dense<0.000000e+00> : vector<5x40xf32>
    %402 = tpu.matmul %399, %401, %cst_341 {dimension_numbers = #tpu.dot_dimension_numbers<[1], [0], [0], [1], [0, 0, 1, 1], [], []>} : vector<5x72xbf16>, vector<72x40xbf16>, vector<5x40xf32> -> vector<5x40xf32>
    %403 = vector.extract_strided_slice %398 {offsets = [1, 0], sizes = [5, 72], strides = [1, 1]} : vector<9x72xbf16> to vector<5x72xbf16>
    %c0_342 = arith.constant 0 : index
    %c1_343 = arith.constant 1 : index
    %c0_344 = arith.constant 0 : index
    %c0_345 = arith.constant 0 : index
    %404 = vector.load %arg13[%c0_342, %c1_343, %c0_344, %c0_345] : memref<1x5x72x40xbf16, #tpu.memory_space<vmem>>, vector<1x1x72x40xbf16>
    %405 = vector.shape_cast %404 : vector<1x1x72x40xbf16> to vector<72x40xbf16>
    %cst_346 = arith.constant dense<0.000000e+00> : vector<5x40xf32>
    %406 = tpu.matmul %403, %405, %cst_346 {dimension_numbers = #tpu.dot_dimension_numbers<[1], [0], [0], [1], [0, 0, 1, 1], [], []>} : vector<5x72xbf16>, vector<72x40xbf16>, vector<5x40xf32> -> vector<5x40xf32>
    %407 = arith.addf %402, %406 : vector<5x40xf32>
    %408 = vector.extract_strided_slice %398 {offsets = [2, 0], sizes = [5, 72], strides = [1, 1]} : vector<9x72xbf16> to vector<5x72xbf16>
    %c0_347 = arith.constant 0 : index
    %c2_348 = arith.constant 2 : index
    %c0_349 = arith.constant 0 : index
    %c0_350 = arith.constant 0 : index
    %409 = vector.load %arg13[%c0_347, %c2_348, %c0_349, %c0_350] : memref<1x5x72x40xbf16, #tpu.memory_space<vmem>>, vector<1x1x72x40xbf16>
    %410 = vector.shape_cast %409 : vector<1x1x72x40xbf16> to vector<72x40xbf16>
    %cst_351 = arith.constant dense<0.000000e+00> : vector<5x40xf32>
    %411 = tpu.matmul %408, %410, %cst_351 {dimension_numbers = #tpu.dot_dimension_numbers<[1], [0], [0], [1], [0, 0, 1, 1], [], []>} : vector<5x72xbf16>, vector<72x40xbf16>, vector<5x40xf32> -> vector<5x40xf32>
    %412 = arith.addf %407, %411 : vector<5x40xf32>
    %413 = vector.extract_strided_slice %398 {offsets = [3, 0], sizes = [5, 72], strides = [1, 1]} : vector<9x72xbf16> to vector<5x72xbf16>
    %c0_352 = arith.constant 0 : index
    %c3_353 = arith.constant 3 : index
    %c0_354 = arith.constant 0 : index
    %c0_355 = arith.constant 0 : index
    %414 = vector.load %arg13[%c0_352, %c3_353, %c0_354, %c0_355] : memref<1x5x72x40xbf16, #tpu.memory_space<vmem>>, vector<1x1x72x40xbf16>
    %415 = vector.shape_cast %414 : vector<1x1x72x40xbf16> to vector<72x40xbf16>
    %cst_356 = arith.constant dense<0.000000e+00> : vector<5x40xf32>
    %416 = tpu.matmul %413, %415, %cst_356 {dimension_numbers = #tpu.dot_dimension_numbers<[1], [0], [0], [1], [0, 0, 1, 1], [], []>} : vector<5x72xbf16>, vector<72x40xbf16>, vector<5x40xf32> -> vector<5x40xf32>
    %417 = arith.addf %412, %416 : vector<5x40xf32>
    %418 = vector.extract_strided_slice %398 {offsets = [4, 0], sizes = [5, 72], strides = [1, 1]} : vector<9x72xbf16> to vector<5x72xbf16>
    %c0_357 = arith.constant 0 : index
    %c4_358 = arith.constant 4 : index
    %c0_359 = arith.constant 0 : index
    %c0_360 = arith.constant 0 : index
    %419 = vector.load %arg13[%c0_357, %c4_358, %c0_359, %c0_360] : memref<1x5x72x40xbf16, #tpu.memory_space<vmem>>, vector<1x1x72x40xbf16>
    %420 = vector.shape_cast %419 : vector<1x1x72x40xbf16> to vector<72x40xbf16>
    %cst_361 = arith.constant dense<0.000000e+00> : vector<5x40xf32>
    %421 = tpu.matmul %418, %420, %cst_361 {dimension_numbers = #tpu.dot_dimension_numbers<[1], [0], [0], [1], [0, 0, 1, 1], [], []>} : vector<5x72xbf16>, vector<72x40xbf16>, vector<5x40xf32> -> vector<5x40xf32>
    %422 = arith.addf %417, %421 : vector<5x40xf32>
    %c0_362 = arith.constant 0 : index
    %c0_363 = arith.constant 0 : index
    %c0_364 = arith.constant 0 : index
    %423 = vector.load %arg14[%c0_362, %c0_363, %c0_364] : memref<1x1x40xf32, #tpu.memory_space<vmem>>, vector<1x1x40xf32>
    %424 = vector.shape_cast %423 : vector<1x1x40xf32> to vector<1x40xf32>
    %425 = vector.broadcast %424 : vector<1x40xf32> to vector<5x40xf32>
    %426 = arith.addf %422, %425 : vector<5x40xf32>
    %cst_365 = arith.constant 0.000000e+00 : f32
    %427 = vector.broadcast %cst_365 : f32 to vector<5x40xf32>
    %428 = arith.cmpf ogt, %426, %427 : vector<5x40xf32>
    %cst_366 = arith.constant 0.000000e+00 : f32
    %429 = vector.broadcast %cst_366 : f32 to vector<5x40xf32>
    %430 = arith.minimumf %426, %429 : vector<5x40xf32>
    %431 = math.exp %430 : vector<5x40xf32>
    %cst_367 = arith.constant 1.000000e+00 : f32
    %432 = vector.broadcast %cst_367 : f32 to vector<5x40xf32>
    %433 = arith.subf %431, %432 : vector<5x40xf32>
    %434 = arith.select %428, %426, %433 : vector<5x40xi1>, vector<5x40xf32>
    %435 = arith.truncf %434 : vector<5x40xf32> to vector<5x40xbf16>
    %436 = vector.extract_strided_slice %435 {offsets = [0, 0], sizes = [1, 40], strides = [1, 1]} : vector<5x40xbf16> to vector<1x40xbf16>
    %c0_368 = arith.constant 0 : index
    %c0_369 = arith.constant 0 : index
    %c0_370 = arith.constant 0 : index
    %c0_371 = arith.constant 0 : index
    %437 = vector.load %arg15[%c0_368, %c0_369, %c0_370, %c0_371] : memref<1x5x40x8xbf16, #tpu.memory_space<vmem>>, vector<1x1x40x8xbf16>
    %438 = vector.shape_cast %437 : vector<1x1x40x8xbf16> to vector<40x8xbf16>
    %cst_372 = arith.constant dense<0.000000e+00> : vector<1x8xf32>
    %439 = tpu.matmul %436, %438, %cst_372 {dimension_numbers = #tpu.dot_dimension_numbers<[1], [0], [0], [1], [0, 0, 1, 1], [], []>} : vector<1x40xbf16>, vector<40x8xbf16>, vector<1x8xf32> -> vector<1x8xf32>
    %440 = vector.extract_strided_slice %435 {offsets = [1, 0], sizes = [1, 40], strides = [1, 1]} : vector<5x40xbf16> to vector<1x40xbf16>
    %c0_373 = arith.constant 0 : index
    %c1_374 = arith.constant 1 : index
    %c0_375 = arith.constant 0 : index
    %c0_376 = arith.constant 0 : index
    %441 = vector.load %arg15[%c0_373, %c1_374, %c0_375, %c0_376] : memref<1x5x40x8xbf16, #tpu.memory_space<vmem>>, vector<1x1x40x8xbf16>
    %442 = vector.shape_cast %441 : vector<1x1x40x8xbf16> to vector<40x8xbf16>
    %cst_377 = arith.constant dense<0.000000e+00> : vector<1x8xf32>
    %443 = tpu.matmul %440, %442, %cst_377 {dimension_numbers = #tpu.dot_dimension_numbers<[1], [0], [0], [1], [0, 0, 1, 1], [], []>} : vector<1x40xbf16>, vector<40x8xbf16>, vector<1x8xf32> -> vector<1x8xf32>
    %444 = arith.addf %439, %443 : vector<1x8xf32>
    %445 = vector.extract_strided_slice %435 {offsets = [2, 0], sizes = [1, 40], strides = [1, 1]} : vector<5x40xbf16> to vector<1x40xbf16>
    %c0_378 = arith.constant 0 : index
    %c2_379 = arith.constant 2 : index
    %c0_380 = arith.constant 0 : index
    %c0_381 = arith.constant 0 : index
    %446 = vector.load %arg15[%c0_378, %c2_379, %c0_380, %c0_381] : memref<1x5x40x8xbf16, #tpu.memory_space<vmem>>, vector<1x1x40x8xbf16>
    %447 = vector.shape_cast %446 : vector<1x1x40x8xbf16> to vector<40x8xbf16>
    %cst_382 = arith.constant dense<0.000000e+00> : vector<1x8xf32>
    %448 = tpu.matmul %445, %447, %cst_382 {dimension_numbers = #tpu.dot_dimension_numbers<[1], [0], [0], [1], [0, 0, 1, 1], [], []>} : vector<1x40xbf16>, vector<40x8xbf16>, vector<1x8xf32> -> vector<1x8xf32>
    %449 = arith.addf %444, %448 : vector<1x8xf32>
    %450 = vector.extract_strided_slice %435 {offsets = [3, 0], sizes = [1, 40], strides = [1, 1]} : vector<5x40xbf16> to vector<1x40xbf16>
    %c0_383 = arith.constant 0 : index
    %c3_384 = arith.constant 3 : index
    %c0_385 = arith.constant 0 : index
    %c0_386 = arith.constant 0 : index
    %451 = vector.load %arg15[%c0_383, %c3_384, %c0_385, %c0_386] : memref<1x5x40x8xbf16, #tpu.memory_space<vmem>>, vector<1x1x40x8xbf16>
    %452 = vector.shape_cast %451 : vector<1x1x40x8xbf16> to vector<40x8xbf16>
    %cst_387 = arith.constant dense<0.000000e+00> : vector<1x8xf32>
    %453 = tpu.matmul %450, %452, %cst_387 {dimension_numbers = #tpu.dot_dimension_numbers<[1], [0], [0], [1], [0, 0, 1, 1], [], []>} : vector<1x40xbf16>, vector<40x8xbf16>, vector<1x8xf32> -> vector<1x8xf32>
    %454 = arith.addf %449, %453 : vector<1x8xf32>
    %455 = vector.extract_strided_slice %435 {offsets = [4, 0], sizes = [1, 40], strides = [1, 1]} : vector<5x40xbf16> to vector<1x40xbf16>
    %c0_388 = arith.constant 0 : index
    %c4_389 = arith.constant 4 : index
    %c0_390 = arith.constant 0 : index
    %c0_391 = arith.constant 0 : index
    %456 = vector.load %arg15[%c0_388, %c4_389, %c0_390, %c0_391] : memref<1x5x40x8xbf16, #tpu.memory_space<vmem>>, vector<1x1x40x8xbf16>
    %457 = vector.shape_cast %456 : vector<1x1x40x8xbf16> to vector<40x8xbf16>
    %cst_392 = arith.constant dense<0.000000e+00> : vector<1x8xf32>
    %458 = tpu.matmul %455, %457, %cst_392 {dimension_numbers = #tpu.dot_dimension_numbers<[1], [0], [0], [1], [0, 0, 1, 1], [], []>} : vector<1x40xbf16>, vector<40x8xbf16>, vector<1x8xf32> -> vector<1x8xf32>
    %459 = arith.addf %454, %458 : vector<1x8xf32>
    %c0_393 = arith.constant 0 : index
    %c0_394 = arith.constant 0 : index
    %c0_395 = arith.constant 0 : index
    %460 = vector.load %arg16[%c0_393, %c0_394, %c0_395] : memref<1x1x8xf32, #tpu.memory_space<vmem>>, vector<1x1x8xf32>
    %461 = vector.shape_cast %460 : vector<1x1x8xf32> to vector<1x8xf32>
    %462 = arith.addf %459, %461 : vector<1x8xf32>
    %cst_396 = arith.constant dense<0.000000e+00> : vector<8xf32>
    %463 = vector.multi_reduction <add>, %462, %cst_396 [0] : vector<1x8xf32> to vector<8xf32>
    %464 = vector.shape_cast %463 : vector<8xf32> to vector<1x8xf32>
    %465 = arith.addf %231, %464 : vector<1x8xf32>
    %466 = arith.mulf %462, %462 : vector<1x8xf32>
    %cst_397 = arith.constant dense<0.000000e+00> : vector<8xf32>
    %467 = vector.multi_reduction <add>, %466, %cst_397 [0] : vector<1x8xf32> to vector<8xf32>
    %468 = vector.shape_cast %467 : vector<8xf32> to vector<1x8xf32>
    %469 = arith.addf %235, %468 : vector<1x8xf32>
    %c0_398 = arith.constant 0 : index
    %c0_399 = arith.constant 0 : index
    %470 = vector.load %arg21[%c0_398, %c0_399] : memref<8x8xf32, #tpu.memory_space<vmem>>, vector<8x8xf32>
    %cst_400 = arith.constant dense<0.000000e+00> : vector<1x8xf32>
    %471 = tpu.matmul %465, %470, %cst_400 {dimension_numbers = #tpu.dot_dimension_numbers<[1], [0], [0], [1], [0, 0, 1, 1], [], []>} : vector<1x8xf32>, vector<8x8xf32>, vector<1x8xf32> -> vector<1x8xf32>
    %cst_401 = arith.constant 2.000000e+00 : f32
    %472 = vector.broadcast %cst_401 : f32 to vector<1x8xf32>
    %473 = arith.divf %471, %472 : vector<1x8xf32>
    %c0_402 = arith.constant 0 : index
    %c0_403 = arith.constant 0 : index
    %474 = vector.load %arg21[%c0_402, %c0_403] : memref<8x8xf32, #tpu.memory_space<vmem>>, vector<8x8xf32>
    %cst_404 = arith.constant dense<0.000000e+00> : vector<1x8xf32>
    %475 = tpu.matmul %469, %474, %cst_404 {dimension_numbers = #tpu.dot_dimension_numbers<[1], [0], [0], [1], [0, 0, 1, 1], [], []>} : vector<1x8xf32>, vector<8x8xf32>, vector<1x8xf32> -> vector<1x8xf32>
    %cst_405 = arith.constant 2.000000e+00 : f32
    %476 = vector.broadcast %cst_405 : f32 to vector<1x8xf32>
    %477 = arith.divf %475, %476 : vector<1x8xf32>
    %478 = arith.mulf %473, %473 : vector<1x8xf32>
    %479 = arith.subf %477, %478 : vector<1x8xf32>
    %c0_406 = arith.constant 0 : index
    %c0_407 = arith.constant 0 : index
    %c0_408 = arith.constant 0 : index
    %480 = vector.load %arg19[%c0_406, %c0_407, %c0_408] : memref<1x1x8xf32, #tpu.memory_space<vmem>>, vector<1x1x8xf32>
    %481 = vector.shape_cast %480 : vector<1x1x8xf32> to vector<1x8xf32>
    %cst_409 = arith.constant 9.99999974E-6 : f32
    %482 = vector.broadcast %cst_409 : f32 to vector<1x8xf32>
    %483 = arith.addf %479, %482 : vector<1x8xf32>
    %484 = math.rsqrt %483 : vector<1x8xf32>
    %485 = arith.mulf %481, %484 : vector<1x8xf32>
    %c0_410 = arith.constant 0 : index
    %c0_411 = arith.constant 0 : index
    %c0_412 = arith.constant 0 : index
    %486 = vector.load %arg20[%c0_410, %c0_411, %c0_412] : memref<1x1x8xf32, #tpu.memory_space<vmem>>, vector<1x1x8xf32>
    %487 = vector.shape_cast %486 : vector<1x1x8xf32> to vector<1x8xf32>
    %488 = arith.mulf %473, %485 : vector<1x8xf32>
    %489 = arith.subf %487, %488 : vector<1x8xf32>
    %c0_413 = arith.constant 0 : index
    %c0_414 = arith.constant 0 : index
    %490 = vector.load %arg22[%c0_413, %c0_414] : memref<8x8xf32, #tpu.memory_space<vmem>>, vector<8x8xf32>
    %cst_415 = arith.constant dense<0.000000e+00> : vector<1x8xf32>
    %491 = tpu.matmul %485, %490, %cst_415 {dimension_numbers = #tpu.dot_dimension_numbers<[1], [0], [0], [1], [0, 0, 1, 1], [], []>} : vector<1x8xf32>, vector<8x8xf32>, vector<1x8xf32> -> vector<1x8xf32>
    %c0_416 = arith.constant 0 : index
    %c0_417 = arith.constant 0 : index
    %492 = vector.load %arg22[%c0_416, %c0_417] : memref<8x8xf32, #tpu.memory_space<vmem>>, vector<8x8xf32>
    %cst_418 = arith.constant dense<0.000000e+00> : vector<1x8xf32>
    %493 = tpu.matmul %489, %492, %cst_418 {dimension_numbers = #tpu.dot_dimension_numbers<[1], [0], [0], [1], [0, 0, 1, 1], [], []>} : vector<1x8xf32>, vector<8x8xf32>, vector<1x8xf32> -> vector<1x8xf32>
    %494 = arith.mulf %228, %491 : vector<1x8xf32>
    %495 = arith.addf %494, %493 : vector<1x8xf32>
    %cst_419 = arith.constant 0.000000e+00 : f32
    %496 = vector.broadcast %cst_419 : f32 to vector<1x8xf32>
    %497 = arith.cmpf ogt, %495, %496 : vector<1x8xf32>
    %cst_420 = arith.constant 0.000000e+00 : f32
    %498 = vector.broadcast %cst_420 : f32 to vector<1x8xf32>
    %499 = arith.minimumf %495, %498 : vector<1x8xf32>
    %500 = math.exp %499 : vector<1x8xf32>
    %cst_421 = arith.constant 1.000000e+00 : f32
    %501 = vector.broadcast %cst_421 : f32 to vector<1x8xf32>
    %502 = arith.subf %500, %501 : vector<1x8xf32>
    %503 = arith.select %497, %495, %502 : vector<1x8xi1>, vector<1x8xf32>
    %c0_422 = arith.constant 0 : index
    %c0_423 = arith.constant 0 : index
    %c0_424 = arith.constant 0 : index
    %c0_425 = arith.constant 0 : index
    %504 = vector.load %arg23[%c0_422, %c0_423, %c0_424, %c0_425] : memref<1x2x1x8xf32, #tpu.memory_space<vmem>>, vector<1x1x1x8xf32>
    %505 = vector.shape_cast %504 : vector<1x1x1x8xf32> to vector<1x8xf32>
    %506 = vector.shape_cast %503 : vector<1x8xf32> to vector<1x1x1x8xf32>
    tpu.vector_store %arg23[%c0_422, %c0_423, %c0_424, %c0_425], %506 {strides = array<i32>} : memref<1x2x1x8xf32, #tpu.memory_space<vmem>>, vector<1x1x1x8xf32>,
    %507 = arith.mulf %462, %491 : vector<1x8xf32>
    %508 = arith.addf %507, %493 : vector<1x8xf32>
    %cst_426 = arith.constant 0.000000e+00 : f32
    %509 = vector.broadcast %cst_426 : f32 to vector<1x8xf32>
    %510 = arith.cmpf ogt, %508, %509 : vector<1x8xf32>
    %cst_427 = arith.constant 0.000000e+00 : f32
    %511 = vector.broadcast %cst_427 : f32 to vector<1x8xf32>
    %512 = arith.minimumf %508, %511 : vector<1x8xf32>
    %513 = math.exp %512 : vector<1x8xf32>
    %cst_428 = arith.constant 1.000000e+00 : f32
    %514 = vector.broadcast %cst_428 : f32 to vector<1x8xf32>
    %515 = arith.subf %513, %514 : vector<1x8xf32>
    %516 = arith.select %510, %508, %515 : vector<1x8xi1>, vector<1x8xf32>
    %c0_429 = arith.constant 0 : index
    %c1_430 = arith.constant 1 : index
    %c0_431 = arith.constant 0 : index
    %c0_432 = arith.constant 0 : index
    %517 = vector.load %arg23[%c0_429, %c1_430, %c0_431, %c0_432] : memref<1x2x1x8xf32, #tpu.memory_space<vmem>>, vector<1x1x1x8xf32>
    %518 = vector.shape_cast %517 : vector<1x1x1x8xf32> to vector<1x8xf32>
    %519 = vector.shape_cast %516 : vector<1x8xf32> to vector<1x1x1x8xf32>
    tpu.vector_store %arg23[%c0_429, %c1_430, %c0_431, %c0_432], %519 {strides = array<i32>} : memref<1x2x1x8xf32, #tpu.memory_space<vmem>>, vector<1x1x1x8xf32>,
    return
  }
  func.func @transform_0(%arg0: i32, %arg1: i32) -> (i32, i32, i32, i32) {
    %c2_i32 = arith.constant 2 : i32
    %0 = arith.muli %arg1, %c2_i32 : i32
    %1 = arith.addi %0, %arg0 : i32
    %c0_i32 = arith.constant 0 : i32
    %c0_i32_0 = arith.constant 0 : i32
    %c0_i32_1 = arith.constant 0 : i32
    %c0_i32_2 = arith.constant 0 : i32
    return %1, %c0_i32, %c0_i32_0, %c0_i32_1 : i32, i32, i32, i32
  }
  func.func @transform_1(%arg0: i32, %arg1: i32) -> (i32, i32, i32) {
    %c2_i32 = arith.constant 2 : i32
    %0 = arith.muli %arg1, %c2_i32 : i32
    %1 = arith.addi %0, %arg0 : i32
    %c0_i32 = arith.constant 0 : i32
    %c0_i32_0 = arith.constant 0 : i32
    %c0_i32_1 = arith.constant 0 : i32
    return %1, %c0_i32, %c0_i32_0 : i32, i32, i32
  }
  func.func @transform_2(%arg0: i32, %arg1: i32) -> (i32, i32, i32) {
    %c2_i32 = arith.constant 2 : i32
    %0 = arith.muli %arg1, %c2_i32 : i32
    %1 = arith.addi %0, %arg0 : i32
    %c0_i32 = arith.constant 0 : i32
    %c0_i32_0 = arith.constant 0 : i32
    %c0_i32_1 = arith.constant 0 : i32
    return %1, %c0_i32, %c0_i32_0 : i32, i32, i32
  }
  func.func @transform_3(%arg0: i32, %arg1: i32) -> (i32, i32, i32, i32) {
    %c0_i32 = arith.constant 0 : i32
    %c0_i32_0 = arith.constant 0 : i32
    %c0_i32_1 = arith.constant 0 : i32
    %c0_i32_2 = arith.constant 0 : i32
    return %arg0, %c0_i32, %c0_i32_0, %c0_i32_1 : i32, i32, i32, i32
  }
  func.func @transform_4(%arg0: i32, %arg1: i32) -> (i32, i32, i32) {
    %c0_i32 = arith.constant 0 : i32
    %c0_i32_0 = arith.constant 0 : i32
    %c0_i32_1 = arith.constant 0 : i32
    return %arg0, %c0_i32, %c0_i32_0 : i32, i32, i32
  }
  func.func @transform_5(%arg0: i32, %arg1: i32) -> (i32, i32, i32, i32) {
    %c0_i32 = arith.constant 0 : i32
    %c0_i32_0 = arith.constant 0 : i32
    %c0_i32_1 = arith.constant 0 : i32
    %c0_i32_2 = arith.constant 0 : i32
    return %arg0, %c0_i32, %c0_i32_0, %c0_i32_1 : i32, i32, i32, i32
  }
  func.func @transform_6(%arg0: i32, %arg1: i32) -> (i32, i32, i32) {
    %c0_i32 = arith.constant 0 : i32
    %c0_i32_0 = arith.constant 0 : i32
    %c0_i32_1 = arith.constant 0 : i32
    return %arg0, %c0_i32, %c0_i32_0 : i32, i32, i32
  }
  func.func @transform_7(%arg0: i32, %arg1: i32) -> (i32, i32, i32, i32) {
    %c0_i32 = arith.constant 0 : i32
    %c0_i32_0 = arith.constant 0 : i32
    %c0_i32_1 = arith.constant 0 : i32
    %c0_i32_2 = arith.constant 0 : i32
    return %arg0, %c0_i32, %c0_i32_0, %c0_i32_1 : i32, i32, i32, i32
  }
  func.func @transform_8(%arg0: i32, %arg1: i32) -> (i32, i32, i32) {
    %c0_i32 = arith.constant 0 : i32
    %c0_i32_0 = arith.constant 0 : i32
    %c0_i32_1 = arith.constant 0 : i32
    return %arg0, %c0_i32, %c0_i32_0 : i32, i32, i32
  }
  func.func @transform_9(%arg0: i32, %arg1: i32) -> (i32, i32, i32, i32) {
    %c0_i32 = arith.constant 0 : i32
    %c0_i32_0 = arith.constant 0 : i32
    %c0_i32_1 = arith.constant 0 : i32
    %c0_i32_2 = arith.constant 0 : i32
    return %arg0, %c0_i32, %c0_i32_0, %c0_i32_1 : i32, i32, i32, i32
  }
  func.func @transform_10(%arg0: i32, %arg1: i32) -> (i32, i32, i32) {
    %c0_i32 = arith.constant 0 : i32
    %c0_i32_0 = arith.constant 0 : i32
    %c0_i32_1 = arith.constant 0 : i32
    return %arg0, %c0_i32, %c0_i32_0 : i32, i32, i32
  }
  func.func @transform_11(%arg0: i32, %arg1: i32) -> (i32, i32, i32, i32) {
    %c0_i32 = arith.constant 0 : i32
    %c0_i32_0 = arith.constant 0 : i32
    %c0_i32_1 = arith.constant 0 : i32
    %c0_i32_2 = arith.constant 0 : i32
    return %arg0, %c0_i32, %c0_i32_0, %c0_i32_1 : i32, i32, i32, i32
  }
  func.func @transform_12(%arg0: i32, %arg1: i32) -> (i32, i32, i32) {
    %c0_i32 = arith.constant 0 : i32
    %c0_i32_0 = arith.constant 0 : i32
    %c0_i32_1 = arith.constant 0 : i32
    return %arg0, %c0_i32, %c0_i32_0 : i32, i32, i32
  }
  func.func @transform_13(%arg0: i32, %arg1: i32) -> (i32, i32, i32, i32) {
    %c0_i32 = arith.constant 0 : i32
    %c0_i32_0 = arith.constant 0 : i32
    %c0_i32_1 = arith.constant 0 : i32
    %c0_i32_2 = arith.constant 0 : i32
    return %arg0, %c0_i32, %c0_i32_0, %c0_i32_1 : i32, i32, i32, i32
  }
  func.func @transform_14(%arg0: i32, %arg1: i32) -> (i32, i32, i32) {
    %c0_i32 = arith.constant 0 : i32
    %c0_i32_0 = arith.constant 0 : i32
    %c0_i32_1 = arith.constant 0 : i32
    return %arg0, %c0_i32, %c0_i32_0 : i32, i32, i32
  }
  func.func @transform_15(%arg0: i32, %arg1: i32) -> (i32, i32) {
    %c0_i32 = arith.constant 0 : i32
    %c0_i32_0 = arith.constant 0 : i32
    %c0_i32_1 = arith.constant 0 : i32
    return %c0_i32, %c0_i32_0 : i32, i32
  }
  func.func @transform_16(%arg0: i32, %arg1: i32) -> (i32, i32) {
    %c0_i32 = arith.constant 0 : i32
    %c0_i32_0 = arith.constant 0 : i32
    %c0_i32_1 = arith.constant 0 : i32
    return %c0_i32, %c0_i32_0 : i32, i32
  }
  func.func @transform_17(%arg0: i32, %arg1: i32) -> (i32, i32, i32) {
    %c0_i32 = arith.constant 0 : i32
    %c0_i32_0 = arith.constant 0 : i32
    %c0_i32_1 = arith.constant 0 : i32
    return %arg0, %c0_i32, %c0_i32_0 : i32, i32, i32
  }
  func.func @transform_18(%arg0: i32, %arg1: i32) -> (i32, i32, i32) {
    %c0_i32 = arith.constant 0 : i32
    %c0_i32_0 = arith.constant 0 : i32
    %c0_i32_1 = arith.constant 0 : i32
    return %arg0, %c0_i32, %c0_i32_0 : i32, i32, i32
  }
  func.func @transform_19(%arg0: i32, %arg1: i32) -> (i32, i32) {
    %c0_i32 = arith.constant 0 : i32
    %c0_i32_0 = arith.constant 0 : i32
    %c0_i32_1 = arith.constant 0 : i32
    return %c0_i32, %c0_i32_0 : i32, i32
  }
  func.func @transform_20(%arg0: i32, %arg1: i32) -> (i32, i32) {
    %c0_i32 = arith.constant 0 : i32
    %c0_i32_0 = arith.constant 0 : i32
    %c0_i32_1 = arith.constant 0 : i32
    return %c0_i32, %c0_i32_0 : i32, i32
  }
  func.func @transform_21(%arg0: i32, %arg1: i32) -> (i32, i32, i32, i32) {
    %c2_i32 = arith.constant 2 : i32
    %0 = arith.muli %arg1, %c2_i32 : i32
    %1 = arith.addi %0, %arg0 : i32
    %c0_i32 = arith.constant 0 : i32
    %c0_i32_0 = arith.constant 0 : i32
    %c0_i32_1 = arith.constant 0 : i32
    %c0_i32_2 = arith.constant 0 : i32
    return %1, %c0_i32, %c0_i32_0, %c0_i32_1 : i32, i32, i32, i32
  }
}

</mosaic_0001>

<llo_original>
// kernel: tile.62
$region0: #{tile.62}
  #allocation0 [shape = 's32[1]{0}', space=sflag, size = 0x4, scoped, tag = 'scoped memory for tile.62']
  %s0 = inlined_call_operand.vmem [shape: f32[8], index: 0, kind: input, shape index: {}]
  %s1 = inlined_call_operand.vmem [shape: f32[30,8], index: 1, kind: output, shape index: {}]
  // Predicated region
  $region2: #{tile.62} parent=0 // pred_check
    _
  $region3: #{tile.62} parent=0 // pred_check_branch
    %3 = sbr.rel (0) target = $region5
  $region4: #{tile.62} parent=0 // pred_region
    _
  $region5: #{tile.62} parent=0 // pred_fallthru
    _
  %v4 = vld [vmem:[%s0] ss:$0 sm:$0xff]
  %5 = vst [vmem:[%s1] sm:$0xff] %v4
  %s6 = scalar_lea.vmem %s1, 8
  %7 = vst [vmem:[%s6] sm:$0xff] %v4
  %s8 = scalar_lea.vmem %s1, 16
  %9 = vst [vmem:[%s8] sm:$0xff] %v4
  %s10 = scalar_lea.vmem %s1, 24
  %11 = vst [vmem:[%s10] sm:$0xff] %v4

// kernel: tile.66
$region0: #{tile.66}
  %s0 = inlined_call_operand.vmem [shape: f32[30,8], index: 0, kind: input, shape index: {}]
  %s1 = inlined_call_operand.vmem [shape: f32[1,1,240], index: 1, kind: output, shape index: {}]
  $region1: #{tile.66} parent=0
    #allocation0 [shape = 'u8[8192]{0}', space=vmem, size = 0x2000, scoped, tag = 'scoped mem for output reshape']
    %s2 = smov 3
    %v3 = vld [vmem:[%s0] ss:$16 sm:%s2]
    %vm4 = vcmask 64512
    %5 = vst.msk [vmem:[#allocation0] ss:$8 sm:$0x3] %vm4, %v3
    %s6 = scalar_lea.vmem %s0, 15
    %v7 = vld [vmem:[%s6] sm:$0x1]
    %8 = vrot.lane.b32.xlu0 %v7, 120
    %v9 = vpop.permute.xlu0 %8
    %vm10 = vcmask 1048512
    %11 = vst.msk [vmem:[#allocation0] sm:$0x1] %vm10, %v9
    %s12 = scalar_lea.vmem %s0, 14
    %v13 = vld [vmem:[%s12] sm:$0x1]
    %14 = vrot.lane.b32.xlu0 %v13, 112
    %v15 = vpop.permute.xlu0 %14
    %vm16 = vcmask 982912
    %17 = vst.msk [vmem:[#allocation0] sm:$0x1] %vm16, %v15
    %s18 = scalar_lea.vmem %s0, 13
    %s19 = smov 3
    %v20 = vld [vmem:[%s18] ss:$16 sm:%s19]
    %21 = vrot.lane.b32.xlu0 %v20, 104
    %v22 = vpop.permute.xlu0 %21
    %vm23 = vcmask 917312
    %24 = vst.msk [vmem:[#allocation0] ss:$8 sm:$0x3] %vm23, %v22
    %s25 = scalar_lea.vmem %s0, 12
    %s26 = smov 3
    %v27 = vld [vmem:[%s25] ss:$16 sm:%s26]
    %28 = vrot.lane.b32.xlu0 %v27, 96
    %v29 = vpop.permute.xlu0 %28
    %vm30 = vcmask 851712
    %31 = vst.msk [vmem:[#allocation0] ss:$8 sm:$0x3] %vm30, %v29
    %s32 = scalar_lea.vmem %s0, 11
    %s33 = smov 3
    %v34 = vld [vmem:[%s32] ss:$16 sm:%s33]
    %35 = vrot.lane.b32.xlu0 %v34, 88
    %v36 = vpop.permute.xlu0 %35
    %vm37 = vcmask 786112
    %38 = vst.msk [vmem:[#allocation0] ss:$8 sm:$0x3] %vm37, %v36
    %s39 = scalar_lea.vmem %s0, 10
    %s40 = smov 3
    %v41 = vld [vmem:[%s39] ss:$16 sm:%s40]
    %42 = vrot.lane.b32.xlu0 %v41, 80
    %v43 = vpop.permute.xlu0 %42
    %vm44 = vcmask 720512
    %45 = vst.msk [vmem:[#allocation0] ss:$8 sm:$0x3] %vm44, %v43
    %s46 = scalar_lea.vmem %s0, 9
    %s47 = smov 3
    %v48 = vld [vmem:[%s46] ss:$16 sm:%s47]
    %49 = vrot.lane.b32.xlu0 %v48, 72
    %v50 = vpop.permute.xlu0 %49
    %vm51 = vcmask 654912
    %52 = vst.msk [vmem:[#allocation0] ss:$8 sm:$0x3] %vm51, %v50
    %s53 = scalar_lea.vmem %s0, 8
    %s54 = smov 3
    %v55 = vld [vmem:[%s53] ss:$16 sm:%s54]
    %56 = vrot.lane.b32.xlu0 %v55, 64
    %v57 = vpop.permute.xlu0 %56
    %vm58 = vcmask 589312
    %59 = vst.msk [vmem:[#allocation0] ss:$8 sm:$0x3] %vm58, %v57
    %s60 = scalar_lea.vmem %s0, 7
    %s61 = smov 3
    %v62 = vld [vmem:[%s60] ss:$16 sm:%s61]
    %63 = vrot.lane.b32.xlu0 %v62, 56
    %v64 = vpop.permute.xlu0 %63
    %vm65 = vcmask 523712
    %66 = vst.msk [vmem:[#allocation0] ss:$8 sm:$0x3] %vm65, %v64
    %s67 = scalar_lea.vmem %s0, 6
    %s68 = smov 3
    %v69 = vld [vmem:[%s67] ss:$16 sm:%s68]
    %70 = vrot.lane.b32.xlu0 %v69, 48
    %v71 = vpop.permute.xlu0 %70
    %vm72 = vcmask 458112
    %73 = vst.msk [vmem:[#allocation0] ss:$8 sm:$0x3] %vm72, %v71
    %s74 = scalar_lea.vmem %s0, 5
    %s75 = smov 3
    %v76 = vld [vmem:[%s74] ss:$16 sm:%s75]
    %77 = vrot.lane.b32.xlu0 %v76, 40
    %v78 = vpop.permute.xlu0 %77
    %vm79 = vcmask 392512
    %80 = vst.msk [vmem:[#allocation0] ss:$8 sm:$0x3] %vm79, %v78
    %s81 = scalar_lea.vmem %s0, 4
    %s82 = smov 3
    %v83 = vld [vmem:[%s81] ss:$16 sm:%s82]
    %84 = vrot.lane.b32.xlu0 %v83, 32
    %v85 = vpop.permute.xlu0 %84
    %vm86 = vcmask 326912
    %87 = vst.msk [vmem:[#allocation0] ss:$8 sm:$0x3] %vm86, %v85
    %s88 = scalar_lea.vmem %s0, 3
    %s89 = smov 3
    %v90 = vld [vmem:[%s88] ss:$16 sm:%s89]
    %91 = vrot.lane.b32.xlu0 %v90, 24
    %v92 = vpop.permute.xlu0 %91
    %vm93 = vcmask 261312
    %94 = vst.msk [vmem:[#allocation0] ss:$8 sm:$0x3] %vm93, %v92
    %s95 = scalar_lea.vmem %s0, 2
    %s96 = smov 3
    %v97 = vld [vmem:[%s95] ss:$16 sm:%s96]
    %98 = vrot.lane.b32.xlu0 %v97, 16
    %v99 = vpop.permute.xlu0 %98
    %vm100 = vcmask 195712
    %101 = vst.msk [vmem:[#allocation0] ss:$8 sm:$0x3] %vm100, %v99
    %s102 = scalar_lea.vmem %s0, 1
    %s103 = smov 3
    %v104 = vld [vmem:[%s102] ss:$16 sm:%s103]
    %105 = vrot.lane.b32.xlu0 %v104, 8
    %v106 = vpop.permute.xlu0 %105
    %vm107 = vcmask 130112
    %108 = vst.msk [vmem:[#allocation0] ss:$8 sm:$0x3] %vm107, %v106
    %s110 = sshllo.u32 0, 1
    %v112 = vld [vmem:[#allocation0] sm:%s110]
    %s113 = sshllo.u32 0, 1
    %114 = vst [vmem:[%s1] sm:%s113] %v112
    %s115 = scalar_lea.vmem [#allocation0], 8
    %v116 = vld [vmem:[%s115] sm:%s110]
    %s117 = sshllo.u32 0, 1
    %s118 = scalar_lea.vmem %s1, 1
    %119 = vst [vmem:[%s118] sm:%s117] %v116

// kernel: tile.70
$region0: #{tile.70}
  #allocation0 [shape = 's32[1]{0}', space=sflag, size = 0x4, scoped, tag = 'scoped memory for tile.70']
  %s0 = inlined_call_operand.vmem [shape: f32[8], index: 0, kind: input, shape index: {}]
  %s1 = inlined_call_operand.vmem [shape: f32[26,8], index: 1, kind: output, shape index: {}]
  // Predicated region
  $region2: #{tile.70} parent=0 // pred_check
    _
  $region3: #{tile.70} parent=0 // pred_check_branch
    %3 = sbr.rel (0) target = $region5
  $region4: #{tile.70} parent=0 // pred_region
    _
  $region5: #{tile.70} parent=0 // pred_fallthru
    _
  %v4 = vld [vmem:[%s0] ss:$0 sm:$0xff]
  %5 = vst [vmem:[%s1] sm:$0xff] %v4
  %s6 = scalar_lea.vmem %s1, 8
  %7 = vst [vmem:[%s6] sm:$0xff] %v4
  %s8 = scalar_lea.vmem %s1, 16
  %9 = vst [vmem:[%s8] sm:$0xff] %v4
  %s10 = scalar_lea.vmem %s1, 24
  %11 = vst [vmem:[%s10] sm:$0xff] %v4

// kernel: tile.74
$region0: #{tile.74}
  %s0 = inlined_call_operand.vmem [shape: f32[26,8], index: 0, kind: input, shape index: {}]
  %s1 = inlined_call_operand.vmem [shape: f32[1,1,208], index: 1, kind: output, shape index: {}]
  $region1: #{tile.74} parent=0
    #allocation0 [shape = 'u8[8192]{0}', space=vmem, size = 0x2000, scoped, tag = 'scoped mem for output reshape']
    %s2 = smov 3
    %v3 = vld [vmem:[%s0] ss:$16 sm:%s2]
    %vm4 = vcmask 64512
    %5 = vst.msk [vmem:[#allocation0] ss:$8 sm:$0x3] %vm4, %v3
    %s6 = scalar_lea.vmem %s0, 15
    %v7 = vld [vmem:[%s6] sm:$0x1]
    %8 = vrot.lane.b32.xlu0 %v7, 120
    %v9 = vpop.permute.xlu0 %8
    %vm10 = vcmask 1048512
    %11 = vst.msk [vmem:[#allocation0] sm:$0x1] %vm10, %v9
    %s12 = scalar_lea.vmem %s0, 14
    %v13 = vld [vmem:[%s12] sm:$0x1]
    %14 = vrot.lane.b32.xlu0 %v13, 112
    %v15 = vpop.permute.xlu0 %14
    %vm16 = vcmask 982912
    %17 = vst.msk [vmem:[#allocation0] sm:$0x1] %vm16, %v15
    %s18 = scalar_lea.vmem %s0, 13
    %v19 = vld [vmem:[%s18] sm:$0x1]
    %20 = vrot.lane.b32.xlu0 %v19, 104
    %v21 = vpop.permute.xlu0 %20
    %vm22 = vcmask 917312
    %23 = vst.msk [vmem:[#allocation0] sm:$0x1] %vm22, %v21
    %s24 = scalar_lea.vmem %s0, 12
    %v25 = vld [vmem:[%s24] sm:$0x1]
    %26 = vrot.lane.b32.xlu0 %v25, 96
    %v27 = vpop.permute.xlu0 %26
    %vm28 = vcmask 851712
    %29 = vst.msk [vmem:[#allocation0] sm:$0x1] %vm28, %v27
    %s30 = scalar_lea.vmem %s0, 11
    %v31 = vld [vmem:[%s30] sm:$0x1]
    %32 = vrot.lane.b32.xlu0 %v31, 88
    %v33 = vpop.permute.xlu0 %32
    %vm34 = vcmask 786112
    %35 = vst.msk [vmem:[#allocation0] sm:$0x1] %vm34, %v33
    %s36 = scalar_lea.vmem %s0, 10
    %v37 = vld [vmem:[%s36] sm:$0x1]
    %38 = vrot.lane.b32.xlu0 %v37, 80
    %v39 = vpop.permute.xlu0 %38
    %vm40 = vcmask 720512
    %41 = vst.msk [vmem:[#allocation0] sm:$0x1] %vm40, %v39
    %s42 = scalar_lea.vmem %s0, 9
    %s43 = smov 3
    %v44 = vld [vmem:[%s42] ss:$16 sm:%s43]
    %45 = vrot.lane.b32.xlu0 %v44, 72
    %v46 = vpop.permute.xlu0 %45
    %vm47 = vcmask 654912
    %48 = vst.msk [vmem:[#allocation0] ss:$8 sm:$0x3] %vm47, %v46
    %s49 = scalar_lea.vmem %s0, 8
    %s50 = smov 3
    %v51 = vld [vmem:[%s49] ss:$16 sm:%s50]
    %52 = vrot.lane.b32.xlu0 %v51, 64
    %v53 = vpop.permute.xlu0 %52
    %vm54 = vcmask 589312
    %55 = vst.msk [vmem:[#allocation0] ss:$8 sm:$0x3] %vm54, %v53
    %s56 = scalar_lea.vmem %s0, 7
    %s57 = smov 3
    %v58 = vld [vmem:[%s56] ss:$16 sm:%s57]
    %59 = vrot.lane.b32.xlu0 %v58, 56
    %v60 = vpop.permute.xlu0 %59
    %vm61 = vcmask 523712
    %62 = vst.msk [vmem:[#allocation0] ss:$8 sm:$0x3] %vm61, %v60
    %s63 = scalar_lea.vmem %s0, 6
    %s64 = smov 3
    %v65 = vld [vmem:[%s63] ss:$16 sm:%s64]
    %66 = vrot.lane.b32.xlu0 %v65, 48
    %v67 = vpop.permute.xlu0 %66
    %vm68 = vcmask 458112
    %69 = vst.msk [vmem:[#allocation0] ss:$8 sm:$0x3] %vm68, %v67
    %s70 = scalar_lea.vmem %s0, 5
    %s71 = smov 3
    %v72 = vld [vmem:[%s70] ss:$16 sm:%s71]
    %73 = vrot.lane.b32.xlu0 %v72, 40
    %v74 = vpop.permute.xlu0 %73
    %vm75 = vcmask 392512
    %76 = vst.msk [vmem:[#allocation0] ss:$8 sm:$0x3] %vm75, %v74
    %s77 = scalar_lea.vmem %s0, 4
    %s78 = smov 3
    %v79 = vld [vmem:[%s77] ss:$16 sm:%s78]
    %80 = vrot.lane.b32.xlu0 %v79, 32
    %v81 = vpop.permute.xlu0 %80
    %vm82 = vcmask 326912
    %83 = vst.msk [vmem:[#allocation0] ss:$8 sm:$0x3] %vm82, %v81
    %s84 = scalar_lea.vmem %s0, 3
    %s85 = smov 3
    %v86 = vld [vmem:[%s84] ss:$16 sm:%s85]
    %87 = vrot.lane.b32.xlu0 %v86, 24
    %v88 = vpop.permute.xlu0 %87
    %vm89 = vcmask 261312
    %90 = vst.msk [vmem:[#allocation0] ss:$8 sm:$0x3] %vm89, %v88
    %s91 = scalar_lea.vmem %s0, 2
    %s92 = smov 3
    %v93 = vld [vmem:[%s91] ss:$16 sm:%s92]
    %94 = vrot.lane.b32.xlu0 %v93, 16
    %v95 = vpop.permute.xlu0 %94
    %vm96 = vcmask 195712
    %97 = vst.msk [vmem:[#allocation0] ss:$8 sm:$0x3] %vm96, %v95
    %s98 = scalar_lea.vmem %s0, 1
    %s99 = smov 3
    %v100 = vld [vmem:[%s98] ss:$16 sm:%s99]
    %101 = vrot.lane.b32.xlu0 %v100, 8
    %v102 = vpop.permute.xlu0 %101
    %vm103 = vcmask 130112
    %104 = vst.msk [vmem:[#allocation0] ss:$8 sm:$0x3] %vm103, %v102
    %s106 = sshllo.u32 0, 1
    %v108 = vld [vmem:[#allocation0] sm:%s106]
    %s109 = sshllo.u32 0, 1
    %110 = vst [vmem:[%s1] sm:%s109] %v108
    %s111 = scalar_lea.vmem [#allocation0], 8
    %v112 = vld [vmem:[%s111] sm:%s106]
    %s113 = sshllo.u32 0, 1
    %s114 = scalar_lea.vmem %s1, 1
    %115 = vst [vmem:[%s114] sm:%s113] %v112

// kernel: tile.78
$region0: #{tile.78}
  #allocation0 [shape = 's32[1]{0}', space=sflag, size = 0x4, scoped, tag = 'scoped memory for tile.78']
  %s0 = inlined_call_operand.vmem [shape: f32[8], index: 0, kind: input, shape index: {}]
  %s1 = inlined_call_operand.vmem [shape: f32[22,8], index: 1, kind: output, shape index: {}]
  // Predicated region
  $region2: #{tile.78} parent=0 // pred_check
    _
  $region3: #{tile.78} parent=0 // pred_check_branch
    %3 = sbr.rel (0) target = $region5
  $region4: #{tile.78} parent=0 // pred_region
    _
  $region5: #{tile.78} parent=0 // pred_fallthru
    _
  %v4 = vld [vmem:[%s0] ss:$0 sm:$0xff]
  %5 = vst [vmem:[%s1] sm:$0xff] %v4
  %s6 = scalar_lea.vmem %s1, 8
  %7 = vst [vmem:[%s6] sm:$0xff] %v4
  %s8 = scalar_lea.vmem %s1, 16
  %9 = vst [vmem:[%s8] sm:$0xff] %v4

// kernel: tile.82
$region0: #{tile.82}
  %s0 = inlined_call_operand.vmem [shape: f32[22,8], index: 0, kind: input, shape index: {}]
  %s1 = inlined_call_operand.vmem [shape: f32[1,1,176], index: 1, kind: output, shape index: {}]
  $region1: #{tile.82} parent=0
    #allocation0 [shape = 'u8[8192]{0}', space=vmem, size = 0x2000, scoped, tag = 'scoped mem for output reshape']
    %s2 = smov 3
    %v3 = vld [vmem:[%s0] ss:$16 sm:%s2]
    %vm4 = vcmask 64512
    %5 = vst.msk [vmem:[#allocation0] ss:$8 sm:$0x3] %vm4, %v3
    %s6 = scalar_lea.vmem %s0, 15
    %v7 = vld [vmem:[%s6] sm:$0x1]
    %8 = vrot.lane.b32.xlu0 %v7, 120
    %v9 = vpop.permute.xlu0 %8
    %vm10 = vcmask 1048512
    %11 = vst.msk [vmem:[#allocation0] sm:$0x1] %vm10, %v9
    %s12 = scalar_lea.vmem %s0, 14
    %v13 = vld [vmem:[%s12] sm:$0x1]
    %14 = vrot.lane.b32.xlu0 %v13, 112
    %v15 = vpop.permute.xlu0 %14
    %vm16 = vcmask 982912
    %17 = vst.msk [vmem:[#allocation0] sm:$0x1] %vm16, %v15
    %s18 = scalar_lea.vmem %s0, 13
    %v19 = vld [vmem:[%s18] sm:$0x1]
    %20 = vrot.lane.b32.xlu0 %v19, 104
    %v21 = vpop.permute.xlu0 %20
    %vm22 = vcmask 917312
    %23 = vst.msk [vmem:[#allocation0] sm:$0x1] %vm22, %v21
    %s24 = scalar_lea.vmem %s0, 12
    %v25 = vld [vmem:[%s24] sm:$0x1]
    %26 = vrot.lane.b32.xlu0 %v25, 96
    %v27 = vpop.permute.xlu0 %26
    %vm28 = vcmask 851712
    %29 = vst.msk [vmem:[#allocation0] sm:$0x1] %vm28, %v27
    %s30 = scalar_lea.vmem %s0, 11
    %v31 = vld [vmem:[%s30] sm:$0x1]
    %32 = vrot.lane.b32.xlu0 %v31, 88
    %v33 = vpop.permute.xlu0 %32
    %vm34 = vcmask 786112
    %35 = vst.msk [vmem:[#allocation0] sm:$0x1] %vm34, %v33
    %s36 = scalar_lea.vmem %s0, 10
    %v37 = vld [vmem:[%s36] sm:$0x1]
    %38 = vrot.lane.b32.xlu0 %v37, 80
    %v39 = vpop.permute.xlu0 %38
    %vm40 = vcmask 720512
    %41 = vst.msk [vmem:[#allocation0] sm:$0x1] %vm40, %v39
    %s42 = scalar_lea.vmem %s0, 9
    %v43 = vld [vmem:[%s42] sm:$0x1]
    %44 = vrot.lane.b32.xlu0 %v43, 72
    %v45 = vpop.permute.xlu0 %44
    %vm46 = vcmask 654912
    %47 = vst.msk [vmem:[#allocation0] sm:$0x1] %vm46, %v45
    %s48 = scalar_lea.vmem %s0, 8
    %v49 = vld [vmem:[%s48] sm:$0x1]
    %50 = vrot.lane.b32.xlu0 %v49, 64
    %v51 = vpop.permute.xlu0 %50
    %vm52 = vcmask 589312
    %53 = vst.msk [vmem:[#allocation0] sm:$0x1] %vm52, %v51
    %s54 = scalar_lea.vmem %s0, 7
    %v55 = vld [vmem:[%s54] sm:$0x1]
    %56 = vrot.lane.b32.xlu0 %v55, 56
    %v57 = vpop.permute.xlu0 %56
    %vm58 = vcmask 523712
    %59 = vst.msk [vmem:[#allocation0] sm:$0x1] %vm58, %v57
    %s60 = scalar_lea.vmem %s0, 6
    %v61 = vld [vmem:[%s60] sm:$0x1]
    %62 = vrot.lane.b32.xlu0 %v61, 48
    %v63 = vpop.permute.xlu0 %62
    %vm64 = vcmask 458112
    %65 = vst.msk [vmem:[#allocation0] sm:$0x1] %vm64, %v63
    %s66 = scalar_lea.vmem %s0, 5
    %s67 = smov 3
    %v68 = vld [vmem:[%s66] ss:$16 sm:%s67]
    %69 = vrot.lane.b32.xlu0 %v68, 40
    %v70 = vpop.permute.xlu0 %69
    %vm71 = vcmask 392512
    %72 = vst.msk [vmem:[#allocation0] ss:$8 sm:$0x3] %vm71, %v70
    %s73 = scalar_lea.vmem %s0, 4
    %s74 = smov 3
    %v75 = vld [vmem:[%s73] ss:$16 sm:%s74]
    %76 = vrot.lane.b32.xlu0 %v75, 32
    %v77 = vpop.permute.xlu0 %76
    %vm78 = vcmask 326912
    %79 = vst.msk [vmem:[#allocation0] ss:$8 sm:$0x3] %vm78, %v77
    %s80 = scalar_lea.vmem %s0, 3
    %s81 = smov 3
    %v82 = vld [vmem:[%s80] ss:$16 sm:%s81]
    %83 = vrot.lane.b32.xlu0 %v82, 24
    %v84 = vpop.permute.xlu0 %83
    %vm85 = vcmask 261312
    %86 = vst.msk [vmem:[#allocation0] ss:$8 sm:$0x3] %vm85, %v84
    %s87 = scalar_lea.vmem %s0, 2
    %s88 = smov 3
    %v89 = vld [vmem:[%s87] ss:$16 sm:%s88]
    %90 = vrot.lane.b32.xlu0 %v89, 16
    %v91 = vpop.permute.xlu0 %90
    %vm92 = vcmask 195712
    %93 = vst.msk [vmem:[#allocation0] ss:$8 sm:$0x3] %vm92, %v91
    %s94 = scalar_lea.vmem %s0, 1
    %s95 = smov 3
    %v96 = vld [vmem:[%s94] ss:$16 sm:%s95]
    %97 = vrot.lane.b32.xlu0 %v96, 8
    %v98 = vpop.permute.xlu0 %97
    %vm99 = vcmask 130112
    %100 = vst.msk [vmem:[#allocation0] ss:$8 sm:$0x3] %vm99, %v98
    %s102 = sshllo.u32 0, 1
    %v104 = vld [vmem:[#allocation0] sm:%s102]
    %s105 = sshllo.u32 0, 1
    %106 = vst [vmem:[%s1] sm:%s105] %v104
    %s107 = scalar_lea.vmem [#allocation0], 8
    %v108 = vld [vmem:[%s107] sm:%s102]
    %s109 = sshllo.u32 0, 1
    %s110 = scalar_lea.vmem %s1, 1
    %111 = vst [vmem:[%s110] sm:%s109] %v108

// kernel: tile.86
$region0: #{tile.86}
  #allocation0 [shape = 's32[1]{0}', space=sflag, size = 0x4, scoped, tag = 'scoped memory for tile.86']
  %s0 = inlined_call_operand.vmem [shape: f32[8], index: 0, kind: input, shape index: {}]
  %s1 = inlined_call_operand.vmem [shape: f32[9,8], index: 1, kind: output, shape index: {}]
  // Predicated region
  $region2: #{tile.86} parent=0 // pred_check
    _
  $region3: #{tile.86} parent=0 // pred_check_branch
    %3 = sbr.rel (0) target = $region5
  $region4: #{tile.86} parent=0 // pred_region
    _
  $region5: #{tile.86} parent=0 // pred_fallthru
    _
  %v4 = vld [vmem:[%s0] ss:$0 sm:$0xff]
  %5 = vst [vmem:[%s1] sm:$0xff] %v4
  %s6 = scalar_lea.vmem %s1, 8
  %7 = vst [vmem:[%s6] sm:$0xff] %v4

// kernel: tile.90
$region0: #{tile.90}
  %s0 = inlined_call_operand.vmem [shape: f32[9,8], index: 0, kind: input, shape index: {}]
  %s1 = inlined_call_operand.vmem [shape: f32[1,1,72], index: 1, kind: output, shape index: {}]
  $region1: #{tile.90} parent=0
    #allocation0 [shape = 'u8[4096]{0}', space=vmem, size = 0x1000, scoped, tag = 'scoped mem for output reshape']
    %v2 = vld [vmem:[%s0] sm:$0x1]
    %vm3 = vcmask 64512
    %4 = vst.msk [vmem:[#allocation0] sm:$0x1] %vm3, %v2
    %s5 = scalar_lea.vmem %s0, 8
    %v6 = vld [vmem:[%s5] sm:$0x1]
    %7 = vrot.lane.b32.xlu0 %v6, 64
    %v8 = vpop.permute.xlu0 %7
    %vm9 = vcmask 589312
    %10 = vst.msk [vmem:[#allocation0] sm:$0x1] %vm9, %v8
    %s11 = scalar_lea.vmem %s0, 7
    %v12 = vld [vmem:[%s11] sm:$0x1]
    %13 = vrot.lane.b32.xlu0 %v12, 56
    %v14 = vpop.permute.xlu0 %13
    %vm15 = vcmask 523712
    %16 = vst.msk [vmem:[#allocation0] sm:$0x1] %vm15, %v14
    %s17 = scalar_lea.vmem %s0, 6
    %v18 = vld [vmem:[%s17] sm:$0x1]
    %19 = vrot.lane.b32.xlu0 %v18, 48
    %v20 = vpop.permute.xlu0 %19
    %vm21 = vcmask 458112
    %22 = vst.msk [vmem:[#allocation0] sm:$0x1] %vm21, %v20
    %s23 = scalar_lea.vmem %s0, 5
    %v24 = vld [vmem:[%s23] sm:$0x1]
    %25 = vrot.lane.b32.xlu0 %v24, 40
    %v26 = vpop.permute.xlu0 %25
    %vm27 = vcmask 392512
    %28 = vst.msk [vmem:[#allocation0] sm:$0x1] %vm27, %v26
    %s29 = scalar_lea.vmem %s0, 4
    %v30 = vld [vmem:[%s29] sm:$0x1]
    %31 = vrot.lane.b32.xlu0 %v30, 32
    %v32 = vpop.permute.xlu0 %31
    %vm33 = vcmask 326912
    %34 = vst.msk [vmem:[#allocation0] sm:$0x1] %vm33, %v32
    %s35 = scalar_lea.vmem %s0, 3
    %v36 = vld [vmem:[%s35] sm:$0x1]
    %37 = vrot.lane.b32.xlu0 %v36, 24
    %v38 = vpop.permute.xlu0 %37
    %vm39 = vcmask 261312
    %40 = vst.msk [vmem:[#allocation0] sm:$0x1] %vm39, %v38
    %s41 = scalar_lea.vmem %s0, 2
    %v42 = vld [vmem:[%s41] sm:$0x1]
    %43 = vrot.lane.b32.xlu0 %v42, 16
    %v44 = vpop.permute.xlu0 %43
    %vm45 = vcmask 195712
    %46 = vst.msk [vmem:[#allocation0] sm:$0x1] %vm45, %v44
    %s47 = scalar_lea.vmem %s0, 1
    %v48 = vld [vmem:[%s47] sm:$0x1]
    %49 = vrot.lane.b32.xlu0 %v48, 8
    %v50 = vpop.permute.xlu0 %49
    %vm51 = vcmask 130112
    %52 = vst.msk [vmem:[#allocation0] sm:$0x1] %vm51, %v50
    %s54 = sshllo.u32 0, 1
    %v56 = vld [vmem:[#allocation0] sm:%s54]
    %s57 = sshllo.u32 0, 1
    %58 = vst [vmem:[%s1] sm:%s57] %v56

// kernel: tile.94
$region0: #{tile.94}
  #allocation0 [shape = 's32[1]{0}', space=sflag, size = 0x4, scoped, tag = 'scoped memory for tile.94']
  %s0 = inlined_call_operand.vmem [shape: f32[8], index: 0, kind: input, shape index: {}]
  %s1 = inlined_call_operand.vmem [shape: f32[5,8], index: 1, kind: output, shape index: {}]
  // Predicated region
  $region2: #{tile.94} parent=0 // pred_check
    _
  $region3: #{tile.94} parent=0 // pred_check_branch
    %3 = sbr.rel (0) target = $region5
  $region4: #{tile.94} parent=0 // pred_region
    _
  $region5: #{tile.94} parent=0 // pred_fallthru
    _
  %v4 = vld [vmem:[%s0] ss:$0 sm:$0xff]
  %5 = vst [vmem:[%s1] sm:$0xff] %v4

// kernel: tile.98
$region0: #{tile.98}
  %s0 = inlined_call_operand.vmem [shape: f32[5,8], index: 0, kind: input, shape index: {}]
  %s1 = inlined_call_operand.vmem [shape: f32[1,1,40], index: 1, kind: output, shape index: {}]
  $region1: #{tile.98} parent=0
    #allocation0 [shape = 'u8[4096]{0}', space=vmem, size = 0x1000, scoped, tag = 'scoped mem for output reshape']
    %v2 = vld [vmem:[%s0] sm:$0x1]
    %vm3 = vcmask 64512
    %4 = vst.msk [vmem:[#allocation0] sm:$0x1] %vm3, %v2
    %s5 = scalar_lea.vmem %s0, 4
    %v6 = vld [vmem:[%s5] sm:$0x1]
    %7 = vrot.lane.b32.xlu0 %v6, 32
    %v8 = vpop.permute.xlu0 %7
    %vm9 = vcmask 326912
    %10 = vst.msk [vmem:[#allocation0] sm:$0x1] %vm9, %v8
    %s11 = scalar_lea.vmem %s0, 3
    %v12 = vld [vmem:[%s11] sm:$0x1]
    %13 = vrot.lane.b32.xlu0 %v12, 24
    %v14 = vpop.permute.xlu0 %13
    %vm15 = vcmask 261312
    %16 = vst.msk [vmem:[#allocation0] sm:$0x1] %vm15, %v14
    %s17 = scalar_lea.vmem %s0, 2
    %v18 = vld [vmem:[%s17] sm:$0x1]
    %19 = vrot.lane.b32.xlu0 %v18, 16
    %v20 = vpop.permute.xlu0 %19
    %vm21 = vcmask 195712
    %22 = vst.msk [vmem:[#allocation0] sm:$0x1] %vm21, %v20
    %s23 = scalar_lea.vmem %s0, 1
    %v24 = vld [vmem:[%s23] sm:$0x1]
    %25 = vrot.lane.b32.xlu0 %v24, 8
    %v26 = vpop.permute.xlu0 %25
    %vm27 = vcmask 130112
    %28 = vst.msk [vmem:[#allocation0] sm:$0x1] %vm27, %v26
    %s30 = sshllo.u32 0, 1
    %v32 = vld [vmem:[#allocation0] sm:%s30]
    %s33 = sshllo.u32 0, 1
    %34 = vst [vmem:[%s1] sm:%s33] %v32

// kernel: _lambda_.3
$region0: #{_lambda_.3}
  #allocation0 [shape = 'u32[]', space=smem, size = 0x4, offset = 0x4, fixed_abs, tag = 'smem constant byte address 0x4 - core index']
  #allocation1 [shape = 'u32[144,128]{1,0:T(1,128)}', space=vmem, size = 0x12000, scoped, tag = 'internal scratch']
  #allocation2 [shape = 'f32[1,1]{1,0:T(1,128)S(1)}', space=vmem, size = 0x200, scoped, tag = 'scoped memory for _lambda_.3']
  %s0 = inlined_call_operand.vmem [shape: f32[4,2,1,8], index: 0, kind: input, shape index: {}]
  %s1 = inlined_call_operand.vmem [shape: f32[8,8], index: 1, kind: input, shape index: {}]
  %s2 = inlined_call_operand.vmem [shape: f32[8,32], index: 2, kind: input, shape index: {}]
  %s3 = inlined_call_operand.vmem [shape: f32[1,32], index: 3, kind: input, shape index: {}]
  %s4 = inlined_call_operand.vmem [shape: f32[32,1], index: 4, kind: input, shape index: {}]
  %s5 = inlined_call_operand.<no memory space> [shape: f32[1,1], index: 5, kind: input, shape index: {}]
  %s6 = inlined_call_operand.vmem [shape: f32[2,2,1], index: 6, kind: output, shape index: {}]
  %s7 = sld [smem:[#allocation0]]
  $region57: #{_lambda_.3} parent=0
    _
  %s9 = ssub.s32 1, %s7
  %s10 = scalar_select 0, %s9, %s7
  %v11 = vstv %s5
  %12 = vst [vmem:[#allocation2] sm:$0x1] %v11
  loop: start=0, step=1, limit=4
  $region2: #{_lambda_.3} parent=0 // loop_pre_header
    _
  $region3: #{_lambda_.3} parent=0 // loop_header
    %s14 = sphi 0, %s18
    %p15 = scmp.ge.s32.totalorder %s14, 4
    %s24 = sphi 0, %s26
    %s27 = sphi 0, %s24
    %s28 = sphi 0, %s27
    %s44 = sphi 0, %s28
    %s48 = sphi 0, %s48
    %s50 = sphi 0, %s48
    %s51 = sphi 0, %s50
    %s65 = sphi 0, %s51
    %s69 = sphi 0, %s69
    %s71 = sphi 0, %s69
    %s72 = sphi 0, %s71
    %s86 = sphi 0, %s72
    %s90 = sphi 0, %s90
    %s92 = sphi 0, %s90
    %s93 = sphi 0, %s92
    %s107 = sphi 0, %s93
    %s111 = sphi 0, %s111
    %s113 = sphi 0, %s111
    %s114 = sphi 0, %s113
    %s128 = sphi 0, %s114
    %s132 = sphi 0, %s132
    %s134 = sphi 0, %s132
    %s135 = sphi 0, %s134
    %s149 = sphi 0, %s135
    %s155 = sphi 0, %s157
    %s158 = sphi 0, %s155
    %s159 = sphi 0, %s158
    %s175 = sphi 0, %s159
  $region4: #{_lambda_.3} parent=0 // loop_header_branch
    %17 = sbr.rel (%p15) target = $region8
  $region5: #{_lambda_.3} parent=0 // loop_body
    %s19 = ssub.s32 %s14, 1
    %s20 = ssub.s32 %s14, 2
    %s21 = sadd.s32 %s14, 1
    %s22 = ssub.s32 %s14, %s21
    %p23 = scmp.eq.s32.totalorder %s22, 0
    %s25 = sadd.s32 %s24, 1
    %s26 = scalar_select %p23, %s24, %s25
    %p29 = pneg %p23
    %p30 = scmp.eq.s32.totalorder %s14, 1
    %p31 = por %p29, %p30
    %p32 = scmp.ne.s32.totalorder %s24, %s27
    %p33 = scmp.eq.s32.totalorder %s14, 0
    %p34 = por %p32, %p33
    %p35 = scmp.ne.s32.totalorder %s24, %s27
    %p36 = scmp.eq.s32.totalorder %s19, 1
    %p37 = por %p35, %p36
    %p38 = scmp.ne.s32.totalorder %s27, %s28
    %p39 = scmp.eq.s32.totalorder %s19, 0
    %p40 = por %p38, %p39
    %p41 = scmp.ne.s32.totalorder %s27, %s28
    %p42 = scmp.eq.s32.totalorder %s20, 1
    %p43 = por %p41, %p42
    %p45 = scmp.ne.s32.totalorder %s28, %s44
    %p46 = scmp.eq.s32.totalorder %s20, 0
    %p47 = por %p45, %p46
    %s49 = sadd.s32 %s48, 1
    %p52 = scmp.eq.s32.totalorder %s14, 1
    %p53 = scmp.ne.s32.totalorder %s48, %s50
    %p54 = scmp.eq.s32.totalorder %s14, 0
    %p55 = por %p53, %p54
    %p56 = scmp.ne.s32.totalorder %s48, %s50
    %p57 = scmp.eq.s32.totalorder %s19, 1
    %p58 = por %p56, %p57
    %p59 = scmp.ne.s32.totalorder %s50, %s51
    %p60 = scmp.eq.s32.totalorder %s19, 0
    %p61 = por %p59, %p60
    %p62 = scmp.ne.s32.totalorder %s50, %s51
    %p63 = scmp.eq.s32.totalorder %s20, 1
    %p64 = por %p62, %p63
    %p66 = scmp.ne.s32.totalorder %s51, %s65
    %p67 = scmp.eq.s32.totalorder %s20, 0
    %p68 = por %p66, %p67
    %s70 = sadd.s32 %s69, 1
    %p73 = scmp.eq.s32.totalorder %s14, 1
    %p74 = scmp.ne.s32.totalorder %s69, %s71
    %p75 = scmp.eq.s32.totalorder %s14, 0
    %p76 = por %p74, %p75
    %p77 = scmp.ne.s32.totalorder %s69, %s71
    %p78 = scmp.eq.s32.totalorder %s19, 1
    %p79 = por %p77, %p78
    %p80 = scmp.ne.s32.totalorder %s71, %s72
    %p81 = scmp.eq.s32.totalorder %s19, 0
    %p82 = por %p80, %p81
    %p83 = scmp.ne.s32.totalorder %s71, %s72
    %p84 = scmp.eq.s32.totalorder %s20, 1
    %p85 = por %p83, %p84
    %p87 = scmp.ne.s32.totalorder %s72, %s86
    %p88 = scmp.eq.s32.totalorder %s20, 0
    %p89 = por %p87, %p88
    %s91 = sadd.s32 %s90, 1
    %p94 = scmp.eq.s32.totalorder %s14, 1
    %p95 = scmp.ne.s32.totalorder %s90, %s92
    %p96 = scmp.eq.s32.totalorder %s14, 0
    %p97 = por %p95, %p96
    %p98 = scmp.ne.s32.totalorder %s90, %s92
    %p99 = scmp.eq.s32.totalorder %s19, 1
    %p100 = por %p98, %p99
    %p101 = scmp.ne.s32.totalorder %s92, %s93
    %p102 = scmp.eq.s32.totalorder %s19, 0
    %p103 = por %p101, %p102
    %p104 = scmp.ne.s32.totalorder %s92, %s93
    %p105 = scmp.eq.s32.totalorder %s20, 1
    %p106 = por %p104, %p105
    %p108 = scmp.ne.s32.totalorder %s93, %s107
    %p109 = scmp.eq.s32.totalorder %s20, 0
    %p110 = por %p108, %p109
    %s112 = sadd.s32 %s111, 1
    %p115 = scmp.eq.s32.totalorder %s14, 1
    %p116 = scmp.ne.s32.totalorder %s111, %s113
    %p117 = scmp.eq.s32.totalorder %s14, 0
    %p118 = por %p116, %p117
    %p119 = scmp.ne.s32.totalorder %s111, %s113
    %p120 = scmp.eq.s32.totalorder %s19, 1
    %p121 = por %p119, %p120
    %p122 = scmp.ne.s32.totalorder %s113, %s114
    %p123 = scmp.eq.s32.totalorder %s19, 0
    %p124 = por %p122, %p123
    %p125 = scmp.ne.s32.totalorder %s113, %s114
    %p126 = scmp.eq.s32.totalorder %s20, 1
    %p127 = por %p125, %p126
    %p129 = scmp.ne.s32.totalorder %s114, %s128
    %p130 = scmp.eq.s32.totalorder %s20, 0
    %p131 = por %p129, %p130
    %s133 = sadd.s32 %s132, 1
    %p136 = scmp.eq.s32.totalorder %s14, 1
    %p137 = scmp.ne.s32.totalorder %s132, %s134
    %p138 = scmp.eq.s32.totalorder %s14, 0
    %p139 = por %p137, %p138
    %p140 = scmp.ne.s32.totalorder %s132, %s134
    %p141 = scmp.eq.s32.totalorder %s19, 1
    %p142 = por %p140, %p141
    %p143 = scmp.ne.s32.totalorder %s134, %s135
    %p144 = scmp.eq.s32.totalorder %s19, 0
    %p145 = por %p143, %p144
    %p146 = scmp.ne.s32.totalorder %s134, %s135
    %p147 = scmp.eq.s32.totalorder %s20, 1
    %p148 = por %p146, %p147
    %p150 = scmp.ne.s32.totalorder %s135, %s149
    %p151 = scmp.eq.s32.totalorder %s20, 0
    %p152 = por %p150, %p151
    %s153 = ssub.s32 %s14, %s21
    %p154 = scmp.eq.s32.totalorder %s153, 0
    %s156 = sadd.s32 %s155, 1
    %s157 = scalar_select %p154, %s155, %s156
    %p160 = pneg %p154
    %p161 = scmp.eq.s32.totalorder %s14, 1
    %p162 = por %p160, %p161
    %p163 = scmp.ne.s32.totalorder %s155, %s158
    %p164 = scmp.eq.s32.totalorder %s14, 0
    %p165 = por %p163, %p164
    %p166 = scmp.ne.s32.totalorder %s155, %s158
    %p167 = scmp.eq.s32.totalorder %s19, 1
    %p168 = por %p166, %p167
    %p169 = scmp.ne.s32.totalorder %s158, %s159
    %p170 = scmp.eq.s32.totalorder %s19, 0
    %p171 = por %p169, %p170
    %p172 = scmp.ne.s32.totalorder %s158, %s159
    %p173 = scmp.eq.s32.totalorder %s20, 1
    %p174 = por %p172, %p173
    %p176 = scmp.ne.s32.totalorder %s159, %s175
    %p177 = scmp.eq.s32.totalorder %s20, 0
    %p178 = por %p176, %p177
    %p179 = scmp.le.s32.totalorder 1, %s14
    %p180 = scmp.lt.s32.totalorder %s14, 3
    %p181 = pnand %p179, %p180
    %p182 = pneg %p181
    // Predicated region
    $region9: #{_lambda_.3} parent=5 // pred_check
      _
    $region10: #{_lambda_.3} parent=5 // pred_check_branch
      %184 = sbr.rel (%p181) target = $region12
    $region11: #{_lambda_.3} parent=5 // pred_region
      %s185 = ssub.s32 %s14, 1
      // Predicated region
      $region13: #{_lambda_.3} parent=11 // pred_check
        %p186 = pneg %p61
      $region14: #{_lambda_.3} parent=11 // pred_check_branch
        %188 = sbr.rel (%p186) target = $region16
      $region15: #{_lambda_.3} parent=11 // pred_region
        _
      $region16: #{_lambda_.3} parent=11 // pred_fallthru
        _
      // Predicated region
      $region17: #{_lambda_.3} parent=11 // pred_check
        %p189 = pneg %p82
      $region18: #{_lambda_.3} parent=11 // pred_check_branch
        %191 = sbr.rel (%p189) target = $region20
      $region19: #{_lambda_.3} parent=11 // pred_region
        _
      $region20: #{_lambda_.3} parent=11 // pred_fallthru
        _
      // Predicated region
      $region21: #{_lambda_.3} parent=11 // pred_check
        %p192 = pneg %p103
      $region22: #{_lambda_.3} parent=11 // pred_check_branch
        %194 = sbr.rel (%p192) target = $region24
      $region23: #{_lambda_.3} parent=11 // pred_region
        _
      $region24: #{_lambda_.3} parent=11 // pred_fallthru
        _
      // Predicated region
      $region25: #{_lambda_.3} parent=11 // pred_check
        %p195 = pneg %p124
      $region26: #{_lambda_.3} parent=11 // pred_check_branch
        %197 = sbr.rel (%p195) target = $region28
      $region27: #{_lambda_.3} parent=11 // pred_region
        _
      $region28: #{_lambda_.3} parent=11 // pred_fallthru
        _
      // Predicated region
      $region29: #{_lambda_.3} parent=11 // pred_check
        %p198 = pneg %p145
      $region30: #{_lambda_.3} parent=11 // pred_check_branch
        %200 = sbr.rel (%p198) target = $region32
      $region31: #{_lambda_.3} parent=11 // pred_region
        _
      $region32: #{_lambda_.3} parent=11 // pred_fallthru
        _
    $region12: #{_lambda_.3} parent=5 // pred_fallthru
      _
    %p201 = scmp.lt.s32.totalorder %s14, 2
    // Predicated region
    $region33: #{_lambda_.3} parent=5 // pred_check
      %p202 = pneg %p201
    $region34: #{_lambda_.3} parent=5 // pred_check_branch
      %204 = sbr.rel (%p202) target = $region36
    $region35: #{_lambda_.3} parent=5 // pred_region
      // Predicated region
      $region37: #{_lambda_.3} parent=35 // pred_check
        %p205 = pneg %p34
      $region38: #{_lambda_.3} parent=35 // pred_check_branch
        %207 = sbr.rel (%p205) target = $region40
      $region39: #{_lambda_.3} parent=35 // pred_region
        %s208 = smul.u32 2, %s14
        %p209 = scmp.lt.s32.totalorder %s208, 3
        %s210 = scalar_select %p209, %s208, 3
        %s211 = smul.addr %s210, 2
        %s212 = scalar_lea.vmem %s0, %s211
        %s213 = smul.u32 2, %s14
      $region40: #{_lambda_.3} parent=35 // pred_fallthru
        _
    $region36: #{_lambda_.3} parent=5 // pred_fallthru
      _
    %p214 = scmp.le.s32.totalorder 1, %s14
    %p215 = scmp.lt.s32.totalorder %s14, 3
    %p216 = pnand %p214, %p215
    %p217 = pneg %p216
    // Predicated region
    $region41: #{_lambda_.3} parent=5 // pred_check
      _
    $region42: #{_lambda_.3} parent=5 // pred_check_branch
      %219 = sbr.rel (%p216) target = $region44
    $region43: #{_lambda_.3} parent=5 // pred_region
      %s220 = ssub.s32 %s14, 1
      %s221 = smul.u32 2, %s19
      %p222 = scmp.lt.s32.totalorder %s221, 3
      %s223 = scalar_select %p222, %s221, 3
      %s224 = smul.addr %s223, 2
      %s225 = scalar_lea.vmem %s0, %s224
      %p226 = pneg %p40
      %p227 = pneg %p37
      %p228 = pneg %p61
      %p229 = pneg %p58
      %p230 = pneg %p82
      %p231 = pneg %p79
      %p232 = pneg %p103
      %p233 = pneg %p100
      %p234 = pneg %p124
      %p235 = pneg %p121
      %p236 = pneg %p145
      %p237 = pneg %p142
      %p238 = pneg %p171
      %p239 = pneg %p168
      %p240 = scmp.lt.s32.totalorder %s19, 1
      %s241 = scalar_select %p240, %s19, 1
      %s242 = smul.addr %s241, 2
      %s243 = scalar_lea.vmem %s6, %s242
      %s244 = smul.u32 2, %s19
      %p245 = scmp.lt.s32.totalorder %s244, 3
      %s246 = scalar_select %p245, %s244, 3
      %s247 = smul.addr %s246, 2
      %s248 = scalar_lea.vmem %s0, %s247
      %s249 = smul.u32 2, %s19
      %p250 = scmp.lt.s32.totalorder %s19, 1
      %s251 = scalar_select %p250, %s19, 1
      %s252 = smul.addr %s251, 2
      %s253 = scalar_lea.vmem %s6, %s252
      %v254 = vld [vmem:[%s248] sm:$0x1]
      %v255 = vld [vmem:[%s248 + $0x1] sm:$0x1]
      %s256 = scalar_lea.vmem %s248, 2
      %v257 = vld [vmem:[%s256] sm:$0x1]
      %v258 = vld [vmem:[%s256 + $0x1] sm:$0x1]
      %v259 = vmul.f32 %v254, %v257
      %v260 = vmul.f32 %v255, %v258
      %v261 = vadd.f32 %v259, 0.0
      %v262 = vadd.f32 %v260, 0.0
      %v263 = vld [vmem:[%s1] sm:$0xff]
      %v266 = vcombine.low %v261, %v262
      %v268 = vunpack.c.l.s4 1966171168
      %v269 = vunpack.c.0.s8 %v268
      %v270 = vlaneseq
      %v271 = vshrl.u32 %v270, 7
      %v272 = vsub.s32 %v269, %v271
      %v273 = vrot.slane %v266, %v272
      %v275 = vunpack.c.l.s4 1966171168
      %v276 = vunpack.c.0.s8 %v275
      %v277 = vlaneseq
      %v278 = vshrl.u32 %v277, 7
      %v279 = vsub.s32 %v276, %v278
      %v280 = vrot.slane %v273, %v279
      %vm281 = vcmask 64512
      %v282 = vsel %vm281, %v280, 0
      %284 = vmatprep.subr.mxu0 0.0
      %285 = vmatpush1.msra.mxu0 %v263
      %286 = vmatprep.subr.mxu0 0.0
      %287 = vmatpush1.msra.mxu0 0.0
      %288 = vmatprep.subr.mxu0 0.0
      %289 = vmatpush1.msra.mxu0 0.0
      %290 = vmatprep.subr.mxu0 0.0
      %291 = vmatpush1.msra.mxu0 0.0
      %292 = vmatprep.subr.mxu0 0.0
      %293 = vmatpush1.msra.mxu0 0.0
      %294 = vmatprep.subr.mxu0 0.0
      %295 = vmatpush1.msra.mxu0 0.0
      %296 = vmatprep.subr.mxu0 0.0
      %297 = vmatpush1.msra.mxu0 0.0
      %298 = vmatprep.subr.mxu0 0.0
      %299 = vmatpush1.msra.mxu0 0.0
      %300 = vmatprep.subr.mxu0 0.0
      %301 = vmatpush1.msra.mxu0 0.0
      %302 = vmatprep.subr.mxu0 0.0
      %303 = vmatpush1.msra.mxu0 0.0
      %304 = vmatprep.subr.mxu0 0.0
      %305 = vmatpush1.msra.mxu0 0.0
      %306 = vmatprep.subr.mxu0 0.0
      %307 = vmatpush1.msra.mxu0 0.0
      %308 = vmatprep.subr.mxu0 0.0
      %309 = vmatpush1.msra.mxu0 0.0
      %310 = vmatprep.subr.mxu0 0.0
      %311 = vmatpush1.msra.mxu0 0.0
      %312 = vmatprep.subr.mxu0 0.0
      %313 = vmatpush1.msra.mxu0 0.0
      %314 = vmatprep.subr.mxu0 0.0
      %315 = vmatpush1.msra.mxu0 0.0
      %316 = vmatprep.subr.mxu0 0.0
      %317 = vmatpush1.msra.mxu0 0.0
      %318 = vmatprep.subr.mxu0 0.0
      %319 = vmatpush1.msra.mxu0 0.0
      %320 = vmatprep.subr.mxu0 0.0
      %321 = vmatpush1.msra.mxu0 0.0
      %322 = vmatprep.subr.mxu0 0.0
      %323 = vmatpush1.msra.mxu0 0.0
      %324 = vmatprep.subr.mxu0 0.0
      %325 = vmatpush1.msra.mxu0 0.0
      %326 = vmatprep.subr.mxu0 0.0
      %327 = vmatpush1.msra.mxu0 0.0
      %328 = vmatprep.subr.mxu0 0.0
      %329 = vmatpush1.msra.mxu0 0.0
      %330 = vmatprep.subr.mxu0 0.0
      %331 = vmatpush1.msra.mxu0 0.0
      %332 = vmatprep.subr.mxu0 0.0
      %333 = vmatpush1.msra.mxu0 0.0
      %334 = vmatprep.subr.mxu0 0.0
      %335 = vmatpush1.msra.mxu0 0.0
      %336 = vmatprep.subr.mxu0 0.0
      %337 = vmatpush1.msra.mxu0 0.0
      %338 = vmatprep.subr.mxu0 0.0
      %339 = vmatpush1.msra.mxu0 0.0
      %340 = vmatprep.subr.mxu0 0.0
      %341 = vmatpush1.msra.mxu0 0.0
      %342 = vmatprep.subr.mxu0 0.0
      %343 = vmatpush1.msra.mxu0 0.0
      %344 = vmatprep.subr.mxu0 0.0
      %345 = vmatpush1.msra.mxu0 0.0
      %346 = vmatprep.subr.mxu0 0.0
      %347 = vmatpush1.msra.mxu0 0.0
      %348 = vmatprep.mubr.f32.mxu0 0.0
      %349 = vmatmul.mubr.f32.gmra.mrb[0].mxu0 %v282
      %v350 = vpop.f32.mrb[0].mxu0
      %v351 = vadd.f32 0.0, %v350
      %v352 = vpop.f32.mrb[0].mxu0
      %353 = vdwg.mxu0
      %v354 = vld [vmem:[%s2] sm:$0xff]
      %v355 = vld [vmem:[%s3] sm:$0x1]
      %v357 = vlaneseq
      %v358 = vshrl.u32 %v357, 7
      %v359 = vsub.s32 0, %v358
      %v360 = vrot.slane %v355, %v359
      %v363 = vsel %vm281, %v351, 0
      %365 = vmatprep.subr.mxu0 0.0
      %366 = vmatpush1.msra.mxu0 %v354
      %367 = vmatprep.subr.mxu0 0.0
      %368 = vmatpush1.msra.mxu0 0.0
      %369 = vmatprep.subr.mxu0 0.0
      %370 = vmatpush1.msra.mxu0 0.0
      %371 = vmatprep.subr.mxu0 0.0
      %372 = vmatpush1.msra.mxu0 0.0
      %373 = vmatprep.subr.mxu0 0.0
      %374 = vmatpush1.msra.mxu0 0.0
      %375 = vmatprep.subr.mxu0 0.0
      %376 = vmatpush1.msra.mxu0 0.0
      %377 = vmatprep.subr.mxu0 0.0
      %378 = vmatpush1.msra.mxu0 0.0
      %379 = vmatprep.subr.mxu0 0.0
      %380 = vmatpush1.msra.mxu0 0.0
      %381 = vmatprep.subr.mxu0 0.0
      %382 = vmatpush1.msra.mxu0 0.0
      %383 = vmatprep.subr.mxu0 0.0
      %384 = vmatpush1.msra.mxu0 0.0
      %385 = vmatprep.subr.mxu0 0.0
      %386 = vmatpush1.msra.mxu0 0.0
      %387 = vmatprep.subr.mxu0 0.0
      %388 = vmatpush1.msra.mxu0 0.0
      %389 = vmatprep.subr.mxu0 0.0
      %390 = vmatpush1.msra.mxu0 0.0
      %391 = vmatprep.subr.mxu0 0.0
      %392 = vmatpush1.msra.mxu0 0.0
      %393 = vmatprep.subr.mxu0 0.0
      %394 = vmatpush1.msra.mxu0 0.0
      %395 = vmatprep.subr.mxu0 0.0
      %396 = vmatpush1.msra.mxu0 0.0
      %397 = vmatprep.subr.mxu0 0.0
      %398 = vmatpush1.msra.mxu0 0.0
      %399 = vmatprep.subr.mxu0 0.0
      %400 = vmatpush1.msra.mxu0 0.0
      %401 = vmatprep.subr.mxu0 0.0
      %402 = vmatpush1.msra.mxu0 0.0
      %403 = vmatprep.subr.mxu0 0.0
      %404 = vmatpush1.msra.mxu0 0.0
      %405 = vmatprep.subr.mxu0 0.0
      %406 = vmatpush1.msra.mxu0 0.0
      %407 = vmatprep.subr.mxu0 0.0
      %408 = vmatpush1.msra.mxu0 0.0
      %409 = vmatprep.subr.mxu0 0.0
      %410 = vmatpush1.msra.mxu0 0.0
      %411 = vmatprep.subr.mxu0 0.0
      %412 = vmatpush1.msra.mxu0 0.0
      %413 = vmatprep.subr.mxu0 0.0
      %414 = vmatpush1.msra.mxu0 0.0
      %415 = vmatprep.subr.mxu0 0.0
      %416 = vmatpush1.msra.mxu0 0.0
      %417 = vmatprep.subr.mxu0 0.0
      %418 = vmatpush1.msra.mxu0 0.0
      %419 = vmatprep.subr.mxu0 0.0
      %420 = vmatpush1.msra.mxu0 0.0
      %421 = vmatprep.subr.mxu0 0.0
      %422 = vmatpush1.msra.mxu0 0.0
      %423 = vmatprep.subr.mxu0 0.0
      %424 = vmatpush1.msra.mxu0 0.0
      %425 = vmatprep.subr.mxu0 0.0
      %426 = vmatpush1.msra.mxu0 0.0
      %427 = vmatprep.subr.mxu0 0.0
      %428 = vmatpush1.msra.mxu0 0.0
      %429 = vmatprep.mubr.f32.mxu0 0.0
      %430 = vmatmul.mubr.f32.gmra.mrb[0].mxu0 %v363
      %v431 = vpop.f32.mrb[0].mxu0
      %v432 = vadd.f32 %v360, %v431
      %v433 = vpop.f32.mrb[0].mxu0
      %434 = vdwg.mxu0
      %vm435 = vcmp.gt.f32.partialorder %v432, 0.0
      %v436 = vmin.f32 %v432, 0.0
      %v437 = vmul.f32 %v436, 1.442695
      %v438 = vpow.pop %v437
      %v439 = vsub.f32 %v438, 1.0
      %v440 = vsel %vm435, %v432, %v439
      %v441 = vld [vmem:[%s4] sm:$0xff]
      %v442 = vld [vmem:[%s4 + $0x8] sm:$0xff]
      %v443 = vld [vmem:[%s4 + $0x10] sm:$0xff]
      %v444 = vld [vmem:[%s4 + $0x18] sm:$0xff]
      %v445 = vld [vmem:[#allocation2] sm:$0x1]
      %v447 = vlaneseq
      %v448 = vshrl.u32 %v447, 7
      %v449 = vsub.s32 0, %v448
      %v450 = vrot.slane %v445, %v449
      %vm452 = vcmask 261120
      %v454 = vsel %vm452, %v440, 0
      %456 = vmatprep.subr.mxu0 0.0
      %457 = vmatpush1.msra.mxu0 %v441
      %458 = vmatprep.subr.mxu0 0.0
      %459 = vmatpush1.msra.mxu0 %v442
      %460 = vmatprep.subr.mxu0 0.0
      %461 = vmatpush1.msra.mxu0 %v443
      %462 = vmatprep.subr.mxu0 0.0
      %463 = vmatpush1.msra.mxu0 %v444
      %464 = vmatprep.subr.mxu0 0.0
      %465 = vmatpush1.msra.mxu0 0.0
      %466 = vmatprep.subr.mxu0 0.0
      %467 = vmatpush1.msra.mxu0 0.0
      %468 = vmatprep.subr.mxu0 0.0
      %469 = vmatpush1.msra.mxu0 0.0
      %470 = vmatprep.subr.mxu0 0.0
      %471 = vmatpush1.msra.mxu0 0.0
      %472 = vmatprep.subr.mxu0 0.0
      %473 = vmatpush1.msra.mxu0 0.0
      %474 = vmatprep.subr.mxu0 0.0
      %475 = vmatpush1.msra.mxu0 0.0
      %476 = vmatprep.subr.mxu0 0.0
      %477 = vmatpush1.msra.mxu0 0.0
      %478 = vmatprep.subr.mxu0 0.0
      %479 = vmatpush1.msra.mxu0 0.0
      %480 = vmatprep.subr.mxu0 0.0
      %481 = vmatpush1.msra.mxu0 0.0
      %482 = vmatprep.subr.mxu0 0.0
      %483 = vmatpush1.msra.mxu0 0.0
      %484 = vmatprep.subr.mxu0 0.0
      %485 = vmatpush1.msra.mxu0 0.0
      %486 = vmatprep.subr.mxu0 0.0
      %487 = vmatpush1.msra.mxu0 0.0
      %488 = vmatprep.subr.mxu0 0.0
      %489 = vmatpush1.msra.mxu0 0.0
      %490 = vmatprep.subr.mxu0 0.0
      %491 = vmatpush1.msra.mxu0 0.0
      %492 = vmatprep.subr.mxu0 0.0
      %493 = vmatpush1.msra.mxu0 0.0
      %494 = vmatprep.subr.mxu0 0.0
      %495 = vmatpush1.msra.mxu0 0.0
      %496 = vmatprep.subr.mxu0 0.0
      %497 = vmatpush1.msra.mxu0 0.0
      %498 = vmatprep.subr.mxu0 0.0
      %499 = vmatpush1.msra.mxu0 0.0
      %500 = vmatprep.subr.mxu0 0.0
      %501 = vmatpush1.msra.mxu0 0.0
      %502 = vmatprep.subr.mxu0 0.0
      %503 = vmatpush1.msra.mxu0 0.0
      %504 = vmatprep.subr.mxu0 0.0
      %505 = vmatpush1.msra.mxu0 0.0
      %506 = vmatprep.subr.mxu0 0.0
      %507 = vmatpush1.msra.mxu0 0.0
      %508 = vmatprep.subr.mxu0 0.0
      %509 = vmatpush1.msra.mxu0 0.0
      %510 = vmatprep.subr.mxu0 0.0
      %511 = vmatpush1.msra.mxu0 0.0
      %512 = vmatprep.subr.mxu0 0.0
      %513 = vmatpush1.msra.mxu0 0.0
      %514 = vmatprep.subr.mxu0 0.0
      %515 = vmatpush1.msra.mxu0 0.0
      %516 = vmatprep.subr.mxu0 0.0
      %517 = vmatpush1.msra.mxu0 0.0
      %518 = vmatprep.subr.mxu0 0.0
      %519 = vmatpush1.msra.mxu0 0.0
      %520 = vmatprep.mubr.f32.mxu0 0.0
      %521 = vmatmul.mubr.f32.gmra.mrb[0].mxu0 %v454
      %v522 = vpop.f32.mrb[0].mxu0
      %v523 = vadd.f32 %v450, %v522
      %v524 = vpop.f32.mrb[0].mxu0
      %525 = vdwg.mxu0
      %vm526 = vcmask 1024
      %527 = vst.msk [vmem:[%s253] sm:$0x3] %vm526, %v523
      %p528 = scmp.lt.s32.totalorder %s19, 1
      %s529 = scalar_select %p528, %s19, 1
      %s530 = smul.addr %s529, 2
      %s531 = scalar_lea.vmem %s6, %s530
      // Predicated region
      $region45: #{_lambda_.3} parent=43 // pred_check
        %p532 = pneg %p168
      $region46: #{_lambda_.3} parent=43 // pred_check_branch
        %534 = sbr.rel (%p532) target = $region48
      $region47: #{_lambda_.3} parent=43 // pred_region
        _
      $region48: #{_lambda_.3} parent=43 // pred_fallthru
        _
    $region44: #{_lambda_.3} parent=5 // pred_fallthru
      _
    %p535 = scmp.le.s32.totalorder 2, %s14
    // Predicated region
    $region49: #{_lambda_.3} parent=5 // pred_check
      %p536 = pneg %p535
    $region50: #{_lambda_.3} parent=5 // pred_check_branch
      %538 = sbr.rel (%p536) target = $region52
    $region51: #{_lambda_.3} parent=5 // pred_region
      %s539 = ssub.s32 %s14, 2
      // Predicated region
      $region53: #{_lambda_.3} parent=51 // pred_check
        %p540 = pneg %p174
      $region54: #{_lambda_.3} parent=51 // pred_check_branch
        %542 = sbr.rel (%p540) target = $region56
      $region55: #{_lambda_.3} parent=51 // pred_region
        %p543 = scmp.lt.s32.totalorder %s20, 1
        %s544 = scalar_select %p543, %s20, 1
        %s545 = smul.addr %s544, 2
        %s546 = scalar_lea.vmem %s6, %s545
      $region56: #{_lambda_.3} parent=51 // pred_fallthru
        _
    $region52: #{_lambda_.3} parent=5 // pred_fallthru
      _
  $region6: #{_lambda_.3} parent=0 // loop_footer
    %s18 = sadd.s32 1, %s14
  $region7: #{_lambda_.3} parent=0 // loop_footer_branch
    %13 = sbr.rel target = $region3
  $region8: #{_lambda_.3} parent=0 // loop_exit
    _

// kernel: _lambda_.2
$region0: #{_lambda_.2}
  #allocation0 [shape = 'u32[]', space=smem, size = 0x4, offset = 0x4, fixed_abs, tag = 'smem constant byte address 0x4 - core index']
  #allocation1 [shape = 'u32[144,128]{1,0:T(1,128)}', space=vmem, size = 0x12000, scoped, tag = 'internal scratch']
  %s0 = inlined_call_operand.vmem [shape: f32[4,2,64,64], index: 0, kind: input, shape index: {}]
  %s1 = inlined_call_operand.vmem [shape: f32[4,1,64], index: 1, kind: input, shape index: {}]
  %s2 = inlined_call_operand.vmem [shape: f32[4,1,64], index: 2, kind: input, shape index: {}]
  %s3 = inlined_call_operand.vmem [shape: bf16[2,5,64,240], index: 3, kind: input, shape index: {}]
  %s4 = inlined_call_operand.vmem [shape: f32[2,1,240], index: 4, kind: input, shape index: {}]
  %s5 = inlined_call_operand.vmem [shape: bf16[2,5,240,208], index: 5, kind: input, shape index: {}]
  %s6 = inlined_call_operand.vmem [shape: f32[2,1,208], index: 6, kind: input, shape index: {}]
  %s7 = inlined_call_operand.vmem [shape: bf16[2,5,208,176], index: 7, kind: input, shape index: {}]
  %s8 = inlined_call_operand.vmem [shape: f32[2,1,176], index: 8, kind: input, shape index: {}]
  %s9 = inlined_call_operand.vmem [shape: bf16[2,5,176,72], index: 9, kind: input, shape index: {}]
  %s10 = inlined_call_operand.vmem [shape: f32[2,1,72], index: 10, kind: input, shape index: {}]
  %s11 = inlined_call_operand.vmem [shape: bf16[2,5,72,40], index: 11, kind: input, shape index: {}]
  %s12 = inlined_call_operand.vmem [shape: f32[2,1,40], index: 12, kind: input, shape index: {}]
  %s13 = inlined_call_operand.vmem [shape: bf16[2,5,40,8], index: 13, kind: input, shape index: {}]
  %s14 = inlined_call_operand.vmem [shape: f32[2,1,8], index: 14, kind: input, shape index: {}]
  %s15 = inlined_call_operand.vmem [shape: f32[30,60], index: 15, kind: input, shape index: {}]
  %s16 = inlined_call_operand.vmem [shape: f32[9,18], index: 16, kind: input, shape index: {}]
  %s17 = inlined_call_operand.vmem [shape: f32[2,1,8], index: 17, kind: input, shape index: {}]
  %s18 = inlined_call_operand.vmem [shape: f32[2,1,8], index: 18, kind: input, shape index: {}]
  %s19 = inlined_call_operand.vmem [shape: f32[8,8], index: 19, kind: input, shape index: {}]
  %s20 = inlined_call_operand.vmem [shape: f32[8,8], index: 20, kind: input, shape index: {}]
  %s21 = inlined_call_operand.vmem [shape: f32[4,2,1,8], index: 21, kind: output, shape index: {}]
  %s22 = sld [smem:[#allocation0]]
  $region117: #{_lambda_.2} parent=0
    _
  %s24 = ssub.s32 1, %s22
  %s25 = scalar_select 0, %s24, %s22
  loop: start=0, step=1, limit=6
  $region2: #{_lambda_.2} parent=0 // loop_pre_header
    _
  $region3: #{_lambda_.2} parent=0 // loop_header
    %s27 = sphi 0, %s31
    %p28 = scmp.ge.s32.totalorder %s27, 6
    %s34 = sphi 0, %s46
    %s35 = sphi 0, %s42
    %s36 = sphi 0, %s34
    %s37 = sphi 0, %s35
    %s38 = sphi 0, %s36
    %s39 = sphi 0, %s37
    %s53 = sphi 0, %s55
    %s56 = sphi 0, %s53
    %s57 = sphi 0, %s56
    %s73 = sphi 0, %s57
    %s83 = sphi 0, %s85
    %s86 = sphi 0, %s83
    %s87 = sphi 0, %s86
    %s103 = sphi 0, %s87
    %s113 = sphi 0, %s115
    %s116 = sphi 0, %s113
    %s117 = sphi 0, %s116
    %s133 = sphi 0, %s117
    %s139 = sphi 0, %s141
    %s142 = sphi 0, %s139
    %s143 = sphi 0, %s142
    %s159 = sphi 0, %s143
    %s165 = sphi 0, %s167
    %s168 = sphi 0, %s165
    %s169 = sphi 0, %s168
    %s185 = sphi 0, %s169
    %s191 = sphi 0, %s193
    %s194 = sphi 0, %s191
    %s195 = sphi 0, %s194
    %s211 = sphi 0, %s195
    %s217 = sphi 0, %s219
    %s220 = sphi 0, %s217
    %s221 = sphi 0, %s220
    %s237 = sphi 0, %s221
    %s243 = sphi 0, %s245
    %s246 = sphi 0, %s243
    %s247 = sphi 0, %s246
    %s263 = sphi 0, %s247
    %s269 = sphi 0, %s271
    %s272 = sphi 0, %s269
    %s273 = sphi 0, %s272
    %s289 = sphi 0, %s273
    %s295 = sphi 0, %s297
    %s298 = sphi 0, %s295
    %s299 = sphi 0, %s298
    %s315 = sphi 0, %s299
    %s321 = sphi 0, %s323
    %s324 = sphi 0, %s321
    %s325 = sphi 0, %s324
    %s341 = sphi 0, %s325
    %s347 = sphi 0, %s349
    %s350 = sphi 0, %s347
    %s351 = sphi 0, %s350
    %s367 = sphi 0, %s351
    %s373 = sphi 0, %s375
    %s376 = sphi 0, %s373
    %s377 = sphi 0, %s376
    %s393 = sphi 0, %s377
    %s399 = sphi 0, %s401
    %s402 = sphi 0, %s399
    %s403 = sphi 0, %s402
    %s419 = sphi 0, %s403
    %s425 = sphi 0, %s427
    %s428 = sphi 0, %s425
    %s429 = sphi 0, %s428
    %s445 = sphi 0, %s429
    %s449 = sphi 0, %s449
    %s451 = sphi 0, %s449
    %s452 = sphi 0, %s451
    %s466 = sphi 0, %s452
    %s470 = sphi 0, %s470
    %s472 = sphi 0, %s470
    %s473 = sphi 0, %s472
    %s487 = sphi 0, %s473
    %s493 = sphi 0, %s495
    %s496 = sphi 0, %s493
    %s497 = sphi 0, %s496
    %s513 = sphi 0, %s497
    %s519 = sphi 0, %s521
    %s522 = sphi 0, %s519
    %s523 = sphi 0, %s522
    %s539 = sphi 0, %s523
    %s543 = sphi 0, %s543
    %s545 = sphi 0, %s543
    %s546 = sphi 0, %s545
    %s560 = sphi 0, %s546
    %s564 = sphi 0, %s564
    %s566 = sphi 0, %s564
    %s567 = sphi 0, %s566
    %s581 = sphi 0, %s567
    %s591 = sphi 0, %s593
    %s594 = sphi 0, %s591
    %s595 = sphi 0, %s594
    %s611 = sphi 0, %s595
  $region4: #{_lambda_.2} parent=0 // loop_header_branch
    %30 = sbr.rel (%p28) target = $region8
  $region5: #{_lambda_.2} parent=0 // loop_body
    %s32 = ssub.s32 %s27, 1
    %s33 = ssub.s32 %s27, 2
    %s40 = sadd.s32 1, %s35
    %p41 = scmp.ge.s32.totalorder %s40, 2
    %s42 = scalar_select %p41, 0, %s40
    %s43 = sadd.s32 1, %s34
    %s44 = scalar_select %p41, %s43, %s34
    %p45 = scmp.ge.s32.totalorder %s44, 2
    %s46 = scalar_select %p45, 0, %s44
    %s47 = smul.u32 %s35, 2
    %s48 = sadd.s32 %s47, %s34
    %s49 = smul.u32 %s42, 2
    %s50 = sadd.s32 %s49, %s46
    %s51 = ssub.s32 %s48, %s50
    %p52 = scmp.eq.s32.totalorder %s51, 0
    %s54 = sadd.s32 %s53, 1
    %s55 = scalar_select %p52, %s53, %s54
    %p58 = pneg %p52
    %p59 = scmp.eq.s32.totalorder %s27, 3
    %p60 = por %p58, %p59
    %p61 = scmp.ne.s32.totalorder %s53, %s56
    %p62 = scmp.eq.s32.totalorder %s27, 0
    %p63 = por %p61, %p62
    %p64 = scmp.ne.s32.totalorder %s53, %s56
    %p65 = scmp.eq.s32.totalorder %s32, 3
    %p66 = por %p64, %p65
    %p67 = scmp.ne.s32.totalorder %s56, %s57
    %p68 = scmp.eq.s32.totalorder %s32, 0
    %p69 = por %p67, %p68
    %p70 = scmp.ne.s32.totalorder %s56, %s57
    %p71 = scmp.eq.s32.totalorder %s33, 3
    %p72 = por %p70, %p71
    %p74 = scmp.ne.s32.totalorder %s57, %s73
    %p75 = scmp.eq.s32.totalorder %s33, 0
    %p76 = por %p74, %p75
    %s77 = smul.u32 %s35, 2
    %s78 = sadd.s32 %s77, %s34
    %s79 = smul.u32 %s42, 2
    %s80 = sadd.s32 %s79, %s46
    %s81 = ssub.s32 %s78, %s80
    %p82 = scmp.eq.s32.totalorder %s81, 0
    %s84 = sadd.s32 %s83, 1
    %s85 = scalar_select %p82, %s83, %s84
    %p88 = pneg %p82
    %p89 = scmp.eq.s32.totalorder %s27, 3
    %p90 = por %p88, %p89
    %p91 = scmp.ne.s32.totalorder %s83, %s86
    %p92 = scmp.eq.s32.totalorder %s27, 0
    %p93 = por %p91, %p92
    %p94 = scmp.ne.s32.totalorder %s83, %s86
    %p95 = scmp.eq.s32.totalorder %s32, 3
    %p96 = por %p94, %p95
    %p97 = scmp.ne.s32.totalorder %s86, %s87
    %p98 = scmp.eq.s32.totalorder %s32, 0
    %p99 = por %p97, %p98
    %p100 = scmp.ne.s32.totalorder %s86, %s87
    %p101 = scmp.eq.s32.totalorder %s33, 3
    %p102 = por %p100, %p101
    %p104 = scmp.ne.s32.totalorder %s87, %s103
    %p105 = scmp.eq.s32.totalorder %s33, 0
    %p106 = por %p104, %p105
    %s107 = smul.u32 %s35, 2
    %s108 = sadd.s32 %s107, %s34
    %s109 = smul.u32 %s42, 2
    %s110 = sadd.s32 %s109, %s46
    %s111 = ssub.s32 %s108, %s110
    %p112 = scmp.eq.s32.totalorder %s111, 0
    %s114 = sadd.s32 %s113, 1
    %s115 = scalar_select %p112, %s113, %s114
    %p118 = pneg %p112
    %p119 = scmp.eq.s32.totalorder %s27, 3
    %p120 = por %p118, %p119
    %p121 = scmp.ne.s32.totalorder %s113, %s116
    %p122 = scmp.eq.s32.totalorder %s27, 0
    %p123 = por %p121, %p122
    %p124 = scmp.ne.s32.totalorder %s113, %s116
    %p125 = scmp.eq.s32.totalorder %s32, 3
    %p126 = por %p124, %p125
    %p127 = scmp.ne.s32.totalorder %s116, %s117
    %p128 = scmp.eq.s32.totalorder %s32, 0
    %p129 = por %p127, %p128
    %p130 = scmp.ne.s32.totalorder %s116, %s117
    %p131 = scmp.eq.s32.totalorder %s33, 3
    %p132 = por %p130, %p131
    %p134 = scmp.ne.s32.totalorder %s117, %s133
    %p135 = scmp.eq.s32.totalorder %s33, 0
    %p136 = por %p134, %p135
    %s137 = ssub.s32 %s34, %s46
    %p138 = scmp.eq.s32.totalorder %s137, 0
    %s140 = sadd.s32 %s139, 1
    %s141 = scalar_select %p138, %s139, %s140
    %p144 = pneg %p138
    %p145 = scmp.eq.s32.totalorder %s27, 3
    %p146 = por %p144, %p145
    %p147 = scmp.ne.s32.totalorder %s139, %s142
    %p148 = scmp.eq.s32.totalorder %s27, 0
    %p149 = por %p147, %p148
    %p150 = scmp.ne.s32.totalorder %s139, %s142
    %p151 = scmp.eq.s32.totalorder %s32, 3
    %p152 = por %p150, %p151
    %p153 = scmp.ne.s32.totalorder %s142, %s143
    %p154 = scmp.eq.s32.totalorder %s32, 0
    %p155 = por %p153, %p154
    %p156 = scmp.ne.s32.totalorder %s142, %s143
    %p157 = scmp.eq.s32.totalorder %s33, 3
    %p158 = por %p156, %p157
    %p160 = scmp.ne.s32.totalorder %s143, %s159
    %p161 = scmp.eq.s32.totalorder %s33, 0
    %p162 = por %p160, %p161
    %s163 = ssub.s32 %s34, %s46
    %p164 = scmp.eq.s32.totalorder %s163, 0
    %s166 = sadd.s32 %s165, 1
    %s167 = scalar_select %p164, %s165, %s166
    %p170 = pneg %p164
    %p171 = scmp.eq.s32.totalorder %s27, 3
    %p172 = por %p170, %p171
    %p173 = scmp.ne.s32.totalorder %s165, %s168
    %p174 = scmp.eq.s32.totalorder %s27, 0
    %p175 = por %p173, %p174
    %p176 = scmp.ne.s32.totalorder %s165, %s168
    %p177 = scmp.eq.s32.totalorder %s32, 3
    %p178 = por %p176, %p177
    %p179 = scmp.ne.s32.totalorder %s168, %s169
    %p180 = scmp.eq.s32.totalorder %s32, 0
    %p181 = por %p179, %p180
    %p182 = scmp.ne.s32.totalorder %s168, %s169
    %p183 = scmp.eq.s32.totalorder %s33, 3
    %p184 = por %p182, %p183
    %p186 = scmp.ne.s32.totalorder %s169, %s185
    %p187 = scmp.eq.s32.totalorder %s33, 0
    %p188 = por %p186, %p187
    %s189 = ssub.s32 %s34, %s46
    %p190 = scmp.eq.s32.totalorder %s189, 0
    %s192 = sadd.s32 %s191, 1
    %s193 = scalar_select %p190, %s191, %s192
    %p196 = pneg %p190
    %p197 = scmp.eq.s32.totalorder %s27, 3
    %p198 = por %p196, %p197
    %p199 = scmp.ne.s32.totalorder %s191, %s194
    %p200 = scmp.eq.s32.totalorder %s27, 0
    %p201 = por %p199, %p200
    %p202 = scmp.ne.s32.totalorder %s191, %s194
    %p203 = scmp.eq.s32.totalorder %s32, 3
    %p204 = por %p202, %p203
    %p205 = scmp.ne.s32.totalorder %s194, %s195
    %p206 = scmp.eq.s32.totalorder %s32, 0
    %p207 = por %p205, %p206
    %p208 = scmp.ne.s32.totalorder %s194, %s195
    %p209 = scmp.eq.s32.totalorder %s33, 3
    %p210 = por %p208, %p209
    %p212 = scmp.ne.s32.totalorder %s195, %s211
    %p213 = scmp.eq.s32.totalorder %s33, 0
    %p214 = por %p212, %p213
    %s215 = ssub.s32 %s34, %s46
    %p216 = scmp.eq.s32.totalorder %s215, 0
    %s218 = sadd.s32 %s217, 1
    %s219 = scalar_select %p216, %s217, %s218
    %p222 = pneg %p216
    %p223 = scmp.eq.s32.totalorder %s27, 3
    %p224 = por %p222, %p223
    %p225 = scmp.ne.s32.totalorder %s217, %s220
    %p226 = scmp.eq.s32.totalorder %s27, 0
    %p227 = por %p225, %p226
    %p228 = scmp.ne.s32.totalorder %s217, %s220
    %p229 = scmp.eq.s32.totalorder %s32, 3
    %p230 = por %p228, %p229
    %p231 = scmp.ne.s32.totalorder %s220, %s221
    %p232 = scmp.eq.s32.totalorder %s32, 0
    %p233 = por %p231, %p232
    %p234 = scmp.ne.s32.totalorder %s220, %s221
    %p235 = scmp.eq.s32.totalorder %s33, 3
    %p236 = por %p234, %p235
    %p238 = scmp.ne.s32.totalorder %s221, %s237
    %p239 = scmp.eq.s32.totalorder %s33, 0
    %p240 = por %p238, %p239
    %s241 = ssub.s32 %s34, %s46
    %p242 = scmp.eq.s32.totalorder %s241, 0
    %s244 = sadd.s32 %s243, 1
    %s245 = scalar_select %p242, %s243, %s244
    %p248 = pneg %p242
    %p249 = scmp.eq.s32.totalorder %s27, 3
    %p250 = por %p248, %p249
    %p251 = scmp.ne.s32.totalorder %s243, %s246
    %p252 = scmp.eq.s32.totalorder %s27, 0
    %p253 = por %p251, %p252
    %p254 = scmp.ne.s32.totalorder %s243, %s246
    %p255 = scmp.eq.s32.totalorder %s32, 3
    %p256 = por %p254, %p255
    %p257 = scmp.ne.s32.totalorder %s246, %s247
    %p258 = scmp.eq.s32.totalorder %s32, 0
    %p259 = por %p257, %p258
    %p260 = scmp.ne.s32.totalorder %s246, %s247
    %p261 = scmp.eq.s32.totalorder %s33, 3
    %p262 = por %p260, %p261
    %p264 = scmp.ne.s32.totalorder %s247, %s263
    %p265 = scmp.eq.s32.totalorder %s33, 0
    %p266 = por %p264, %p265
    %s267 = ssub.s32 %s34, %s46
    %p268 = scmp.eq.s32.totalorder %s267, 0
    %s270 = sadd.s32 %s269, 1
    %s271 = scalar_select %p268, %s269, %s270
    %p274 = pneg %p268
    %p275 = scmp.eq.s32.totalorder %s27, 3
    %p276 = por %p274, %p275
    %p277 = scmp.ne.s32.totalorder %s269, %s272
    %p278 = scmp.eq.s32.totalorder %s27, 0
    %p279 = por %p277, %p278
    %p280 = scmp.ne.s32.totalorder %s269, %s272
    %p281 = scmp.eq.s32.totalorder %s32, 3
    %p282 = por %p280, %p281
    %p283 = scmp.ne.s32.totalorder %s272, %s273
    %p284 = scmp.eq.s32.totalorder %s32, 0
    %p285 = por %p283, %p284
    %p286 = scmp.ne.s32.totalorder %s272, %s273
    %p287 = scmp.eq.s32.totalorder %s33, 3
    %p288 = por %p286, %p287
    %p290 = scmp.ne.s32.totalorder %s273, %s289
    %p291 = scmp.eq.s32.totalorder %s33, 0
    %p292 = por %p290, %p291
    %s293 = ssub.s32 %s34, %s46
    %p294 = scmp.eq.s32.totalorder %s293, 0
    %s296 = sadd.s32 %s295, 1
    %s297 = scalar_select %p294, %s295, %s296
    %p300 = pneg %p294
    %p301 = scmp.eq.s32.totalorder %s27, 3
    %p302 = por %p300, %p301
    %p303 = scmp.ne.s32.totalorder %s295, %s298
    %p304 = scmp.eq.s32.totalorder %s27, 0
    %p305 = por %p303, %p304
    %p306 = scmp.ne.s32.totalorder %s295, %s298
    %p307 = scmp.eq.s32.totalorder %s32, 3
    %p308 = por %p306, %p307
    %p309 = scmp.ne.s32.totalorder %s298, %s299
    %p310 = scmp.eq.s32.totalorder %s32, 0
    %p311 = por %p309, %p310
    %p312 = scmp.ne.s32.totalorder %s298, %s299
    %p313 = scmp.eq.s32.totalorder %s33, 3
    %p314 = por %p312, %p313
    %p316 = scmp.ne.s32.totalorder %s299, %s315
    %p317 = scmp.eq.s32.totalorder %s33, 0
    %p318 = por %p316, %p317
    %s319 = ssub.s32 %s34, %s46
    %p320 = scmp.eq.s32.totalorder %s319, 0
    %s322 = sadd.s32 %s321, 1
    %s323 = scalar_select %p320, %s321, %s322
    %p326 = pneg %p320
    %p327 = scmp.eq.s32.totalorder %s27, 3
    %p328 = por %p326, %p327
    %p329 = scmp.ne.s32.totalorder %s321, %s324
    %p330 = scmp.eq.s32.totalorder %s27, 0
    %p331 = por %p329, %p330
    %p332 = scmp.ne.s32.totalorder %s321, %s324
    %p333 = scmp.eq.s32.totalorder %s32, 3
    %p334 = por %p332, %p333
    %p335 = scmp.ne.s32.totalorder %s324, %s325
    %p336 = scmp.eq.s32.totalorder %s32, 0
    %p337 = por %p335, %p336
    %p338 = scmp.ne.s32.totalorder %s324, %s325
    %p339 = scmp.eq.s32.totalorder %s33, 3
    %p340 = por %p338, %p339
    %p342 = scmp.ne.s32.totalorder %s325, %s341
    %p343 = scmp.eq.s32.totalorder %s33, 0
    %p344 = por %p342, %p343
    %s345 = ssub.s32 %s34, %s46
    %p346 = scmp.eq.s32.totalorder %s345, 0
    %s348 = sadd.s32 %s347, 1
    %s349 = scalar_select %p346, %s347, %s348
    %p352 = pneg %p346
    %p353 = scmp.eq.s32.totalorder %s27, 3
    %p354 = por %p352, %p353
    %p355 = scmp.ne.s32.totalorder %s347, %s350
    %p356 = scmp.eq.s32.totalorder %s27, 0
    %p357 = por %p355, %p356
    %p358 = scmp.ne.s32.totalorder %s347, %s350
    %p359 = scmp.eq.s32.totalorder %s32, 3
    %p360 = por %p358, %p359
    %p361 = scmp.ne.s32.totalorder %s350, %s351
    %p362 = scmp.eq.s32.totalorder %s32, 0
    %p363 = por %p361, %p362
    %p364 = scmp.ne.s32.totalorder %s350, %s351
    %p365 = scmp.eq.s32.totalorder %s33, 3
    %p366 = por %p364, %p365
    %p368 = scmp.ne.s32.totalorder %s351, %s367
    %p369 = scmp.eq.s32.totalorder %s33, 0
    %p370 = por %p368, %p369
    %s371 = ssub.s32 %s34, %s46
    %p372 = scmp.eq.s32.totalorder %s371, 0
    %s374 = sadd.s32 %s373, 1
    %s375 = scalar_select %p372, %s373, %s374
    %p378 = pneg %p372
    %p379 = scmp.eq.s32.totalorder %s27, 3
    %p380 = por %p378, %p379
    %p381 = scmp.ne.s32.totalorder %s373, %s376
    %p382 = scmp.eq.s32.totalorder %s27, 0
    %p383 = por %p381, %p382
    %p384 = scmp.ne.s32.totalorder %s373, %s376
    %p385 = scmp.eq.s32.totalorder %s32, 3
    %p386 = por %p384, %p385
    %p387 = scmp.ne.s32.totalorder %s376, %s377
    %p388 = scmp.eq.s32.totalorder %s32, 0
    %p389 = por %p387, %p388
    %p390 = scmp.ne.s32.totalorder %s376, %s377
    %p391 = scmp.eq.s32.totalorder %s33, 3
    %p392 = por %p390, %p391
    %p394 = scmp.ne.s32.totalorder %s377, %s393
    %p395 = scmp.eq.s32.totalorder %s33, 0
    %p396 = por %p394, %p395
    %s397 = ssub.s32 %s34, %s46
    %p398 = scmp.eq.s32.totalorder %s397, 0
    %s400 = sadd.s32 %s399, 1
    %s401 = scalar_select %p398, %s399, %s400
    %p404 = pneg %p398
    %p405 = scmp.eq.s32.totalorder %s27, 3
    %p406 = por %p404, %p405
    %p407 = scmp.ne.s32.totalorder %s399, %s402
    %p408 = scmp.eq.s32.totalorder %s27, 0
    %p409 = por %p407, %p408
    %p410 = scmp.ne.s32.totalorder %s399, %s402
    %p411 = scmp.eq.s32.totalorder %s32, 3
    %p412 = por %p410, %p411
    %p413 = scmp.ne.s32.totalorder %s402, %s403
    %p414 = scmp.eq.s32.totalorder %s32, 0
    %p415 = por %p413, %p414
    %p416 = scmp.ne.s32.totalorder %s402, %s403
    %p417 = scmp.eq.s32.totalorder %s33, 3
    %p418 = por %p416, %p417
    %p420 = scmp.ne.s32.totalorder %s403, %s419
    %p421 = scmp.eq.s32.totalorder %s33, 0
    %p422 = por %p420, %p421
    %s423 = ssub.s32 %s34, %s46
    %p424 = scmp.eq.s32.totalorder %s423, 0
    %s426 = sadd.s32 %s425, 1
    %s427 = scalar_select %p424, %s425, %s426
    %p430 = pneg %p424
    %p431 = scmp.eq.s32.totalorder %s27, 3
    %p432 = por %p430, %p431
    %p433 = scmp.ne.s32.totalorder %s425, %s428
    %p434 = scmp.eq.s32.totalorder %s27, 0
    %p435 = por %p433, %p434
    %p436 = scmp.ne.s32.totalorder %s425, %s428
    %p437 = scmp.eq.s32.totalorder %s32, 3
    %p438 = por %p436, %p437
    %p439 = scmp.ne.s32.totalorder %s428, %s429
    %p440 = scmp.eq.s32.totalorder %s32, 0
    %p441 = por %p439, %p440
    %p442 = scmp.ne.s32.totalorder %s428, %s429
    %p443 = scmp.eq.s32.totalorder %s33, 3
    %p444 = por %p442, %p443
    %p446 = scmp.ne.s32.totalorder %s429, %s445
    %p447 = scmp.eq.s32.totalorder %s33, 0
    %p448 = por %p446, %p447
    %s450 = sadd.s32 %s449, 1
    %p453 = scmp.eq.s32.totalorder %s27, 3
    %p454 = scmp.ne.s32.totalorder %s449, %s451
    %p455 = scmp.eq.s32.totalorder %s27, 0
    %p456 = por %p454, %p455
    %p457 = scmp.ne.s32.totalorder %s449, %s451
    %p458 = scmp.eq.s32.totalorder %s32, 3
    %p459 = por %p457, %p458
    %p460 = scmp.ne.s32.totalorder %s451, %s452
    %p461 = scmp.eq.s32.totalorder %s32, 0
    %p462 = por %p460, %p461
    %p463 = scmp.ne.s32.totalorder %s451, %s452
    %p464 = scmp.eq.s32.totalorder %s33, 3
    %p465 = por %p463, %p464
    %p467 = scmp.ne.s32.totalorder %s452, %s466
    %p468 = scmp.eq.s32.totalorder %s33, 0
    %p469 = por %p467, %p468
    %s471 = sadd.s32 %s470, 1
    %p474 = scmp.eq.s32.totalorder %s27, 3
    %p475 = scmp.ne.s32.totalorder %s470, %s472
    %p476 = scmp.eq.s32.totalorder %s27, 0
    %p477 = por %p475, %p476
    %p478 = scmp.ne.s32.totalorder %s470, %s472
    %p479 = scmp.eq.s32.totalorder %s32, 3
    %p480 = por %p478, %p479
    %p481 = scmp.ne.s32.totalorder %s472, %s473
    %p482 = scmp.eq.s32.totalorder %s32, 0
    %p483 = por %p481, %p482
    %p484 = scmp.ne.s32.totalorder %s472, %s473
    %p485 = scmp.eq.s32.totalorder %s33, 3
    %p486 = por %p484, %p485
    %p488 = scmp.ne.s32.totalorder %s473, %s487
    %p489 = scmp.eq.s32.totalorder %s33, 0
    %p490 = por %p488, %p489
    %s491 = ssub.s32 %s34, %s46
    %p492 = scmp.eq.s32.totalorder %s491, 0
    %s494 = sadd.s32 %s493, 1
    %s495 = scalar_select %p492, %s493, %s494
    %p498 = pneg %p492
    %p499 = scmp.eq.s32.totalorder %s27, 3
    %p500 = por %p498, %p499
    %p501 = scmp.ne.s32.totalorder %s493, %s496
    %p502 = scmp.eq.s32.totalorder %s27, 0
    %p503 = por %p501, %p502
    %p504 = scmp.ne.s32.totalorder %s493, %s496
    %p505 = scmp.eq.s32.totalorder %s32, 3
    %p506 = por %p504, %p505
    %p507 = scmp.ne.s32.totalorder %s496, %s497
    %p508 = scmp.eq.s32.totalorder %s32, 0
    %p509 = por %p507, %p508
    %p510 = scmp.ne.s32.totalorder %s496, %s497
    %p511 = scmp.eq.s32.totalorder %s33, 3
    %p512 = por %p510, %p511
    %p514 = scmp.ne.s32.totalorder %s497, %s513
    %p515 = scmp.eq.s32.totalorder %s33, 0
    %p516 = por %p514, %p515
    %s517 = ssub.s32 %s34, %s46
    %p518 = scmp.eq.s32.totalorder %s517, 0
    %s520 = sadd.s32 %s519, 1
    %s521 = scalar_select %p518, %s519, %s520
    %p524 = pneg %p518
    %p525 = scmp.eq.s32.totalorder %s27, 3
    %p526 = por %p524, %p525
    %p527 = scmp.ne.s32.totalorder %s519, %s522
    %p528 = scmp.eq.s32.totalorder %s27, 0
    %p529 = por %p527, %p528
    %p530 = scmp.ne.s32.totalorder %s519, %s522
    %p531 = scmp.eq.s32.totalorder %s32, 3
    %p532 = por %p530, %p531
    %p533 = scmp.ne.s32.totalorder %s522, %s523
    %p534 = scmp.eq.s32.totalorder %s32, 0
    %p535 = por %p533, %p534
    %p536 = scmp.ne.s32.totalorder %s522, %s523
    %p537 = scmp.eq.s32.totalorder %s33, 3
    %p538 = por %p536, %p537
    %p540 = scmp.ne.s32.totalorder %s523, %s539
    %p541 = scmp.eq.s32.totalorder %s33, 0
    %p542 = por %p540, %p541
    %s544 = sadd.s32 %s543, 1
    %p547 = scmp.eq.s32.totalorder %s27, 3
    %p548 = scmp.ne.s32.totalorder %s543, %s545
    %p549 = scmp.eq.s32.totalorder %s27, 0
    %p550 = por %p548, %p549
    %p551 = scmp.ne.s32.totalorder %s543, %s545
    %p552 = scmp.eq.s32.totalorder %s32, 3
    %p553 = por %p551, %p552
    %p554 = scmp.ne.s32.totalorder %s545, %s546
    %p555 = scmp.eq.s32.totalorder %s32, 0
    %p556 = por %p554, %p555
    %p557 = scmp.ne.s32.totalorder %s545, %s546
    %p558 = scmp.eq.s32.totalorder %s33, 3
    %p559 = por %p557, %p558
    %p561 = scmp.ne.s32.totalorder %s546, %s560
    %p562 = scmp.eq.s32.totalorder %s33, 0
    %p563 = por %p561, %p562
    %s565 = sadd.s32 %s564, 1
    %p568 = scmp.eq.s32.totalorder %s27, 3
    %p569 = scmp.ne.s32.totalorder %s564, %s566
    %p570 = scmp.eq.s32.totalorder %s27, 0
    %p571 = por %p569, %p570
    %p572 = scmp.ne.s32.totalorder %s564, %s566
    %p573 = scmp.eq.s32.totalorder %s32, 3
    %p574 = por %p572, %p573
    %p575 = scmp.ne.s32.totalorder %s566, %s567
    %p576 = scmp.eq.s32.totalorder %s32, 0
    %p577 = por %p575, %p576
    %p578 = scmp.ne.s32.totalorder %s566, %s567
    %p579 = scmp.eq.s32.totalorder %s33, 3
    %p580 = por %p578, %p579
    %p582 = scmp.ne.s32.totalorder %s567, %s581
    %p583 = scmp.eq.s32.totalorder %s33, 0
    %p584 = por %p582, %p583
    %s585 = smul.u32 %s35, 2
    %s586 = sadd.s32 %s585, %s34
    %s587 = smul.u32 %s42, 2
    %s588 = sadd.s32 %s587, %s46
    %s589 = ssub.s32 %s586, %s588
    %p590 = scmp.eq.s32.totalorder %s589, 0
    %s592 = sadd.s32 %s591, 1
    %s593 = scalar_select %p590, %s591, %s592
    %p596 = pneg %p590
    %p597 = scmp.eq.s32.totalorder %s27, 3
    %p598 = por %p596, %p597
    %p599 = scmp.ne.s32.totalorder %s591, %s594
    %p600 = scmp.eq.s32.totalorder %s27, 0
    %p601 = por %p599, %p600
    %p602 = scmp.ne.s32.totalorder %s591, %s594
    %p603 = scmp.eq.s32.totalorder %s32, 3
    %p604 = por %p602, %p603
    %p605 = scmp.ne.s32.totalorder %s594, %s595
    %p606 = scmp.eq.s32.totalorder %s32, 0
    %p607 = por %p605, %p606
    %p608 = scmp.ne.s32.totalorder %s594, %s595
    %p609 = scmp.eq.s32.totalorder %s33, 3
    %p610 = por %p608, %p609
    %p612 = scmp.ne.s32.totalorder %s595, %s611
    %p613 = scmp.eq.s32.totalorder %s33, 0
    %p614 = por %p612, %p613
    %p615 = scmp.le.s32.totalorder 1, %s27
    %p616 = scmp.lt.s32.totalorder %s27, 5
    %p617 = pnand %p615, %p616
    %p618 = pneg %p617
    // Predicated region
    $region9: #{_lambda_.2} parent=5 // pred_check
      _
    $region10: #{_lambda_.2} parent=5 // pred_check_branch
      %620 = sbr.rel (%p617) target = $region12
    $region11: #{_lambda_.2} parent=5 // pred_region
      %s621 = ssub.s32 %s27, 1
      // Predicated region
      $region13: #{_lambda_.2} parent=11 // pred_check
        %p622 = pneg %p462
      $region14: #{_lambda_.2} parent=11 // pred_check_branch
        %624 = sbr.rel (%p622) target = $region16
      $region15: #{_lambda_.2} parent=11 // pred_region
        _
      $region16: #{_lambda_.2} parent=11 // pred_fallthru
        _
      // Predicated region
      $region17: #{_lambda_.2} parent=11 // pred_check
        %p625 = pneg %p483
      $region18: #{_lambda_.2} parent=11 // pred_check_branch
        %627 = sbr.rel (%p625) target = $region20
      $region19: #{_lambda_.2} parent=11 // pred_region
        _
      $region20: #{_lambda_.2} parent=11 // pred_fallthru
        _
      // Predicated region
      $region21: #{_lambda_.2} parent=11 // pred_check
        %p628 = pneg %p556
      $region22: #{_lambda_.2} parent=11 // pred_check_branch
        %630 = sbr.rel (%p628) target = $region24
      $region23: #{_lambda_.2} parent=11 // pred_region
        _
      $region24: #{_lambda_.2} parent=11 // pred_fallthru
        _
      // Predicated region
      $region25: #{_lambda_.2} parent=11 // pred_check
        %p631 = pneg %p577
      $region26: #{_lambda_.2} parent=11 // pred_check_branch
        %633 = sbr.rel (%p631) target = $region28
      $region27: #{_lambda_.2} parent=11 // pred_region
        _
      $region28: #{_lambda_.2} parent=11 // pred_fallthru
        _
    $region12: #{_lambda_.2} parent=5 // pred_fallthru
      _
    %p634 = scmp.lt.s32.totalorder %s27, 4
    // Predicated region
    $region29: #{_lambda_.2} parent=5 // pred_check
      %p635 = pneg %p634
    $region30: #{_lambda_.2} parent=5 // pred_check_branch
      %637 = sbr.rel (%p635) target = $region32
    $region31: #{_lambda_.2} parent=5 // pred_region
      // Predicated region
      $region33: #{_lambda_.2} parent=31 // pred_check
        %p638 = pneg %p63
      $region34: #{_lambda_.2} parent=31 // pred_check_branch
        %640 = sbr.rel (%p638) target = $region36
      $region35: #{_lambda_.2} parent=31 // pred_region
        %s641 = smul.u32 %s35, 2
        %s642 = sadd.s32 %s641, %s34
        %p643 = scmp.lt.s32.totalorder %s642, 3
        %s644 = scalar_select %p643, %s642, 3
        %s645 = smul.addr %s644, 16
        %s646 = smul.addr %s645, 8
        %s647 = scalar_lea.vmem %s0, %s646
        %s648 = smul.u32 %s35, 2
        %s649 = sadd.s32 %s648, %s34
      $region36: #{_lambda_.2} parent=31 // pred_fallthru
        _
      // Predicated region
      $region37: #{_lambda_.2} parent=31 // pred_check
        %p650 = pneg %p93
      $region38: #{_lambda_.2} parent=31 // pred_check_branch
        %652 = sbr.rel (%p650) target = $region40
      $region39: #{_lambda_.2} parent=31 // pred_region
        %s653 = smul.u32 %s35, 2
        %s654 = sadd.s32 %s653, %s34
        %p655 = scmp.lt.s32.totalorder %s654, 3
        %s656 = scalar_select %p655, %s654, 3
        %s657 = scalar_lea.vmem %s1, %s656
        %s658 = smul.u32 %s35, 2
        %s659 = sadd.s32 %s658, %s34
      $region40: #{_lambda_.2} parent=31 // pred_fallthru
        _
      // Predicated region
      $region41: #{_lambda_.2} parent=31 // pred_check
        %p660 = pneg %p123
      $region42: #{_lambda_.2} parent=31 // pred_check_branch
        %662 = sbr.rel (%p660) target = $region44
      $region43: #{_lambda_.2} parent=31 // pred_region
        %s663 = smul.u32 %s35, 2
        %s664 = sadd.s32 %s663, %s34
        %p665 = scmp.lt.s32.totalorder %s664, 3
        %s666 = scalar_select %p665, %s664, 3
        %s667 = scalar_lea.vmem %s2, %s666
        %s668 = smul.u32 %s35, 2
        %s669 = sadd.s32 %s668, %s34
      $region44: #{_lambda_.2} parent=31 // pred_fallthru
        _
      // Predicated region
      $region45: #{_lambda_.2} parent=31 // pred_check
        %p670 = pneg %p149
      $region46: #{_lambda_.2} parent=31 // pred_check_branch
        %672 = sbr.rel (%p670) target = $region48
      $region47: #{_lambda_.2} parent=31 // pred_region
        %p673 = scmp.lt.s32.totalorder %s34, 1
        %s674 = scalar_select %p673, %s34, 1
        %s675 = smul.addr %s674, 80
        %s676 = smul.addr %s675, 4
        %s677 = scalar_lea.vmem %s3, %s676
      $region48: #{_lambda_.2} parent=31 // pred_fallthru
        _
      // Predicated region
      $region49: #{_lambda_.2} parent=31 // pred_check
        %p678 = pneg %p175
      $region50: #{_lambda_.2} parent=31 // pred_check_branch
        %680 = sbr.rel (%p678) target = $region52
      $region51: #{_lambda_.2} parent=31 // pred_region
        %p681 = scmp.lt.s32.totalorder %s34, 1
        %s682 = scalar_select %p681, %s34, 1
        %s683 = smul.addr %s682, 2
        %s684 = scalar_lea.vmem %s4, %s683
      $region52: #{_lambda_.2} parent=31 // pred_fallthru
        _
      // Predicated region
      $region53: #{_lambda_.2} parent=31 // pred_check
        %p685 = pneg %p201
      $region54: #{_lambda_.2} parent=31 // pred_check_branch
        %687 = sbr.rel (%p685) target = $region56
      $region55: #{_lambda_.2} parent=31 // pred_region
        %p688 = scmp.lt.s32.totalorder %s34, 1
        %s689 = scalar_select %p688, %s34, 1
        %s690 = smul.addr %s689, 300
        %s691 = smul.addr %s690, 4
        %s692 = scalar_lea.vmem %s5, %s691
      $region56: #{_lambda_.2} parent=31 // pred_fallthru
        _
      // Predicated region
      $region57: #{_lambda_.2} parent=31 // pred_check
        %p693 = pneg %p227
      $region58: #{_lambda_.2} parent=31 // pred_check_branch
        %695 = sbr.rel (%p693) target = $region60
      $region59: #{_lambda_.2} parent=31 // pred_region
        %p696 = scmp.lt.s32.totalorder %s34, 1
        %s697 = scalar_select %p696, %s34, 1
        %s698 = smul.addr %s697, 2
        %s699 = scalar_lea.vmem %s6, %s698
      $region60: #{_lambda_.2} parent=31 // pred_fallthru
        _
      // Predicated region
      $region61: #{_lambda_.2} parent=31 // pred_check
        %p700 = pneg %p253
      $region62: #{_lambda_.2} parent=31 // pred_check_branch
        %702 = sbr.rel (%p700) target = $region64
      $region63: #{_lambda_.2} parent=31 // pred_region
        %p703 = scmp.lt.s32.totalorder %s34, 1
        %s704 = scalar_select %p703, %s34, 1
        %s705 = smul.addr %s704, 260
        %s706 = smul.addr %s705, 4
        %s707 = scalar_lea.vmem %s7, %s706
      $region64: #{_lambda_.2} parent=31 // pred_fallthru
        _
      // Predicated region
      $region65: #{_lambda_.2} parent=31 // pred_check
        %p708 = pneg %p279
      $region66: #{_lambda_.2} parent=31 // pred_check_branch
        %710 = sbr.rel (%p708) target = $region68
      $region67: #{_lambda_.2} parent=31 // pred_region
        %p711 = scmp.lt.s32.totalorder %s34, 1
        %s712 = scalar_select %p711, %s34, 1
        %s713 = smul.addr %s712, 2
        %s714 = scalar_lea.vmem %s8, %s713
      $region68: #{_lambda_.2} parent=31 // pred_fallthru
        _
      // Predicated region
      $region69: #{_lambda_.2} parent=31 // pred_check
        %p715 = pneg %p305
      $region70: #{_lambda_.2} parent=31 // pred_check_branch
        %717 = sbr.rel (%p715) target = $region72
      $region71: #{_lambda_.2} parent=31 // pred_region
        %p718 = scmp.lt.s32.totalorder %s34, 1
        %s719 = scalar_select %p718, %s34, 1
        %s720 = smul.addr %s719, 110
        %s721 = smul.addr %s720, 4
        %s722 = scalar_lea.vmem %s9, %s721
      $region72: #{_lambda_.2} parent=31 // pred_fallthru
        _
      // Predicated region
      $region73: #{_lambda_.2} parent=31 // pred_check
        %p723 = pneg %p331
      $region74: #{_lambda_.2} parent=31 // pred_check_branch
        %725 = sbr.rel (%p723) target = $region76
      $region75: #{_lambda_.2} parent=31 // pred_region
        %p726 = scmp.lt.s32.totalorder %s34, 1
        %s727 = scalar_select %p726, %s34, 1
        %s728 = scalar_lea.vmem %s10, %s727
      $region76: #{_lambda_.2} parent=31 // pred_fallthru
        _
      // Predicated region
      $region77: #{_lambda_.2} parent=31 // pred_check
        %p729 = pneg %p357
      $region78: #{_lambda_.2} parent=31 // pred_check_branch
        %731 = sbr.rel (%p729) target = $region80
      $region79: #{_lambda_.2} parent=31 // pred_region
        %p732 = scmp.lt.s32.totalorder %s34, 1
        %s733 = scalar_select %p732, %s34, 1
        %s734 = smul.addr %s733, 45
        %s735 = smul.addr %s734, 4
        %s736 = scalar_lea.vmem %s11, %s735
      $region80: #{_lambda_.2} parent=31 // pred_fallthru
        _
      // Predicated region
      $region81: #{_lambda_.2} parent=31 // pred_check
        %p737 = pneg %p383
      $region82: #{_lambda_.2} parent=31 // pred_check_branch
        %739 = sbr.rel (%p737) target = $region84
      $region83: #{_lambda_.2} parent=31 // pred_region
        %p740 = scmp.lt.s32.totalorder %s34, 1
        %s741 = scalar_select %p740, %s34, 1
        %s742 = scalar_lea.vmem %s12, %s741
      $region84: #{_lambda_.2} parent=31 // pred_fallthru
        _
      // Predicated region
      $region85: #{_lambda_.2} parent=31 // pred_check
        %p743 = pneg %p409
      $region86: #{_lambda_.2} parent=31 // pred_check_branch
        %745 = sbr.rel (%p743) target = $region88
      $region87: #{_lambda_.2} parent=31 // pred_region
        %p746 = scmp.lt.s32.totalorder %s34, 1
        %s747 = scalar_select %p746, %s34, 1
        %s748 = smul.addr %s747, 25
        %s749 = smul.addr %s748, 4
        %s750 = scalar_lea.vmem %s13, %s749
      $region88: #{_lambda_.2} parent=31 // pred_fallthru
        _
      // Predicated region
      $region89: #{_lambda_.2} parent=31 // pred_check
        %p751 = pneg %p435
      $region90: #{_lambda_.2} parent=31 // pred_check_branch
        %753 = sbr.rel (%p751) target = $region92
      $region91: #{_lambda_.2} parent=31 // pred_region
        %p754 = scmp.lt.s32.totalorder %s34, 1
        %s755 = scalar_select %p754, %s34, 1
        %s756 = scalar_lea.vmem %s14, %s755
      $region92: #{_lambda_.2} parent=31 // pred_fallthru
        _
      // Predicated region
      $region93: #{_lambda_.2} parent=31 // pred_check
        %p757 = pneg %p503
      $region94: #{_lambda_.2} parent=31 // pred_check_branch
        %759 = sbr.rel (%p757) target = $region96
      $region95: #{_lambda_.2} parent=31 // pred_region
        %p760 = scmp.lt.s32.totalorder %s34, 1
        %s761 = scalar_select %p760, %s34, 1
        %s762 = scalar_lea.vmem %s17, %s761
      $region96: #{_lambda_.2} parent=31 // pred_fallthru
        _
      // Predicated region
      $region97: #{_lambda_.2} parent=31 // pred_check
        %p763 = pneg %p529
      $region98: #{_lambda_.2} parent=31 // pred_check_branch
        %765 = sbr.rel (%p763) target = $region100
      $region99: #{_lambda_.2} parent=31 // pred_region
        %p766 = scmp.lt.s32.totalorder %s34, 1
        %s767 = scalar_select %p766, %s34, 1
        %s768 = scalar_lea.vmem %s18, %s767
      $region100: #{_lambda_.2} parent=31 // pred_fallthru
        _
    $region32: #{_lambda_.2} parent=5 // pred_fallthru
      _
    %p769 = scmp.le.s32.totalorder 1, %s27
    %p770 = scmp.lt.s32.totalorder %s27, 5
    %p771 = pnand %p769, %p770
    %p772 = pneg %p771
    // Predicated region
    $region101: #{_lambda_.2} parent=5 // pred_check
      _
    $region102: #{_lambda_.2} parent=5 // pred_check_branch
      %774 = sbr.rel (%p771) target = $region104
    $region103: #{_lambda_.2} parent=5 // pred_region
      %s775 = ssub.s32 %s27, 1
      %s776 = smul.u32 %s37, 2
      %s777 = sadd.s32 %s776, %s36
      %p778 = scmp.lt.s32.totalorder %s777, 3
      %s779 = scalar_select %p778, %s777, 3
      %s780 = smul.addr %s779, 16
      %s781 = smul.addr %s780, 8
      %s782 = scalar_lea.vmem %s0, %s781
      %p783 = pneg %p69
      %p784 = pneg %p66
      %s785 = smul.u32 %s37, 2
      %s786 = sadd.s32 %s785, %s36
      %p787 = scmp.lt.s32.totalorder %s786, 3
      %s788 = scalar_select %p787, %s786, 3
      %s789 = scalar_lea.vmem %s1, %s788
      %p790 = pneg %p99
      %p791 = pneg %p96
      %s792 = smul.u32 %s37, 2
      %s793 = sadd.s32 %s792, %s36
      %p794 = scmp.lt.s32.totalorder %s793, 3
      %s795 = scalar_select %p794, %s793, 3
      %s796 = scalar_lea.vmem %s2, %s795
      %p797 = pneg %p129
      %p798 = pneg %p126
      %p799 = scmp.lt.s32.totalorder %s36, 1
      %s800 = scalar_select %p799, %s36, 1
      %s801 = smul.addr %s800, 80
      %s802 = smul.addr %s801, 4
      %s803 = scalar_lea.vmem %s3, %s802
      %p804 = pneg %p155
      %p805 = pneg %p152
      %p806 = scmp.lt.s32.totalorder %s36, 1
      %s807 = scalar_select %p806, %s36, 1
      %s808 = smul.addr %s807, 2
      %s809 = scalar_lea.vmem %s4, %s808
      %p810 = pneg %p181
      %p811 = pneg %p178
      %p812 = scmp.lt.s32.totalorder %s36, 1
      %s813 = scalar_select %p812, %s36, 1
      %s814 = smul.addr %s813, 300
      %s815 = smul.addr %s814, 4
      %s816 = scalar_lea.vmem %s5, %s815
      %p817 = pneg %p207
      %p818 = pneg %p204
      %p819 = scmp.lt.s32.totalorder %s36, 1
      %s820 = scalar_select %p819, %s36, 1
      %s821 = smul.addr %s820, 2
      %s822 = scalar_lea.vmem %s6, %s821
      %p823 = pneg %p233
      %p824 = pneg %p230
      %p825 = scmp.lt.s32.totalorder %s36, 1
      %s826 = scalar_select %p825, %s36, 1
      %s827 = smul.addr %s826, 260
      %s828 = smul.addr %s827, 4
      %s829 = scalar_lea.vmem %s7, %s828
      %p830 = pneg %p259
      %p831 = pneg %p256
      %p832 = scmp.lt.s32.totalorder %s36, 1
      %s833 = scalar_select %p832, %s36, 1
      %s834 = smul.addr %s833, 2
      %s835 = scalar_lea.vmem %s8, %s834
      %p836 = pneg %p285
      %p837 = pneg %p282
      %p838 = scmp.lt.s32.totalorder %s36, 1
      %s839 = scalar_select %p838, %s36, 1
      %s840 = smul.addr %s839, 110
      %s841 = smul.addr %s840, 4
      %s842 = scalar_lea.vmem %s9, %s841
      %p843 = pneg %p311
      %p844 = pneg %p308
      %p845 = scmp.lt.s32.totalorder %s36, 1
      %s846 = scalar_select %p845, %s36, 1
      %s847 = scalar_lea.vmem %s10, %s846
      %p848 = pneg %p337
      %p849 = pneg %p334
      %p850 = scmp.lt.s32.totalorder %s36, 1
      %s851 = scalar_select %p850, %s36, 1
      %s852 = smul.addr %s851, 45
      %s853 = smul.addr %s852, 4
      %s854 = scalar_lea.vmem %s11, %s853
      %p855 = pneg %p363
      %p856 = pneg %p360
      %p857 = scmp.lt.s32.totalorder %s36, 1
      %s858 = scalar_select %p857, %s36, 1
      %s859 = scalar_lea.vmem %s12, %s858
      %p860 = pneg %p389
      %p861 = pneg %p386
      %p862 = scmp.lt.s32.totalorder %s36, 1
      %s863 = scalar_select %p862, %s36, 1
      %s864 = smul.addr %s863, 25
      %s865 = smul.addr %s864, 4
      %s866 = scalar_lea.vmem %s13, %s865
      %p867 = pneg %p415
      %p868 = pneg %p412
      %p869 = scmp.lt.s32.totalorder %s36, 1
      %s870 = scalar_select %p869, %s36, 1
      %s871 = scalar_lea.vmem %s14, %s870
      %p872 = pneg %p441
      %p873 = pneg %p438
      %p874 = pneg %p462
      %p875 = pneg %p459
      %p876 = pneg %p483
      %p877 = pneg %p480
      %p878 = scmp.lt.s32.totalorder %s36, 1
      %s879 = scalar_select %p878, %s36, 1
      %s880 = scalar_lea.vmem %s17, %s879
      %p881 = pneg %p509
      %p882 = pneg %p506
      %p883 = scmp.lt.s32.totalorder %s36, 1
      %s884 = scalar_select %p883, %s36, 1
      %s885 = scalar_lea.vmem %s18, %s884
      %p886 = pneg %p535
      %p887 = pneg %p532
      %p888 = pneg %p556
      %p889 = pneg %p553
      %p890 = pneg %p577
      %p891 = pneg %p574
      %p892 = pneg %p607
      %p893 = pneg %p604
      %s894 = smul.u32 %s37, 2
      %s895 = sadd.s32 %s894, %s36
      %p896 = scmp.lt.s32.totalorder %s895, 3
      %s897 = scalar_select %p896, %s895, 3
      %s898 = smul.addr %s897, 2
      %s899 = scalar_lea.vmem %s21, %s898
      %s900 = smul.u32 %s37, 2
      %s901 = sadd.s32 %s900, %s36
      %p902 = scmp.lt.s32.totalorder %s901, 3
      %s903 = scalar_select %p902, %s901, 3
      %s904 = smul.addr %s903, 16
      %s905 = smul.addr %s904, 8
      %s906 = scalar_lea.vmem %s0, %s905
      %s907 = smul.u32 %s37, 2
      %s908 = sadd.s32 %s907, %s36
      %s909 = smul.u32 %s37, 2
      %s910 = sadd.s32 %s909, %s36
      %p911 = scmp.lt.s32.totalorder %s910, 3
      %s912 = scalar_select %p911, %s910, 3
      %s913 = scalar_lea.vmem %s1, %s912
      %s914 = smul.u32 %s37, 2
      %s915 = sadd.s32 %s914, %s36
      %s916 = smul.u32 %s37, 2
      %s917 = sadd.s32 %s916, %s36
      %p918 = scmp.lt.s32.totalorder %s917, 3
      %s919 = scalar_select %p918, %s917, 3
      %s920 = scalar_lea.vmem %s2, %s919
      %s921 = smul.u32 %s37, 2
      %s922 = sadd.s32 %s921, %s36
      %p923 = scmp.lt.s32.totalorder %s36, 1
      %s924 = scalar_select %p923, %s36, 1
      %s925 = smul.addr %s924, 80
      %s926 = smul.addr %s925, 4
      %s927 = scalar_lea.vmem %s3, %s926
      %p928 = scmp.lt.s32.totalorder %s36, 1
      %s929 = scalar_select %p928, %s36, 1
      %s930 = smul.addr %s929, 2
      %s931 = scalar_lea.vmem %s4, %s930
      %p932 = scmp.lt.s32.totalorder %s36, 1
      %s933 = scalar_select %p932, %s36, 1
      %s934 = smul.addr %s933, 300
      %s935 = smul.addr %s934, 4
      %s936 = scalar_lea.vmem %s5, %s935
      %p937 = scmp.lt.s32.totalorder %s36, 1
      %s938 = scalar_select %p937, %s36, 1
      %s939 = smul.addr %s938, 2
      %s940 = scalar_lea.vmem %s6, %s939
      %p941 = scmp.lt.s32.totalorder %s36, 1
      %s942 = scalar_select %p941, %s36, 1
      %s943 = smul.addr %s942, 260
      %s944 = smul.addr %s943, 4
      %s945 = scalar_lea.vmem %s7, %s944
      %p946 = scmp.lt.s32.totalorder %s36, 1
      %s947 = scalar_select %p946, %s36, 1
      %s948 = smul.addr %s947, 2
      %s949 = scalar_lea.vmem %s8, %s948
      %p950 = scmp.lt.s32.totalorder %s36, 1
      %s951 = scalar_select %p950, %s36, 1
      %s952 = smul.addr %s951, 110
      %s953 = smul.addr %s952, 4
      %s954 = scalar_lea.vmem %s9, %s953
      %p955 = scmp.lt.s32.totalorder %s36, 1
      %s956 = scalar_select %p955, %s36, 1
      %s957 = scalar_lea.vmem %s10, %s956
      %p958 = scmp.lt.s32.totalorder %s36, 1
      %s959 = scalar_select %p958, %s36, 1
      %s960 = smul.addr %s959, 45
      %s961 = smul.addr %s960, 4
      %s962 = scalar_lea.vmem %s11, %s961
      %p963 = scmp.lt.s32.totalorder %s36, 1
      %s964 = scalar_select %p963, %s36, 1
      %s965 = scalar_lea.vmem %s12, %s964
      %p966 = scmp.lt.s32.totalorder %s36, 1
      %s967 = scalar_select %p966, %s36, 1
      %s968 = smul.addr %s967, 25
      %s969 = smul.addr %s968, 4
      %s970 = scalar_lea.vmem %s13, %s969
      %p971 = scmp.lt.s32.totalorder %s36, 1
      %s972 = scalar_select %p971, %s36, 1
      %s973 = scalar_lea.vmem %s14, %s972
      %p974 = scmp.lt.s32.totalorder %s36, 1
      %s975 = scalar_select %p974, %s36, 1
      %s976 = scalar_lea.vmem %s17, %s975
      %p977 = scmp.lt.s32.totalorder %s36, 1
      %s978 = scalar_select %p977, %s36, 1
      %s979 = scalar_lea.vmem %s18, %s978
      %s980 = smul.u32 %s37, 2
      %s981 = sadd.s32 %s980, %s36
      %p982 = scmp.lt.s32.totalorder %s981, 3
      %s983 = scalar_select %p982, %s981, 3
      %s984 = smul.addr %s983, 2
      %s985 = scalar_lea.vmem %s21, %s984
      %s986 = smul.u32 %s37, 2
      %s987 = sadd.s32 %s986, %s36
      %v989 = vld [vmem:[%s906] sm:$0xff]
      %v990 = vld [vmem:[%s906 + $0x8] sm:$0xff]
      %v991 = vld [vmem:[%s906 + $0x10] sm:$0xff]
      %v992 = vld [vmem:[%s906 + $0x18] sm:$0xff]
      %v993 = vld [vmem:[%s906 + $0x20] sm:$0xff]
      %v994 = vld [vmem:[%s906 + $0x28] sm:$0xff]
      %v995 = vld [vmem:[%s906 + $0x30] sm:$0xff]
      %v996 = vld [vmem:[%s906 + $0x38] sm:$0xff]
      %v997 = vld [vmem:[%s913] sm:$0x1]
      %v999 = vlaneseq
      %v1000 = vshrl.u32 %v999, 7
      %v1001 = vsub.s32 0, %v1000
      %v1002 = vrot.slane %v997, %v1001
      %v1004 = vmul.f32 %v989, %v1002
      %v1005 = vmul.f32 %v990, %v1002
      %v1006 = vmul.f32 %v991, %v1002
      %v1007 = vmul.f32 %v992, %v1002
      %v1008 = vmul.f32 %v993, %v1002
      %v1009 = vmul.f32 %v994, %v1002
      %v1010 = vmul.f32 %v995, %v1002
      %v1011 = vmul.f32 %v996, %v1002
      %v1012 = vld [vmem:[%s920] sm:$0x1]
      %v1014 = vlaneseq
      %v1015 = vshrl.u32 %v1014, 7
      %v1016 = vsub.s32 0, %v1015
      %v1017 = vrot.slane %v1012, %v1016
      %v1019 = vadd.f32 %v1004, %v1017
      %v1020 = vadd.f32 %v1005, %v1017
      %v1021 = vadd.f32 %v1006, %v1017
      %v1022 = vadd.f32 %v1007, %v1017
      %v1023 = vadd.f32 %v1008, %v1017
      %v1024 = vadd.f32 %v1009, %v1017
      %v1025 = vadd.f32 %v1010, %v1017
      %v1026 = vadd.f32 %v1011, %v1017
      %v1027 = vpack.c.bf16 %v1020, %v1019
      %v1028 = vpack.c.bf16 %v1022, %v1021
      %v1029 = vpack.c.bf16 %v1024, %v1023
      %v1030 = vpack.c.bf16 %v1026, %v1025
      %v1031 = vld [vmem:[%s927] sm:$0xff]
      %v1032 = vld [vmem:[%s927 + $0x8] sm:$0xff]
      %v1033 = vld [vmem:[%s927 + $0x10] sm:$0xff]
      %v1034 = vld [vmem:[%s927 + $0x18] sm:$0xff]
      %v1035 = vld [vmem:[%s927 + $0x20] sm:$0xff]
      %v1036 = vld [vmem:[%s927 + $0x28] sm:$0xff]
      %v1037 = vld [vmem:[%s927 + $0x30] sm:$0xff]
      %v1038 = vld [vmem:[%s927 + $0x38] sm:$0xff]
      %s1039 = scalar_lea.vmem %s927, 64
      %v1040 = vld [vmem:[%s1039] sm:$0xff]
      %v1041 = vld [vmem:[%s1039 + $0x8] sm:$0xff]
      %v1042 = vld [vmem:[%s1039 + $0x10] sm:$0xff]
      %v1043 = vld [vmem:[%s1039 + $0x18] sm:$0xff]
      %v1044 = vld [vmem:[%s1039 + $0x20] sm:$0xff]
      %v1045 = vld [vmem:[%s1039 + $0x28] sm:$0xff]
      %v1046 = vld [vmem:[%s1039 + $0x30] sm:$0xff]
      %v1047 = vld [vmem:[%s1039 + $0x38] sm:$0xff]
      %vm1048 = vsmask.f32 7424
      %v1050 = vshrl.u32 %v1027, 16
      %v1052 = vshll.u32 %v1027, 16
      %v1054 = vrot.slane %v1052, 1
      %v1055 = vor.u32 %v1050, %v1054
      %v1057 = vshll.u32 %v1028, 16
      %v1059 = vrot.slane %v1057, 1
      %v1060 = vsel %vm1048, %v1055, %v1059
      %v1061 = vshrl.u32 %v1028, 16
      %v1063 = vor.u32 %v1061, %v1059
      %v1065 = vshll.u32 %v1029, 16
      %v1067 = vrot.slane %v1065, 1
      %v1068 = vsel %vm1048, %v1063, %v1067
      %v1069 = vshrl.u32 %v1029, 16
      %v1071 = vor.u32 %v1069, %v1067
      %v1073 = vshll.u32 %v1030, 16
      %v1075 = vrot.slane %v1073, 1
      %v1076 = vsel %vm1048, %v1071, %v1075
      %v1077 = vshrl.u32 %v1030, 16
      %v1079 = vor.u32 %v1077, %v1075
      %v1088 = vunpack.c.l.b16 %v1040
      %v1089 = vunpack.c.h.b16 %v1040
      %v1090 = vunpack.c.l.b16 %v1041
      %v1091 = vunpack.c.h.b16 %v1041
      %v1092 = vunpack.c.l.b16 %v1042
      %v1093 = vunpack.c.h.b16 %v1042
      %v1094 = vunpack.c.l.b16 %v1043
      %v1095 = vunpack.c.h.b16 %v1043
      %v1096 = vunpack.c.l.b16 %v1044
      %v1097 = vunpack.c.h.b16 %v1044
      %v1098 = vunpack.c.l.b16 %v1045
      %v1099 = vunpack.c.h.b16 %v1045
      %v1100 = vunpack.c.l.b16 %v1046
      %v1101 = vunpack.c.h.b16 %v1046
      %v1102 = vunpack.c.l.b16 %v1047
      %v1103 = vunpack.c.h.b16 %v1047
      %v1104 = vpack.c.b16 %v1090, %v1088
      %v1105 = vpack.c.b16 %v1091, %v1089
      %v1106 = vpack.c.b16 %v1094, %v1092
      %v1107 = vpack.c.b16 %v1095, %v1093
      %v1108 = vpack.c.b16 %v1098, %v1096
      %v1109 = vpack.c.b16 %v1099, %v1097
      %v1110 = vpack.c.b16 %v1102, %v1100
      %v1111 = vpack.c.b16 %v1103, %v1101
      %vm1120 = vcmask 523264
      %v1122 = vsel %vm1120, %v1060, 0
      %v1125 = vsel %vm1120, %v1068, 0
      %v1128 = vsel %vm1120, %v1076, 0
      %v1131 = vsel %vm1120, %v1079, 0
      %1133 = vmatprep.subr.bf16.mxu0 %v1105
      %1134 = vmatpush1.bf16.msra.mxu0 %v1104
      %1135 = vmatprep.subr.bf16.mxu0 %v1107
      %1136 = vmatpush1.bf16.msra.mxu0 %v1106
      %1137 = vmatprep.subr.bf16.mxu0 %v1109
      %1138 = vmatpush1.bf16.msra.mxu0 %v1108
      %1139 = vmatprep.subr.bf16.mxu0 %v1111
      %1140 = vmatpush1.bf16.msra.mxu0 %v1110
      %1141 = vmatprep.subr.bf16.mxu0 0
      %1142 = vmatpush1.bf16.msra.mxu0 0
      %1143 = vmatprep.subr.bf16.mxu0 0
      %1144 = vmatpush1.bf16.msra.mxu0 0
      %1145 = vmatprep.subr.bf16.mxu0 0
      %1146 = vmatpush1.bf16.msra.mxu0 0
      %1147 = vmatprep.subr.bf16.mxu0 0
      %1148 = vmatpush1.bf16.msra.mxu0 0
      %1149 = vmatprep.subr.bf16.mxu0 0
      %1150 = vmatpush1.bf16.msra.mxu0 0
      %1151 = vmatprep.subr.bf16.mxu0 0
      %1152 = vmatpush1.bf16.msra.mxu0 0
      %1153 = vmatprep.subr.bf16.mxu0 0
      %1154 = vmatpush1.bf16.msra.mxu0 0
      %1155 = vmatprep.subr.bf16.mxu0 0
      %1156 = vmatpush1.bf16.msra.mxu0 0
      %1157 = vmatprep.subr.bf16.mxu0 0
      %1158 = vmatpush1.bf16.msra.mxu0 0
      %1159 = vmatprep.subr.bf16.mxu0 0
      %1160 = vmatpush1.bf16.msra.mxu0 0
      %1161 = vmatprep.subr.bf16.mxu0 0
      %1162 = vmatpush1.bf16.msra.mxu0 0
      %1163 = vmatprep.subr.bf16.mxu0 0
      %1164 = vmatpush1.bf16.msra.mxu0 0
      %1165 = vmatprep.mubr.bf16.mxu0 0
      %1166 = vmatmul.mubr.bf16.gmra.mrb[0].mxu0 %v1122
      %v1167 = vpop.f32.mrb[0].mxu0
      %v1168 = vadd.f32 0.0, %v1167
      %v1169 = vpop.f32.mrb[0].mxu0
      %v1170 = vadd.f32 0.0, %v1169
      %v1171 = vpop.f32.mrb[0].mxu0
      %v1172 = vadd.f32 0.0, %v1171
      %v1173 = vpop.f32.mrb[0].mxu0
      %v1174 = vadd.f32 0.0, %v1173
      %1175 = vmatprep.mubr.bf16.mxu0 0
      %1176 = vmatmul.mubr.bf16.gmra.mrb[0].mxu0 %v1125
      %v1177 = vpop.f32.mrb[0].mxu0
      %v1178 = vadd.f32 0.0, %v1177
      %v1179 = vpop.f32.mrb[0].mxu0
      %v1180 = vadd.f32 0.0, %v1179
      %v1181 = vpop.f32.mrb[0].mxu0
      %v1182 = vadd.f32 0.0, %v1181
      %v1183 = vpop.f32.mrb[0].mxu0
      %v1184 = vadd.f32 0.0, %v1183
      %1185 = vmatprep.mubr.bf16.mxu0 0
      %1186 = vmatmul.mubr.bf16.gmra.mrb[0].mxu0 %v1128
      %v1187 = vpop.f32.mrb[0].mxu0
      %v1188 = vadd.f32 0.0, %v1187
      %v1189 = vpop.f32.mrb[0].mxu0
      %v1190 = vadd.f32 0.0, %v1189
      %v1191 = vpop.f32.mrb[0].mxu0
      %v1192 = vadd.f32 0.0, %v1191
      %v1193 = vpop.f32.mrb[0].mxu0
      %v1194 = vadd.f32 0.0, %v1193
      %1195 = vmatprep.mubr.bf16.mxu0 0
      %1196 = vmatmul.mubr.bf16.gmra.mrb[0].mxu0 %v1131
      %v1197 = vpop.f32.mrb[0].mxu0
      %v1198 = vadd.f32 0.0, %v1197
      %v1199 = vpop.f32.mrb[0].mxu0
      %v1200 = vadd.f32 0.0, %v1199
      %v1201 = vpop.f32.mrb[0].mxu0
      %v1202 = vadd.f32 0.0, %v1201
      %v1203 = vpop.f32.mrb[0].mxu0
      %v1204 = vadd.f32 0.0, %v1203
      %1205 = vdwg.mxu0
      %v1214 = vunpack.c.l.b16 %v1031
      %v1215 = vunpack.c.h.b16 %v1031
      %v1216 = vunpack.c.l.b16 %v1032
      %v1217 = vunpack.c.h.b16 %v1032
      %v1218 = vunpack.c.l.b16 %v1033
      %v1219 = vunpack.c.h.b16 %v1033
      %v1220 = vunpack.c.l.b16 %v1034
      %v1221 = vunpack.c.h.b16 %v1034
      %v1222 = vunpack.c.l.b16 %v1035
      %v1223 = vunpack.c.h.b16 %v1035
      %v1224 = vunpack.c.l.b16 %v1036
      %v1225 = vunpack.c.h.b16 %v1036
      %v1226 = vunpack.c.l.b16 %v1037
      %v1227 = vunpack.c.h.b16 %v1037
      %v1228 = vunpack.c.l.b16 %v1038
      %v1229 = vunpack.c.h.b16 %v1038
      %v1230 = vpack.c.b16 %v1216, %v1214
      %v1231 = vpack.c.b16 %v1217, %v1215
      %v1232 = vpack.c.b16 %v1220, %v1218
      %v1233 = vpack.c.b16 %v1221, %v1219
      %v1234 = vpack.c.b16 %v1224, %v1222
      %v1235 = vpack.c.b16 %v1225, %v1223
      %v1236 = vpack.c.b16 %v1228, %v1226
      %v1237 = vpack.c.b16 %v1229, %v1227
      %v1246 = vsel %vm1120, %v1027, 0
      %v1248 = vsel %vm1120, %v1028, 0
      %v1250 = vsel %vm1120, %v1029, 0
      %v1252 = vsel %vm1120, %v1030, 0
      %1254 = vmatprep.subr.bf16.mxu0 %v1231
      %1255 = vmatpush1.bf16.msra.mxu0 %v1230
      %1256 = vmatprep.subr.bf16.mxu0 %v1233
      %1257 = vmatpush1.bf16.msra.mxu0 %v1232
      %1258 = vmatprep.subr.bf16.mxu0 %v1235
      %1259 = vmatpush1.bf16.msra.mxu0 %v1234
      %1260 = vmatprep.subr.bf16.mxu0 %v1237
      %1261 = vmatpush1.bf16.msra.mxu0 %v1236
      %1262 = vmatprep.subr.bf16.mxu0 0
      %1263 = vmatpush1.bf16.msra.mxu0 0
      %1264 = vmatprep.subr.bf16.mxu0 0
      %1265 = vmatpush1.bf16.msra.mxu0 0
      %1266 = vmatprep.subr.bf16.mxu0 0
      %1267 = vmatpush1.bf16.msra.mxu0 0
      %1268 = vmatprep.subr.bf16.mxu0 0
      %1269 = vmatpush1.bf16.msra.mxu0 0
      %1270 = vmatprep.subr.bf16.mxu0 0
      %1271 = vmatpush1.bf16.msra.mxu0 0
      %1272 = vmatprep.subr.bf16.mxu0 0
      %1273 = vmatpush1.bf16.msra.mxu0 0
      %1274 = vmatprep.subr.bf16.mxu0 0
      %1275 = vmatpush1.bf16.msra.mxu0 0
      %1276 = vmatprep.subr.bf16.mxu0 0
      %1277 = vmatpush1.bf16.msra.mxu0 0
      %1278 = vmatprep.subr.bf16.mxu0 0
      %1279 = vmatpush1.bf16.msra.mxu0 0
      %1280 = vmatprep.subr.bf16.mxu0 0
      %1281 = vmatpush1.bf16.msra.mxu0 0
      %1282 = vmatprep.subr.bf16.mxu0 0
      %1283 = vmatpush1.bf16.msra.mxu0 0
      %1284 = vmatprep.subr.bf16.mxu0 0
      %1285 = vmatpush1.bf16.msra.mxu0 0
      %1286 = vmatprep.mubr.bf16.mxu0 0
      %1287 = vmatmul.mubr.bf16.gmra.mrb[0].mxu0 %v1246
      %v1288 = vpop.f32.mrb[0].mxu0
      %v1289 = vadd.f32 %v1168, %v1288
      %v1290 = vpop.f32.mrb[0].mxu0
      %v1291 = vadd.f32 %v1170, %v1290
      %v1292 = vpop.f32.mrb[0].mxu0
      %v1293 = vadd.f32 %v1172, %v1292
      %v1294 = vpop.f32.mrb[0].mxu0
      %v1295 = vadd.f32 %v1174, %v1294
      %1296 = vmatprep.mubr.bf16.mxu0 0
      %1297 = vmatmul.mubr.bf16.gmra.mrb[0].mxu0 %v1248
      %v1298 = vpop.f32.mrb[0].mxu0
      %v1299 = vadd.f32 %v1178, %v1298
      %v1300 = vpop.f32.mrb[0].mxu0
      %v1301 = vadd.f32 %v1180, %v1300
      %v1302 = vpop.f32.mrb[0].mxu0
      %v1303 = vadd.f32 %v1182, %v1302
      %v1304 = vpop.f32.mrb[0].mxu0
      %v1305 = vadd.f32 %v1184, %v1304
      %1306 = vmatprep.mubr.bf16.mxu0 0
      %1307 = vmatmul.mubr.bf16.gmra.mrb[0].mxu0 %v1250
      %v1308 = vpop.f32.mrb[0].mxu0
      %v1309 = vadd.f32 %v1188, %v1308
      %v1310 = vpop.f32.mrb[0].mxu0
      %v1311 = vadd.f32 %v1190, %v1310
      %v1312 = vpop.f32.mrb[0].mxu0
      %v1313 = vadd.f32 %v1192, %v1312
      %v1314 = vpop.f32.mrb[0].mxu0
      %v1315 = vadd.f32 %v1194, %v1314
      %1316 = vmatprep.mubr.bf16.mxu0 0
      %1317 = vmatmul.mubr.bf16.gmra.mrb[0].mxu0 %v1252
      %v1318 = vpop.f32.mrb[0].mxu0
      %v1319 = vadd.f32 %v1198, %v1318
      %v1320 = vpop.f32.mrb[0].mxu0
      %v1321 = vadd.f32 %v1200, %v1320
      %v1322 = vpop.f32.mrb[0].mxu0
      %v1323 = vadd.f32 %v1202, %v1322
      %v1324 = vpop.f32.mrb[0].mxu0
      %v1325 = vadd.f32 %v1204, %v1324
      %1326 = vdwg.mxu0
      %s1327 = scalar_lea.vmem %s927, 128
      %v1328 = vld [vmem:[%s1327] sm:$0xff]
      %v1329 = vld [vmem:[%s1327 + $0x8] sm:$0xff]
      %v1330 = vld [vmem:[%s1327 + $0x10] sm:$0xff]
      %v1331 = vld [vmem:[%s1327 + $0x18] sm:$0xff]
      %v1332 = vld [vmem:[%s1327 + $0x20] sm:$0xff]
      %v1333 = vld [vmem:[%s1327 + $0x28] sm:$0xff]
      %v1334 = vld [vmem:[%s1327 + $0x30] sm:$0xff]
      %v1335 = vld [vmem:[%s1327 + $0x38] sm:$0xff]
      %vm1340 = vcmask 1046528
      %v1341 = vrot.slane %v1027, 1
      %v1342 = vrot.slane %v1028, 1
      %v1343 = vsel %vm1340, %v1341, %v1342
      %v1344 = vrot.slane %v1029, 1
      %v1345 = vsel %vm1340, %v1342, %v1344
      %v1346 = vrot.slane %v1030, 1
      %v1347 = vsel %vm1340, %v1344, %v1346
      %v1356 = vunpack.c.l.b16 %v1328
      %v1357 = vunpack.c.h.b16 %v1328
      %v1358 = vunpack.c.l.b16 %v1329
      %v1359 = vunpack.c.h.b16 %v1329
      %v1360 = vunpack.c.l.b16 %v1330
      %v1361 = vunpack.c.h.b16 %v1330
      %v1362 = vunpack.c.l.b16 %v1331
      %v1363 = vunpack.c.h.b16 %v1331
      %v1364 = vunpack.c.l.b16 %v1332
      %v1365 = vunpack.c.h.b16 %v1332
      %v1366 = vunpack.c.l.b16 %v1333
      %v1367 = vunpack.c.h.b16 %v1333
      %v1368 = vunpack.c.l.b16 %v1334
      %v1369 = vunpack.c.h.b16 %v1334
      %v1370 = vunpack.c.l.b16 %v1335
      %v1371 = vunpack.c.h.b16 %v1335
      %v1372 = vpack.c.b16 %v1358, %v1356
      %v1373 = vpack.c.b16 %v1359, %v1357
      %v1374 = vpack.c.b16 %v1362, %v1360
      %v1375 = vpack.c.b16 %v1363, %v1361
      %v1376 = vpack.c.b16 %v1366, %v1364
      %v1377 = vpack.c.b16 %v1367, %v1365
      %v1378 = vpack.c.b16 %v1370, %v1368
      %v1379 = vpack.c.b16 %v1371, %v1369
      %v1389 = vsel %vm1120, %v1343, 0
      %v1392 = vsel %vm1120, %v1345, 0
      %v1395 = vsel %vm1120, %v1347, 0
      %v1398 = vsel %vm1120, %v1346, 0
      %1400 = vmatprep.subr.bf16.mxu0 %v1373
      %1401 = vmatpush1.bf16.msra.mxu0 %v1372
      %1402 = vmatprep.subr.bf16.mxu0 %v1375
      %1403 = vmatpush1.bf16.msra.mxu0 %v1374
      %1404 = vmatprep.subr.bf16.mxu0 %v1377
      %1405 = vmatpush1.bf16.msra.mxu0 %v1376
      %1406 = vmatprep.subr.bf16.mxu0 %v1379
      %1407 = vmatpush1.bf16.msra.mxu0 %v1378
      %1408 = vmatprep.subr.bf16.mxu0 0
      %1409 = vmatpush1.bf16.msra.mxu0 0
      %1410 = vmatprep.subr.bf16.mxu0 0
      %1411 = vmatpush1.bf16.msra.mxu0 0
      %1412 = vmatprep.subr.bf16.mxu0 0
      %1413 = vmatpush1.bf16.msra.mxu0 0
      %1414 = vmatprep.subr.bf16.mxu0 0
      %1415 = vmatpush1.bf16.msra.mxu0 0
      %1416 = vmatprep.subr.bf16.mxu0 0
      %1417 = vmatpush1.bf16.msra.mxu0 0
      %1418 = vmatprep.subr.bf16.mxu0 0
      %1419 = vmatpush1.bf16.msra.mxu0 0
      %1420 = vmatprep.subr.bf16.mxu0 0
      %1421 = vmatpush1.bf16.msra.mxu0 0
      %1422 = vmatprep.subr.bf16.mxu0 0
      %1423 = vmatpush1.bf16.msra.mxu0 0
      %1424 = vmatprep.subr.bf16.mxu0 0
      %1425 = vmatpush1.bf16.msra.mxu0 0
      %1426 = vmatprep.subr.bf16.mxu0 0
      %1427 = vmatpush1.bf16.msra.mxu0 0
      %1428 = vmatprep.subr.bf16.mxu0 0
      %1429 = vmatpush1.bf16.msra.mxu0 0
      %1430 = vmatprep.subr.bf16.mxu0 0
      %1431 = vmatpush1.bf16.msra.mxu0 0
      %1432 = vmatprep.mubr.bf16.mxu0 0
      %1433 = vmatmul.mubr.bf16.gmra.mrb[0].mxu0 %v1389
      %v1434 = vpop.f32.mrb[0].mxu0
      %v1435 = vadd.f32 0.0, %v1434
      %v1436 = vpop.f32.mrb[0].mxu0
      %v1437 = vadd.f32 0.0, %v1436
      %v1438 = vpop.f32.mrb[0].mxu0
      %v1439 = vadd.f32 0.0, %v1438
      %v1440 = vpop.f32.mrb[0].mxu0
      %v1441 = vadd.f32 0.0, %v1440
      %1442 = vmatprep.mubr.bf16.mxu0 0
      %1443 = vmatmul.mubr.bf16.gmra.mrb[0].mxu0 %v1392
      %v1444 = vpop.f32.mrb[0].mxu0
      %v1445 = vadd.f32 0.0, %v1444
      %v1446 = vpop.f32.mrb[0].mxu0
      %v1447 = vadd.f32 0.0, %v1446
      %v1448 = vpop.f32.mrb[0].mxu0
      %v1449 = vadd.f32 0.0, %v1448
      %v1450 = vpop.f32.mrb[0].mxu0
      %v1451 = vadd.f32 0.0, %v1450
      %1452 = vmatprep.mubr.bf16.mxu0 0
      %1453 = vmatmul.mubr.bf16.gmra.mrb[0].mxu0 %v1395
      %v1454 = vpop.f32.mrb[0].mxu0
      %v1455 = vadd.f32 0.0, %v1454
      %v1456 = vpop.f32.mrb[0].mxu0
      %v1457 = vadd.f32 0.0, %v1456
      %v1458 = vpop.f32.mrb[0].mxu0
      %v1459 = vadd.f32 0.0, %v1458
      %v1460 = vpop.f32.mrb[0].mxu0
      %v1461 = vadd.f32 0.0, %v1460
      %1462 = vmatprep.mubr.bf16.mxu0 0
      %1463 = vmatmul.mubr.bf16.gmra.mrb[0].mxu0 %v1398
      %v1464 = vpop.f32.mrb[0].mxu0
      %v1465 = vadd.f32 0.0, %v1464
      %v1466 = vpop.f32.mrb[0].mxu0
      %v1467 = vadd.f32 0.0, %v1466
      %v1468 = vpop.f32.mrb[0].mxu0
      %v1469 = vadd.f32 0.0, %v1468
      %v1470 = vpop.f32.mrb[0].mxu0
      %v1471 = vadd.f32 0.0, %v1470
      %1472 = vdwg.mxu0
      %v1473 = vadd.f32 %v1289, %v1435
      %v1474 = vadd.f32 %v1291, %v1437
      %v1475 = vadd.f32 %v1293, %v1439
      %v1476 = vadd.f32 %v1295, %v1441
      %v1477 = vadd.f32 %v1299, %v1445
      %v1478 = vadd.f32 %v1301, %v1447
      %v1479 = vadd.f32 %v1303, %v1449
      %v1480 = vadd.f32 %v1305, %v1451
      %v1481 = vadd.f32 %v1309, %v1455
      %v1482 = vadd.f32 %v1311, %v1457
      %v1483 = vadd.f32 %v1313, %v1459
      %v1484 = vadd.f32 %v1315, %v1461
      %v1485 = vadd.f32 %v1319, %v1465
      %v1486 = vadd.f32 %v1321, %v1467
      %v1487 = vadd.f32 %v1323, %v1469
      %v1488 = vadd.f32 %v1325, %v1471
      %s1489 = scalar_lea.vmem %s927, 192
      %v1490 = vld [vmem:[%s1489] sm:$0xff]
      %v1491 = vld [vmem:[%s1489 + $0x8] sm:$0xff]
      %v1492 = vld [vmem:[%s1489 + $0x10] sm:$0xff]
      %v1493 = vld [vmem:[%s1489 + $0x18] sm:$0xff]
      %v1494 = vld [vmem:[%s1489 + $0x20] sm:$0xff]
      %v1495 = vld [vmem:[%s1489 + $0x28] sm:$0xff]
      %v1496 = vld [vmem:[%s1489 + $0x30] sm:$0xff]
      %v1497 = vld [vmem:[%s1489 + $0x38] sm:$0xff]
      %vm1498 = vsmask.f32 6400
      %v1499 = vrot.slane %v1050, 1
      %v1500 = vrot.slane %v1052, 2
      %v1501 = vor.u32 %v1499, %v1500
      %v1502 = vrot.slane %v1061, 1
      %v1503 = vrot.slane %v1057, 2
      %v1504 = vor.u32 %v1502, %v1503
      %v1505 = vsel %vm1498, %v1501, %v1504
      %v1506 = vrot.slane %v1069, 1
      %v1507 = vrot.slane %v1065, 2
      %v1508 = vor.u32 %v1506, %v1507
      %v1509 = vsel %vm1498, %v1504, %v1508
      %v1510 = vrot.slane %v1077, 1
      %v1511 = vrot.slane %v1073, 2
      %v1512 = vor.u32 %v1510, %v1511
      %v1513 = vsel %vm1498, %v1508, %v1512
      %v1522 = vunpack.c.l.b16 %v1490
      %v1523 = vunpack.c.h.b16 %v1490
      %v1524 = vunpack.c.l.b16 %v1491
      %v1525 = vunpack.c.h.b16 %v1491
      %v1526 = vunpack.c.l.b16 %v1492
      %v1527 = vunpack.c.h.b16 %v1492
      %v1528 = vunpack.c.l.b16 %v1493
      %v1529 = vunpack.c.h.b16 %v1493
      %v1530 = vunpack.c.l.b16 %v1494
      %v1531 = vunpack.c.h.b16 %v1494
      %v1532 = vunpack.c.l.b16 %v1495
      %v1533 = vunpack.c.h.b16 %v1495
      %v1534 = vunpack.c.l.b16 %v1496
      %v1535 = vunpack.c.h.b16 %v1496
      %v1536 = vunpack.c.l.b16 %v1497
      %v1537 = vunpack.c.h.b16 %v1497
      %v1538 = vpack.c.b16 %v1524, %v1522
      %v1539 = vpack.c.b16 %v1525, %v1523
      %v1540 = vpack.c.b16 %v1528, %v1526
      %v1541 = vpack.c.b16 %v1529, %v1527
      %v1542 = vpack.c.b16 %v1532, %v1530
      %v1543 = vpack.c.b16 %v1533, %v1531
      %v1544 = vpack.c.b16 %v1536, %v1534
      %v1545 = vpack.c.b16 %v1537, %v1535
      %v1555 = vsel %vm1120, %v1505, 0
      %v1558 = vsel %vm1120, %v1509, 0
      %v1561 = vsel %vm1120, %v1513, 0
      %v1564 = vsel %vm1120, %v1512, 0
      %1566 = vmatprep.subr.bf16.mxu0 %v1539
      %1567 = vmatpush1.bf16.msra.mxu0 %v1538
      %1568 = vmatprep.subr.bf16.mxu0 %v1541
      %1569 = vmatpush1.bf16.msra.mxu0 %v1540
      %1570 = vmatprep.subr.bf16.mxu0 %v1543
      %1571 = vmatpush1.bf16.msra.mxu0 %v1542
      %1572 = vmatprep.subr.bf16.mxu0 %v1545
      %1573 = vmatpush1.bf16.msra.mxu0 %v1544
      %1574 = vmatprep.subr.bf16.mxu0 0
      %1575 = vmatpush1.bf16.msra.mxu0 0
      %1576 = vmatprep.subr.bf16.mxu0 0
      %1577 = vmatpush1.bf16.msra.mxu0 0
      %1578 = vmatprep.subr.bf16.mxu0 0
      %1579 = vmatpush1.bf16.msra.mxu0 0
      %1580 = vmatprep.subr.bf16.mxu0 0
      %1581 = vmatpush1.bf16.msra.mxu0 0
      %1582 = vmatprep.subr.bf16.mxu0 0
      %1583 = vmatpush1.bf16.msra.mxu0 0
      %1584 = vmatprep.subr.bf16.mxu0 0
      %1585 = vmatpush1.bf16.msra.mxu0 0
      %1586 = vmatprep.subr.bf16.mxu0 0
      %1587 = vmatpush1.bf16.msra.mxu0 0
      %1588 = vmatprep.subr.bf16.mxu0 0
      %1589 = vmatpush1.bf16.msra.mxu0 0
      %1590 = vmatprep.subr.bf16.mxu0 0
      %1591 = vmatpush1.bf16.msra.mxu0 0
      %1592 = vmatprep.subr.bf16.mxu0 0
      %1593 = vmatpush1.bf16.msra.mxu0 0
      %1594 = vmatprep.subr.bf16.mxu0 0
      %1595 = vmatpush1.bf16.msra.mxu0 0
      %1596 = vmatprep.subr.bf16.mxu0 0
      %1597 = vmatpush1.bf16.msra.mxu0 0
      %1598 = vmatprep.mubr.bf16.mxu0 0
      %1599 = vmatmul.mubr.bf16.gmra.mrb[0].mxu0 %v1555
      %v1600 = vpop.f32.mrb[0].mxu0
      %v1601 = vadd.f32 0.0, %v1600
      %v1602 = vpop.f32.mrb[0].mxu0
      %v1603 = vadd.f32 0.0, %v1602
      %v1604 = vpop.f32.mrb[0].mxu0
      %v1605 = vadd.f32 0.0, %v1604
      %v1606 = vpop.f32.mrb[0].mxu0
      %v1607 = vadd.f32 0.0, %v1606
      %1608 = vmatprep.mubr.bf16.mxu0 0
      %1609 = vmatmul.mubr.bf16.gmra.mrb[0].mxu0 %v1558
      %v1610 = vpop.f32.mrb[0].mxu0
      %v1611 = vadd.f32 0.0, %v1610
      %v1612 = vpop.f32.mrb[0].mxu0
      %v1613 = vadd.f32 0.0, %v1612
      %v1614 = vpop.f32.mrb[0].mxu0
      %v1615 = vadd.f32 0.0, %v1614
      %v1616 = vpop.f32.mrb[0].mxu0
      %v1617 = vadd.f32 0.0, %v1616
      %1618 = vmatprep.mubr.bf16.mxu0 0
      %1619 = vmatmul.mubr.bf16.gmra.mrb[0].mxu0 %v1561
      %v1620 = vpop.f32.mrb[0].mxu0
      %v1621 = vadd.f32 0.0, %v1620
      %v1622 = vpop.f32.mrb[0].mxu0
      %v1623 = vadd.f32 0.0, %v1622
      %v1624 = vpop.f32.mrb[0].mxu0
      %v1625 = vadd.f32 0.0, %v1624
      %v1626 = vpop.f32.mrb[0].mxu0
      %v1627 = vadd.f32 0.0, %v1626
      %1628 = vmatprep.mubr.bf16.mxu0 0
      %1629 = vmatmul.mubr.bf16.gmra.mrb[0].mxu0 %v1564
      %v1630 = vpop.f32.mrb[0].mxu0
      %v1631 = vadd.f32 0.0, %v1630
      %v1632 = vpop.f32.mrb[0].mxu0
      %v1633 = vadd.f32 0.0, %v1632
      %v1634 = vpop.f32.mrb[0].mxu0
      %v1635 = vadd.f32 0.0, %v1634
      %v1636 = vpop.f32.mrb[0].mxu0
      %v1637 = vadd.f32 0.0, %v1636
      %1638 = vdwg.mxu0
      %v1639 = vadd.f32 %v1473, %v1601
      %v1640 = vadd.f32 %v1474, %v1603
      %v1641 = vadd.f32 %v1475, %v1605
      %v1642 = vadd.f32 %v1476, %v1607
      %v1643 = vadd.f32 %v1477, %v1611
      %v1644 = vadd.f32 %v1478, %v1613
      %v1645 = vadd.f32 %v1479, %v1615
      %v1646 = vadd.f32 %v1480, %v1617
      %v1647 = vadd.f32 %v1481, %v1621
      %v1648 = vadd.f32 %v1482, %v1623
      %v1649 = vadd.f32 %v1483, %v1625
      %v1650 = vadd.f32 %v1484, %v1627
      %v1651 = vadd.f32 %v1485, %v1631
      %v1652 = vadd.f32 %v1486, %v1633
      %v1653 = vadd.f32 %v1487, %v1635
      %v1654 = vadd.f32 %v1488, %v1637
      %s1655 = scalar_lea.vmem %s927, 256
      %v1656 = vld [vmem:[%s1655] sm:$0xff]
      %v1657 = vld [vmem:[%s1655 + $0x8] sm:$0xff]
      %v1658 = vld [vmem:[%s1655 + $0x10] sm:$0xff]
      %v1659 = vld [vmem:[%s1655 + $0x18] sm:$0xff]
      %v1660 = vld [vmem:[%s1655 + $0x20] sm:$0xff]
      %v1661 = vld [vmem:[%s1655 + $0x28] sm:$0xff]
      %v1662 = vld [vmem:[%s1655 + $0x30] sm:$0xff]
      %v1663 = vld [vmem:[%s1655 + $0x38] sm:$0xff]
      %vm1664 = vcmask 1045504
      %v1665 = vrot.slane %v1027, 2
      %v1666 = vrot.slane %v1028, 2
      %v1667 = vsel %vm1664, %v1665, %v1666
      %v1668 = vrot.slane %v1029, 2
      %v1669 = vsel %vm1664, %v1666, %v1668
      %v1670 = vrot.slane %v1030, 2
      %v1671 = vsel %vm1664, %v1668, %v1670
      %v1680 = vunpack.c.l.b16 %v1656
      %v1681 = vunpack.c.h.b16 %v1656
      %v1682 = vunpack.c.l.b16 %v1657
      %v1683 = vunpack.c.h.b16 %v1657
      %v1684 = vunpack.c.l.b16 %v1658
      %v1685 = vunpack.c.h.b16 %v1658
      %v1686 = vunpack.c.l.b16 %v1659
      %v1687 = vunpack.c.h.b16 %v1659
      %v1688 = vunpack.c.l.b16 %v1660
      %v1689 = vunpack.c.h.b16 %v1660
      %v1690 = vunpack.c.l.b16 %v1661
      %v1691 = vunpack.c.h.b16 %v1661
      %v1692 = vunpack.c.l.b16 %v1662
      %v1693 = vunpack.c.h.b16 %v1662
      %v1694 = vunpack.c.l.b16 %v1663
      %v1695 = vunpack.c.h.b16 %v1663
      %v1696 = vpack.c.b16 %v1682, %v1680
      %v1697 = vpack.c.b16 %v1683, %v1681
      %v1698 = vpack.c.b16 %v1686, %v1684
      %v1699 = vpack.c.b16 %v1687, %v1685
      %v1700 = vpack.c.b16 %v1690, %v1688
      %v1701 = vpack.c.b16 %v1691, %v1689
      %v1702 = vpack.c.b16 %v1694, %v1692
      %v1703 = vpack.c.b16 %v1695, %v1693
      %v1713 = vsel %vm1120, %v1667, 0
      %v1716 = vsel %vm1120, %v1669, 0
      %v1719 = vsel %vm1120, %v1671, 0
      %v1722 = vsel %vm1120, %v1670, 0
      %1724 = vmatprep.subr.bf16.mxu0 %v1697
      %1725 = vmatpush1.bf16.msra.mxu0 %v1696
      %1726 = vmatprep.subr.bf16.mxu0 %v1699
      %1727 = vmatpush1.bf16.msra.mxu0 %v1698
      %1728 = vmatprep.subr.bf16.mxu0 %v1701
      %1729 = vmatpush1.bf16.msra.mxu0 %v1700
      %1730 = vmatprep.subr.bf16.mxu0 %v1703
      %1731 = vmatpush1.bf16.msra.mxu0 %v1702
      %1732 = vmatprep.subr.bf16.mxu0 0
      %1733 = vmatpush1.bf16.msra.mxu0 0
      %1734 = vmatprep.subr.bf16.mxu0 0
      %1735 = vmatpush1.bf16.msra.mxu0 0
      %1736 = vmatprep.subr.bf16.mxu0 0
      %1737 = vmatpush1.bf16.msra.mxu0 0
      %1738 = vmatprep.subr.bf16.mxu0 0
      %1739 = vmatpush1.bf16.msra.mxu0 0
      %1740 = vmatprep.subr.bf16.mxu0 0
      %1741 = vmatpush1.bf16.msra.mxu0 0
      %1742 = vmatprep.subr.bf16.mxu0 0
      %1743 = vmatpush1.bf16.msra.mxu0 0
      %1744 = vmatprep.subr.bf16.mxu0 0
      %1745 = vmatpush1.bf16.msra.mxu0 0
      %1746 = vmatprep.subr.bf16.mxu0 0
      %1747 = vmatpush1.bf16.msra.mxu0 0
      %1748 = vmatprep.subr.bf16.mxu0 0
      %1749 = vmatpush1.bf16.msra.mxu0 0
      %1750 = vmatprep.subr.bf16.mxu0 0
      %1751 = vmatpush1.bf16.msra.mxu0 0
      %1752 = vmatprep.subr.bf16.mxu0 0
      %1753 = vmatpush1.bf16.msra.mxu0 0
      %1754 = vmatprep.subr.bf16.mxu0 0
      %1755 = vmatpush1.bf16.msra.mxu0 0
      %1756 = vmatprep.mubr.bf16.mxu0 0
      %1757 = vmatmul.mubr.bf16.gmra.mrb[0].mxu0 %v1713
      %v1758 = vpop.f32.mrb[0].mxu0
      %v1759 = vadd.f32 0.0, %v1758
      %v1760 = vpop.f32.mrb[0].mxu0
      %v1761 = vadd.f32 0.0, %v1760
      %v1762 = vpop.f32.mrb[0].mxu0
      %v1763 = vadd.f32 0.0, %v1762
      %v1764 = vpop.f32.mrb[0].mxu0
      %v1765 = vadd.f32 0.0, %v1764
      %1766 = vmatprep.mubr.bf16.mxu0 0
      %1767 = vmatmul.mubr.bf16.gmra.mrb[0].mxu0 %v1716
      %v1768 = vpop.f32.mrb[0].mxu0
      %v1769 = vadd.f32 0.0, %v1768
      %v1770 = vpop.f32.mrb[0].mxu0
      %v1771 = vadd.f32 0.0, %v1770
      %v1772 = vpop.f32.mrb[0].mxu0
      %v1773 = vadd.f32 0.0, %v1772
      %v1774 = vpop.f32.mrb[0].mxu0
      %v1775 = vadd.f32 0.0, %v1774
      %1776 = vmatprep.mubr.bf16.mxu0 0
      %1777 = vmatmul.mubr.bf16.gmra.mrb[0].mxu0 %v1719
      %v1778 = vpop.f32.mrb[0].mxu0
      %v1779 = vadd.f32 0.0, %v1778
      %v1780 = vpop.f32.mrb[0].mxu0
      %v1781 = vadd.f32 0.0, %v1780
      %v1782 = vpop.f32.mrb[0].mxu0
      %v1783 = vadd.f32 0.0, %v1782
      %v1784 = vpop.f32.mrb[0].mxu0
      %v1785 = vadd.f32 0.0, %v1784
      %1786 = vmatprep.mubr.bf16.mxu0 0
      %1787 = vmatmul.mubr.bf16.gmra.mrb[0].mxu0 %v1722
      %v1788 = vpop.f32.mrb[0].mxu0
      %v1789 = vadd.f32 0.0, %v1788
      %v1790 = vpop.f32.mrb[0].mxu0
      %v1791 = vadd.f32 0.0, %v1790
      %v1792 = vpop.f32.mrb[0].mxu0
      %v1793 = vadd.f32 0.0, %v1792
      %v1794 = vpop.f32.mrb[0].mxu0
      %v1795 = vadd.f32 0.0, %v1794
      %1796 = vdwg.mxu0
      %v1797 = vadd.f32 %v1639, %v1759
      %v1798 = vadd.f32 %v1640, %v1761
      %v1799 = vadd.f32 %v1641, %v1763
      %v1800 = vadd.f32 %v1642, %v1765
      %v1801 = vadd.f32 %v1643, %v1769
      %v1802 = vadd.f32 %v1644, %v1771
      %v1803 = vadd.f32 %v1645, %v1773
      %v1804 = vadd.f32 %v1646, %v1775
      %v1805 = vadd.f32 %v1647, %v1779
      %v1806 = vadd.f32 %v1648, %v1781
      %v1807 = vadd.f32 %v1649, %v1783
      %v1808 = vadd.f32 %v1650, %v1785
      %v1809 = vadd.f32 %v1651, %v1789
      %v1810 = vadd.f32 %v1652, %v1791
      %v1811 = vadd.f32 %v1653, %v1793
      %v1812 = vadd.f32 %v1654, %v1795
      %v1813 = vld [vmem:[%s931] sm:$0x3]
      %v1815 = vlaneseq
      %v1816 = vshrl.u32 %v1815, 7
      %v1817 = vsub.s32 0, %v1816
      %v1818 = vrot.slane %v1813, %v1817
      %v1819 = vlaneseq
      %v1820 = vshrl.u32 %v1819, 7
      %v1821 = vsub.s32 1, %v1820
      %v1822 = vrot.slane %v1813, %v1821
      %v1825 = vadd.f32 %v1797, %v1818
      %v1826 = vadd.f32 %v1798, %v1822
      %v1827 = vadd.f32 %v1799, %v1818
      %v1828 = vadd.f32 %v1800, %v1822
      %v1829 = vadd.f32 %v1801, %v1818
      %v1830 = vadd.f32 %v1802, %v1822
      %v1831 = vadd.f32 %v1803, %v1818
      %v1832 = vadd.f32 %v1804, %v1822
      %v1833 = vadd.f32 %v1805, %v1818
      %v1834 = vadd.f32 %v1806, %v1822
      %v1835 = vadd.f32 %v1807, %v1818
      %v1836 = vadd.f32 %v1808, %v1822
      %v1837 = vadd.f32 %v1809, %v1818
      %v1838 = vadd.f32 %v1810, %v1822
      %v1839 = vadd.f32 %v1811, %v1818
      %v1840 = vadd.f32 %v1812, %v1822
      %v1841 = vld [vmem:[%s15] sm:$0xff]
      %v1842 = vld [vmem:[%s15 + $0x8] sm:$0xff]
      %v1843 = vld [vmem:[%s15 + $0x10] sm:$0xff]
      %v1844 = vld [vmem:[%s15 + $0x18] sm:$0x3f]
      %vm1845 = vcmask 490496
      %v1847 = vsel %vm1845, %v1841, 0
      %v1850 = vsel %vm1845, %v1842, 0
      %v1853 = vsel %vm1845, %v1843, 0
      %v1856 = vsel %vm1845, %v1844, 0
      %vm1858 = vcmask 1043456
      %v1860 = vsel %vm1858, %v1839, 0
      %v1863 = vsel %vm1858, %v1840, 0
      %1865 = vmatprep.subr.mxu0 %v1826
      %1866 = vmatpush1.msra.mxu0 %v1825
      %1867 = vmatprep.subr.mxu0 %v1828
      %1868 = vmatpush1.msra.mxu0 %v1827
      %1869 = vmatprep.subr.mxu0 %v1830
      %1870 = vmatpush1.msra.mxu0 %v1829
      %1871 = vmatprep.subr.mxu0 %v1832
      %1872 = vmatpush1.msra.mxu0 %v1831
      %1873 = vmatprep.subr.mxu0 %v1834
      %1874 = vmatpush1.msra.mxu0 %v1833
      %1875 = vmatprep.subr.mxu0 %v1836
      %1876 = vmatpush1.msra.mxu0 %v1835
      %1877 = vmatprep.subr.mxu0 %v1838
      %1878 = vmatpush1.msra.mxu0 %v1837
      %1879 = vmatprep.subr.mxu0 %v1863
      %1880 = vmatpush1.msra.mxu0 %v1860
      %1881 = vmatprep.subr.mxu0 0.0
      %1882 = vmatpush1.msra.mxu0 0.0
      %1883 = vmatprep.subr.mxu0 0.0
      %1884 = vmatpush1.msra.mxu0 0.0
      %1885 = vmatprep.subr.mxu0 0.0
      %1886 = vmatpush1.msra.mxu0 0.0
      %1887 = vmatprep.subr.mxu0 0.0
      %1888 = vmatpush1.msra.mxu0 0.0
      %1889 = vmatprep.subr.mxu0 0.0
      %1890 = vmatpush1.msra.mxu0 0.0
      %1891 = vmatprep.subr.mxu0 0.0
      %1892 = vmatpush1.msra.mxu0 0.0
      %1893 = vmatprep.subr.mxu0 0.0
      %1894 = vmatpush1.msra.mxu0 0.0
      %1895 = vmatprep.subr.mxu0 0.0
      %1896 = vmatpush1.msra.mxu0 0.0
      %1897 = vmatprep.subr.mxu0 0.0
      %1898 = vmatpush1.msra.mxu0 0.0
      %1899 = vmatprep.subr.mxu0 0.0
      %1900 = vmatpush1.msra.mxu0 0.0
      %1901 = vmatprep.subr.mxu0 0.0
      %1902 = vmatpush1.msra.mxu0 0.0
      %1903 = vmatprep.subr.mxu0 0.0
      %1904 = vmatpush1.msra.mxu0 0.0
      %1905 = vmatprep.subr.mxu0 0.0
      %1906 = vmatpush1.msra.mxu0 0.0
      %1907 = vmatprep.subr.mxu0 0.0
      %1908 = vmatpush1.msra.mxu0 0.0
      %1909 = vmatprep.subr.mxu0 0.0
      %1910 = vmatpush1.msra.mxu0 0.0
      %1911 = vmatprep.subr.mxu0 0.0
      %1912 = vmatpush1.msra.mxu0 0.0
      %1913 = vmatprep.subr.mxu0 0.0
      %1914 = vmatpush1.msra.mxu0 0.0
      %1915 = vmatprep.subr.mxu0 0.0
      %1916 = vmatpush1.msra.mxu0 0.0
      %1917 = vmatprep.subr.mxu0 0.0
      %1918 = vmatpush1.msra.mxu0 0.0
      %1919 = vmatprep.subr.mxu0 0.0
      %1920 = vmatpush1.msra.mxu0 0.0
      %1921 = vmatprep.subr.mxu0 0.0
      %1922 = vmatpush1.msra.mxu0 0.0
      %1923 = vmatprep.subr.mxu0 0.0
      %1924 = vmatpush1.msra.mxu0 0.0
      %1925 = vmatprep.subr.mxu0 0.0
      %1926 = vmatpush1.msra.mxu0 0.0
      %1927 = vmatprep.subr.mxu0 0.0
      %1928 = vmatpush1.msra.mxu0 0.0
      %1929 = vmatprep.mubr.f32.mxu0 0.0
      %1930 = vmatmul.mubr.f32.gmra.mrb[0].mxu0 %v1847
      %v1931 = vpop.f32.mrb[0].mxu0
      %v1932 = vadd.f32 0.0, %v1931
      %v1933 = vpop.f32.mrb[0].mxu0
      %v1934 = vadd.f32 0.0, %v1933
      %1935 = vmatprep.mubr.f32.mxu0 0.0
      %1936 = vmatmul.mubr.f32.gmra.mrb[0].mxu0 %v1850
      %v1937 = vpop.f32.mrb[0].mxu0
      %v1938 = vadd.f32 0.0, %v1937
      %v1939 = vpop.f32.mrb[0].mxu0
      %v1940 = vadd.f32 0.0, %v1939
      %1941 = vmatprep.mubr.f32.mxu0 0.0
      %1942 = vmatmul.mubr.f32.gmra.mrb[0].mxu0 %v1853
      %v1943 = vpop.f32.mrb[0].mxu0
      %v1944 = vadd.f32 0.0, %v1943
      %v1945 = vpop.f32.mrb[0].mxu0
      %v1946 = vadd.f32 0.0, %v1945
      %1947 = vmatprep.mubr.f32.mxu0 0.0
      %1948 = vmatmul.mubr.f32.gmra.mrb[0].mxu0 %v1856
      %v1949 = vpop.f32.mrb[0].mxu0
      %v1950 = vadd.f32 0.0, %v1949
      %v1951 = vpop.f32.mrb[0].mxu0
      %v1952 = vadd.f32 0.0, %v1951
      %1953 = vdwg.mxu0
      %vm1954 = vcmp.gt.f32.partialorder %v1932, 0.0
      %vm1955 = vcmp.gt.f32.partialorder %v1934, 0.0
      %vm1956 = vcmp.gt.f32.partialorder %v1938, 0.0
      %vm1957 = vcmp.gt.f32.partialorder %v1940, 0.0
      %vm1958 = vcmp.gt.f32.partialorder %v1944, 0.0
      %vm1959 = vcmp.gt.f32.partialorder %v1946, 0.0
      %vm1960 = vcmp.gt.f32.partialorder %v1950, 0.0
      %vm1961 = vcmp.gt.f32.partialorder %v1952, 0.0
      %v1962 = vmin.f32 %v1932, 0.0
      %v1963 = vmin.f32 %v1934, 0.0
      %v1964 = vmin.f32 %v1938, 0.0
      %v1965 = vmin.f32 %v1940, 0.0
      %v1966 = vmin.f32 %v1944, 0.0
      %v1967 = vmin.f32 %v1946, 0.0
      %v1968 = vmin.f32 %v1950, 0.0
      %v1969 = vmin.f32 %v1952, 0.0
      %v1970 = vmul.f32 %v1962, 1.442695
      %v1971 = vpow.pop %v1970
      %v1972 = vmul.f32 %v1963, 1.442695
      %v1973 = vpow.pop %v1972
      %v1974 = vmul.f32 %v1964, 1.442695
      %v1975 = vpow.pop %v1974
      %v1976 = vmul.f32 %v1965, 1.442695
      %v1977 = vpow.pop %v1976
      %v1978 = vmul.f32 %v1966, 1.442695
      %v1979 = vpow.pop %v1978
      %v1980 = vmul.f32 %v1967, 1.442695
      %v1981 = vpow.pop %v1980
      %v1982 = vmul.f32 %v1968, 1.442695
      %v1983 = vpow.pop %v1982
      %v1984 = vmul.f32 %v1969, 1.442695
      %v1985 = vpow.pop %v1984
      %v1986 = vsub.f32 %v1971, 1.0
      %v1987 = vsub.f32 %v1973, 1.0
      %v1988 = vsub.f32 %v1975, 1.0
      %v1989 = vsub.f32 %v1977, 1.0
      %v1990 = vsub.f32 %v1979, 1.0
      %v1991 = vsub.f32 %v1981, 1.0
      %v1992 = vsub.f32 %v1983, 1.0
      %v1993 = vsub.f32 %v1985, 1.0
      %v1994 = vsel %vm1954, %v1932, %v1986
      %v1995 = vsel %vm1955, %v1934, %v1987
      %v1996 = vsel %vm1956, %v1938, %v1988
      %v1997 = vsel %vm1957, %v1940, %v1989
      %v1998 = vsel %vm1958, %v1944, %v1990
      %v1999 = vsel %vm1959, %v1946, %v1991
      %v2000 = vsel %vm1960, %v1950, %v1992
      %v2001 = vsel %vm1961, %v1952, %v1993
      %v2002 = vpack.c.bf16 %v1996, %v1994
      %v2003 = vpack.c.bf16 %v1997, %v1995
      %v2004 = vpack.c.bf16 %v2000, %v1998
      %v2005 = vpack.c.bf16 %v2001, %v1999
      %v2006 = vld [vmem:[%s936] sm:$0xff]
      %v2007 = vld [vmem:[%s936 + $0x8] sm:$0xff]
      %v2008 = vld [vmem:[%s936 + $0x10] sm:$0xff]
      %v2009 = vld [vmem:[%s936 + $0x18] sm:$0xff]
      %v2010 = vld [vmem:[%s936 + $0x20] sm:$0xff]
      %v2011 = vld [vmem:[%s936 + $0x28] sm:$0xff]
      %v2012 = vld [vmem:[%s936 + $0x30] sm:$0xff]
      %v2013 = vld [vmem:[%s936 + $0x38] sm:$0xff]
      %v2014 = vld [vmem:[%s936 + $0x40] sm:$0xff]
      %v2015 = vld [vmem:[%s936 + $0x48] sm:$0xff]
      %v2016 = vld [vmem:[%s936 + $0x50] sm:$0xff]
      %v2017 = vld [vmem:[%s936 + $0x58] sm:$0xff]
      %v2018 = vld [vmem:[%s936 + $0x60] sm:$0xff]
      %v2019 = vld [vmem:[%s936 + $0x68] sm:$0xff]
      %v2020 = vld [vmem:[%s936 + $0x70] sm:$0xff]
      %v2021 = vld [vmem:[%s936 + $0x78] sm:$0xff]
      %v2022 = vld [vmem:[%s936 + $0x80] sm:$0xff]
      %v2023 = vld [vmem:[%s936 + $0x88] sm:$0xff]
      %v2024 = vld [vmem:[%s936 + $0x90] sm:$0xff]
      %v2025 = vld [vmem:[%s936 + $0x98] sm:$0xff]
      %v2026 = vld [vmem:[%s936 + $0xa0] sm:$0xff]
      %v2027 = vld [vmem:[%s936 + $0xa8] sm:$0xff]
      %v2028 = vld [vmem:[%s936 + $0xb0] sm:$0xff]
      %v2029 = vld [vmem:[%s936 + $0xb8] sm:$0xff]
      %v2030 = vld [vmem:[%s936 + $0xc0] sm:$0xff]
      %v2031 = vld [vmem:[%s936 + $0xc8] sm:$0xff]
      %v2032 = vld [vmem:[%s936 + $0xd0] sm:$0xff]
      %v2033 = vld [vmem:[%s936 + $0xd8] sm:$0xff]
      %v2034 = vld [vmem:[%s936 + $0xe0] sm:$0xff]
      %v2035 = vld [vmem:[%s936 + $0xe8] sm:$0xff]
      %s2036 = scalar_lea.vmem %s936, 240
      %v2037 = vld [vmem:[%s2036] sm:$0xff]
      %v2038 = vld [vmem:[%s2036 + $0x8] sm:$0xff]
      %v2039 = vld [vmem:[%s2036 + $0x10] sm:$0xff]
      %v2040 = vld [vmem:[%s2036 + $0x18] sm:$0xff]
      %v2041 = vld [vmem:[%s2036 + $0x20] sm:$0xff]
      %v2042 = vld [vmem:[%s2036 + $0x28] sm:$0xff]
      %v2043 = vld [vmem:[%s2036 + $0x30] sm:$0xff]
      %v2044 = vld [vmem:[%s2036 + $0x38] sm:$0xff]
      %v2045 = vld [vmem:[%s2036 + $0x40] sm:$0xff]
      %v2046 = vld [vmem:[%s2036 + $0x48] sm:$0xff]
      %v2047 = vld [vmem:[%s2036 + $0x50] sm:$0xff]
      %v2048 = vld [vmem:[%s2036 + $0x58] sm:$0xff]
      %v2049 = vld [vmem:[%s2036 + $0x60] sm:$0xff]
      %v2050 = vld [vmem:[%s2036 + $0x68] sm:$0xff]
      %v2051 = vld [vmem:[%s2036 + $0x70] sm:$0xff]
      %v2052 = vld [vmem:[%s2036 + $0x78] sm:$0xff]
      %v2053 = vld [vmem:[%s2036 + $0x80] sm:$0xff]
      %v2054 = vld [vmem:[%s2036 + $0x88] sm:$0xff]
      %v2055 = vld [vmem:[%s2036 + $0x90] sm:$0xff]
      %v2056 = vld [vmem:[%s2036 + $0x98] sm:$0xff]
      %v2057 = vld [vmem:[%s2036 + $0xa0] sm:$0xff]
      %v2058 = vld [vmem:[%s2036 + $0xa8] sm:$0xff]
      %v2059 = vld [vmem:[%s2036 + $0xb0] sm:$0xff]
      %v2060 = vld [vmem:[%s2036 + $0xb8] sm:$0xff]
      %v2061 = vld [vmem:[%s2036 + $0xc0] sm:$0xff]
      %v2062 = vld [vmem:[%s2036 + $0xc8] sm:$0xff]
      %v2063 = vld [vmem:[%s2036 + $0xd0] sm:$0xff]
      %v2064 = vld [vmem:[%s2036 + $0xd8] sm:$0xff]
      %v2065 = vld [vmem:[%s2036 + $0xe0] sm:$0xff]
      %v2066 = vld [vmem:[%s2036 + $0xe8] sm:$0xff]
      %v2068 = vshrl.u32 %v2002, 16
      %v2070 = vshll.u32 %v2002, 16
      %v2072 = vrot.slane %v2070, 1
      %v2073 = vor.u32 %v2068, %v2072
      %v2075 = vshll.u32 %v2004, 16
      %v2077 = vrot.slane %v2075, 1
      %v2078 = vsel %vm1048, %v2073, %v2077
      %v2080 = vshrl.u32 %v2003, 16
      %v2082 = vshll.u32 %v2003, 16
      %v2084 = vrot.slane %v2082, 1
      %v2085 = vor.u32 %v2080, %v2084
      %v2087 = vshll.u32 %v2005, 16
      %v2089 = vrot.slane %v2087, 1
      %v2090 = vsel %vm1048, %v2085, %v2089
      %v2091 = vshrl.u32 %v2004, 16
      %v2093 = vor.u32 %v2091, %v2077
      %v2094 = vshrl.u32 %v2005, 16
      %v2096 = vor.u32 %v2094, %v2089
      %v2129 = vunpack.c.l.b16 %v2037
      %v2130 = vunpack.c.h.b16 %v2037
      %v2131 = vunpack.c.l.b16 %v2038
      %v2132 = vunpack.c.h.b16 %v2038
      %v2133 = vunpack.c.l.b16 %v2039
      %v2134 = vunpack.c.h.b16 %v2039
      %v2135 = vunpack.c.l.b16 %v2040
      %v2136 = vunpack.c.h.b16 %v2040
      %v2137 = vunpack.c.l.b16 %v2041
      %v2138 = vunpack.c.h.b16 %v2041
      %v2139 = vunpack.c.l.b16 %v2042
      %v2140 = vunpack.c.h.b16 %v2042
      %v2141 = vunpack.c.l.b16 %v2043
      %v2142 = vunpack.c.h.b16 %v2043
      %v2143 = vunpack.c.l.b16 %v2044
      %v2144 = vunpack.c.h.b16 %v2044
      %v2145 = vunpack.c.l.b16 %v2045
      %v2146 = vunpack.c.h.b16 %v2045
      %v2147 = vunpack.c.l.b16 %v2046
      %v2148 = vunpack.c.h.b16 %v2046
      %v2149 = vunpack.c.l.b16 %v2047
      %v2150 = vunpack.c.h.b16 %v2047
      %v2151 = vunpack.c.l.b16 %v2048
      %v2152 = vunpack.c.h.b16 %v2048
      %v2153 = vunpack.c.l.b16 %v2049
      %v2154 = vunpack.c.h.b16 %v2049
      %v2155 = vunpack.c.l.b16 %v2050
      %v2156 = vunpack.c.h.b16 %v2050
      %v2157 = vunpack.c.l.b16 %v2051
      %v2158 = vunpack.c.h.b16 %v2051
      %v2159 = vunpack.c.l.b16 %v2052
      %v2160 = vunpack.c.h.b16 %v2052
      %v2161 = vunpack.c.l.b16 %v2053
      %v2162 = vunpack.c.h.b16 %v2053
      %v2163 = vunpack.c.l.b16 %v2054
      %v2164 = vunpack.c.h.b16 %v2054
      %v2165 = vunpack.c.l.b16 %v2055
      %v2166 = vunpack.c.h.b16 %v2055
      %v2167 = vunpack.c.l.b16 %v2056
      %v2168 = vunpack.c.h.b16 %v2056
      %v2169 = vunpack.c.l.b16 %v2057
      %v2170 = vunpack.c.h.b16 %v2057
      %v2171 = vunpack.c.l.b16 %v2058
      %v2172 = vunpack.c.h.b16 %v2058
      %v2173 = vunpack.c.l.b16 %v2059
      %v2174 = vunpack.c.h.b16 %v2059
      %v2175 = vunpack.c.l.b16 %v2060
      %v2176 = vunpack.c.h.b16 %v2060
      %v2177 = vunpack.c.l.b16 %v2061
      %v2178 = vunpack.c.h.b16 %v2061
      %v2179 = vunpack.c.l.b16 %v2062
      %v2180 = vunpack.c.h.b16 %v2062
      %v2181 = vunpack.c.l.b16 %v2063
      %v2182 = vunpack.c.h.b16 %v2063
      %v2183 = vunpack.c.l.b16 %v2064
      %v2184 = vunpack.c.h.b16 %v2064
      %v2185 = vunpack.c.l.b16 %v2065
      %v2186 = vunpack.c.h.b16 %v2065
      %v2187 = vunpack.c.l.b16 %v2066
      %v2188 = vunpack.c.h.b16 %v2066
      %v2189 = vpack.c.b16 %v2131, %v2129
      %v2190 = vpack.c.b16 %v2132, %v2130
      %v2191 = vpack.c.b16 %v2135, %v2133
      %v2192 = vpack.c.b16 %v2136, %v2134
      %v2193 = vpack.c.b16 %v2139, %v2137
      %v2194 = vpack.c.b16 %v2140, %v2138
      %v2195 = vpack.c.b16 %v2143, %v2141
      %v2196 = vpack.c.b16 %v2144, %v2142
      %v2197 = vpack.c.b16 %v2147, %v2145
      %v2198 = vpack.c.b16 %v2148, %v2146
      %v2199 = vpack.c.b16 %v2151, %v2149
      %v2200 = vpack.c.b16 %v2152, %v2150
      %v2201 = vpack.c.b16 %v2155, %v2153
      %v2202 = vpack.c.b16 %v2156, %v2154
      %v2203 = vpack.c.b16 %v2159, %v2157
      %v2204 = vpack.c.b16 %v2160, %v2158
      %v2205 = vpack.c.b16 %v2163, %v2161
      %v2206 = vpack.c.b16 %v2164, %v2162
      %v2207 = vpack.c.b16 %v2167, %v2165
      %v2208 = vpack.c.b16 %v2168, %v2166
      %v2209 = vpack.c.b16 %v2171, %v2169
      %v2210 = vpack.c.b16 %v2172, %v2170
      %v2211 = vpack.c.b16 %v2175, %v2173
      %v2212 = vpack.c.b16 %v2176, %v2174
      %v2213 = vpack.c.b16 %v2179, %v2177
      %v2214 = vpack.c.b16 %v2180, %v2178
      %v2215 = vpack.c.b16 %v2183, %v2181
      %v2216 = vpack.c.b16 %v2184, %v2182
      %v2217 = vpack.c.b16 %v2187, %v2185
      %v2218 = vpack.c.b16 %v2188, %v2186
      %vm2249 = vcmask 916480
      %v2251 = vsel %vm2249, %v2090, 0
      %v2254 = vsel %vm2249, %v2096, 0
      %2256 = vmatprep.subr.bf16.mxu0 %v2190
      %2257 = vmatpush1.bf16.msra.mxu0 %v2189
      %2258 = vmatprep.subr.bf16.mxu0 %v2192
      %2259 = vmatpush1.bf16.msra.mxu0 %v2191
      %2260 = vmatprep.subr.bf16.mxu0 %v2194
      %2261 = vmatpush1.bf16.msra.mxu0 %v2193
      %2262 = vmatprep.subr.bf16.mxu0 %v2196
      %2263 = vmatpush1.bf16.msra.mxu0 %v2195
      %2264 = vmatprep.subr.bf16.mxu0 %v2198
      %2265 = vmatpush1.bf16.msra.mxu0 %v2197
      %2266 = vmatprep.subr.bf16.mxu0 %v2200
      %2267 = vmatpush1.bf16.msra.mxu0 %v2199
      %2268 = vmatprep.subr.bf16.mxu0 %v2202
      %2269 = vmatpush1.bf16.msra.mxu0 %v2201
      %2270 = vmatprep.subr.bf16.mxu0 %v2204
      %2271 = vmatpush1.bf16.msra.mxu0 %v2203
      %2272 = vmatprep.subr.bf16.mxu0 %v2206
      %2273 = vmatpush1.bf16.msra.mxu0 %v2205
      %2274 = vmatprep.subr.bf16.mxu0 %v2208
      %2275 = vmatpush1.bf16.msra.mxu0 %v2207
      %2276 = vmatprep.subr.bf16.mxu0 %v2210
      %2277 = vmatpush1.bf16.msra.mxu0 %v2209
      %2278 = vmatprep.subr.bf16.mxu0 %v2212
      %2279 = vmatpush1.bf16.msra.mxu0 %v2211
      %2280 = vmatprep.subr.bf16.mxu0 %v2214
      %2281 = vmatpush1.bf16.msra.mxu0 %v2213
      %2282 = vmatprep.subr.bf16.mxu0 %v2216
      %2283 = vmatpush1.bf16.msra.mxu0 %v2215
      %2284 = vmatprep.subr.bf16.mxu0 %v2218
      %2285 = vmatpush1.bf16.msra.mxu0 %v2217
      %2286 = vmatprep.subr.bf16.mxu0 0
      %2287 = vmatpush1.bf16.msra.mxu0 0
      %2288 = vmatprep.mubr.bf16.mxu0 %v2251
      %2289 = vmatmul.mubr.bf16.gmra.mrb[0].mxu0 %v2078
      %v2290 = vpop.f32.mrb[0].mxu0
      %v2291 = vadd.f32 0.0, %v2290
      %v2292 = vpop.f32.mrb[0].mxu0
      %v2293 = vadd.f32 0.0, %v2292
      %v2294 = vpop.f32.mrb[0].mxu0
      %v2295 = vadd.f32 0.0, %v2294
      %v2296 = vpop.f32.mrb[0].mxu0
      %v2297 = vadd.f32 0.0, %v2296
      %2298 = vmatprep.mubr.bf16.mxu0 %v2254
      %2299 = vmatmul.mubr.bf16.gmra.mrb[0].mxu0 %v2093
      %v2300 = vpop.f32.mrb[0].mxu0
      %v2301 = vadd.f32 0.0, %v2300
      %v2302 = vpop.f32.mrb[0].mxu0
      %v2303 = vadd.f32 0.0, %v2302
      %v2304 = vpop.f32.mrb[0].mxu0
      %v2305 = vadd.f32 0.0, %v2304
      %v2306 = vpop.f32.mrb[0].mxu0
      %v2307 = vadd.f32 0.0, %v2306
      %2308 = vdwg.mxu0
      %v2339 = vunpack.c.l.b16 %v2006
      %v2340 = vunpack.c.h.b16 %v2006
      %v2341 = vunpack.c.l.b16 %v2007
      %v2342 = vunpack.c.h.b16 %v2007
      %v2343 = vunpack.c.l.b16 %v2008
      %v2344 = vunpack.c.h.b16 %v2008
      %v2345 = vunpack.c.l.b16 %v2009
      %v2346 = vunpack.c.h.b16 %v2009
      %v2347 = vunpack.c.l.b16 %v2010
      %v2348 = vunpack.c.h.b16 %v2010
      %v2349 = vunpack.c.l.b16 %v2011
      %v2350 = vunpack.c.h.b16 %v2011
      %v2351 = vunpack.c.l.b16 %v2012
      %v2352 = vunpack.c.h.b16 %v2012
      %v2353 = vunpack.c.l.b16 %v2013
      %v2354 = vunpack.c.h.b16 %v2013
      %v2355 = vunpack.c.l.b16 %v2014
      %v2356 = vunpack.c.h.b16 %v2014
      %v2357 = vunpack.c.l.b16 %v2015
      %v2358 = vunpack.c.h.b16 %v2015
      %v2359 = vunpack.c.l.b16 %v2016
      %v2360 = vunpack.c.h.b16 %v2016
      %v2361 = vunpack.c.l.b16 %v2017
      %v2362 = vunpack.c.h.b16 %v2017
      %v2363 = vunpack.c.l.b16 %v2018
      %v2364 = vunpack.c.h.b16 %v2018
      %v2365 = vunpack.c.l.b16 %v2019
      %v2366 = vunpack.c.h.b16 %v2019
      %v2367 = vunpack.c.l.b16 %v2020
      %v2368 = vunpack.c.h.b16 %v2020
      %v2369 = vunpack.c.l.b16 %v2021
      %v2370 = vunpack.c.h.b16 %v2021
      %v2371 = vunpack.c.l.b16 %v2022
      %v2372 = vunpack.c.h.b16 %v2022
      %v2373 = vunpack.c.l.b16 %v2023
      %v2374 = vunpack.c.h.b16 %v2023
      %v2375 = vunpack.c.l.b16 %v2024
      %v2376 = vunpack.c.h.b16 %v2024
      %v2377 = vunpack.c.l.b16 %v2025
      %v2378 = vunpack.c.h.b16 %v2025
      %v2379 = vunpack.c.l.b16 %v2026
      %v2380 = vunpack.c.h.b16 %v2026
      %v2381 = vunpack.c.l.b16 %v2027
      %v2382 = vunpack.c.h.b16 %v2027
      %v2383 = vunpack.c.l.b16 %v2028
      %v2384 = vunpack.c.h.b16 %v2028
      %v2385 = vunpack.c.l.b16 %v2029
      %v2386 = vunpack.c.h.b16 %v2029
      %v2387 = vunpack.c.l.b16 %v2030
      %v2388 = vunpack.c.h.b16 %v2030
      %v2389 = vunpack.c.l.b16 %v2031
      %v2390 = vunpack.c.h.b16 %v2031
      %v2391 = vunpack.c.l.b16 %v2032
      %v2392 = vunpack.c.h.b16 %v2032
      %v2393 = vunpack.c.l.b16 %v2033
      %v2394 = vunpack.c.h.b16 %v2033
      %v2395 = vunpack.c.l.b16 %v2034
      %v2396 = vunpack.c.h.b16 %v2034
      %v2397 = vunpack.c.l.b16 %v2035
      %v2398 = vunpack.c.h.b16 %v2035
      %v2399 = vpack.c.b16 %v2341, %v2339
      %v2400 = vpack.c.b16 %v2342, %v2340
      %v2401 = vpack.c.b16 %v2345, %v2343
      %v2402 = vpack.c.b16 %v2346, %v2344
      %v2403 = vpack.c.b16 %v2349, %v2347
      %v2404 = vpack.c.b16 %v2350, %v2348
      %v2405 = vpack.c.b16 %v2353, %v2351
      %v2406 = vpack.c.b16 %v2354, %v2352
      %v2407 = vpack.c.b16 %v2357, %v2355
      %v2408 = vpack.c.b16 %v2358, %v2356
      %v2409 = vpack.c.b16 %v2361, %v2359
      %v2410 = vpack.c.b16 %v2362, %v2360
      %v2411 = vpack.c.b16 %v2365, %v2363
      %v2412 = vpack.c.b16 %v2366, %v2364
      %v2413 = vpack.c.b16 %v2369, %v2367
      %v2414 = vpack.c.b16 %v2370, %v2368
      %v2415 = vpack.c.b16 %v2373, %v2371
      %v2416 = vpack.c.b16 %v2374, %v2372
      %v2417 = vpack.c.b16 %v2377, %v2375
      %v2418 = vpack.c.b16 %v2378, %v2376
      %v2419 = vpack.c.b16 %v2381, %v2379
      %v2420 = vpack.c.b16 %v2382, %v2380
      %v2421 = vpack.c.b16 %v2385, %v2383
      %v2422 = vpack.c.b16 %v2386, %v2384
      %v2423 = vpack.c.b16 %v2389, %v2387
      %v2424 = vpack.c.b16 %v2390, %v2388
      %v2425 = vpack.c.b16 %v2393, %v2391
      %v2426 = vpack.c.b16 %v2394, %v2392
      %v2427 = vpack.c.b16 %v2397, %v2395
      %v2428 = vpack.c.b16 %v2398, %v2396
      %v2459 = vsel %vm2249, %v2003, 0
      %v2461 = vsel %vm2249, %v2005, 0
      %2463 = vmatprep.subr.bf16.mxu0 %v2400
      %2464 = vmatpush1.bf16.msra.mxu0 %v2399
      %2465 = vmatprep.subr.bf16.mxu0 %v2402
      %2466 = vmatpush1.bf16.msra.mxu0 %v2401
      %2467 = vmatprep.subr.bf16.mxu0 %v2404
      %2468 = vmatpush1.bf16.msra.mxu0 %v2403
      %2469 = vmatprep.subr.bf16.mxu0 %v2406
      %2470 = vmatpush1.bf16.msra.mxu0 %v2405
      %2471 = vmatprep.subr.bf16.mxu0 %v2408
      %2472 = vmatpush1.bf16.msra.mxu0 %v2407
      %2473 = vmatprep.subr.bf16.mxu0 %v2410
      %2474 = vmatpush1.bf16.msra.mxu0 %v2409
      %2475 = vmatprep.subr.bf16.mxu0 %v2412
      %2476 = vmatpush1.bf16.msra.mxu0 %v2411
      %2477 = vmatprep.subr.bf16.mxu0 %v2414
      %2478 = vmatpush1.bf16.msra.mxu0 %v2413
      %2479 = vmatprep.subr.bf16.mxu0 %v2416
      %2480 = vmatpush1.bf16.msra.mxu0 %v2415
      %2481 = vmatprep.subr.bf16.mxu0 %v2418
      %2482 = vmatpush1.bf16.msra.mxu0 %v2417
      %2483 = vmatprep.subr.bf16.mxu0 %v2420
      %2484 = vmatpush1.bf16.msra.mxu0 %v2419
      %2485 = vmatprep.subr.bf16.mxu0 %v2422
      %2486 = vmatpush1.bf16.msra.mxu0 %v2421
      %2487 = vmatprep.subr.bf16.mxu0 %v2424
      %2488 = vmatpush1.bf16.msra.mxu0 %v2423
      %2489 = vmatprep.subr.bf16.mxu0 %v2426
      %2490 = vmatpush1.bf16.msra.mxu0 %v2425
      %2491 = vmatprep.subr.bf16.mxu0 %v2428
      %2492 = vmatpush1.bf16.msra.mxu0 %v2427
      %2493 = vmatprep.subr.bf16.mxu0 0
      %2494 = vmatpush1.bf16.msra.mxu0 0
      %2495 = vmatprep.mubr.bf16.mxu0 %v2459
      %2496 = vmatmul.mubr.bf16.gmra.mrb[0].mxu0 %v2002
      %v2497 = vpop.f32.mrb[0].mxu0
      %v2498 = vadd.f32 %v2291, %v2497
      %v2499 = vpop.f32.mrb[0].mxu0
      %v2500 = vadd.f32 %v2293, %v2499
      %v2501 = vpop.f32.mrb[0].mxu0
      %v2502 = vadd.f32 %v2295, %v2501
      %v2503 = vpop.f32.mrb[0].mxu0
      %v2504 = vadd.f32 %v2297, %v2503
      %2505 = vmatprep.mubr.bf16.mxu0 %v2461
      %2506 = vmatmul.mubr.bf16.gmra.mrb[0].mxu0 %v2004
      %v2507 = vpop.f32.mrb[0].mxu0
      %v2508 = vadd.f32 %v2301, %v2507
      %v2509 = vpop.f32.mrb[0].mxu0
      %v2510 = vadd.f32 %v2303, %v2509
      %v2511 = vpop.f32.mrb[0].mxu0
      %v2512 = vadd.f32 %v2305, %v2511
      %v2513 = vpop.f32.mrb[0].mxu0
      %v2514 = vadd.f32 %v2307, %v2513
      %2515 = vdwg.mxu0
      %s2516 = scalar_lea.vmem %s936, 480
      %v2517 = vld [vmem:[%s2516] sm:$0xff]
      %v2518 = vld [vmem:[%s2516 + $0x8] sm:$0xff]
      %v2519 = vld [vmem:[%s2516 + $0x10] sm:$0xff]
      %v2520 = vld [vmem:[%s2516 + $0x18] sm:$0xff]
      %v2521 = vld [vmem:[%s2516 + $0x20] sm:$0xff]
      %v2522 = vld [vmem:[%s2516 + $0x28] sm:$0xff]
      %v2523 = vld [vmem:[%s2516 + $0x30] sm:$0xff]
      %v2524 = vld [vmem:[%s2516 + $0x38] sm:$0xff]
      %v2525 = vld [vmem:[%s2516 + $0x40] sm:$0xff]
      %v2526 = vld [vmem:[%s2516 + $0x48] sm:$0xff]
      %v2527 = vld [vmem:[%s2516 + $0x50] sm:$0xff]
      %v2528 = vld [vmem:[%s2516 + $0x58] sm:$0xff]
      %v2529 = vld [vmem:[%s2516 + $0x60] sm:$0xff]
      %v2530 = vld [vmem:[%s2516 + $0x68] sm:$0xff]
      %v2531 = vld [vmem:[%s2516 + $0x70] sm:$0xff]
      %v2532 = vld [vmem:[%s2516 + $0x78] sm:$0xff]
      %v2533 = vld [vmem:[%s2516 + $0x80] sm:$0xff]
      %v2534 = vld [vmem:[%s2516 + $0x88] sm:$0xff]
      %v2535 = vld [vmem:[%s2516 + $0x90] sm:$0xff]
      %v2536 = vld [vmem:[%s2516 + $0x98] sm:$0xff]
      %v2537 = vld [vmem:[%s2516 + $0xa0] sm:$0xff]
      %v2538 = vld [vmem:[%s2516 + $0xa8] sm:$0xff]
      %v2539 = vld [vmem:[%s2516 + $0xb0] sm:$0xff]
      %v2540 = vld [vmem:[%s2516 + $0xb8] sm:$0xff]
      %v2541 = vld [vmem:[%s2516 + $0xc0] sm:$0xff]
      %v2542 = vld [vmem:[%s2516 + $0xc8] sm:$0xff]
      %v2543 = vld [vmem:[%s2516 + $0xd0] sm:$0xff]
      %v2544 = vld [vmem:[%s2516 + $0xd8] sm:$0xff]
      %v2545 = vld [vmem:[%s2516 + $0xe0] sm:$0xff]
      %v2546 = vld [vmem:[%s2516 + $0xe8] sm:$0xff]
      %v2551 = vrot.slane %v2002, 1
      %v2552 = vrot.slane %v2004, 1
      %v2553 = vsel %vm1340, %v2551, %v2552
      %v2554 = vrot.slane %v2003, 1
      %v2555 = vrot.slane %v2005, 1
      %v2556 = vsel %vm1340, %v2554, %v2555
      %v2589 = vunpack.c.l.b16 %v2517
      %v2590 = vunpack.c.h.b16 %v2517
      %v2591 = vunpack.c.l.b16 %v2518
      %v2592 = vunpack.c.h.b16 %v2518
      %v2593 = vunpack.c.l.b16 %v2519
      %v2594 = vunpack.c.h.b16 %v2519
      %v2595 = vunpack.c.l.b16 %v2520
      %v2596 = vunpack.c.h.b16 %v2520
      %v2597 = vunpack.c.l.b16 %v2521
      %v2598 = vunpack.c.h.b16 %v2521
      %v2599 = vunpack.c.l.b16 %v2522
      %v2600 = vunpack.c.h.b16 %v2522
      %v2601 = vunpack.c.l.b16 %v2523
      %v2602 = vunpack.c.h.b16 %v2523
      %v2603 = vunpack.c.l.b16 %v2524
      %v2604 = vunpack.c.h.b16 %v2524
      %v2605 = vunpack.c.l.b16 %v2525
      %v2606 = vunpack.c.h.b16 %v2525
      %v2607 = vunpack.c.l.b16 %v2526
      %v2608 = vunpack.c.h.b16 %v2526
      %v2609 = vunpack.c.l.b16 %v2527
      %v2610 = vunpack.c.h.b16 %v2527
      %v2611 = vunpack.c.l.b16 %v2528
      %v2612 = vunpack.c.h.b16 %v2528
      %v2613 = vunpack.c.l.b16 %v2529
      %v2614 = vunpack.c.h.b16 %v2529
      %v2615 = vunpack.c.l.b16 %v2530
      %v2616 = vunpack.c.h.b16 %v2530
      %v2617 = vunpack.c.l.b16 %v2531
      %v2618 = vunpack.c.h.b16 %v2531
      %v2619 = vunpack.c.l.b16 %v2532
      %v2620 = vunpack.c.h.b16 %v2532
      %v2621 = vunpack.c.l.b16 %v2533
      %v2622 = vunpack.c.h.b16 %v2533
      %v2623 = vunpack.c.l.b16 %v2534
      %v2624 = vunpack.c.h.b16 %v2534
      %v2625 = vunpack.c.l.b16 %v2535
      %v2626 = vunpack.c.h.b16 %v2535
      %v2627 = vunpack.c.l.b16 %v2536
      %v2628 = vunpack.c.h.b16 %v2536
      %v2629 = vunpack.c.l.b16 %v2537
      %v2630 = vunpack.c.h.b16 %v2537
      %v2631 = vunpack.c.l.b16 %v2538
      %v2632 = vunpack.c.h.b16 %v2538
      %v2633 = vunpack.c.l.b16 %v2539
      %v2634 = vunpack.c.h.b16 %v2539
      %v2635 = vunpack.c.l.b16 %v2540
      %v2636 = vunpack.c.h.b16 %v2540
      %v2637 = vunpack.c.l.b16 %v2541
      %v2638 = vunpack.c.h.b16 %v2541
      %v2639 = vunpack.c.l.b16 %v2542
      %v2640 = vunpack.c.h.b16 %v2542
      %v2641 = vunpack.c.l.b16 %v2543
      %v2642 = vunpack.c.h.b16 %v2543
      %v2643 = vunpack.c.l.b16 %v2544
      %v2644 = vunpack.c.h.b16 %v2544
      %v2645 = vunpack.c.l.b16 %v2545
      %v2646 = vunpack.c.h.b16 %v2545
      %v2647 = vunpack.c.l.b16 %v2546
      %v2648 = vunpack.c.h.b16 %v2546
      %v2649 = vpack.c.b16 %v2591, %v2589
      %v2650 = vpack.c.b16 %v2592, %v2590
      %v2651 = vpack.c.b16 %v2595, %v2593
      %v2652 = vpack.c.b16 %v2596, %v2594
      %v2653 = vpack.c.b16 %v2599, %v2597
      %v2654 = vpack.c.b16 %v2600, %v2598
      %v2655 = vpack.c.b16 %v2603, %v2601
      %v2656 = vpack.c.b16 %v2604, %v2602
      %v2657 = vpack.c.b16 %v2607, %v2605
      %v2658 = vpack.c.b16 %v2608, %v2606
      %v2659 = vpack.c.b16 %v2611, %v2609
      %v2660 = vpack.c.b16 %v2612, %v2610
      %v2661 = vpack.c.b16 %v2615, %v2613
      %v2662 = vpack.c.b16 %v2616, %v2614
      %v2663 = vpack.c.b16 %v2619, %v2617
      %v2664 = vpack.c.b16 %v2620, %v2618
      %v2665 = vpack.c.b16 %v2623, %v2621
      %v2666 = vpack.c.b16 %v2624, %v2622
      %v2667 = vpack.c.b16 %v2627, %v2625
      %v2668 = vpack.c.b16 %v2628, %v2626
      %v2669 = vpack.c.b16 %v2631, %v2629
      %v2670 = vpack.c.b16 %v2632, %v2630
      %v2671 = vpack.c.b16 %v2635, %v2633
      %v2672 = vpack.c.b16 %v2636, %v2634
      %v2673 = vpack.c.b16 %v2639, %v2637
      %v2674 = vpack.c.b16 %v2640, %v2638
      %v2675 = vpack.c.b16 %v2643, %v2641
      %v2676 = vpack.c.b16 %v2644, %v2642
      %v2677 = vpack.c.b16 %v2647, %v2645
      %v2678 = vpack.c.b16 %v2648, %v2646
      %v2710 = vsel %vm2249, %v2556, 0
      %v2713 = vsel %vm2249, %v2555, 0
      %2715 = vmatprep.subr.bf16.mxu0 %v2650
      %2716 = vmatpush1.bf16.msra.mxu0 %v2649
      %2717 = vmatprep.subr.bf16.mxu0 %v2652
      %2718 = vmatpush1.bf16.msra.mxu0 %v2651
      %2719 = vmatprep.subr.bf16.mxu0 %v2654
      %2720 = vmatpush1.bf16.msra.mxu0 %v2653
      %2721 = vmatprep.subr.bf16.mxu0 %v2656
      %2722 = vmatpush1.bf16.msra.mxu0 %v2655
      %2723 = vmatprep.subr.bf16.mxu0 %v2658
      %2724 = vmatpush1.bf16.msra.mxu0 %v2657
      %2725 = vmatprep.subr.bf16.mxu0 %v2660
      %2726 = vmatpush1.bf16.msra.mxu0 %v2659
      %2727 = vmatprep.subr.bf16.mxu0 %v2662
      %2728 = vmatpush1.bf16.msra.mxu0 %v2661
      %2729 = vmatprep.subr.bf16.mxu0 %v2664
      %2730 = vmatpush1.bf16.msra.mxu0 %v2663
      %2731 = vmatprep.subr.bf16.mxu0 %v2666
      %2732 = vmatpush1.bf16.msra.mxu0 %v2665
      %2733 = vmatprep.subr.bf16.mxu0 %v2668
      %2734 = vmatpush1.bf16.msra.mxu0 %v2667
      %2735 = vmatprep.subr.bf16.mxu0 %v2670
      %2736 = vmatpush1.bf16.msra.mxu0 %v2669
      %2737 = vmatprep.subr.bf16.mxu0 %v2672
      %2738 = vmatpush1.bf16.msra.mxu0 %v2671
      %2739 = vmatprep.subr.bf16.mxu0 %v2674
      %2740 = vmatpush1.bf16.msra.mxu0 %v2673
      %2741 = vmatprep.subr.bf16.mxu0 %v2676
      %2742 = vmatpush1.bf16.msra.mxu0 %v2675
      %2743 = vmatprep.subr.bf16.mxu0 %v2678
      %2744 = vmatpush1.bf16.msra.mxu0 %v2677
      %2745 = vmatprep.subr.bf16.mxu0 0
      %2746 = vmatpush1.bf16.msra.mxu0 0
      %2747 = vmatprep.mubr.bf16.mxu0 %v2710
      %2748 = vmatmul.mubr.bf16.gmra.mrb[0].mxu0 %v2553
      %v2749 = vpop.f32.mrb[0].mxu0
      %v2750 = vadd.f32 0.0, %v2749
      %v2751 = vpop.f32.mrb[0].mxu0
      %v2752 = vadd.f32 0.0, %v2751
      %v2753 = vpop.f32.mrb[0].mxu0
      %v2754 = vadd.f32 0.0, %v2753
      %v2755 = vpop.f32.mrb[0].mxu0
      %v2756 = vadd.f32 0.0, %v2755
      %2757 = vmatprep.mubr.bf16.mxu0 %v2713
      %2758 = vmatmul.mubr.bf16.gmra.mrb[0].mxu0 %v2552
      %v2759 = vpop.f32.mrb[0].mxu0
      %v2760 = vadd.f32 0.0, %v2759
      %v2761 = vpop.f32.mrb[0].mxu0
      %v2762 = vadd.f32 0.0, %v2761
      %v2763 = vpop.f32.mrb[0].mxu0
      %v2764 = vadd.f32 0.0, %v2763
      %v2765 = vpop.f32.mrb[0].mxu0
      %v2766 = vadd.f32 0.0, %v2765
      %2767 = vdwg.mxu0
      %v2768 = vadd.f32 %v2498, %v2750
      %v2769 = vadd.f32 %v2500, %v2752
      %v2770 = vadd.f32 %v2502, %v2754
      %v2771 = vadd.f32 %v2504, %v2756
      %v2772 = vadd.f32 %v2508, %v2760
      %v2773 = vadd.f32 %v2510, %v2762
      %v2774 = vadd.f32 %v2512, %v2764
      %v2775 = vadd.f32 %v2514, %v2766
      %s2776 = scalar_lea.vmem %s936, 720
      %v2777 = vld [vmem:[%s2776] sm:$0xff]
      %v2778 = vld [vmem:[%s2776 + $0x8] sm:$0xff]
      %v2779 = vld [vmem:[%s2776 + $0x10] sm:$0xff]
      %v2780 = vld [vmem:[%s2776 + $0x18] sm:$0xff]
      %v2781 = vld [vmem:[%s2776 + $0x20] sm:$0xff]
      %v2782 = vld [vmem:[%s2776 + $0x28] sm:$0xff]
      %v2783 = vld [vmem:[%s2776 + $0x30] sm:$0xff]
      %v2784 = vld [vmem:[%s2776 + $0x38] sm:$0xff]
      %v2785 = vld [vmem:[%s2776 + $0x40] sm:$0xff]
      %v2786 = vld [vmem:[%s2776 + $0x48] sm:$0xff]
      %v2787 = vld [vmem:[%s2776 + $0x50] sm:$0xff]
      %v2788 = vld [vmem:[%s2776 + $0x58] sm:$0xff]
      %v2789 = vld [vmem:[%s2776 + $0x60] sm:$0xff]
      %v2790 = vld [vmem:[%s2776 + $0x68] sm:$0xff]
      %v2791 = vld [vmem:[%s2776 + $0x70] sm:$0xff]
      %v2792 = vld [vmem:[%s2776 + $0x78] sm:$0xff]
      %v2793 = vld [vmem:[%s2776 + $0x80] sm:$0xff]
      %v2794 = vld [vmem:[%s2776 + $0x88] sm:$0xff]
      %v2795 = vld [vmem:[%s2776 + $0x90] sm:$0xff]
      %v2796 = vld [vmem:[%s2776 + $0x98] sm:$0xff]
      %v2797 = vld [vmem:[%s2776 + $0xa0] sm:$0xff]
      %v2798 = vld [vmem:[%s2776 + $0xa8] sm:$0xff]
      %v2799 = vld [vmem:[%s2776 + $0xb0] sm:$0xff]
      %v2800 = vld [vmem:[%s2776 + $0xb8] sm:$0xff]
      %v2801 = vld [vmem:[%s2776 + $0xc0] sm:$0xff]
      %v2802 = vld [vmem:[%s2776 + $0xc8] sm:$0xff]
      %v2803 = vld [vmem:[%s2776 + $0xd0] sm:$0xff]
      %v2804 = vld [vmem:[%s2776 + $0xd8] sm:$0xff]
      %v2805 = vld [vmem:[%s2776 + $0xe0] sm:$0xff]
      %v2806 = vld [vmem:[%s2776 + $0xe8] sm:$0xff]
      %v2807 = vrot.slane %v2068, 1
      %v2808 = vrot.slane %v2070, 2
      %v2809 = vor.u32 %v2807, %v2808
      %v2810 = vrot.slane %v2091, 1
      %v2811 = vrot.slane %v2075, 2
      %v2812 = vor.u32 %v2810, %v2811
      %v2813 = vsel %vm1498, %v2809, %v2812
      %v2814 = vrot.slane %v2080, 1
      %v2815 = vrot.slane %v2082, 2
      %v2816 = vor.u32 %v2814, %v2815
      %v2817 = vrot.slane %v2094, 1
      %v2818 = vrot.slane %v2087, 2
      %v2819 = vor.u32 %v2817, %v2818
      %v2820 = vsel %vm1498, %v2816, %v2819
      %v2853 = vunpack.c.l.b16 %v2777
      %v2854 = vunpack.c.h.b16 %v2777
      %v2855 = vunpack.c.l.b16 %v2778
      %v2856 = vunpack.c.h.b16 %v2778
      %v2857 = vunpack.c.l.b16 %v2779
      %v2858 = vunpack.c.h.b16 %v2779
      %v2859 = vunpack.c.l.b16 %v2780
      %v2860 = vunpack.c.h.b16 %v2780
      %v2861 = vunpack.c.l.b16 %v2781
      %v2862 = vunpack.c.h.b16 %v2781
      %v2863 = vunpack.c.l.b16 %v2782
      %v2864 = vunpack.c.h.b16 %v2782
      %v2865 = vunpack.c.l.b16 %v2783
      %v2866 = vunpack.c.h.b16 %v2783
      %v2867 = vunpack.c.l.b16 %v2784
      %v2868 = vunpack.c.h.b16 %v2784
      %v2869 = vunpack.c.l.b16 %v2785
      %v2870 = vunpack.c.h.b16 %v2785
      %v2871 = vunpack.c.l.b16 %v2786
      %v2872 = vunpack.c.h.b16 %v2786
      %v2873 = vunpack.c.l.b16 %v2787
      %v2874 = vunpack.c.h.b16 %v2787
      %v2875 = vunpack.c.l.b16 %v2788
      %v2876 = vunpack.c.h.b16 %v2788
      %v2877 = vunpack.c.l.b16 %v2789
      %v2878 = vunpack.c.h.b16 %v2789
      %v2879 = vunpack.c.l.b16 %v2790
      %v2880 = vunpack.c.h.b16 %v2790
      %v2881 = vunpack.c.l.b16 %v2791
      %v2882 = vunpack.c.h.b16 %v2791
      %v2883 = vunpack.c.l.b16 %v2792
      %v2884 = vunpack.c.h.b16 %v2792
      %v2885 = vunpack.c.l.b16 %v2793
      %v2886 = vunpack.c.h.b16 %v2793
      %v2887 = vunpack.c.l.b16 %v2794
      %v2888 = vunpack.c.h.b16 %v2794
      %v2889 = vunpack.c.l.b16 %v2795
      %v2890 = vunpack.c.h.b16 %v2795
      %v2891 = vunpack.c.l.b16 %v2796
      %v2892 = vunpack.c.h.b16 %v2796
      %v2893 = vunpack.c.l.b16 %v2797
      %v2894 = vunpack.c.h.b16 %v2797
      %v2895 = vunpack.c.l.b16 %v2798
      %v2896 = vunpack.c.h.b16 %v2798
      %v2897 = vunpack.c.l.b16 %v2799
      %v2898 = vunpack.c.h.b16 %v2799
      %v2899 = vunpack.c.l.b16 %v2800
      %v2900 = vunpack.c.h.b16 %v2800
      %v2901 = vunpack.c.l.b16 %v2801
      %v2902 = vunpack.c.h.b16 %v2801
      %v2903 = vunpack.c.l.b16 %v2802
      %v2904 = vunpack.c.h.b16 %v2802
      %v2905 = vunpack.c.l.b16 %v2803
      %v2906 = vunpack.c.h.b16 %v2803
      %v2907 = vunpack.c.l.b16 %v2804
      %v2908 = vunpack.c.h.b16 %v2804
      %v2909 = vunpack.c.l.b16 %v2805
      %v2910 = vunpack.c.h.b16 %v2805
      %v2911 = vunpack.c.l.b16 %v2806
      %v2912 = vunpack.c.h.b16 %v2806
      %v2913 = vpack.c.b16 %v2855, %v2853
      %v2914 = vpack.c.b16 %v2856, %v2854
      %v2915 = vpack.c.b16 %v2859, %v2857
      %v2916 = vpack.c.b16 %v2860, %v2858
      %v2917 = vpack.c.b16 %v2863, %v2861
      %v2918 = vpack.c.b16 %v2864, %v2862
      %v2919 = vpack.c.b16 %v2867, %v2865
      %v2920 = vpack.c.b16 %v2868, %v2866
      %v2921 = vpack.c.b16 %v2871, %v2869
      %v2922 = vpack.c.b16 %v2872, %v2870
      %v2923 = vpack.c.b16 %v2875, %v2873
      %v2924 = vpack.c.b16 %v2876, %v2874
      %v2925 = vpack.c.b16 %v2879, %v2877
      %v2926 = vpack.c.b16 %v2880, %v2878
      %v2927 = vpack.c.b16 %v2883, %v2881
      %v2928 = vpack.c.b16 %v2884, %v2882
      %v2929 = vpack.c.b16 %v2887, %v2885
      %v2930 = vpack.c.b16 %v2888, %v2886
      %v2931 = vpack.c.b16 %v2891, %v2889
      %v2932 = vpack.c.b16 %v2892, %v2890
      %v2933 = vpack.c.b16 %v2895, %v2893
      %v2934 = vpack.c.b16 %v2896, %v2894
      %v2935 = vpack.c.b16 %v2899, %v2897
      %v2936 = vpack.c.b16 %v2900, %v2898
      %v2937 = vpack.c.b16 %v2903, %v2901
      %v2938 = vpack.c.b16 %v2904, %v2902
      %v2939 = vpack.c.b16 %v2907, %v2905
      %v2940 = vpack.c.b16 %v2908, %v2906
      %v2941 = vpack.c.b16 %v2911, %v2909
      %v2942 = vpack.c.b16 %v2912, %v2910
      %v2974 = vsel %vm2249, %v2820, 0
      %v2977 = vsel %vm2249, %v2819, 0
      %2979 = vmatprep.subr.bf16.mxu0 %v2914
      %2980 = vmatpush1.bf16.msra.mxu0 %v2913
      %2981 = vmatprep.subr.bf16.mxu0 %v2916
      %2982 = vmatpush1.bf16.msra.mxu0 %v2915
      %2983 = vmatprep.subr.bf16.mxu0 %v2918
      %2984 = vmatpush1.bf16.msra.mxu0 %v2917
      %2985 = vmatprep.subr.bf16.mxu0 %v2920
      %2986 = vmatpush1.bf16.msra.mxu0 %v2919
      %2987 = vmatprep.subr.bf16.mxu0 %v2922
      %2988 = vmatpush1.bf16.msra.mxu0 %v2921
      %2989 = vmatprep.subr.bf16.mxu0 %v2924
      %2990 = vmatpush1.bf16.msra.mxu0 %v2923
      %2991 = vmatprep.subr.bf16.mxu0 %v2926
      %2992 = vmatpush1.bf16.msra.mxu0 %v2925
      %2993 = vmatprep.subr.bf16.mxu0 %v2928
      %2994 = vmatpush1.bf16.msra.mxu0 %v2927
      %2995 = vmatprep.subr.bf16.mxu0 %v2930
      %2996 = vmatpush1.bf16.msra.mxu0 %v2929
      %2997 = vmatprep.subr.bf16.mxu0 %v2932
      %2998 = vmatpush1.bf16.msra.mxu0 %v2931
      %2999 = vmatprep.subr.bf16.mxu0 %v2934
      %3000 = vmatpush1.bf16.msra.mxu0 %v2933
      %3001 = vmatprep.subr.bf16.mxu0 %v2936
      %3002 = vmatpush1.bf16.msra.mxu0 %v2935
      %3003 = vmatprep.subr.bf16.mxu0 %v2938
      %3004 = vmatpush1.bf16.msra.mxu0 %v2937
      %3005 = vmatprep.subr.bf16.mxu0 %v2940
      %3006 = vmatpush1.bf16.msra.mxu0 %v2939
      %3007 = vmatprep.subr.bf16.mxu0 %v2942
      %3008 = vmatpush1.bf16.msra.mxu0 %v2941
      %3009 = vmatprep.subr.bf16.mxu0 0
      %3010 = vmatpush1.bf16.msra.mxu0 0
      %3011 = vmatprep.mubr.bf16.mxu0 %v2974
      %3012 = vmatmul.mubr.bf16.gmra.mrb[0].mxu0 %v2813
      %v3013 = vpop.f32.mrb[0].mxu0
      %v3014 = vadd.f32 0.0, %v3013
      %v3015 = vpop.f32.mrb[0].mxu0
      %v3016 = vadd.f32 0.0, %v3015
      %v3017 = vpop.f32.mrb[0].mxu0
      %v3018 = vadd.f32 0.0, %v3017
      %v3019 = vpop.f32.mrb[0].mxu0
      %v3020 = vadd.f32 0.0, %v3019
      %3021 = vmatprep.mubr.bf16.mxu0 %v2977
      %3022 = vmatmul.mubr.bf16.gmra.mrb[0].mxu0 %v2812
      %v3023 = vpop.f32.mrb[0].mxu0
      %v3024 = vadd.f32 0.0, %v3023
      %v3025 = vpop.f32.mrb[0].mxu0
      %v3026 = vadd.f32 0.0, %v3025
      %v3027 = vpop.f32.mrb[0].mxu0
      %v3028 = vadd.f32 0.0, %v3027
      %v3029 = vpop.f32.mrb[0].mxu0
      %v3030 = vadd.f32 0.0, %v3029
      %3031 = vdwg.mxu0
      %v3032 = vadd.f32 %v2768, %v3014
      %v3033 = vadd.f32 %v2769, %v3016
      %v3034 = vadd.f32 %v2770, %v3018
      %v3035 = vadd.f32 %v2771, %v3020
      %v3036 = vadd.f32 %v2772, %v3024
      %v3037 = vadd.f32 %v2773, %v3026
      %v3038 = vadd.f32 %v2774, %v3028
      %v3039 = vadd.f32 %v2775, %v3030
      %s3040 = scalar_lea.vmem %s936, 960
      %v3041 = vld [vmem:[%s3040] sm:$0xff]
      %v3042 = vld [vmem:[%s3040 + $0x8] sm:$0xff]
      %v3043 = vld [vmem:[%s3040 + $0x10] sm:$0xff]
      %v3044 = vld [vmem:[%s3040 + $0x18] sm:$0xff]
      %v3045 = vld [vmem:[%s3040 + $0x20] sm:$0xff]
      %v3046 = vld [vmem:[%s3040 + $0x28] sm:$0xff]
      %v3047 = vld [vmem:[%s3040 + $0x30] sm:$0xff]
      %v3048 = vld [vmem:[%s3040 + $0x38] sm:$0xff]
      %v3049 = vld [vmem:[%s3040 + $0x40] sm:$0xff]
      %v3050 = vld [vmem:[%s3040 + $0x48] sm:$0xff]
      %v3051 = vld [vmem:[%s3040 + $0x50] sm:$0xff]
      %v3052 = vld [vmem:[%s3040 + $0x58] sm:$0xff]
      %v3053 = vld [vmem:[%s3040 + $0x60] sm:$0xff]
      %v3054 = vld [vmem:[%s3040 + $0x68] sm:$0xff]
      %v3055 = vld [vmem:[%s3040 + $0x70] sm:$0xff]
      %v3056 = vld [vmem:[%s3040 + $0x78] sm:$0xff]
      %v3057 = vld [vmem:[%s3040 + $0x80] sm:$0xff]
      %v3058 = vld [vmem:[%s3040 + $0x88] sm:$0xff]
      %v3059 = vld [vmem:[%s3040 + $0x90] sm:$0xff]
      %v3060 = vld [vmem:[%s3040 + $0x98] sm:$0xff]
      %v3061 = vld [vmem:[%s3040 + $0xa0] sm:$0xff]
      %v3062 = vld [vmem:[%s3040 + $0xa8] sm:$0xff]
      %v3063 = vld [vmem:[%s3040 + $0xb0] sm:$0xff]
      %v3064 = vld [vmem:[%s3040 + $0xb8] sm:$0xff]
      %v3065 = vld [vmem:[%s3040 + $0xc0] sm:$0xff]
      %v3066 = vld [vmem:[%s3040 + $0xc8] sm:$0xff]
      %v3067 = vld [vmem:[%s3040 + $0xd0] sm:$0xff]
      %v3068 = vld [vmem:[%s3040 + $0xd8] sm:$0xff]
      %v3069 = vld [vmem:[%s3040 + $0xe0] sm:$0xff]
      %v3070 = vld [vmem:[%s3040 + $0xe8] sm:$0xff]
      %v3071 = vrot.slane %v2002, 2
      %v3072 = vrot.slane %v2004, 2
      %v3073 = vsel %vm1664, %v3071, %v3072
      %v3074 = vrot.slane %v2003, 2
      %v3075 = vrot.slane %v2005, 2
      %v3076 = vsel %vm1664, %v3074, %v3075
      %v3109 = vunpack.c.l.b16 %v3041
      %v3110 = vunpack.c.h.b16 %v3041
      %v3111 = vunpack.c.l.b16 %v3042
      %v3112 = vunpack.c.h.b16 %v3042
      %v3113 = vunpack.c.l.b16 %v3043
      %v3114 = vunpack.c.h.b16 %v3043
      %v3115 = vunpack.c.l.b16 %v3044
      %v3116 = vunpack.c.h.b16 %v3044
      %v3117 = vunpack.c.l.b16 %v3045
      %v3118 = vunpack.c.h.b16 %v3045
      %v3119 = vunpack.c.l.b16 %v3046
      %v3120 = vunpack.c.h.b16 %v3046
      %v3121 = vunpack.c.l.b16 %v3047
      %v3122 = vunpack.c.h.b16 %v3047
      %v3123 = vunpack.c.l.b16 %v3048
      %v3124 = vunpack.c.h.b16 %v3048
      %v3125 = vunpack.c.l.b16 %v3049
      %v3126 = vunpack.c.h.b16 %v3049
      %v3127 = vunpack.c.l.b16 %v3050
      %v3128 = vunpack.c.h.b16 %v3050
      %v3129 = vunpack.c.l.b16 %v3051
      %v3130 = vunpack.c.h.b16 %v3051
      %v3131 = vunpack.c.l.b16 %v3052
      %v3132 = vunpack.c.h.b16 %v3052
      %v3133 = vunpack.c.l.b16 %v3053
      %v3134 = vunpack.c.h.b16 %v3053
      %v3135 = vunpack.c.l.b16 %v3054
      %v3136 = vunpack.c.h.b16 %v3054
      %v3137 = vunpack.c.l.b16 %v3055
      %v3138 = vunpack.c.h.b16 %v3055
      %v3139 = vunpack.c.l.b16 %v3056
      %v3140 = vunpack.c.h.b16 %v3056
      %v3141 = vunpack.c.l.b16 %v3057
      %v3142 = vunpack.c.h.b16 %v3057
      %v3143 = vunpack.c.l.b16 %v3058
      %v3144 = vunpack.c.h.b16 %v3058
      %v3145 = vunpack.c.l.b16 %v3059
      %v3146 = vunpack.c.h.b16 %v3059
      %v3147 = vunpack.c.l.b16 %v3060
      %v3148 = vunpack.c.h.b16 %v3060
      %v3149 = vunpack.c.l.b16 %v3061
      %v3150 = vunpack.c.h.b16 %v3061
      %v3151 = vunpack.c.l.b16 %v3062
      %v3152 = vunpack.c.h.b16 %v3062
      %v3153 = vunpack.c.l.b16 %v3063
      %v3154 = vunpack.c.h.b16 %v3063
      %v3155 = vunpack.c.l.b16 %v3064
      %v3156 = vunpack.c.h.b16 %v3064
      %v3157 = vunpack.c.l.b16 %v3065
      %v3158 = vunpack.c.h.b16 %v3065
      %v3159 = vunpack.c.l.b16 %v3066
      %v3160 = vunpack.c.h.b16 %v3066
      %v3161 = vunpack.c.l.b16 %v3067
      %v3162 = vunpack.c.h.b16 %v3067
      %v3163 = vunpack.c.l.b16 %v3068
      %v3164 = vunpack.c.h.b16 %v3068
      %v3165 = vunpack.c.l.b16 %v3069
      %v3166 = vunpack.c.h.b16 %v3069
      %v3167 = vunpack.c.l.b16 %v3070
      %v3168 = vunpack.c.h.b16 %v3070
      %v3169 = vpack.c.b16 %v3111, %v3109
      %v3170 = vpack.c.b16 %v3112, %v3110
      %v3171 = vpack.c.b16 %v3115, %v3113
      %v3172 = vpack.c.b16 %v3116, %v3114
      %v3173 = vpack.c.b16 %v3119, %v3117
      %v3174 = vpack.c.b16 %v3120, %v3118
      %v3175 = vpack.c.b16 %v3123, %v3121
      %v3176 = vpack.c.b16 %v3124, %v3122
      %v3177 = vpack.c.b16 %v3127, %v3125
      %v3178 = vpack.c.b16 %v3128, %v3126
      %v3179 = vpack.c.b16 %v3131, %v3129
      %v3180 = vpack.c.b16 %v3132, %v3130
      %v3181 = vpack.c.b16 %v3135, %v3133
      %v3182 = vpack.c.b16 %v3136, %v3134
      %v3183 = vpack.c.b16 %v3139, %v3137
      %v3184 = vpack.c.b16 %v3140, %v3138
      %v3185 = vpack.c.b16 %v3143, %v3141
      %v3186 = vpack.c.b16 %v3144, %v3142
      %v3187 = vpack.c.b16 %v3147, %v3145
      %v3188 = vpack.c.b16 %v3148, %v3146
      %v3189 = vpack.c.b16 %v3151, %v3149
      %v3190 = vpack.c.b16 %v3152, %v3150
      %v3191 = vpack.c.b16 %v3155, %v3153
      %v3192 = vpack.c.b16 %v3156, %v3154
      %v3193 = vpack.c.b16 %v3159, %v3157
      %v3194 = vpack.c.b16 %v3160, %v3158
      %v3195 = vpack.c.b16 %v3163, %v3161
      %v3196 = vpack.c.b16 %v3164, %v3162
      %v3197 = vpack.c.b16 %v3167, %v3165
      %v3198 = vpack.c.b16 %v3168, %v3166
      %v3230 = vsel %vm2249, %v3076, 0
      %v3233 = vsel %vm2249, %v3075, 0
      %3235 = vmatprep.subr.bf16.mxu0 %v3170
      %3236 = vmatpush1.bf16.msra.mxu0 %v3169
      %3237 = vmatprep.subr.bf16.mxu0 %v3172
      %3238 = vmatpush1.bf16.msra.mxu0 %v3171
      %3239 = vmatprep.subr.bf16.mxu0 %v3174
      %3240 = vmatpush1.bf16.msra.mxu0 %v3173
      %3241 = vmatprep.subr.bf16.mxu0 %v3176
      %3242 = vmatpush1.bf16.msra.mxu0 %v3175
      %3243 = vmatprep.subr.bf16.mxu0 %v3178
      %3244 = vmatpush1.bf16.msra.mxu0 %v3177
      %3245 = vmatprep.subr.bf16.mxu0 %v3180
      %3246 = vmatpush1.bf16.msra.mxu0 %v3179
      %3247 = vmatprep.subr.bf16.mxu0 %v3182
      %3248 = vmatpush1.bf16.msra.mxu0 %v3181
      %3249 = vmatprep.subr.bf16.mxu0 %v3184
      %3250 = vmatpush1.bf16.msra.mxu0 %v3183
      %3251 = vmatprep.subr.bf16.mxu0 %v3186
      %3252 = vmatpush1.bf16.msra.mxu0 %v3185
      %3253 = vmatprep.subr.bf16.mxu0 %v3188
      %3254 = vmatpush1.bf16.msra.mxu0 %v3187
      %3255 = vmatprep.subr.bf16.mxu0 %v3190
      %3256 = vmatpush1.bf16.msra.mxu0 %v3189
      %3257 = vmatprep.subr.bf16.mxu0 %v3192
      %3258 = vmatpush1.bf16.msra.mxu0 %v3191
      %3259 = vmatprep.subr.bf16.mxu0 %v3194
      %3260 = vmatpush1.bf16.msra.mxu0 %v3193
      %3261 = vmatprep.subr.bf16.mxu0 %v3196
      %3262 = vmatpush1.bf16.msra.mxu0 %v3195
      %3263 = vmatprep.subr.bf16.mxu0 %v3198
      %3264 = vmatpush1.bf16.msra.mxu0 %v3197
      %3265 = vmatprep.subr.bf16.mxu0 0
      %3266 = vmatpush1.bf16.msra.mxu0 0
      %3267 = vmatprep.mubr.bf16.mxu0 %v3230
      %3268 = vmatmul.mubr.bf16.gmra.mrb[0].mxu0 %v3073
      %v3269 = vpop.f32.mrb[0].mxu0
      %v3270 = vadd.f32 0.0, %v3269
      %v3271 = vpop.f32.mrb[0].mxu0
      %v3272 = vadd.f32 0.0, %v3271
      %v3273 = vpop.f32.mrb[0].mxu0
      %v3274 = vadd.f32 0.0, %v3273
      %v3275 = vpop.f32.mrb[0].mxu0
      %v3276 = vadd.f32 0.0, %v3275
      %3277 = vmatprep.mubr.bf16.mxu0 %v3233
      %3278 = vmatmul.mubr.bf16.gmra.mrb[0].mxu0 %v3072
      %v3279 = vpop.f32.mrb[0].mxu0
      %v3280 = vadd.f32 0.0, %v3279
      %v3281 = vpop.f32.mrb[0].mxu0
      %v3282 = vadd.f32 0.0, %v3281
      %v3283 = vpop.f32.mrb[0].mxu0
      %v3284 = vadd.f32 0.0, %v3283
      %v3285 = vpop.f32.mrb[0].mxu0
      %v3286 = vadd.f32 0.0, %v3285
      %3287 = vdwg.mxu0
      %v3288 = vadd.f32 %v3032, %v3270
      %v3289 = vadd.f32 %v3033, %v3272
      %v3290 = vadd.f32 %v3034, %v3274
      %v3291 = vadd.f32 %v3035, %v3276
      %v3292 = vadd.f32 %v3036, %v3280
      %v3293 = vadd.f32 %v3037, %v3282
      %v3294 = vadd.f32 %v3038, %v3284
      %v3295 = vadd.f32 %v3039, %v3286
      %v3296 = vld [vmem:[%s940] sm:$0x3]
      %v3298 = vlaneseq
      %v3299 = vshrl.u32 %v3298, 7
      %v3300 = vsub.s32 0, %v3299
      %v3301 = vrot.slane %v3296, %v3300
      %v3302 = vlaneseq
      %v3303 = vshrl.u32 %v3302, 7
      %v3304 = vsub.s32 1, %v3303
      %v3305 = vrot.slane %v3296, %v3304
      %v3308 = vadd.f32 %v3288, %v3301
      %v3309 = vadd.f32 %v3289, %v3305
      %v3310 = vadd.f32 %v3290, %v3301
      %v3311 = vadd.f32 %v3291, %v3305
      %v3312 = vadd.f32 %v3292, %v3301
      %v3313 = vadd.f32 %v3293, %v3305
      %v3314 = vadd.f32 %v3294, %v3301
      %v3315 = vadd.f32 %v3295, %v3305
      %vm3316 = vcmp.gt.f32.partialorder %v3308, 0.0
      %vm3317 = vcmp.gt.f32.partialorder %v3309, 0.0
      %vm3318 = vcmp.gt.f32.partialorder %v3310, 0.0
      %vm3319 = vcmp.gt.f32.partialorder %v3311, 0.0
      %vm3320 = vcmp.gt.f32.partialorder %v3312, 0.0
      %vm3321 = vcmp.gt.f32.partialorder %v3313, 0.0
      %vm3322 = vcmp.gt.f32.partialorder %v3314, 0.0
      %vm3323 = vcmp.gt.f32.partialorder %v3315, 0.0
      %v3324 = vmin.f32 %v3308, 0.0
      %v3325 = vmin.f32 %v3309, 0.0
      %v3326 = vmin.f32 %v3310, 0.0
      %v3327 = vmin.f32 %v3311, 0.0
      %v3328 = vmin.f32 %v3312, 0.0
      %v3329 = vmin.f32 %v3313, 0.0
      %v3330 = vmin.f32 %v3314, 0.0
      %v3331 = vmin.f32 %v3315, 0.0
      %v3332 = vmul.f32 %v3324, 1.442695
      %v3333 = vpow.pop %v3332
      %v3334 = vmul.f32 %v3325, 1.442695
      %v3335 = vpow.pop %v3334
      %v3336 = vmul.f32 %v3326, 1.442695
      %v3337 = vpow.pop %v3336
      %v3338 = vmul.f32 %v3327, 1.442695
      %v3339 = vpow.pop %v3338
      %v3340 = vmul.f32 %v3328, 1.442695
      %v3341 = vpow.pop %v3340
      %v3342 = vmul.f32 %v3329, 1.442695
      %v3343 = vpow.pop %v3342
      %v3344 = vmul.f32 %v3330, 1.442695
      %v3345 = vpow.pop %v3344
      %v3346 = vmul.f32 %v3331, 1.442695
      %v3347 = vpow.pop %v3346
      %v3348 = vsub.f32 %v3333, 1.0
      %v3349 = vsub.f32 %v3335, 1.0
      %v3350 = vsub.f32 %v3337, 1.0
      %v3351 = vsub.f32 %v3339, 1.0
      %v3352 = vsub.f32 %v3341, 1.0
      %v3353 = vsub.f32 %v3343, 1.0
      %v3354 = vsub.f32 %v3345, 1.0
      %v3355 = vsub.f32 %v3347, 1.0
      %v3356 = vsel %vm3316, %v3308, %v3348
      %v3357 = vsel %vm3317, %v3309, %v3349
      %v3358 = vsel %vm3318, %v3310, %v3350
      %v3359 = vsel %vm3319, %v3311, %v3351
      %v3360 = vsel %vm3320, %v3312, %v3352
      %v3361 = vsel %vm3321, %v3313, %v3353
      %v3362 = vsel %vm3322, %v3314, %v3354
      %v3363 = vsel %vm3323, %v3315, %v3355
      %v3364 = vpack.c.bf16 %v3358, %v3356
      %v3365 = vpack.c.bf16 %v3359, %v3357
      %v3366 = vpack.c.bf16 %v3362, %v3360
      %v3367 = vpack.c.bf16 %v3363, %v3361
      %v3368 = vld [vmem:[%s945] sm:$0xff]
      %v3369 = vld [vmem:[%s945 + $0x8] sm:$0xff]
      %v3370 = vld [vmem:[%s945 + $0x10] sm:$0xff]
      %v3371 = vld [vmem:[%s945 + $0x18] sm:$0xff]
      %v3372 = vld [vmem:[%s945 + $0x20] sm:$0xff]
      %v3373 = vld [vmem:[%s945 + $0x28] sm:$0xff]
      %v3374 = vld [vmem:[%s945 + $0x30] sm:$0xff]
      %v3375 = vld [vmem:[%s945 + $0x38] sm:$0xff]
      %v3376 = vld [vmem:[%s945 + $0x40] sm:$0xff]
      %v3377 = vld [vmem:[%s945 + $0x48] sm:$0xff]
      %v3378 = vld [vmem:[%s945 + $0x50] sm:$0xff]
      %v3379 = vld [vmem:[%s945 + $0x58] sm:$0xff]
      %v3380 = vld [vmem:[%s945 + $0x60] sm:$0xff]
      %v3381 = vld [vmem:[%s945 + $0x68] sm:$0xff]
      %v3382 = vld [vmem:[%s945 + $0x70] sm:$0xff]
      %v3383 = vld [vmem:[%s945 + $0x78] sm:$0xff]
      %v3384 = vld [vmem:[%s945 + $0x80] sm:$0xff]
      %v3385 = vld [vmem:[%s945 + $0x88] sm:$0xff]
      %v3386 = vld [vmem:[%s945 + $0x90] sm:$0xff]
      %v3387 = vld [vmem:[%s945 + $0x98] sm:$0xff]
      %v3388 = vld [vmem:[%s945 + $0xa0] sm:$0xff]
      %v3389 = vld [vmem:[%s945 + $0xa8] sm:$0xff]
      %v3390 = vld [vmem:[%s945 + $0xb0] sm:$0xff]
      %v3391 = vld [vmem:[%s945 + $0xb8] sm:$0xff]
      %v3392 = vld [vmem:[%s945 + $0xc0] sm:$0xff]
      %v3393 = vld [vmem:[%s945 + $0xc8] sm:$0xff]
      %s3394 = scalar_lea.vmem %s945, 208
      %v3395 = vld [vmem:[%s3394] sm:$0xff]
      %v3396 = vld [vmem:[%s3394 + $0x8] sm:$0xff]
      %v3397 = vld [vmem:[%s3394 + $0x10] sm:$0xff]
      %v3398 = vld [vmem:[%s3394 + $0x18] sm:$0xff]
      %v3399 = vld [vmem:[%s3394 + $0x20] sm:$0xff]
      %v3400 = vld [vmem:[%s3394 + $0x28] sm:$0xff]
      %v3401 = vld [vmem:[%s3394 + $0x30] sm:$0xff]
      %v3402 = vld [vmem:[%s3394 + $0x38] sm:$0xff]
      %v3403 = vld [vmem:[%s3394 + $0x40] sm:$0xff]
      %v3404 = vld [vmem:[%s3394 + $0x48] sm:$0xff]
      %v3405 = vld [vmem:[%s3394 + $0x50] sm:$0xff]
      %v3406 = vld [vmem:[%s3394 + $0x58] sm:$0xff]
      %v3407 = vld [vmem:[%s3394 + $0x60] sm:$0xff]
      %v3408 = vld [vmem:[%s3394 + $0x68] sm:$0xff]
      %v3409 = vld [vmem:[%s3394 + $0x70] sm:$0xff]
      %v3410 = vld [vmem:[%s3394 + $0x78] sm:$0xff]
      %v3411 = vld [vmem:[%s3394 + $0x80] sm:$0xff]
      %v3412 = vld [vmem:[%s3394 + $0x88] sm:$0xff]
      %v3413 = vld [vmem:[%s3394 + $0x90] sm:$0xff]
      %v3414 = vld [vmem:[%s3394 + $0x98] sm:$0xff]
      %v3415 = vld [vmem:[%s3394 + $0xa0] sm:$0xff]
      %v3416 = vld [vmem:[%s3394 + $0xa8] sm:$0xff]
      %v3417 = vld [vmem:[%s3394 + $0xb0] sm:$0xff]
      %v3418 = vld [vmem:[%s3394 + $0xb8] sm:$0xff]
      %v3419 = vld [vmem:[%s3394 + $0xc0] sm:$0xff]
      %v3420 = vld [vmem:[%s3394 + $0xc8] sm:$0xff]
      %v3422 = vshrl.u32 %v3364, 16
      %v3424 = vshll.u32 %v3364, 16
      %v3426 = vrot.slane %v3424, 1
      %v3427 = vor.u32 %v3422, %v3426
      %v3429 = vshll.u32 %v3366, 16
      %v3431 = vrot.slane %v3429, 1
      %v3432 = vsel %vm1048, %v3427, %v3431
      %v3434 = vshrl.u32 %v3365, 16
      %v3436 = vshll.u32 %v3365, 16
      %v3438 = vrot.slane %v3436, 1
      %v3439 = vor.u32 %v3434, %v3438
      %v3441 = vshll.u32 %v3367, 16
      %v3443 = vrot.slane %v3441, 1
      %v3444 = vsel %vm1048, %v3439, %v3443
      %v3445 = vshrl.u32 %v3366, 16
      %v3447 = vor.u32 %v3445, %v3431
      %v3448 = vshrl.u32 %v3367, 16
      %v3450 = vor.u32 %v3448, %v3443
      %v3479 = vunpack.c.l.b16 %v3395
      %v3480 = vunpack.c.h.b16 %v3395
      %v3481 = vunpack.c.l.b16 %v3396
      %v3482 = vunpack.c.h.b16 %v3396
      %v3483 = vunpack.c.l.b16 %v3397
      %v3484 = vunpack.c.h.b16 %v3397
      %v3485 = vunpack.c.l.b16 %v3398
      %v3486 = vunpack.c.h.b16 %v3398
      %v3487 = vunpack.c.l.b16 %v3399
      %v3488 = vunpack.c.h.b16 %v3399
      %v3489 = vunpack.c.l.b16 %v3400
      %v3490 = vunpack.c.h.b16 %v3400
      %v3491 = vunpack.c.l.b16 %v3401
      %v3492 = vunpack.c.h.b16 %v3401
      %v3493 = vunpack.c.l.b16 %v3402
      %v3494 = vunpack.c.h.b16 %v3402
      %v3495 = vunpack.c.l.b16 %v3403
      %v3496 = vunpack.c.h.b16 %v3403
      %v3497 = vunpack.c.l.b16 %v3404
      %v3498 = vunpack.c.h.b16 %v3404
      %v3499 = vunpack.c.l.b16 %v3405
      %v3500 = vunpack.c.h.b16 %v3405
      %v3501 = vunpack.c.l.b16 %v3406
      %v3502 = vunpack.c.h.b16 %v3406
      %v3503 = vunpack.c.l.b16 %v3407
      %v3504 = vunpack.c.h.b16 %v3407
      %v3505 = vunpack.c.l.b16 %v3408
      %v3506 = vunpack.c.h.b16 %v3408
      %v3507 = vunpack.c.l.b16 %v3409
      %v3508 = vunpack.c.h.b16 %v3409
      %v3509 = vunpack.c.l.b16 %v3410
      %v3510 = vunpack.c.h.b16 %v3410
      %v3511 = vunpack.c.l.b16 %v3411
      %v3512 = vunpack.c.h.b16 %v3411
      %v3513 = vunpack.c.l.b16 %v3412
      %v3514 = vunpack.c.h.b16 %v3412
      %v3515 = vunpack.c.l.b16 %v3413
      %v3516 = vunpack.c.h.b16 %v3413
      %v3517 = vunpack.c.l.b16 %v3414
      %v3518 = vunpack.c.h.b16 %v3414
      %v3519 = vunpack.c.l.b16 %v3415
      %v3520 = vunpack.c.h.b16 %v3415
      %v3521 = vunpack.c.l.b16 %v3416
      %v3522 = vunpack.c.h.b16 %v3416
      %v3523 = vunpack.c.l.b16 %v3417
      %v3524 = vunpack.c.h.b16 %v3417
      %v3525 = vunpack.c.l.b16 %v3418
      %v3526 = vunpack.c.h.b16 %v3418
      %v3527 = vunpack.c.l.b16 %v3419
      %v3528 = vunpack.c.h.b16 %v3419
      %v3529 = vunpack.c.l.b16 %v3420
      %v3530 = vunpack.c.h.b16 %v3420
      %v3531 = vpack.c.b16 %v3481, %v3479
      %v3532 = vpack.c.b16 %v3482, %v3480
      %v3533 = vpack.c.b16 %v3485, %v3483
      %v3534 = vpack.c.b16 %v3486, %v3484
      %v3535 = vpack.c.b16 %v3489, %v3487
      %v3536 = vpack.c.b16 %v3490, %v3488
      %v3537 = vpack.c.b16 %v3493, %v3491
      %v3538 = vpack.c.b16 %v3494, %v3492
      %v3539 = vpack.c.b16 %v3497, %v3495
      %v3540 = vpack.c.b16 %v3498, %v3496
      %v3541 = vpack.c.b16 %v3501, %v3499
      %v3542 = vpack.c.b16 %v3502, %v3500
      %v3543 = vpack.c.b16 %v3505, %v3503
      %v3544 = vpack.c.b16 %v3506, %v3504
      %v3545 = vpack.c.b16 %v3509, %v3507
      %v3546 = vpack.c.b16 %v3510, %v3508
      %v3547 = vpack.c.b16 %v3513, %v3511
      %v3548 = vpack.c.b16 %v3514, %v3512
      %v3549 = vpack.c.b16 %v3517, %v3515
      %v3550 = vpack.c.b16 %v3518, %v3516
      %v3551 = vpack.c.b16 %v3521, %v3519
      %v3552 = vpack.c.b16 %v3522, %v3520
      %v3553 = vpack.c.b16 %v3525, %v3523
      %v3554 = vpack.c.b16 %v3526, %v3524
      %v3555 = vpack.c.b16 %v3529, %v3527
      %v3556 = vpack.c.b16 %v3530, %v3528
      %vm3583 = vcmask 654336
      %v3585 = vsel %vm3583, %v3444, 0
      %v3588 = vsel %vm3583, %v3450, 0
      %3590 = vmatprep.subr.bf16.mxu0 %v3532
      %3591 = vmatpush1.bf16.msra.mxu0 %v3531
      %3592 = vmatprep.subr.bf16.mxu0 %v3534
      %3593 = vmatpush1.bf16.msra.mxu0 %v3533
      %3594 = vmatprep.subr.bf16.mxu0 %v3536
      %3595 = vmatpush1.bf16.msra.mxu0 %v3535
      %3596 = vmatprep.subr.bf16.mxu0 %v3538
      %3597 = vmatpush1.bf16.msra.mxu0 %v3537
      %3598 = vmatprep.subr.bf16.mxu0 %v3540
      %3599 = vmatpush1.bf16.msra.mxu0 %v3539
      %3600 = vmatprep.subr.bf16.mxu0 %v3542
      %3601 = vmatpush1.bf16.msra.mxu0 %v3541
      %3602 = vmatprep.subr.bf16.mxu0 %v3544
      %3603 = vmatpush1.bf16.msra.mxu0 %v3543
      %3604 = vmatprep.subr.bf16.mxu0 %v3546
      %3605 = vmatpush1.bf16.msra.mxu0 %v3545
      %3606 = vmatprep.subr.bf16.mxu0 %v3548
      %3607 = vmatpush1.bf16.msra.mxu0 %v3547
      %3608 = vmatprep.subr.bf16.mxu0 %v3550
      %3609 = vmatpush1.bf16.msra.mxu0 %v3549
      %3610 = vmatprep.subr.bf16.mxu0 %v3552
      %3611 = vmatpush1.bf16.msra.mxu0 %v3551
      %3612 = vmatprep.subr.bf16.mxu0 %v3554
      %3613 = vmatpush1.bf16.msra.mxu0 %v3553
      %3614 = vmatprep.subr.bf16.mxu0 %v3556
      %3615 = vmatpush1.bf16.msra.mxu0 %v3555
      %3616 = vmatprep.subr.bf16.mxu0 0
      %3617 = vmatpush1.bf16.msra.mxu0 0
      %3618 = vmatprep.subr.bf16.mxu0 0
      %3619 = vmatpush1.bf16.msra.mxu0 0
      %3620 = vmatprep.subr.bf16.mxu0 0
      %3621 = vmatpush1.bf16.msra.mxu0 0
      %3622 = vmatprep.mubr.bf16.mxu0 %v3585
      %3623 = vmatmul.mubr.bf16.gmra.mrb[0].mxu0 %v3432
      %v3624 = vpop.f32.mrb[0].mxu0
      %v3625 = vadd.f32 0.0, %v3624
      %v3626 = vpop.f32.mrb[0].mxu0
      %v3627 = vadd.f32 0.0, %v3626
      %v3628 = vpop.f32.mrb[0].mxu0
      %v3629 = vadd.f32 0.0, %v3628
      %v3630 = vpop.f32.mrb[0].mxu0
      %v3631 = vadd.f32 0.0, %v3630
      %3632 = vmatprep.mubr.bf16.mxu0 %v3588
      %3633 = vmatmul.mubr.bf16.gmra.mrb[0].mxu0 %v3447
      %v3634 = vpop.f32.mrb[0].mxu0
      %v3635 = vadd.f32 0.0, %v3634
      %v3636 = vpop.f32.mrb[0].mxu0
      %v3637 = vadd.f32 0.0, %v3636
      %v3638 = vpop.f32.mrb[0].mxu0
      %v3639 = vpop.f32.mrb[0].mxu0
      %3640 = vdwg.mxu0
      %v3667 = vunpack.c.l.b16 %v3368
      %v3668 = vunpack.c.h.b16 %v3368
      %v3669 = vunpack.c.l.b16 %v3369
      %v3670 = vunpack.c.h.b16 %v3369
      %v3671 = vunpack.c.l.b16 %v3370
      %v3672 = vunpack.c.h.b16 %v3370
      %v3673 = vunpack.c.l.b16 %v3371
      %v3674 = vunpack.c.h.b16 %v3371
      %v3675 = vunpack.c.l.b16 %v3372
      %v3676 = vunpack.c.h.b16 %v3372
      %v3677 = vunpack.c.l.b16 %v3373
      %v3678 = vunpack.c.h.b16 %v3373
      %v3679 = vunpack.c.l.b16 %v3374
      %v3680 = vunpack.c.h.b16 %v3374
      %v3681 = vunpack.c.l.b16 %v3375
      %v3682 = vunpack.c.h.b16 %v3375
      %v3683 = vunpack.c.l.b16 %v3376
      %v3684 = vunpack.c.h.b16 %v3376
      %v3685 = vunpack.c.l.b16 %v3377
      %v3686 = vunpack.c.h.b16 %v3377
      %v3687 = vunpack.c.l.b16 %v3378
      %v3688 = vunpack.c.h.b16 %v3378
      %v3689 = vunpack.c.l.b16 %v3379
      %v3690 = vunpack.c.h.b16 %v3379
      %v3691 = vunpack.c.l.b16 %v3380
      %v3692 = vunpack.c.h.b16 %v3380
      %v3693 = vunpack.c.l.b16 %v3381
      %v3694 = vunpack.c.h.b16 %v3381
      %v3695 = vunpack.c.l.b16 %v3382
      %v3696 = vunpack.c.h.b16 %v3382
      %v3697 = vunpack.c.l.b16 %v3383
      %v3698 = vunpack.c.h.b16 %v3383
      %v3699 = vunpack.c.l.b16 %v3384
      %v3700 = vunpack.c.h.b16 %v3384
      %v3701 = vunpack.c.l.b16 %v3385
      %v3702 = vunpack.c.h.b16 %v3385
      %v3703 = vunpack.c.l.b16 %v3386
      %v3704 = vunpack.c.h.b16 %v3386
      %v3705 = vunpack.c.l.b16 %v3387
      %v3706 = vunpack.c.h.b16 %v3387
      %v3707 = vunpack.c.l.b16 %v3388
      %v3708 = vunpack.c.h.b16 %v3388
      %v3709 = vunpack.c.l.b16 %v3389
      %v3710 = vunpack.c.h.b16 %v3389
      %v3711 = vunpack.c.l.b16 %v3390
      %v3712 = vunpack.c.h.b16 %v3390
      %v3713 = vunpack.c.l.b16 %v3391
      %v3714 = vunpack.c.h.b16 %v3391
      %v3715 = vunpack.c.l.b16 %v3392
      %v3716 = vunpack.c.h.b16 %v3392
      %v3717 = vunpack.c.l.b16 %v3393
      %v3718 = vunpack.c.h.b16 %v3393
      %v3719 = vpack.c.b16 %v3669, %v3667
      %v3720 = vpack.c.b16 %v3670, %v3668
      %v3721 = vpack.c.b16 %v3673, %v3671
      %v3722 = vpack.c.b16 %v3674, %v3672
      %v3723 = vpack.c.b16 %v3677, %v3675
      %v3724 = vpack.c.b16 %v3678, %v3676
      %v3725 = vpack.c.b16 %v3681, %v3679
      %v3726 = vpack.c.b16 %v3682, %v3680
      %v3727 = vpack.c.b16 %v3685, %v3683
      %v3728 = vpack.c.b16 %v3686, %v3684
      %v3729 = vpack.c.b16 %v3689, %v3687
      %v3730 = vpack.c.b16 %v3690, %v3688
      %v3731 = vpack.c.b16 %v3693, %v3691
      %v3732 = vpack.c.b16 %v3694, %v3692
      %v3733 = vpack.c.b16 %v3697, %v3695
      %v3734 = vpack.c.b16 %v3698, %v3696
      %v3735 = vpack.c.b16 %v3701, %v3699
      %v3736 = vpack.c.b16 %v3702, %v3700
      %v3737 = vpack.c.b16 %v3705, %v3703
      %v3738 = vpack.c.b16 %v3706, %v3704
      %v3739 = vpack.c.b16 %v3709, %v3707
      %v3740 = vpack.c.b16 %v3710, %v3708
      %v3741 = vpack.c.b16 %v3713, %v3711
      %v3742 = vpack.c.b16 %v3714, %v3712
      %v3743 = vpack.c.b16 %v3717, %v3715
      %v3744 = vpack.c.b16 %v3718, %v3716
      %v3771 = vsel %vm3583, %v3365, 0
      %v3773 = vsel %vm3583, %v3367, 0
      %3775 = vmatprep.subr.bf16.mxu0 %v3720
      %3776 = vmatpush1.bf16.msra.mxu0 %v3719
      %3777 = vmatprep.subr.bf16.mxu0 %v3722
      %3778 = vmatpush1.bf16.msra.mxu0 %v3721
      %3779 = vmatprep.subr.bf16.mxu0 %v3724
      %3780 = vmatpush1.bf16.msra.mxu0 %v3723
      %3781 = vmatprep.subr.bf16.mxu0 %v3726
      %3782 = vmatpush1.bf16.msra.mxu0 %v3725
      %3783 = vmatprep.subr.bf16.mxu0 %v3728
      %3784 = vmatpush1.bf16.msra.mxu0 %v3727
      %3785 = vmatprep.subr.bf16.mxu0 %v3730
      %3786 = vmatpush1.bf16.msra.mxu0 %v3729
      %3787 = vmatprep.subr.bf16.mxu0 %v3732
      %3788 = vmatpush1.bf16.msra.mxu0 %v3731
      %3789 = vmatprep.subr.bf16.mxu0 %v3734
      %3790 = vmatpush1.bf16.msra.mxu0 %v3733
      %3791 = vmatprep.subr.bf16.mxu0 %v3736
      %3792 = vmatpush1.bf16.msra.mxu0 %v3735
      %3793 = vmatprep.subr.bf16.mxu0 %v3738
      %3794 = vmatpush1.bf16.msra.mxu0 %v3737
      %3795 = vmatprep.subr.bf16.mxu0 %v3740
      %3796 = vmatpush1.bf16.msra.mxu0 %v3739
      %3797 = vmatprep.subr.bf16.mxu0 %v3742
      %3798 = vmatpush1.bf16.msra.mxu0 %v3741
      %3799 = vmatprep.subr.bf16.mxu0 %v3744
      %3800 = vmatpush1.bf16.msra.mxu0 %v3743
      %3801 = vmatprep.subr.bf16.mxu0 0
      %3802 = vmatpush1.bf16.msra.mxu0 0
      %3803 = vmatprep.subr.bf16.mxu0 0
      %3804 = vmatpush1.bf16.msra.mxu0 0
      %3805 = vmatprep.subr.bf16.mxu0 0
      %3806 = vmatpush1.bf16.msra.mxu0 0
      %3807 = vmatprep.mubr.bf16.mxu0 %v3771
      %3808 = vmatmul.mubr.bf16.gmra.mrb[0].mxu0 %v3364
      %v3809 = vpop.f32.mrb[0].mxu0
      %v3810 = vadd.f32 %v3625, %v3809
      %v3811 = vpop.f32.mrb[0].mxu0
      %v3812 = vadd.f32 %v3627, %v3811
      %v3813 = vpop.f32.mrb[0].mxu0
      %v3814 = vadd.f32 %v3629, %v3813
      %v3815 = vpop.f32.mrb[0].mxu0
      %v3816 = vadd.f32 %v3631, %v3815
      %3817 = vmatprep.mubr.bf16.mxu0 %v3773
      %3818 = vmatmul.mubr.bf16.gmra.mrb[0].mxu0 %v3366
      %v3819 = vpop.f32.mrb[0].mxu0
      %v3820 = vadd.f32 %v3635, %v3819
      %v3821 = vpop.f32.mrb[0].mxu0
      %v3822 = vadd.f32 %v3637, %v3821
      %v3823 = vpop.f32.mrb[0].mxu0
      %v3824 = vpop.f32.mrb[0].mxu0
      %3825 = vdwg.mxu0
      %s3826 = scalar_lea.vmem %s945, 416
      %v3827 = vld [vmem:[%s3826] sm:$0xff]
      %v3828 = vld [vmem:[%s3826 + $0x8] sm:$0xff]
      %v3829 = vld [vmem:[%s3826 + $0x10] sm:$0xff]
      %v3830 = vld [vmem:[%s3826 + $0x18] sm:$0xff]
      %v3831 = vld [vmem:[%s3826 + $0x20] sm:$0xff]
      %v3832 = vld [vmem:[%s3826 + $0x28] sm:$0xff]
      %v3833 = vld [vmem:[%s3826 + $0x30] sm:$0xff]
      %v3834 = vld [vmem:[%s3826 + $0x38] sm:$0xff]
      %v3835 = vld [vmem:[%s3826 + $0x40] sm:$0xff]
      %v3836 = vld [vmem:[%s3826 + $0x48] sm:$0xff]
      %v3837 = vld [vmem:[%s3826 + $0x50] sm:$0xff]
      %v3838 = vld [vmem:[%s3826 + $0x58] sm:$0xff]
      %v3839 = vld [vmem:[%s3826 + $0x60] sm:$0xff]
      %v3840 = vld [vmem:[%s3826 + $0x68] sm:$0xff]
      %v3841 = vld [vmem:[%s3826 + $0x70] sm:$0xff]
      %v3842 = vld [vmem:[%s3826 + $0x78] sm:$0xff]
      %v3843 = vld [vmem:[%s3826 + $0x80] sm:$0xff]
      %v3844 = vld [vmem:[%s3826 + $0x88] sm:$0xff]
      %v3845 = vld [vmem:[%s3826 + $0x90] sm:$0xff]
      %v3846 = vld [vmem:[%s3826 + $0x98] sm:$0xff]
      %v3847 = vld [vmem:[%s3826 + $0xa0] sm:$0xff]
      %v3848 = vld [vmem:[%s3826 + $0xa8] sm:$0xff]
      %v3849 = vld [vmem:[%s3826 + $0xb0] sm:$0xff]
      %v3850 = vld [vmem:[%s3826 + $0xb8] sm:$0xff]
      %v3851 = vld [vmem:[%s3826 + $0xc0] sm:$0xff]
      %v3852 = vld [vmem:[%s3826 + $0xc8] sm:$0xff]
      %v3857 = vrot.slane %v3364, 1
      %v3858 = vrot.slane %v3366, 1
      %v3859 = vsel %vm1340, %v3857, %v3858
      %v3860 = vrot.slane %v3365, 1
      %v3861 = vrot.slane %v3367, 1
      %v3862 = vsel %vm1340, %v3860, %v3861
      %v3891 = vunpack.c.l.b16 %v3827
      %v3892 = vunpack.c.h.b16 %v3827
      %v3893 = vunpack.c.l.b16 %v3828
      %v3894 = vunpack.c.h.b16 %v3828
      %v3895 = vunpack.c.l.b16 %v3829
      %v3896 = vunpack.c.h.b16 %v3829
      %v3897 = vunpack.c.l.b16 %v3830
      %v3898 = vunpack.c.h.b16 %v3830
      %v3899 = vunpack.c.l.b16 %v3831
      %v3900 = vunpack.c.h.b16 %v3831
      %v3901 = vunpack.c.l.b16 %v3832
      %v3902 = vunpack.c.h.b16 %v3832
      %v3903 = vunpack.c.l.b16 %v3833
      %v3904 = vunpack.c.h.b16 %v3833
      %v3905 = vunpack.c.l.b16 %v3834
      %v3906 = vunpack.c.h.b16 %v3834
      %v3907 = vunpack.c.l.b16 %v3835
      %v3908 = vunpack.c.h.b16 %v3835
      %v3909 = vunpack.c.l.b16 %v3836
      %v3910 = vunpack.c.h.b16 %v3836
      %v3911 = vunpack.c.l.b16 %v3837
      %v3912 = vunpack.c.h.b16 %v3837
      %v3913 = vunpack.c.l.b16 %v3838
      %v3914 = vunpack.c.h.b16 %v3838
      %v3915 = vunpack.c.l.b16 %v3839
      %v3916 = vunpack.c.h.b16 %v3839
      %v3917 = vunpack.c.l.b16 %v3840
      %v3918 = vunpack.c.h.b16 %v3840
      %v3919 = vunpack.c.l.b16 %v3841
      %v3920 = vunpack.c.h.b16 %v3841
      %v3921 = vunpack.c.l.b16 %v3842
      %v3922 = vunpack.c.h.b16 %v3842
      %v3923 = vunpack.c.l.b16 %v3843
      %v3924 = vunpack.c.h.b16 %v3843
      %v3925 = vunpack.c.l.b16 %v3844
      %v3926 = vunpack.c.h.b16 %v3844
      %v3927 = vunpack.c.l.b16 %v3845
      %v3928 = vunpack.c.h.b16 %v3845
      %v3929 = vunpack.c.l.b16 %v3846
      %v3930 = vunpack.c.h.b16 %v3846
      %v3931 = vunpack.c.l.b16 %v3847
      %v3932 = vunpack.c.h.b16 %v3847
      %v3933 = vunpack.c.l.b16 %v3848
      %v3934 = vunpack.c.h.b16 %v3848
      %v3935 = vunpack.c.l.b16 %v3849
      %v3936 = vunpack.c.h.b16 %v3849
      %v3937 = vunpack.c.l.b16 %v3850
      %v3938 = vunpack.c.h.b16 %v3850
      %v3939 = vunpack.c.l.b16 %v3851
      %v3940 = vunpack.c.h.b16 %v3851
      %v3941 = vunpack.c.l.b16 %v3852
      %v3942 = vunpack.c.h.b16 %v3852
      %v3943 = vpack.c.b16 %v3893, %v3891
      %v3944 = vpack.c.b16 %v3894, %v3892
      %v3945 = vpack.c.b16 %v3897, %v3895
      %v3946 = vpack.c.b16 %v3898, %v3896
      %v3947 = vpack.c.b16 %v3901, %v3899
      %v3948 = vpack.c.b16 %v3902, %v3900
      %v3949 = vpack.c.b16 %v3905, %v3903
      %v3950 = vpack.c.b16 %v3906, %v3904
      %v3951 = vpack.c.b16 %v3909, %v3907
      %v3952 = vpack.c.b16 %v3910, %v3908
      %v3953 = vpack.c.b16 %v3913, %v3911
      %v3954 = vpack.c.b16 %v3914, %v3912
      %v3955 = vpack.c.b16 %v3917, %v3915
      %v3956 = vpack.c.b16 %v3918, %v3916
      %v3957 = vpack.c.b16 %v3921, %v3919
      %v3958 = vpack.c.b16 %v3922, %v3920
      %v3959 = vpack.c.b16 %v3925, %v3923
      %v3960 = vpack.c.b16 %v3926, %v3924
      %v3961 = vpack.c.b16 %v3929, %v3927
      %v3962 = vpack.c.b16 %v3930, %v3928
      %v3963 = vpack.c.b16 %v3933, %v3931
      %v3964 = vpack.c.b16 %v3934, %v3932
      %v3965 = vpack.c.b16 %v3937, %v3935
      %v3966 = vpack.c.b16 %v3938, %v3936
      %v3967 = vpack.c.b16 %v3941, %v3939
      %v3968 = vpack.c.b16 %v3942, %v3940
      %v3996 = vsel %vm3583, %v3862, 0
      %v3999 = vsel %vm3583, %v3861, 0
      %4001 = vmatprep.subr.bf16.mxu0 %v3944
      %4002 = vmatpush1.bf16.msra.mxu0 %v3943
      %4003 = vmatprep.subr.bf16.mxu0 %v3946
      %4004 = vmatpush1.bf16.msra.mxu0 %v3945
      %4005 = vmatprep.subr.bf16.mxu0 %v3948
      %4006 = vmatpush1.bf16.msra.mxu0 %v3947
      %4007 = vmatprep.subr.bf16.mxu0 %v3950
      %4008 = vmatpush1.bf16.msra.mxu0 %v3949
      %4009 = vmatprep.subr.bf16.mxu0 %v3952
      %4010 = vmatpush1.bf16.msra.mxu0 %v3951
      %4011 = vmatprep.subr.bf16.mxu0 %v3954
      %4012 = vmatpush1.bf16.msra.mxu0 %v3953
      %4013 = vmatprep.subr.bf16.mxu0 %v3956
      %4014 = vmatpush1.bf16.msra.mxu0 %v3955
      %4015 = vmatprep.subr.bf16.mxu0 %v3958
      %4016 = vmatpush1.bf16.msra.mxu0 %v3957
      %4017 = vmatprep.subr.bf16.mxu0 %v3960
      %4018 = vmatpush1.bf16.msra.mxu0 %v3959
      %4019 = vmatprep.subr.bf16.mxu0 %v3962
      %4020 = vmatpush1.bf16.msra.mxu0 %v3961
      %4021 = vmatprep.subr.bf16.mxu0 %v3964
      %4022 = vmatpush1.bf16.msra.mxu0 %v3963
      %4023 = vmatprep.subr.bf16.mxu0 %v3966
      %4024 = vmatpush1.bf16.msra.mxu0 %v3965
      %4025 = vmatprep.subr.bf16.mxu0 %v3968
      %4026 = vmatpush1.bf16.msra.mxu0 %v3967
      %4027 = vmatprep.subr.bf16.mxu0 0
      %4028 = vmatpush1.bf16.msra.mxu0 0
      %4029 = vmatprep.subr.bf16.mxu0 0
      %4030 = vmatpush1.bf16.msra.mxu0 0
      %4031 = vmatprep.subr.bf16.mxu0 0
      %4032 = vmatpush1.bf16.msra.mxu0 0
      %4033 = vmatprep.mubr.bf16.mxu0 %v3996
      %4034 = vmatmul.mubr.bf16.gmra.mrb[0].mxu0 %v3859
      %v4035 = vpop.f32.mrb[0].mxu0
      %v4036 = vadd.f32 0.0, %v4035
      %v4037 = vpop.f32.mrb[0].mxu0
      %v4038 = vadd.f32 0.0, %v4037
      %v4039 = vpop.f32.mrb[0].mxu0
      %v4040 = vadd.f32 0.0, %v4039
      %v4041 = vpop.f32.mrb[0].mxu0
      %v4042 = vadd.f32 0.0, %v4041
      %4043 = vmatprep.mubr.bf16.mxu0 %v3999
      %4044 = vmatmul.mubr.bf16.gmra.mrb[0].mxu0 %v3858
      %v4045 = vpop.f32.mrb[0].mxu0
      %v4046 = vadd.f32 0.0, %v4045
      %v4047 = vpop.f32.mrb[0].mxu0
      %v4048 = vadd.f32 0.0, %v4047
      %v4049 = vpop.f32.mrb[0].mxu0
      %v4050 = vpop.f32.mrb[0].mxu0
      %4051 = vdwg.mxu0
      %v4052 = vadd.f32 %v3810, %v4036
      %v4053 = vadd.f32 %v3812, %v4038
      %v4054 = vadd.f32 %v3814, %v4040
      %v4055 = vadd.f32 %v3816, %v4042
      %v4056 = vadd.f32 %v3820, %v4046
      %v4057 = vadd.f32 %v3822, %v4048
      %s4058 = scalar_lea.vmem %s945, 624
      %v4059 = vld [vmem:[%s4058] sm:$0xff]
      %v4060 = vld [vmem:[%s4058 + $0x8] sm:$0xff]
      %v4061 = vld [vmem:[%s4058 + $0x10] sm:$0xff]
      %v4062 = vld [vmem:[%s4058 + $0x18] sm:$0xff]
      %v4063 = vld [vmem:[%s4058 + $0x20] sm:$0xff]
      %v4064 = vld [vmem:[%s4058 + $0x28] sm:$0xff]
      %v4065 = vld [vmem:[%s4058 + $0x30] sm:$0xff]
      %v4066 = vld [vmem:[%s4058 + $0x38] sm:$0xff]
      %v4067 = vld [vmem:[%s4058 + $0x40] sm:$0xff]
      %v4068 = vld [vmem:[%s4058 + $0x48] sm:$0xff]
      %v4069 = vld [vmem:[%s4058 + $0x50] sm:$0xff]
      %v4070 = vld [vmem:[%s4058 + $0x58] sm:$0xff]
      %v4071 = vld [vmem:[%s4058 + $0x60] sm:$0xff]
      %v4072 = vld [vmem:[%s4058 + $0x68] sm:$0xff]
      %v4073 = vld [vmem:[%s4058 + $0x70] sm:$0xff]
      %v4074 = vld [vmem:[%s4058 + $0x78] sm:$0xff]
      %v4075 = vld [vmem:[%s4058 + $0x80] sm:$0xff]
      %v4076 = vld [vmem:[%s4058 + $0x88] sm:$0xff]
      %v4077 = vld [vmem:[%s4058 + $0x90] sm:$0xff]
      %v4078 = vld [vmem:[%s4058 + $0x98] sm:$0xff]
      %v4079 = vld [vmem:[%s4058 + $0xa0] sm:$0xff]
      %v4080 = vld [vmem:[%s4058 + $0xa8] sm:$0xff]
      %v4081 = vld [vmem:[%s4058 + $0xb0] sm:$0xff]
      %v4082 = vld [vmem:[%s4058 + $0xb8] sm:$0xff]
      %v4083 = vld [vmem:[%s4058 + $0xc0] sm:$0xff]
      %v4084 = vld [vmem:[%s4058 + $0xc8] sm:$0xff]
      %v4085 = vrot.slane %v3422, 1
      %v4086 = vrot.slane %v3424, 2
      %v4087 = vor.u32 %v4085, %v4086
      %v4088 = vrot.slane %v3445, 1
      %v4089 = vrot.slane %v3429, 2
      %v4090 = vor.u32 %v4088, %v4089
      %v4091 = vsel %vm1498, %v4087, %v4090
      %v4092 = vrot.slane %v3434, 1
      %v4093 = vrot.slane %v3436, 2
      %v4094 = vor.u32 %v4092, %v4093
      %v4095 = vrot.slane %v3448, 1
      %v4096 = vrot.slane %v3441, 2
      %v4097 = vor.u32 %v4095, %v4096
      %v4098 = vsel %vm1498, %v4094, %v4097
      %v4127 = vunpack.c.l.b16 %v4059
      %v4128 = vunpack.c.h.b16 %v4059
      %v4129 = vunpack.c.l.b16 %v4060
      %v4130 = vunpack.c.h.b16 %v4060
      %v4131 = vunpack.c.l.b16 %v4061
      %v4132 = vunpack.c.h.b16 %v4061
      %v4133 = vunpack.c.l.b16 %v4062
      %v4134 = vunpack.c.h.b16 %v4062
      %v4135 = vunpack.c.l.b16 %v4063
      %v4136 = vunpack.c.h.b16 %v4063
      %v4137 = vunpack.c.l.b16 %v4064
      %v4138 = vunpack.c.h.b16 %v4064
      %v4139 = vunpack.c.l.b16 %v4065
      %v4140 = vunpack.c.h.b16 %v4065
      %v4141 = vunpack.c.l.b16 %v4066
      %v4142 = vunpack.c.h.b16 %v4066
      %v4143 = vunpack.c.l.b16 %v4067
      %v4144 = vunpack.c.h.b16 %v4067
      %v4145 = vunpack.c.l.b16 %v4068
      %v4146 = vunpack.c.h.b16 %v4068
      %v4147 = vunpack.c.l.b16 %v4069
      %v4148 = vunpack.c.h.b16 %v4069
      %v4149 = vunpack.c.l.b16 %v4070
      %v4150 = vunpack.c.h.b16 %v4070
      %v4151 = vunpack.c.l.b16 %v4071
      %v4152 = vunpack.c.h.b16 %v4071
      %v4153 = vunpack.c.l.b16 %v4072
      %v4154 = vunpack.c.h.b16 %v4072
      %v4155 = vunpack.c.l.b16 %v4073
      %v4156 = vunpack.c.h.b16 %v4073
      %v4157 = vunpack.c.l.b16 %v4074
      %v4158 = vunpack.c.h.b16 %v4074
      %v4159 = vunpack.c.l.b16 %v4075
      %v4160 = vunpack.c.h.b16 %v4075
      %v4161 = vunpack.c.l.b16 %v4076
      %v4162 = vunpack.c.h.b16 %v4076
      %v4163 = vunpack.c.l.b16 %v4077
      %v4164 = vunpack.c.h.b16 %v4077
      %v4165 = vunpack.c.l.b16 %v4078
      %v4166 = vunpack.c.h.b16 %v4078
      %v4167 = vunpack.c.l.b16 %v4079
      %v4168 = vunpack.c.h.b16 %v4079
      %v4169 = vunpack.c.l.b16 %v4080
      %v4170 = vunpack.c.h.b16 %v4080
      %v4171 = vunpack.c.l.b16 %v4081
      %v4172 = vunpack.c.h.b16 %v4081
      %v4173 = vunpack.c.l.b16 %v4082
      %v4174 = vunpack.c.h.b16 %v4082
      %v4175 = vunpack.c.l.b16 %v4083
      %v4176 = vunpack.c.h.b16 %v4083
      %v4177 = vunpack.c.l.b16 %v4084
      %v4178 = vunpack.c.h.b16 %v4084
      %v4179 = vpack.c.b16 %v4129, %v4127
      %v4180 = vpack.c.b16 %v4130, %v4128
      %v4181 = vpack.c.b16 %v4133, %v4131
      %v4182 = vpack.c.b16 %v4134, %v4132
      %v4183 = vpack.c.b16 %v4137, %v4135
      %v4184 = vpack.c.b16 %v4138, %v4136
      %v4185 = vpack.c.b16 %v4141, %v4139
      %v4186 = vpack.c.b16 %v4142, %v4140
      %v4187 = vpack.c.b16 %v4145, %v4143
      %v4188 = vpack.c.b16 %v4146, %v4144
      %v4189 = vpack.c.b16 %v4149, %v4147
      %v4190 = vpack.c.b16 %v4150, %v4148
      %v4191 = vpack.c.b16 %v4153, %v4151
      %v4192 = vpack.c.b16 %v4154, %v4152
      %v4193 = vpack.c.b16 %v4157, %v4155
      %v4194 = vpack.c.b16 %v4158, %v4156
      %v4195 = vpack.c.b16 %v4161, %v4159
      %v4196 = vpack.c.b16 %v4162, %v4160
      %v4197 = vpack.c.b16 %v4165, %v4163
      %v4198 = vpack.c.b16 %v4166, %v4164
      %v4199 = vpack.c.b16 %v4169, %v4167
      %v4200 = vpack.c.b16 %v4170, %v4168
      %v4201 = vpack.c.b16 %v4173, %v4171
      %v4202 = vpack.c.b16 %v4174, %v4172
      %v4203 = vpack.c.b16 %v4177, %v4175
      %v4204 = vpack.c.b16 %v4178, %v4176
      %v4232 = vsel %vm3583, %v4098, 0
      %v4235 = vsel %vm3583, %v4097, 0
      %4237 = vmatprep.subr.bf16.mxu0 %v4180
      %4238 = vmatpush1.bf16.msra.mxu0 %v4179
      %4239 = vmatprep.subr.bf16.mxu0 %v4182
      %4240 = vmatpush1.bf16.msra.mxu0 %v4181
      %4241 = vmatprep.subr.bf16.mxu0 %v4184
      %4242 = vmatpush1.bf16.msra.mxu0 %v4183
      %4243 = vmatprep.subr.bf16.mxu0 %v4186
      %4244 = vmatpush1.bf16.msra.mxu0 %v4185
      %4245 = vmatprep.subr.bf16.mxu0 %v4188
      %4246 = vmatpush1.bf16.msra.mxu0 %v4187
      %4247 = vmatprep.subr.bf16.mxu0 %v4190
      %4248 = vmatpush1.bf16.msra.mxu0 %v4189
      %4249 = vmatprep.subr.bf16.mxu0 %v4192
      %4250 = vmatpush1.bf16.msra.mxu0 %v4191
      %4251 = vmatprep.subr.bf16.mxu0 %v4194
      %4252 = vmatpush1.bf16.msra.mxu0 %v4193
      %4253 = vmatprep.subr.bf16.mxu0 %v4196
      %4254 = vmatpush1.bf16.msra.mxu0 %v4195
      %4255 = vmatprep.subr.bf16.mxu0 %v4198
      %4256 = vmatpush1.bf16.msra.mxu0 %v4197
      %4257 = vmatprep.subr.bf16.mxu0 %v4200
      %4258 = vmatpush1.bf16.msra.mxu0 %v4199
      %4259 = vmatprep.subr.bf16.mxu0 %v4202
      %4260 = vmatpush1.bf16.msra.mxu0 %v4201
      %4261 = vmatprep.subr.bf16.mxu0 %v4204
      %4262 = vmatpush1.bf16.msra.mxu0 %v4203
      %4263 = vmatprep.subr.bf16.mxu0 0
      %4264 = vmatpush1.bf16.msra.mxu0 0
      %4265 = vmatprep.subr.bf16.mxu0 0
      %4266 = vmatpush1.bf16.msra.mxu0 0
      %4267 = vmatprep.subr.bf16.mxu0 0
      %4268 = vmatpush1.bf16.msra.mxu0 0
      %4269 = vmatprep.mubr.bf16.mxu0 %v4232
      %4270 = vmatmul.mubr.bf16.gmra.mrb[0].mxu0 %v4091
      %v4271 = vpop.f32.mrb[0].mxu0
      %v4272 = vadd.f32 0.0, %v4271
      %v4273 = vpop.f32.mrb[0].mxu0
      %v4274 = vadd.f32 0.0, %v4273
      %v4275 = vpop.f32.mrb[0].mxu0
      %v4276 = vadd.f32 0.0, %v4275
      %v4277 = vpop.f32.mrb[0].mxu0
      %v4278 = vadd.f32 0.0, %v4277
      %4279 = vmatprep.mubr.bf16.mxu0 %v4235
      %4280 = vmatmul.mubr.bf16.gmra.mrb[0].mxu0 %v4090
      %v4281 = vpop.f32.mrb[0].mxu0
      %v4282 = vadd.f32 0.0, %v4281
      %v4283 = vpop.f32.mrb[0].mxu0
      %v4284 = vadd.f32 0.0, %v4283
      %v4285 = vpop.f32.mrb[0].mxu0
      %v4286 = vpop.f32.mrb[0].mxu0
      %4287 = vdwg.mxu0
      %v4288 = vadd.f32 %v4052, %v4272
      %v4289 = vadd.f32 %v4053, %v4274
      %v4290 = vadd.f32 %v4054, %v4276
      %v4291 = vadd.f32 %v4055, %v4278
      %v4292 = vadd.f32 %v4056, %v4282
      %v4293 = vadd.f32 %v4057, %v4284
      %s4294 = scalar_lea.vmem %s945, 832
      %v4295 = vld [vmem:[%s4294] sm:$0xff]
      %v4296 = vld [vmem:[%s4294 + $0x8] sm:$0xff]
      %v4297 = vld [vmem:[%s4294 + $0x10] sm:$0xff]
      %v4298 = vld [vmem:[%s4294 + $0x18] sm:$0xff]
      %v4299 = vld [vmem:[%s4294 + $0x20] sm:$0xff]
      %v4300 = vld [vmem:[%s4294 + $0x28] sm:$0xff]
      %v4301 = vld [vmem:[%s4294 + $0x30] sm:$0xff]
      %v4302 = vld [vmem:[%s4294 + $0x38] sm:$0xff]
      %v4303 = vld [vmem:[%s4294 + $0x40] sm:$0xff]
      %v4304 = vld [vmem:[%s4294 + $0x48] sm:$0xff]
      %v4305 = vld [vmem:[%s4294 + $0x50] sm:$0xff]
      %v4306 = vld [vmem:[%s4294 + $0x58] sm:$0xff]
      %v4307 = vld [vmem:[%s4294 + $0x60] sm:$0xff]
      %v4308 = vld [vmem:[%s4294 + $0x68] sm:$0xff]
      %v4309 = vld [vmem:[%s4294 + $0x70] sm:$0xff]
      %v4310 = vld [vmem:[%s4294 + $0x78] sm:$0xff]
      %v4311 = vld [vmem:[%s4294 + $0x80] sm:$0xff]
      %v4312 = vld [vmem:[%s4294 + $0x88] sm:$0xff]
      %v4313 = vld [vmem:[%s4294 + $0x90] sm:$0xff]
      %v4314 = vld [vmem:[%s4294 + $0x98] sm:$0xff]
      %v4315 = vld [vmem:[%s4294 + $0xa0] sm:$0xff]
      %v4316 = vld [vmem:[%s4294 + $0xa8] sm:$0xff]
      %v4317 = vld [vmem:[%s4294 + $0xb0] sm:$0xff]
      %v4318 = vld [vmem:[%s4294 + $0xb8] sm:$0xff]
      %v4319 = vld [vmem:[%s4294 + $0xc0] sm:$0xff]
      %v4320 = vld [vmem:[%s4294 + $0xc8] sm:$0xff]
      %v4321 = vrot.slane %v3364, 2
      %v4322 = vrot.slane %v3366, 2
      %v4323 = vsel %vm1664, %v4321, %v4322
      %v4324 = vrot.slane %v3365, 2
      %v4325 = vrot.slane %v3367, 2
      %v4326 = vsel %vm1664, %v4324, %v4325
      %v4355 = vunpack.c.l.b16 %v4295
      %v4356 = vunpack.c.h.b16 %v4295
      %v4357 = vunpack.c.l.b16 %v4296
      %v4358 = vunpack.c.h.b16 %v4296
      %v4359 = vunpack.c.l.b16 %v4297
      %v4360 = vunpack.c.h.b16 %v4297
      %v4361 = vunpack.c.l.b16 %v4298
      %v4362 = vunpack.c.h.b16 %v4298
      %v4363 = vunpack.c.l.b16 %v4299
      %v4364 = vunpack.c.h.b16 %v4299
      %v4365 = vunpack.c.l.b16 %v4300
      %v4366 = vunpack.c.h.b16 %v4300
      %v4367 = vunpack.c.l.b16 %v4301
      %v4368 = vunpack.c.h.b16 %v4301
      %v4369 = vunpack.c.l.b16 %v4302
      %v4370 = vunpack.c.h.b16 %v4302
      %v4371 = vunpack.c.l.b16 %v4303
      %v4372 = vunpack.c.h.b16 %v4303
      %v4373 = vunpack.c.l.b16 %v4304
      %v4374 = vunpack.c.h.b16 %v4304
      %v4375 = vunpack.c.l.b16 %v4305
      %v4376 = vunpack.c.h.b16 %v4305
      %v4377 = vunpack.c.l.b16 %v4306
      %v4378 = vunpack.c.h.b16 %v4306
      %v4379 = vunpack.c.l.b16 %v4307
      %v4380 = vunpack.c.h.b16 %v4307
      %v4381 = vunpack.c.l.b16 %v4308
      %v4382 = vunpack.c.h.b16 %v4308
      %v4383 = vunpack.c.l.b16 %v4309
      %v4384 = vunpack.c.h.b16 %v4309
      %v4385 = vunpack.c.l.b16 %v4310
      %v4386 = vunpack.c.h.b16 %v4310
      %v4387 = vunpack.c.l.b16 %v4311
      %v4388 = vunpack.c.h.b16 %v4311
      %v4389 = vunpack.c.l.b16 %v4312
      %v4390 = vunpack.c.h.b16 %v4312
      %v4391 = vunpack.c.l.b16 %v4313
      %v4392 = vunpack.c.h.b16 %v4313
      %v4393 = vunpack.c.l.b16 %v4314
      %v4394 = vunpack.c.h.b16 %v4314
      %v4395 = vunpack.c.l.b16 %v4315
      %v4396 = vunpack.c.h.b16 %v4315
      %v4397 = vunpack.c.l.b16 %v4316
      %v4398 = vunpack.c.h.b16 %v4316
      %v4399 = vunpack.c.l.b16 %v4317
      %v4400 = vunpack.c.h.b16 %v4317
      %v4401 = vunpack.c.l.b16 %v4318
      %v4402 = vunpack.c.h.b16 %v4318
      %v4403 = vunpack.c.l.b16 %v4319
      %v4404 = vunpack.c.h.b16 %v4319
      %v4405 = vunpack.c.l.b16 %v4320
      %v4406 = vunpack.c.h.b16 %v4320
      %v4407 = vpack.c.b16 %v4357, %v4355
      %v4408 = vpack.c.b16 %v4358, %v4356
      %v4409 = vpack.c.b16 %v4361, %v4359
      %v4410 = vpack.c.b16 %v4362, %v4360
      %v4411 = vpack.c.b16 %v4365, %v4363
      %v4412 = vpack.c.b16 %v4366, %v4364
      %v4413 = vpack.c.b16 %v4369, %v4367
      %v4414 = vpack.c.b16 %v4370, %v4368
      %v4415 = vpack.c.b16 %v4373, %v4371
      %v4416 = vpack.c.b16 %v4374, %v4372
      %v4417 = vpack.c.b16 %v4377, %v4375
      %v4418 = vpack.c.b16 %v4378, %v4376
      %v4419 = vpack.c.b16 %v4381, %v4379
      %v4420 = vpack.c.b16 %v4382, %v4380
      %v4421 = vpack.c.b16 %v4385, %v4383
      %v4422 = vpack.c.b16 %v4386, %v4384
      %v4423 = vpack.c.b16 %v4389, %v4387
      %v4424 = vpack.c.b16 %v4390, %v4388
      %v4425 = vpack.c.b16 %v4393, %v4391
      %v4426 = vpack.c.b16 %v4394, %v4392
      %v4427 = vpack.c.b16 %v4397, %v4395
      %v4428 = vpack.c.b16 %v4398, %v4396
      %v4429 = vpack.c.b16 %v4401, %v4399
      %v4430 = vpack.c.b16 %v4402, %v4400
      %v4431 = vpack.c.b16 %v4405, %v4403
      %v4432 = vpack.c.b16 %v4406, %v4404
      %v4460 = vsel %vm3583, %v4326, 0
      %v4463 = vsel %vm3583, %v4325, 0
      %4465 = vmatprep.subr.bf16.mxu0 %v4408
      %4466 = vmatpush1.bf16.msra.mxu0 %v4407
      %4467 = vmatprep.subr.bf16.mxu0 %v4410
      %4468 = vmatpush1.bf16.msra.mxu0 %v4409
      %4469 = vmatprep.subr.bf16.mxu0 %v4412
      %4470 = vmatpush1.bf16.msra.mxu0 %v4411
      %4471 = vmatprep.subr.bf16.mxu0 %v4414
      %4472 = vmatpush1.bf16.msra.mxu0 %v4413
      %4473 = vmatprep.subr.bf16.mxu0 %v4416
      %4474 = vmatpush1.bf16.msra.mxu0 %v4415
      %4475 = vmatprep.subr.bf16.mxu0 %v4418
      %4476 = vmatpush1.bf16.msra.mxu0 %v4417
      %4477 = vmatprep.subr.bf16.mxu0 %v4420
      %4478 = vmatpush1.bf16.msra.mxu0 %v4419
      %4479 = vmatprep.subr.bf16.mxu0 %v4422
      %4480 = vmatpush1.bf16.msra.mxu0 %v4421
      %4481 = vmatprep.subr.bf16.mxu0 %v4424
      %4482 = vmatpush1.bf16.msra.mxu0 %v4423
      %4483 = vmatprep.subr.bf16.mxu0 %v4426
      %4484 = vmatpush1.bf16.msra.mxu0 %v4425
      %4485 = vmatprep.subr.bf16.mxu0 %v4428
      %4486 = vmatpush1.bf16.msra.mxu0 %v4427
      %4487 = vmatprep.subr.bf16.mxu0 %v4430
      %4488 = vmatpush1.bf16.msra.mxu0 %v4429
      %4489 = vmatprep.subr.bf16.mxu0 %v4432
      %4490 = vmatpush1.bf16.msra.mxu0 %v4431
      %4491 = vmatprep.subr.bf16.mxu0 0
      %4492 = vmatpush1.bf16.msra.mxu0 0
      %4493 = vmatprep.subr.bf16.mxu0 0
      %4494 = vmatpush1.bf16.msra.mxu0 0
      %4495 = vmatprep.subr.bf16.mxu0 0
      %4496 = vmatpush1.bf16.msra.mxu0 0
      %4497 = vmatprep.mubr.bf16.mxu0 %v4460
      %4498 = vmatmul.mubr.bf16.gmra.mrb[0].mxu0 %v4323
      %v4499 = vpop.f32.mrb[0].mxu0
      %v4500 = vadd.f32 0.0, %v4499
      %v4501 = vpop.f32.mrb[0].mxu0
      %v4502 = vadd.f32 0.0, %v4501
      %v4503 = vpop.f32.mrb[0].mxu0
      %v4504 = vadd.f32 0.0, %v4503
      %v4505 = vpop.f32.mrb[0].mxu0
      %v4506 = vadd.f32 0.0, %v4505
      %4507 = vmatprep.mubr.bf16.mxu0 %v4463
      %4508 = vmatmul.mubr.bf16.gmra.mrb[0].mxu0 %v4322
      %v4509 = vpop.f32.mrb[0].mxu0
      %v4510 = vadd.f32 0.0, %v4509
      %v4511 = vpop.f32.mrb[0].mxu0
      %v4512 = vadd.f32 0.0, %v4511
      %v4513 = vpop.f32.mrb[0].mxu0
      %v4514 = vpop.f32.mrb[0].mxu0
      %4515 = vdwg.mxu0
      %v4516 = vadd.f32 %v4288, %v4500
      %v4517 = vadd.f32 %v4289, %v4502
      %v4518 = vadd.f32 %v4290, %v4504
      %v4519 = vadd.f32 %v4291, %v4506
      %v4520 = vadd.f32 %v4292, %v4510
      %v4521 = vadd.f32 %v4293, %v4512
      %v4522 = vld [vmem:[%s949] sm:$0x3]
      %v4524 = vlaneseq
      %v4525 = vshrl.u32 %v4524, 7
      %v4526 = vsub.s32 0, %v4525
      %v4527 = vrot.slane %v4522, %v4526
      %v4528 = vlaneseq
      %v4529 = vshrl.u32 %v4528, 7
      %v4530 = vsub.s32 1, %v4529
      %v4531 = vrot.slane %v4522, %v4530
      %v4534 = vadd.f32 %v4516, %v4527
      %v4535 = vadd.f32 %v4517, %v4531
      %v4536 = vadd.f32 %v4518, %v4527
      %v4537 = vadd.f32 %v4519, %v4531
      %v4538 = vadd.f32 %v4520, %v4527
      %v4539 = vadd.f32 %v4521, %v4531
      %vm4540 = vcmp.gt.f32.partialorder %v4534, 0.0
      %vm4541 = vcmp.gt.f32.partialorder %v4535, 0.0
      %vm4542 = vcmp.gt.f32.partialorder %v4536, 0.0
      %vm4543 = vcmp.gt.f32.partialorder %v4537, 0.0
      %vm4544 = vcmp.gt.f32.partialorder %v4538, 0.0
      %vm4545 = vcmp.gt.f32.partialorder %v4539, 0.0
      %v4546 = vmin.f32 %v4534, 0.0
      %v4547 = vmin.f32 %v4535, 0.0
      %v4548 = vmin.f32 %v4536, 0.0
      %v4549 = vmin.f32 %v4537, 0.0
      %v4550 = vmin.f32 %v4538, 0.0
      %v4551 = vmin.f32 %v4539, 0.0
      %v4552 = vmul.f32 %v4546, 1.442695
      %v4553 = vpow.pop %v4552
      %v4554 = vmul.f32 %v4547, 1.442695
      %v4555 = vpow.pop %v4554
      %v4556 = vmul.f32 %v4548, 1.442695
      %v4557 = vpow.pop %v4556
      %v4558 = vmul.f32 %v4549, 1.442695
      %v4559 = vpow.pop %v4558
      %v4560 = vmul.f32 %v4550, 1.442695
      %v4561 = vpow.pop %v4560
      %v4562 = vmul.f32 %v4551, 1.442695
      %v4563 = vpow.pop %v4562
      %v4564 = vsub.f32 %v4553, 1.0
      %v4565 = vsub.f32 %v4555, 1.0
      %v4566 = vsub.f32 %v4557, 1.0
      %v4567 = vsub.f32 %v4559, 1.0
      %v4568 = vsub.f32 %v4561, 1.0
      %v4569 = vsub.f32 %v4563, 1.0
      %v4570 = vsel %vm4540, %v4534, %v4564
      %v4571 = vsel %vm4541, %v4535, %v4565
      %v4572 = vsel %vm4542, %v4536, %v4566
      %v4573 = vsel %vm4543, %v4537, %v4567
      %v4574 = vsel %vm4544, %v4538, %v4568
      %v4575 = vsel %vm4545, %v4539, %v4569
      %v4576 = vpack.c.bf16 %v4572, %v4570
      %v4577 = vpack.c.bf16 %v4573, %v4571
      %v4578 = vpack.c.bf16 %v4574, %v4574
      %v4579 = vpack.c.bf16 %v4575, %v4575
      %v4580 = vld [vmem:[%s954] sm:$0xf]
      %v4581 = vld [vmem:[%s954 + $0x4] sm:$0xf]
      %v4582 = vld [vmem:[%s954 + $0x8] sm:$0xf]
      %v4583 = vld [vmem:[%s954 + $0xc] sm:$0xf]
      %v4584 = vld [vmem:[%s954 + $0x10] sm:$0xf]
      %v4585 = vld [vmem:[%s954 + $0x14] sm:$0xf]
      %v4586 = vld [vmem:[%s954 + $0x18] sm:$0xf]
      %v4587 = vld [vmem:[%s954 + $0x1c] sm:$0xf]
      %v4588 = vld [vmem:[%s954 + $0x20] sm:$0xf]
      %v4589 = vld [vmem:[%s954 + $0x24] sm:$0xf]
      %v4590 = vld [vmem:[%s954 + $0x28] sm:$0xf]
      %v4591 = vld [vmem:[%s954 + $0x2c] sm:$0xf]
      %v4592 = vld [vmem:[%s954 + $0x30] sm:$0xf]
      %v4593 = vld [vmem:[%s954 + $0x34] sm:$0xf]
      %v4594 = vld [vmem:[%s954 + $0x38] sm:$0xf]
      %v4595 = vld [vmem:[%s954 + $0x3c] sm:$0xf]
      %v4596 = vld [vmem:[%s954 + $0x40] sm:$0xf]
      %v4597 = vld [vmem:[%s954 + $0x44] sm:$0xf]
      %v4598 = vld [vmem:[%s954 + $0x48] sm:$0xf]
      %v4599 = vld [vmem:[%s954 + $0x4c] sm:$0xf]
      %v4600 = vld [vmem:[%s954 + $0x50] sm:$0xf]
      %v4601 = vld [vmem:[%s954 + $0x54] sm:$0xf]
      %s4602 = scalar_lea.vmem %s954, 88
      %v4603 = vld [vmem:[%s4602] sm:$0xf]
      %v4604 = vld [vmem:[%s4602 + $0x4] sm:$0xf]
      %v4605 = vld [vmem:[%s4602 + $0x8] sm:$0xf]
      %v4606 = vld [vmem:[%s4602 + $0xc] sm:$0xf]
      %v4607 = vld [vmem:[%s4602 + $0x10] sm:$0xf]
      %v4608 = vld [vmem:[%s4602 + $0x14] sm:$0xf]
      %v4609 = vld [vmem:[%s4602 + $0x18] sm:$0xf]
      %v4610 = vld [vmem:[%s4602 + $0x1c] sm:$0xf]
      %v4611 = vld [vmem:[%s4602 + $0x20] sm:$0xf]
      %v4612 = vld [vmem:[%s4602 + $0x24] sm:$0xf]
      %v4613 = vld [vmem:[%s4602 + $0x28] sm:$0xf]
      %v4614 = vld [vmem:[%s4602 + $0x2c] sm:$0xf]
      %v4615 = vld [vmem:[%s4602 + $0x30] sm:$0xf]
      %v4616 = vld [vmem:[%s4602 + $0x34] sm:$0xf]
      %v4617 = vld [vmem:[%s4602 + $0x38] sm:$0xf]
      %v4618 = vld [vmem:[%s4602 + $0x3c] sm:$0xf]
      %v4619 = vld [vmem:[%s4602 + $0x40] sm:$0xf]
      %v4620 = vld [vmem:[%s4602 + $0x44] sm:$0xf]
      %v4621 = vld [vmem:[%s4602 + $0x48] sm:$0xf]
      %v4622 = vld [vmem:[%s4602 + $0x4c] sm:$0xf]
      %v4623 = vld [vmem:[%s4602 + $0x50] sm:$0xf]
      %v4624 = vld [vmem:[%s4602 + $0x54] sm:$0xf]
      %v4626 = vshrl.u32 %v4576, 16
      %v4628 = vshll.u32 %v4576, 16
      %v4630 = vrot.slane %v4628, 1
      %v4631 = vor.u32 %v4626, %v4630
      %v4633 = vshll.u32 %v4578, 16
      %v4635 = vrot.slane %v4633, 1
      %v4636 = vsel %vm1048, %v4631, %v4635
      %v4638 = vshrl.u32 %v4577, 16
      %v4640 = vshll.u32 %v4577, 16
      %v4642 = vrot.slane %v4640, 1
      %v4643 = vor.u32 %v4638, %v4642
      %v4645 = vshll.u32 %v4579, 16
      %v4647 = vrot.slane %v4645, 1
      %v4648 = vsel %vm1048, %v4643, %v4647
      %v4649 = vshrl.u32 %v4578, 16
      %v4651 = vor.u32 %v4649, %v4635
      %v4652 = vshrl.u32 %v4579, 16
      %v4654 = vor.u32 %v4652, %v4647
      %v4679 = vunpack.c.l.b16 %v4603
      %v4680 = vunpack.c.l.b16 %v4604
      %v4681 = vunpack.c.l.b16 %v4605
      %v4682 = vunpack.c.l.b16 %v4606
      %v4683 = vunpack.c.l.b16 %v4607
      %v4684 = vunpack.c.l.b16 %v4608
      %v4685 = vunpack.c.l.b16 %v4609
      %v4686 = vunpack.c.l.b16 %v4610
      %v4687 = vunpack.c.l.b16 %v4611
      %v4688 = vunpack.c.l.b16 %v4612
      %v4689 = vunpack.c.l.b16 %v4613
      %v4690 = vunpack.c.l.b16 %v4614
      %v4691 = vunpack.c.l.b16 %v4615
      %v4692 = vunpack.c.l.b16 %v4616
      %v4693 = vunpack.c.l.b16 %v4617
      %v4694 = vunpack.c.l.b16 %v4618
      %v4695 = vunpack.c.l.b16 %v4619
      %v4696 = vunpack.c.l.b16 %v4620
      %v4697 = vunpack.c.l.b16 %v4621
      %v4698 = vunpack.c.l.b16 %v4622
      %v4699 = vunpack.c.l.b16 %v4623
      %v4700 = vunpack.c.l.b16 %v4624
      %v4701 = vpack.c.b16 %v4680, %v4679
      %v4702 = vpack.c.b16 %v4682, %v4681
      %v4703 = vpack.c.b16 %v4684, %v4683
      %v4704 = vpack.c.b16 %v4686, %v4685
      %v4705 = vpack.c.b16 %v4688, %v4687
      %v4706 = vpack.c.b16 %v4690, %v4689
      %v4707 = vpack.c.b16 %v4692, %v4691
      %v4708 = vpack.c.b16 %v4694, %v4693
      %v4709 = vpack.c.b16 %v4696, %v4695
      %v4710 = vpack.c.b16 %v4698, %v4697
      %v4711 = vpack.c.b16 %v4700, %v4699
      %vm4723 = vcmask 392192
      %v4725 = vsel %vm4723, %v4648, 0
      %v4728 = vsel %vm4723, %v4654, 0
      %4730 = vmatprep.subr.bf16.mxu0 0
      %4731 = vmatpush1.bf16.msra.mxu0 %v4701
      %4732 = vmatprep.subr.bf16.mxu0 0
      %4733 = vmatpush1.bf16.msra.mxu0 %v4702
      %4734 = vmatprep.subr.bf16.mxu0 0
      %4735 = vmatpush1.bf16.msra.mxu0 %v4703
      %4736 = vmatprep.subr.bf16.mxu0 0
      %4737 = vmatpush1.bf16.msra.mxu0 %v4704
      %4738 = vmatprep.subr.bf16.mxu0 0
      %4739 = vmatpush1.bf16.msra.mxu0 %v4705
      %4740 = vmatprep.subr.bf16.mxu0 0
      %4741 = vmatpush1.bf16.msra.mxu0 %v4706
      %4742 = vmatprep.subr.bf16.mxu0 0
      %4743 = vmatpush1.bf16.msra.mxu0 %v4707
      %4744 = vmatprep.subr.bf16.mxu0 0
      %4745 = vmatpush1.bf16.msra.mxu0 %v4708
      %4746 = vmatprep.subr.bf16.mxu0 0
      %4747 = vmatpush1.bf16.msra.mxu0 %v4709
      %4748 = vmatprep.subr.bf16.mxu0 0
      %4749 = vmatpush1.bf16.msra.mxu0 %v4710
      %4750 = vmatprep.subr.bf16.mxu0 0
      %4751 = vmatpush1.bf16.msra.mxu0 %v4711
      %4752 = vmatprep.subr.bf16.mxu0 0
      %4753 = vmatpush1.bf16.msra.mxu0 0
      %4754 = vmatprep.subr.bf16.mxu0 0
      %4755 = vmatpush1.bf16.msra.mxu0 0
      %4756 = vmatprep.subr.bf16.mxu0 0
      %4757 = vmatpush1.bf16.msra.mxu0 0
      %4758 = vmatprep.subr.bf16.mxu0 0
      %4759 = vmatpush1.bf16.msra.mxu0 0
      %4760 = vmatprep.subr.bf16.mxu0 0
      %4761 = vmatpush1.bf16.msra.mxu0 0
      %4762 = vmatprep.mubr.bf16.mxu0 %v4725
      %4763 = vmatmul.mubr.bf16.gmra.mrb[0].mxu0 %v4636
      %v4764 = vpop.f32.mrb[0].mxu0
      %v4765 = vadd.f32 0.0, %v4764
      %v4766 = vpop.f32.mrb[0].mxu0
      %v4767 = vpop.f32.mrb[0].mxu0
      %v4768 = vadd.f32 0.0, %v4767
      %v4769 = vpop.f32.mrb[0].mxu0
      %4770 = vmatprep.mubr.bf16.mxu0 %v4728
      %4771 = vmatmul.mubr.bf16.gmra.mrb[0].mxu0 %v4651
      %v4772 = vpop.f32.mrb[0].mxu0
      %v4773 = vadd.f32 0.0, %v4772
      %v4774 = vpop.f32.mrb[0].mxu0
      %v4775 = vpop.f32.mrb[0].mxu0
      %v4776 = vpop.f32.mrb[0].mxu0
      %4777 = vdwg.mxu0
      %v4800 = vunpack.c.l.b16 %v4580
      %v4801 = vunpack.c.l.b16 %v4581
      %v4802 = vunpack.c.l.b16 %v4582
      %v4803 = vunpack.c.l.b16 %v4583
      %v4804 = vunpack.c.l.b16 %v4584
      %v4805 = vunpack.c.l.b16 %v4585
      %v4806 = vunpack.c.l.b16 %v4586
      %v4807 = vunpack.c.l.b16 %v4587
      %v4808 = vunpack.c.l.b16 %v4588
      %v4809 = vunpack.c.l.b16 %v4589
      %v4810 = vunpack.c.l.b16 %v4590
      %v4811 = vunpack.c.l.b16 %v4591
      %v4812 = vunpack.c.l.b16 %v4592
      %v4813 = vunpack.c.l.b16 %v4593
      %v4814 = vunpack.c.l.b16 %v4594
      %v4815 = vunpack.c.l.b16 %v4595
      %v4816 = vunpack.c.l.b16 %v4596
      %v4817 = vunpack.c.l.b16 %v4597
      %v4818 = vunpack.c.l.b16 %v4598
      %v4819 = vunpack.c.l.b16 %v4599
      %v4820 = vunpack.c.l.b16 %v4600
      %v4821 = vunpack.c.l.b16 %v4601
      %v4822 = vpack.c.b16 %v4801, %v4800
      %v4823 = vpack.c.b16 %v4803, %v4802
      %v4824 = vpack.c.b16 %v4805, %v4804
      %v4825 = vpack.c.b16 %v4807, %v4806
      %v4826 = vpack.c.b16 %v4809, %v4808
      %v4827 = vpack.c.b16 %v4811, %v4810
      %v4828 = vpack.c.b16 %v4813, %v4812
      %v4829 = vpack.c.b16 %v4815, %v4814
      %v4830 = vpack.c.b16 %v4817, %v4816
      %v4831 = vpack.c.b16 %v4819, %v4818
      %v4832 = vpack.c.b16 %v4821, %v4820
      %v4844 = vsel %vm4723, %v4577, 0
      %v4846 = vsel %vm4723, %v4579, 0
      %4848 = vmatprep.subr.bf16.mxu0 0
      %4849 = vmatpush1.bf16.msra.mxu0 %v4822
      %4850 = vmatprep.subr.bf16.mxu0 0
      %4851 = vmatpush1.bf16.msra.mxu0 %v4823
      %4852 = vmatprep.subr.bf16.mxu0 0
      %4853 = vmatpush1.bf16.msra.mxu0 %v4824
      %4854 = vmatprep.subr.bf16.mxu0 0
      %4855 = vmatpush1.bf16.msra.mxu0 %v4825
      %4856 = vmatprep.subr.bf16.mxu0 0
      %4857 = vmatpush1.bf16.msra.mxu0 %v4826
      %4858 = vmatprep.subr.bf16.mxu0 0
      %4859 = vmatpush1.bf16.msra.mxu0 %v4827
      %4860 = vmatprep.subr.bf16.mxu0 0
      %4861 = vmatpush1.bf16.msra.mxu0 %v4828
      %4862 = vmatprep.subr.bf16.mxu0 0
      %4863 = vmatpush1.bf16.msra.mxu0 %v4829
      %4864 = vmatprep.subr.bf16.mxu0 0
      %4865 = vmatpush1.bf16.msra.mxu0 %v4830
      %4866 = vmatprep.subr.bf16.mxu0 0
      %4867 = vmatpush1.bf16.msra.mxu0 %v4831
      %4868 = vmatprep.subr.bf16.mxu0 0
      %4869 = vmatpush1.bf16.msra.mxu0 %v4832
      %4870 = vmatprep.subr.bf16.mxu0 0
      %4871 = vmatpush1.bf16.msra.mxu0 0
      %4872 = vmatprep.subr.bf16.mxu0 0
      %4873 = vmatpush1.bf16.msra.mxu0 0
      %4874 = vmatprep.subr.bf16.mxu0 0
      %4875 = vmatpush1.bf16.msra.mxu0 0
      %4876 = vmatprep.subr.bf16.mxu0 0
      %4877 = vmatpush1.bf16.msra.mxu0 0
      %4878 = vmatprep.subr.bf16.mxu0 0
      %4879 = vmatpush1.bf16.msra.mxu0 0
      %4880 = vmatprep.mubr.bf16.mxu0 %v4844
      %4881 = vmatmul.mubr.bf16.gmra.mrb[0].mxu0 %v4576
      %v4882 = vpop.f32.mrb[0].mxu0
      %v4883 = vadd.f32 %v4765, %v4882
      %v4884 = vpop.f32.mrb[0].mxu0
      %v4885 = vpop.f32.mrb[0].mxu0
      %v4886 = vadd.f32 %v4768, %v4885
      %v4887 = vpop.f32.mrb[0].mxu0
      %4888 = vmatprep.mubr.bf16.mxu0 %v4846
      %4889 = vmatmul.mubr.bf16.gmra.mrb[0].mxu0 %v4578
      %v4890 = vpop.f32.mrb[0].mxu0
      %v4891 = vadd.f32 %v4773, %v4890
      %v4892 = vpop.f32.mrb[0].mxu0
      %v4893 = vpop.f32.mrb[0].mxu0
      %v4894 = vpop.f32.mrb[0].mxu0
      %4895 = vdwg.mxu0
      %s4896 = scalar_lea.vmem %s954, 176
      %v4897 = vld [vmem:[%s4896] sm:$0xf]
      %v4898 = vld [vmem:[%s4896 + $0x4] sm:$0xf]
      %v4899 = vld [vmem:[%s4896 + $0x8] sm:$0xf]
      %v4900 = vld [vmem:[%s4896 + $0xc] sm:$0xf]
      %v4901 = vld [vmem:[%s4896 + $0x10] sm:$0xf]
      %v4902 = vld [vmem:[%s4896 + $0x14] sm:$0xf]
      %v4903 = vld [vmem:[%s4896 + $0x18] sm:$0xf]
      %v4904 = vld [vmem:[%s4896 + $0x1c] sm:$0xf]
      %v4905 = vld [vmem:[%s4896 + $0x20] sm:$0xf]
      %v4906 = vld [vmem:[%s4896 + $0x24] sm:$0xf]
      %v4907 = vld [vmem:[%s4896 + $0x28] sm:$0xf]
      %v4908 = vld [vmem:[%s4896 + $0x2c] sm:$0xf]
      %v4909 = vld [vmem:[%s4896 + $0x30] sm:$0xf]
      %v4910 = vld [vmem:[%s4896 + $0x34] sm:$0xf]
      %v4911 = vld [vmem:[%s4896 + $0x38] sm:$0xf]
      %v4912 = vld [vmem:[%s4896 + $0x3c] sm:$0xf]
      %v4913 = vld [vmem:[%s4896 + $0x40] sm:$0xf]
      %v4914 = vld [vmem:[%s4896 + $0x44] sm:$0xf]
      %v4915 = vld [vmem:[%s4896 + $0x48] sm:$0xf]
      %v4916 = vld [vmem:[%s4896 + $0x4c] sm:$0xf]
      %v4917 = vld [vmem:[%s4896 + $0x50] sm:$0xf]
      %v4918 = vld [vmem:[%s4896 + $0x54] sm:$0xf]
      %v4923 = vrot.slane %v4576, 1
      %v4924 = vrot.slane %v4578, 1
      %v4925 = vsel %vm1340, %v4923, %v4924
      %v4926 = vrot.slane %v4577, 1
      %v4927 = vrot.slane %v4579, 1
      %v4928 = vsel %vm1340, %v4926, %v4927
      %v4953 = vunpack.c.l.b16 %v4897
      %v4954 = vunpack.c.l.b16 %v4898
      %v4955 = vunpack.c.l.b16 %v4899
      %v4956 = vunpack.c.l.b16 %v4900
      %v4957 = vunpack.c.l.b16 %v4901
      %v4958 = vunpack.c.l.b16 %v4902
      %v4959 = vunpack.c.l.b16 %v4903
      %v4960 = vunpack.c.l.b16 %v4904
      %v4961 = vunpack.c.l.b16 %v4905
      %v4962 = vunpack.c.l.b16 %v4906
      %v4963 = vunpack.c.l.b16 %v4907
      %v4964 = vunpack.c.l.b16 %v4908
      %v4965 = vunpack.c.l.b16 %v4909
      %v4966 = vunpack.c.l.b16 %v4910
      %v4967 = vunpack.c.l.b16 %v4911
      %v4968 = vunpack.c.l.b16 %v4912
      %v4969 = vunpack.c.l.b16 %v4913
      %v4970 = vunpack.c.l.b16 %v4914
      %v4971 = vunpack.c.l.b16 %v4915
      %v4972 = vunpack.c.l.b16 %v4916
      %v4973 = vunpack.c.l.b16 %v4917
      %v4974 = vunpack.c.l.b16 %v4918
      %v4975 = vpack.c.b16 %v4954, %v4953
      %v4976 = vpack.c.b16 %v4956, %v4955
      %v4977 = vpack.c.b16 %v4958, %v4957
      %v4978 = vpack.c.b16 %v4960, %v4959
      %v4979 = vpack.c.b16 %v4962, %v4961
      %v4980 = vpack.c.b16 %v4964, %v4963
      %v4981 = vpack.c.b16 %v4966, %v4965
      %v4982 = vpack.c.b16 %v4968, %v4967
      %v4983 = vpack.c.b16 %v4970, %v4969
      %v4984 = vpack.c.b16 %v4972, %v4971
      %v4985 = vpack.c.b16 %v4974, %v4973
      %v4998 = vsel %vm4723, %v4928, 0
      %v5001 = vsel %vm4723, %v4927, 0
      %5003 = vmatprep.subr.bf16.mxu0 0
      %5004 = vmatpush1.bf16.msra.mxu0 %v4975
      %5005 = vmatprep.subr.bf16.mxu0 0
      %5006 = vmatpush1.bf16.msra.mxu0 %v4976
      %5007 = vmatprep.subr.bf16.mxu0 0
      %5008 = vmatpush1.bf16.msra.mxu0 %v4977
      %5009 = vmatprep.subr.bf16.mxu0 0
      %5010 = vmatpush1.bf16.msra.mxu0 %v4978
      %5011 = vmatprep.subr.bf16.mxu0 0
      %5012 = vmatpush1.bf16.msra.mxu0 %v4979
      %5013 = vmatprep.subr.bf16.mxu0 0
      %5014 = vmatpush1.bf16.msra.mxu0 %v4980
      %5015 = vmatprep.subr.bf16.mxu0 0
      %5016 = vmatpush1.bf16.msra.mxu0 %v4981
      %5017 = vmatprep.subr.bf16.mxu0 0
      %5018 = vmatpush1.bf16.msra.mxu0 %v4982
      %5019 = vmatprep.subr.bf16.mxu0 0
      %5020 = vmatpush1.bf16.msra.mxu0 %v4983
      %5021 = vmatprep.subr.bf16.mxu0 0
      %5022 = vmatpush1.bf16.msra.mxu0 %v4984
      %5023 = vmatprep.subr.bf16.mxu0 0
      %5024 = vmatpush1.bf16.msra.mxu0 %v4985
      %5025 = vmatprep.subr.bf16.mxu0 0
      %5026 = vmatpush1.bf16.msra.mxu0 0
      %5027 = vmatprep.subr.bf16.mxu0 0
      %5028 = vmatpush1.bf16.msra.mxu0 0
      %5029 = vmatprep.subr.bf16.mxu0 0
      %5030 = vmatpush1.bf16.msra.mxu0 0
      %5031 = vmatprep.subr.bf16.mxu0 0
      %5032 = vmatpush1.bf16.msra.mxu0 0
      %5033 = vmatprep.subr.bf16.mxu0 0
      %5034 = vmatpush1.bf16.msra.mxu0 0
      %5035 = vmatprep.mubr.bf16.mxu0 %v4998
      %5036 = vmatmul.mubr.bf16.gmra.mrb[0].mxu0 %v4925
      %v5037 = vpop.f32.mrb[0].mxu0
      %v5038 = vadd.f32 0.0, %v5037
      %v5039 = vpop.f32.mrb[0].mxu0
      %v5040 = vpop.f32.mrb[0].mxu0
      %v5041 = vadd.f32 0.0, %v5040
      %v5042 = vpop.f32.mrb[0].mxu0
      %5043 = vmatprep.mubr.bf16.mxu0 %v5001
      %5044 = vmatmul.mubr.bf16.gmra.mrb[0].mxu0 %v4924
      %v5045 = vpop.f32.mrb[0].mxu0
      %v5046 = vadd.f32 0.0, %v5045
      %v5047 = vpop.f32.mrb[0].mxu0
      %v5048 = vpop.f32.mrb[0].mxu0
      %v5049 = vpop.f32.mrb[0].mxu0
      %5050 = vdwg.mxu0
      %v5051 = vadd.f32 %v4883, %v5038
      %v5052 = vadd.f32 %v4886, %v5041
      %v5053 = vadd.f32 %v4891, %v5046
      %s5054 = scalar_lea.vmem %s954, 264
      %v5055 = vld [vmem:[%s5054] sm:$0xf]
      %v5056 = vld [vmem:[%s5054 + $0x4] sm:$0xf]
      %v5057 = vld [vmem:[%s5054 + $0x8] sm:$0xf]
      %v5058 = vld [vmem:[%s5054 + $0xc] sm:$0xf]
      %v5059 = vld [vmem:[%s5054 + $0x10] sm:$0xf]
      %v5060 = vld [vmem:[%s5054 + $0x14] sm:$0xf]
      %v5061 = vld [vmem:[%s5054 + $0x18] sm:$0xf]
      %v5062 = vld [vmem:[%s5054 + $0x1c] sm:$0xf]
      %v5063 = vld [vmem:[%s5054 + $0x20] sm:$0xf]
      %v5064 = vld [vmem:[%s5054 + $0x24] sm:$0xf]
      %v5065 = vld [vmem:[%s5054 + $0x28] sm:$0xf]
      %v5066 = vld [vmem:[%s5054 + $0x2c] sm:$0xf]
      %v5067 = vld [vmem:[%s5054 + $0x30] sm:$0xf]
      %v5068 = vld [vmem:[%s5054 + $0x34] sm:$0xf]
      %v5069 = vld [vmem:[%s5054 + $0x38] sm:$0xf]
      %v5070 = vld [vmem:[%s5054 + $0x3c] sm:$0xf]
      %v5071 = vld [vmem:[%s5054 + $0x40] sm:$0xf]
      %v5072 = vld [vmem:[%s5054 + $0x44] sm:$0xf]
      %v5073 = vld [vmem:[%s5054 + $0x48] sm:$0xf]
      %v5074 = vld [vmem:[%s5054 + $0x4c] sm:$0xf]
      %v5075 = vld [vmem:[%s5054 + $0x50] sm:$0xf]
      %v5076 = vld [vmem:[%s5054 + $0x54] sm:$0xf]
      %v5077 = vrot.slane %v4626, 1
      %v5078 = vrot.slane %v4628, 2
      %v5079 = vor.u32 %v5077, %v5078
      %v5080 = vrot.slane %v4649, 1
      %v5081 = vrot.slane %v4633, 2
      %v5082 = vor.u32 %v5080, %v5081
      %v5083 = vsel %vm1498, %v5079, %v5082
      %v5084 = vrot.slane %v4638, 1
      %v5085 = vrot.slane %v4640, 2
      %v5086 = vor.u32 %v5084, %v5085
      %v5087 = vrot.slane %v4652, 1
      %v5088 = vrot.slane %v4645, 2
      %v5089 = vor.u32 %v5087, %v5088
      %v5090 = vsel %vm1498, %v5086, %v5089
      %v5115 = vunpack.c.l.b16 %v5055
      %v5116 = vunpack.c.l.b16 %v5056
      %v5117 = vunpack.c.l.b16 %v5057
      %v5118 = vunpack.c.l.b16 %v5058
      %v5119 = vunpack.c.l.b16 %v5059
      %v5120 = vunpack.c.l.b16 %v5060
      %v5121 = vunpack.c.l.b16 %v5061
      %v5122 = vunpack.c.l.b16 %v5062
      %v5123 = vunpack.c.l.b16 %v5063
      %v5124 = vunpack.c.l.b16 %v5064
      %v5125 = vunpack.c.l.b16 %v5065
      %v5126 = vunpack.c.l.b16 %v5066
      %v5127 = vunpack.c.l.b16 %v5067
      %v5128 = vunpack.c.l.b16 %v5068
      %v5129 = vunpack.c.l.b16 %v5069
      %v5130 = vunpack.c.l.b16 %v5070
      %v5131 = vunpack.c.l.b16 %v5071
      %v5132 = vunpack.c.l.b16 %v5072
      %v5133 = vunpack.c.l.b16 %v5073
      %v5134 = vunpack.c.l.b16 %v5074
      %v5135 = vunpack.c.l.b16 %v5075
      %v5136 = vunpack.c.l.b16 %v5076
      %v5137 = vpack.c.b16 %v5116, %v5115
      %v5138 = vpack.c.b16 %v5118, %v5117
      %v5139 = vpack.c.b16 %v5120, %v5119
      %v5140 = vpack.c.b16 %v5122, %v5121
      %v5141 = vpack.c.b16 %v5124, %v5123
      %v5142 = vpack.c.b16 %v5126, %v5125
      %v5143 = vpack.c.b16 %v5128, %v5127
      %v5144 = vpack.c.b16 %v5130, %v5129
      %v5145 = vpack.c.b16 %v5132, %v5131
      %v5146 = vpack.c.b16 %v5134, %v5133
      %v5147 = vpack.c.b16 %v5136, %v5135
      %v5160 = vsel %vm4723, %v5090, 0
      %v5163 = vsel %vm4723, %v5089, 0
      %5165 = vmatprep.subr.bf16.mxu0 0
      %5166 = vmatpush1.bf16.msra.mxu0 %v5137
      %5167 = vmatprep.subr.bf16.mxu0 0
      %5168 = vmatpush1.bf16.msra.mxu0 %v5138
      %5169 = vmatprep.subr.bf16.mxu0 0
      %5170 = vmatpush1.bf16.msra.mxu0 %v5139
      %5171 = vmatprep.subr.bf16.mxu0 0
      %5172 = vmatpush1.bf16.msra.mxu0 %v5140
      %5173 = vmatprep.subr.bf16.mxu0 0
      %5174 = vmatpush1.bf16.msra.mxu0 %v5141
      %5175 = vmatprep.subr.bf16.mxu0 0
      %5176 = vmatpush1.bf16.msra.mxu0 %v5142
      %5177 = vmatprep.subr.bf16.mxu0 0
      %5178 = vmatpush1.bf16.msra.mxu0 %v5143
      %5179 = vmatprep.subr.bf16.mxu0 0
      %5180 = vmatpush1.bf16.msra.mxu0 %v5144
      %5181 = vmatprep.subr.bf16.mxu0 0
      %5182 = vmatpush1.bf16.msra.mxu0 %v5145
      %5183 = vmatprep.subr.bf16.mxu0 0
      %5184 = vmatpush1.bf16.msra.mxu0 %v5146
      %5185 = vmatprep.subr.bf16.mxu0 0
      %5186 = vmatpush1.bf16.msra.mxu0 %v5147
      %5187 = vmatprep.subr.bf16.mxu0 0
      %5188 = vmatpush1.bf16.msra.mxu0 0
      %5189 = vmatprep.subr.bf16.mxu0 0
      %5190 = vmatpush1.bf16.msra.mxu0 0
      %5191 = vmatprep.subr.bf16.mxu0 0
      %5192 = vmatpush1.bf16.msra.mxu0 0
      %5193 = vmatprep.subr.bf16.mxu0 0
      %5194 = vmatpush1.bf16.msra.mxu0 0
      %5195 = vmatprep.subr.bf16.mxu0 0
      %5196 = vmatpush1.bf16.msra.mxu0 0
      %5197 = vmatprep.mubr.bf16.mxu0 %v5160
      %5198 = vmatmul.mubr.bf16.gmra.mrb[0].mxu0 %v5083
      %v5199 = vpop.f32.mrb[0].mxu0
      %v5200 = vadd.f32 0.0, %v5199
      %v5201 = vpop.f32.mrb[0].mxu0
      %v5202 = vpop.f32.mrb[0].mxu0
      %v5203 = vadd.f32 0.0, %v5202
      %v5204 = vpop.f32.mrb[0].mxu0
      %5205 = vmatprep.mubr.bf16.mxu0 %v5163
      %5206 = vmatmul.mubr.bf16.gmra.mrb[0].mxu0 %v5082
      %v5207 = vpop.f32.mrb[0].mxu0
      %v5208 = vadd.f32 0.0, %v5207
      %v5209 = vpop.f32.mrb[0].mxu0
      %v5210 = vpop.f32.mrb[0].mxu0
      %v5211 = vpop.f32.mrb[0].mxu0
      %5212 = vdwg.mxu0
      %v5213 = vadd.f32 %v5051, %v5200
      %v5214 = vadd.f32 %v5052, %v5203
      %v5215 = vadd.f32 %v5053, %v5208
      %s5216 = scalar_lea.vmem %s954, 352
      %v5217 = vld [vmem:[%s5216] sm:$0xf]
      %v5218 = vld [vmem:[%s5216 + $0x4] sm:$0xf]
      %v5219 = vld [vmem:[%s5216 + $0x8] sm:$0xf]
      %v5220 = vld [vmem:[%s5216 + $0xc] sm:$0xf]
      %v5221 = vld [vmem:[%s5216 + $0x10] sm:$0xf]
      %v5222 = vld [vmem:[%s5216 + $0x14] sm:$0xf]
      %v5223 = vld [vmem:[%s5216 + $0x18] sm:$0xf]
      %v5224 = vld [vmem:[%s5216 + $0x1c] sm:$0xf]
      %v5225 = vld [vmem:[%s5216 + $0x20] sm:$0xf]
      %v5226 = vld [vmem:[%s5216 + $0x24] sm:$0xf]
      %v5227 = vld [vmem:[%s5216 + $0x28] sm:$0xf]
      %v5228 = vld [vmem:[%s5216 + $0x2c] sm:$0xf]
      %v5229 = vld [vmem:[%s5216 + $0x30] sm:$0xf]
      %v5230 = vld [vmem:[%s5216 + $0x34] sm:$0xf]
      %v5231 = vld [vmem:[%s5216 + $0x38] sm:$0xf]
      %v5232 = vld [vmem:[%s5216 + $0x3c] sm:$0xf]
      %v5233 = vld [vmem:[%s5216 + $0x40] sm:$0xf]
      %v5234 = vld [vmem:[%s5216 + $0x44] sm:$0xf]
      %v5235 = vld [vmem:[%s5216 + $0x48] sm:$0xf]
      %v5236 = vld [vmem:[%s5216 + $0x4c] sm:$0xf]
      %v5237 = vld [vmem:[%s5216 + $0x50] sm:$0xf]
      %v5238 = vld [vmem:[%s5216 + $0x54] sm:$0xf]
      %v5239 = vrot.slane %v4576, 2
      %v5240 = vrot.slane %v4578, 2
      %v5241 = vsel %vm1664, %v5239, %v5240
      %v5242 = vrot.slane %v4577, 2
      %v5243 = vrot.slane %v4579, 2
      %v5244 = vsel %vm1664, %v5242, %v5243
      %v5269 = vunpack.c.l.b16 %v5217
      %v5270 = vunpack.c.l.b16 %v5218
      %v5271 = vunpack.c.l.b16 %v5219
      %v5272 = vunpack.c.l.b16 %v5220
      %v5273 = vunpack.c.l.b16 %v5221
      %v5274 = vunpack.c.l.b16 %v5222
      %v5275 = vunpack.c.l.b16 %v5223
      %v5276 = vunpack.c.l.b16 %v5224
      %v5277 = vunpack.c.l.b16 %v5225
      %v5278 = vunpack.c.l.b16 %v5226
      %v5279 = vunpack.c.l.b16 %v5227
      %v5280 = vunpack.c.l.b16 %v5228
      %v5281 = vunpack.c.l.b16 %v5229
      %v5282 = vunpack.c.l.b16 %v5230
      %v5283 = vunpack.c.l.b16 %v5231
      %v5284 = vunpack.c.l.b16 %v5232
      %v5285 = vunpack.c.l.b16 %v5233
      %v5286 = vunpack.c.l.b16 %v5234
      %v5287 = vunpack.c.l.b16 %v5235
      %v5288 = vunpack.c.l.b16 %v5236
      %v5289 = vunpack.c.l.b16 %v5237
      %v5290 = vunpack.c.l.b16 %v5238
      %v5291 = vpack.c.b16 %v5270, %v5269
      %v5292 = vpack.c.b16 %v5272, %v5271
      %v5293 = vpack.c.b16 %v5274, %v5273
      %v5294 = vpack.c.b16 %v5276, %v5275
      %v5295 = vpack.c.b16 %v5278, %v5277
      %v5296 = vpack.c.b16 %v5280, %v5279
      %v5297 = vpack.c.b16 %v5282, %v5281
      %v5298 = vpack.c.b16 %v5284, %v5283
      %v5299 = vpack.c.b16 %v5286, %v5285
      %v5300 = vpack.c.b16 %v5288, %v5287
      %v5301 = vpack.c.b16 %v5290, %v5289
      %v5314 = vsel %vm4723, %v5244, 0
      %v5317 = vsel %vm4723, %v5243, 0
      %5319 = vmatprep.subr.bf16.mxu0 0
      %5320 = vmatpush1.bf16.msra.mxu0 %v5291
      %5321 = vmatprep.subr.bf16.mxu0 0
      %5322 = vmatpush1.bf16.msra.mxu0 %v5292
      %5323 = vmatprep.subr.bf16.mxu0 0
      %5324 = vmatpush1.bf16.msra.mxu0 %v5293
      %5325 = vmatprep.subr.bf16.mxu0 0
      %5326 = vmatpush1.bf16.msra.mxu0 %v5294
      %5327 = vmatprep.subr.bf16.mxu0 0
      %5328 = vmatpush1.bf16.msra.mxu0 %v5295
      %5329 = vmatprep.subr.bf16.mxu0 0
      %5330 = vmatpush1.bf16.msra.mxu0 %v5296
      %5331 = vmatprep.subr.bf16.mxu0 0
      %5332 = vmatpush1.bf16.msra.mxu0 %v5297
      %5333 = vmatprep.subr.bf16.mxu0 0
      %5334 = vmatpush1.bf16.msra.mxu0 %v5298
      %5335 = vmatprep.subr.bf16.mxu0 0
      %5336 = vmatpush1.bf16.msra.mxu0 %v5299
      %5337 = vmatprep.subr.bf16.mxu0 0
      %5338 = vmatpush1.bf16.msra.mxu0 %v5300
      %5339 = vmatprep.subr.bf16.mxu0 0
      %5340 = vmatpush1.bf16.msra.mxu0 %v5301
      %5341 = vmatprep.subr.bf16.mxu0 0
      %5342 = vmatpush1.bf16.msra.mxu0 0
      %5343 = vmatprep.subr.bf16.mxu0 0
      %5344 = vmatpush1.bf16.msra.mxu0 0
      %5345 = vmatprep.subr.bf16.mxu0 0
      %5346 = vmatpush1.bf16.msra.mxu0 0
      %5347 = vmatprep.subr.bf16.mxu0 0
      %5348 = vmatpush1.bf16.msra.mxu0 0
      %5349 = vmatprep.subr.bf16.mxu0 0
      %5350 = vmatpush1.bf16.msra.mxu0 0
      %5351 = vmatprep.mubr.bf16.mxu0 %v5314
      %5352 = vmatmul.mubr.bf16.gmra.mrb[0].mxu0 %v5241
      %v5353 = vpop.f32.mrb[0].mxu0
      %v5354 = vadd.f32 0.0, %v5353
      %v5355 = vpop.f32.mrb[0].mxu0
      %v5356 = vpop.f32.mrb[0].mxu0
      %v5357 = vadd.f32 0.0, %v5356
      %v5358 = vpop.f32.mrb[0].mxu0
      %5359 = vmatprep.mubr.bf16.mxu0 %v5317
      %5360 = vmatmul.mubr.bf16.gmra.mrb[0].mxu0 %v5240
      %v5361 = vpop.f32.mrb[0].mxu0
      %v5362 = vadd.f32 0.0, %v5361
      %v5363 = vpop.f32.mrb[0].mxu0
      %v5364 = vpop.f32.mrb[0].mxu0
      %v5365 = vpop.f32.mrb[0].mxu0
      %5366 = vdwg.mxu0
      %v5367 = vadd.f32 %v5213, %v5354
      %v5368 = vadd.f32 %v5214, %v5357
      %v5369 = vadd.f32 %v5215, %v5362
      %v5370 = vld [vmem:[%s957] sm:$0x1]
      %v5372 = vlaneseq
      %v5373 = vshrl.u32 %v5372, 7
      %v5374 = vsub.s32 0, %v5373
      %v5375 = vrot.slane %v5370, %v5374
      %v5377 = vadd.f32 %v5367, %v5375
      %v5378 = vadd.f32 %v5368, %v5375
      %v5379 = vadd.f32 %v5369, %v5375
      %v5380 = vld [vmem:[%s16] sm:$0xff]
      %v5381 = vld [vmem:[%s16 + $0x8] sm:$0x1]
      %vm5382 = vcmask 146432
      %v5384 = vsel %vm5382, %v5380, 0
      %v5387 = vsel %vm5382, %v5381, 0
      %vm5389 = vcmask 1041408
      %v5391 = vsel %vm5389, %v5379, 0
      %5393 = vmatprep.subr.mxu0 0.0
      %5394 = vmatpush1.msra.mxu0 %v5377
      %5395 = vmatprep.subr.mxu0 0.0
      %5396 = vmatpush1.msra.mxu0 %v5378
      %5397 = vmatprep.subr.mxu0 0.0
      %5398 = vmatpush1.msra.mxu0 %v5391
      %5399 = vmatprep.subr.mxu0 0.0
      %5400 = vmatpush1.msra.mxu0 0.0
      %5401 = vmatprep.subr.mxu0 0.0
      %5402 = vmatpush1.msra.mxu0 0.0
      %5403 = vmatprep.subr.mxu0 0.0
      %5404 = vmatpush1.msra.mxu0 0.0
      %5405 = vmatprep.subr.mxu0 0.0
      %5406 = vmatpush1.msra.mxu0 0.0
      %5407 = vmatprep.subr.mxu0 0.0
      %5408 = vmatpush1.msra.mxu0 0.0
      %5409 = vmatprep.subr.mxu0 0.0
      %5410 = vmatpush1.msra.mxu0 0.0
      %5411 = vmatprep.subr.mxu0 0.0
      %5412 = vmatpush1.msra.mxu0 0.0
      %5413 = vmatprep.subr.mxu0 0.0
      %5414 = vmatpush1.msra.mxu0 0.0
      %5415 = vmatprep.subr.mxu0 0.0
      %5416 = vmatpush1.msra.mxu0 0.0
      %5417 = vmatprep.subr.mxu0 0.0
      %5418 = vmatpush1.msra.mxu0 0.0
      %5419 = vmatprep.subr.mxu0 0.0
      %5420 = vmatpush1.msra.mxu0 0.0
      %5421 = vmatprep.subr.mxu0 0.0
      %5422 = vmatpush1.msra.mxu0 0.0
      %5423 = vmatprep.subr.mxu0 0.0
      %5424 = vmatpush1.msra.mxu0 0.0
      %5425 = vmatprep.subr.mxu0 0.0
      %5426 = vmatpush1.msra.mxu0 0.0
      %5427 = vmatprep.subr.mxu0 0.0
      %5428 = vmatpush1.msra.mxu0 0.0
      %5429 = vmatprep.subr.mxu0 0.0
      %5430 = vmatpush1.msra.mxu0 0.0
      %5431 = vmatprep.subr.mxu0 0.0
      %5432 = vmatpush1.msra.mxu0 0.0
      %5433 = vmatprep.subr.mxu0 0.0
      %5434 = vmatpush1.msra.mxu0 0.0
      %5435 = vmatprep.subr.mxu0 0.0
      %5436 = vmatpush1.msra.mxu0 0.0
      %5437 = vmatprep.subr.mxu0 0.0
      %5438 = vmatpush1.msra.mxu0 0.0
      %5439 = vmatprep.subr.mxu0 0.0
      %5440 = vmatpush1.msra.mxu0 0.0
      %5441 = vmatprep.subr.mxu0 0.0
      %5442 = vmatpush1.msra.mxu0 0.0
      %5443 = vmatprep.subr.mxu0 0.0
      %5444 = vmatpush1.msra.mxu0 0.0
      %5445 = vmatprep.subr.mxu0 0.0
      %5446 = vmatpush1.msra.mxu0 0.0
      %5447 = vmatprep.subr.mxu0 0.0
      %5448 = vmatpush1.msra.mxu0 0.0
      %5449 = vmatprep.subr.mxu0 0.0
      %5450 = vmatpush1.msra.mxu0 0.0
      %5451 = vmatprep.subr.mxu0 0.0
      %5452 = vmatpush1.msra.mxu0 0.0
      %5453 = vmatprep.subr.mxu0 0.0
      %5454 = vmatpush1.msra.mxu0 0.0
      %5455 = vmatprep.subr.mxu0 0.0
      %5456 = vmatpush1.msra.mxu0 0.0
      %5457 = vmatprep.mubr.f32.mxu0 0.0
      %5458 = vmatmul.mubr.f32.gmra.mrb[0].mxu0 %v5384
      %v5459 = vpop.f32.mrb[0].mxu0
      %v5460 = vadd.f32 0.0, %v5459
      %v5461 = vpop.f32.mrb[0].mxu0
      %5462 = vmatprep.mubr.f32.mxu0 0.0
      %5463 = vmatmul.mubr.f32.gmra.mrb[0].mxu0 %v5387
      %v5464 = vpop.f32.mrb[0].mxu0
      %v5465 = vadd.f32 0.0, %v5464
      %v5466 = vpop.f32.mrb[0].mxu0
      %5467 = vdwg.mxu0
      %vm5468 = vcmp.gt.f32.partialorder %v5460, 0.0
      %vm5469 = vcmp.gt.f32.partialorder %v5465, 0.0
      %v5470 = vmin.f32 %v5460, 0.0
      %v5471 = vmin.f32 %v5465, 0.0
      %v5472 = vmul.f32 %v5470, 1.442695
      %v5473 = vpow.pop %v5472
      %v5474 = vmul.f32 %v5471, 1.442695
      %v5475 = vpow.pop %v5474
      %v5476 = vsub.f32 %v5473, 1.0
      %v5477 = vsub.f32 %v5475, 1.0
      %v5478 = vsel %vm5468, %v5460, %v5476
      %v5479 = vsel %vm5469, %v5465, %v5477
      %v5480 = vpack.c.bf16 %v5479, %v5478
      %v5481 = vld [vmem:[%s962] sm:$0xf]
      %v5482 = vld [vmem:[%s962 + $0x4] sm:$0xf]
      %v5483 = vld [vmem:[%s962 + $0x8] sm:$0xf]
      %v5484 = vld [vmem:[%s962 + $0xc] sm:$0xf]
      %v5485 = vld [vmem:[%s962 + $0x10] sm:$0xf]
      %v5486 = vld [vmem:[%s962 + $0x14] sm:$0xf]
      %v5487 = vld [vmem:[%s962 + $0x18] sm:$0xf]
      %v5488 = vld [vmem:[%s962 + $0x1c] sm:$0xf]
      %v5489 = vld [vmem:[%s962 + $0x20] sm:$0xf]
      %s5490 = scalar_lea.vmem %s962, 36
      %v5491 = vld [vmem:[%s5490] sm:$0xf]
      %v5492 = vld [vmem:[%s5490 + $0x4] sm:$0xf]
      %v5493 = vld [vmem:[%s5490 + $0x8] sm:$0xf]
      %v5494 = vld [vmem:[%s5490 + $0xc] sm:$0xf]
      %v5495 = vld [vmem:[%s5490 + $0x10] sm:$0xf]
      %v5496 = vld [vmem:[%s5490 + $0x14] sm:$0xf]
      %v5497 = vld [vmem:[%s5490 + $0x18] sm:$0xf]
      %v5498 = vld [vmem:[%s5490 + $0x1c] sm:$0xf]
      %v5499 = vld [vmem:[%s5490 + $0x20] sm:$0xf]
      %v5501 = vshrl.u32 %v5480, 16
      %v5503 = vshll.u32 %v5480, 16
      %v5505 = vrot.slane %v5503, 1
      %v5506 = vor.u32 %v5501, %v5505
      %v5516 = vunpack.c.l.b16 %v5491
      %v5517 = vunpack.c.l.b16 %v5492
      %v5518 = vunpack.c.l.b16 %v5493
      %v5519 = vunpack.c.l.b16 %v5494
      %v5520 = vunpack.c.l.b16 %v5495
      %v5521 = vunpack.c.l.b16 %v5496
      %v5522 = vunpack.c.l.b16 %v5497
      %v5523 = vunpack.c.l.b16 %v5498
      %v5524 = vunpack.c.l.b16 %v5499
      %v5525 = vpack.c.b16 %v5517, %v5516
      %v5526 = vpack.c.b16 %v5519, %v5518
      %v5527 = vpack.c.b16 %v5521, %v5520
      %v5528 = vpack.c.b16 %v5523, %v5522
      %v5529 = vpack.c.b16 %v5524, %v5524
      %vm5534 = vcmask 588800
      %v5536 = vsel %vm5534, %v5506, 0
      %v5539 = vsel %vm1858, %v5529, 0
      %5541 = vmatprep.subr.bf16.mxu0 0
      %5542 = vmatpush1.bf16.msra.mxu0 %v5525
      %5543 = vmatprep.subr.bf16.mxu0 0
      %5544 = vmatpush1.bf16.msra.mxu0 %v5526
      %5545 = vmatprep.subr.bf16.mxu0 0
      %5546 = vmatpush1.bf16.msra.mxu0 %v5527
      %5547 = vmatprep.subr.bf16.mxu0 0
      %5548 = vmatpush1.bf16.msra.mxu0 %v5528
      %5549 = vmatprep.subr.bf16.mxu0 0
      %5550 = vmatpush1.bf16.msra.mxu0 %v5539
      %5551 = vmatprep.subr.bf16.mxu0 0
      %5552 = vmatpush1.bf16.msra.mxu0 0
      %5553 = vmatprep.subr.bf16.mxu0 0
      %5554 = vmatpush1.bf16.msra.mxu0 0
      %5555 = vmatprep.subr.bf16.mxu0 0
      %5556 = vmatpush1.bf16.msra.mxu0 0
      %5557 = vmatprep.subr.bf16.mxu0 0
      %5558 = vmatpush1.bf16.msra.mxu0 0
      %5559 = vmatprep.subr.bf16.mxu0 0
      %5560 = vmatpush1.bf16.msra.mxu0 0
      %5561 = vmatprep.subr.bf16.mxu0 0
      %5562 = vmatpush1.bf16.msra.mxu0 0
      %5563 = vmatprep.subr.bf16.mxu0 0
      %5564 = vmatpush1.bf16.msra.mxu0 0
      %5565 = vmatprep.subr.bf16.mxu0 0
      %5566 = vmatpush1.bf16.msra.mxu0 0
      %5567 = vmatprep.subr.bf16.mxu0 0
      %5568 = vmatpush1.bf16.msra.mxu0 0
      %5569 = vmatprep.subr.bf16.mxu0 0
      %5570 = vmatpush1.bf16.msra.mxu0 0
      %5571 = vmatprep.subr.bf16.mxu0 0
      %5572 = vmatpush1.bf16.msra.mxu0 0
      %5573 = vmatprep.mubr.bf16.mxu0 0
      %5574 = vmatmul.mubr.bf16.gmra.mrb[0].mxu0 %v5536
      %v5575 = vpop.f32.mrb[0].mxu0
      %v5576 = vadd.f32 0.0, %v5575
      %v5577 = vpop.f32.mrb[0].mxu0
      %v5578 = vpop.f32.mrb[0].mxu0
      %v5579 = vpop.f32.mrb[0].mxu0
      %5580 = vdwg.mxu0
      %v5590 = vunpack.c.l.b16 %v5481
      %v5591 = vunpack.c.l.b16 %v5482
      %v5592 = vunpack.c.l.b16 %v5483
      %v5593 = vunpack.c.l.b16 %v5484
      %v5594 = vunpack.c.l.b16 %v5485
      %v5595 = vunpack.c.l.b16 %v5486
      %v5596 = vunpack.c.l.b16 %v5487
      %v5597 = vunpack.c.l.b16 %v5488
      %v5598 = vunpack.c.l.b16 %v5489
      %v5599 = vpack.c.b16 %v5591, %v5590
      %v5600 = vpack.c.b16 %v5593, %v5592
      %v5601 = vpack.c.b16 %v5595, %v5594
      %v5602 = vpack.c.b16 %v5597, %v5596
      %v5603 = vpack.c.b16 %v5598, %v5598
      %v5608 = vsel %vm5534, %v5480, 0
      %v5611 = vsel %vm1858, %v5603, 0
      %5613 = vmatprep.subr.bf16.mxu0 0
      %5614 = vmatpush1.bf16.msra.mxu0 %v5599
      %5615 = vmatprep.subr.bf16.mxu0 0
      %5616 = vmatpush1.bf16.msra.mxu0 %v5600
      %5617 = vmatprep.subr.bf16.mxu0 0
      %5618 = vmatpush1.bf16.msra.mxu0 %v5601
      %5619 = vmatprep.subr.bf16.mxu0 0
      %5620 = vmatpush1.bf16.msra.mxu0 %v5602
      %5621 = vmatprep.subr.bf16.mxu0 0
      %5622 = vmatpush1.bf16.msra.mxu0 %v5611
      %5623 = vmatprep.subr.bf16.mxu0 0
      %5624 = vmatpush1.bf16.msra.mxu0 0
      %5625 = vmatprep.subr.bf16.mxu0 0
      %5626 = vmatpush1.bf16.msra.mxu0 0
      %5627 = vmatprep.subr.bf16.mxu0 0
      %5628 = vmatpush1.bf16.msra.mxu0 0
      %5629 = vmatprep.subr.bf16.mxu0 0
      %5630 = vmatpush1.bf16.msra.mxu0 0
      %5631 = vmatprep.subr.bf16.mxu0 0
      %5632 = vmatpush1.bf16.msra.mxu0 0
      %5633 = vmatprep.subr.bf16.mxu0 0
      %5634 = vmatpush1.bf16.msra.mxu0 0
      %5635 = vmatprep.subr.bf16.mxu0 0
      %5636 = vmatpush1.bf16.msra.mxu0 0
      %5637 = vmatprep.subr.bf16.mxu0 0
      %5638 = vmatpush1.bf16.msra.mxu0 0
      %5639 = vmatprep.subr.bf16.mxu0 0
      %5640 = vmatpush1.bf16.msra.mxu0 0
      %5641 = vmatprep.subr.bf16.mxu0 0
      %5642 = vmatpush1.bf16.msra.mxu0 0
      %5643 = vmatprep.subr.bf16.mxu0 0
      %5644 = vmatpush1.bf16.msra.mxu0 0
      %5645 = vmatprep.mubr.bf16.mxu0 0
      %5646 = vmatmul.mubr.bf16.gmra.mrb[0].mxu0 %v5608
      %v5647 = vpop.f32.mrb[0].mxu0
      %v5648 = vadd.f32 %v5576, %v5647
      %v5649 = vpop.f32.mrb[0].mxu0
      %v5650 = vpop.f32.mrb[0].mxu0
      %v5651 = vpop.f32.mrb[0].mxu0
      %5652 = vdwg.mxu0
      %s5653 = scalar_lea.vmem %s962, 72
      %v5654 = vld [vmem:[%s5653] sm:$0xf]
      %v5655 = vld [vmem:[%s5653 + $0x4] sm:$0xf]
      %v5656 = vld [vmem:[%s5653 + $0x8] sm:$0xf]
      %v5657 = vld [vmem:[%s5653 + $0xc] sm:$0xf]
      %v5658 = vld [vmem:[%s5653 + $0x10] sm:$0xf]
      %v5659 = vld [vmem:[%s5653 + $0x14] sm:$0xf]
      %v5660 = vld [vmem:[%s5653 + $0x18] sm:$0xf]
      %v5661 = vld [vmem:[%s5653 + $0x1c] sm:$0xf]
      %v5662 = vld [vmem:[%s5653 + $0x20] sm:$0xf]
      %v5664 = vrot.slane %v5480, 1
      %v5674 = vunpack.c.l.b16 %v5654
      %v5675 = vunpack.c.l.b16 %v5655
      %v5676 = vunpack.c.l.b16 %v5656
      %v5677 = vunpack.c.l.b16 %v5657
      %v5678 = vunpack.c.l.b16 %v5658
      %v5679 = vunpack.c.l.b16 %v5659
      %v5680 = vunpack.c.l.b16 %v5660
      %v5681 = vunpack.c.l.b16 %v5661
      %v5682 = vunpack.c.l.b16 %v5662
      %v5683 = vpack.c.b16 %v5675, %v5674
      %v5684 = vpack.c.b16 %v5677, %v5676
      %v5685 = vpack.c.b16 %v5679, %v5678
      %v5686 = vpack.c.b16 %v5681, %v5680
      %v5687 = vpack.c.b16 %v5682, %v5682
      %v5693 = vsel %vm5534, %v5664, 0
      %v5696 = vsel %vm1858, %v5687, 0
      %5698 = vmatprep.subr.bf16.mxu0 0
      %5699 = vmatpush1.bf16.msra.mxu0 %v5683
      %5700 = vmatprep.subr.bf16.mxu0 0
      %5701 = vmatpush1.bf16.msra.mxu0 %v5684
      %5702 = vmatprep.subr.bf16.mxu0 0
      %5703 = vmatpush1.bf16.msra.mxu0 %v5685
      %5704 = vmatprep.subr.bf16.mxu0 0
      %5705 = vmatpush1.bf16.msra.mxu0 %v5686
      %5706 = vmatprep.subr.bf16.mxu0 0
      %5707 = vmatpush1.bf16.msra.mxu0 %v5696
      %5708 = vmatprep.subr.bf16.mxu0 0
      %5709 = vmatpush1.bf16.msra.mxu0 0
      %5710 = vmatprep.subr.bf16.mxu0 0
      %5711 = vmatpush1.bf16.msra.mxu0 0
      %5712 = vmatprep.subr.bf16.mxu0 0
      %5713 = vmatpush1.bf16.msra.mxu0 0
      %5714 = vmatprep.subr.bf16.mxu0 0
      %5715 = vmatpush1.bf16.msra.mxu0 0
      %5716 = vmatprep.subr.bf16.mxu0 0
      %5717 = vmatpush1.bf16.msra.mxu0 0
      %5718 = vmatprep.subr.bf16.mxu0 0
      %5719 = vmatpush1.bf16.msra.mxu0 0
      %5720 = vmatprep.subr.bf16.mxu0 0
      %5721 = vmatpush1.bf16.msra.mxu0 0
      %5722 = vmatprep.subr.bf16.mxu0 0
      %5723 = vmatpush1.bf16.msra.mxu0 0
      %5724 = vmatprep.subr.bf16.mxu0 0
      %5725 = vmatpush1.bf16.msra.mxu0 0
      %5726 = vmatprep.subr.bf16.mxu0 0
      %5727 = vmatpush1.bf16.msra.mxu0 0
      %5728 = vmatprep.subr.bf16.mxu0 0
      %5729 = vmatpush1.bf16.msra.mxu0 0
      %5730 = vmatprep.mubr.bf16.mxu0 0
      %5731 = vmatmul.mubr.bf16.gmra.mrb[0].mxu0 %v5693
      %v5732 = vpop.f32.mrb[0].mxu0
      %v5733 = vadd.f32 0.0, %v5732
      %v5734 = vpop.f32.mrb[0].mxu0
      %v5735 = vpop.f32.mrb[0].mxu0
      %v5736 = vpop.f32.mrb[0].mxu0
      %5737 = vdwg.mxu0
      %v5738 = vadd.f32 %v5648, %v5733
      %s5739 = scalar_lea.vmem %s962, 108
      %v5740 = vld [vmem:[%s5739] sm:$0xf]
      %v5741 = vld [vmem:[%s5739 + $0x4] sm:$0xf]
      %v5742 = vld [vmem:[%s5739 + $0x8] sm:$0xf]
      %v5743 = vld [vmem:[%s5739 + $0xc] sm:$0xf]
      %v5744 = vld [vmem:[%s5739 + $0x10] sm:$0xf]
      %v5745 = vld [vmem:[%s5739 + $0x14] sm:$0xf]
      %v5746 = vld [vmem:[%s5739 + $0x18] sm:$0xf]
      %v5747 = vld [vmem:[%s5739 + $0x1c] sm:$0xf]
      %v5748 = vld [vmem:[%s5739 + $0x20] sm:$0xf]
      %v5749 = vrot.slane %v5501, 1
      %v5750 = vrot.slane %v5503, 2
      %v5751 = vor.u32 %v5749, %v5750
      %v5761 = vunpack.c.l.b16 %v5740
      %v5762 = vunpack.c.l.b16 %v5741
      %v5763 = vunpack.c.l.b16 %v5742
      %v5764 = vunpack.c.l.b16 %v5743
      %v5765 = vunpack.c.l.b16 %v5744
      %v5766 = vunpack.c.l.b16 %v5745
      %v5767 = vunpack.c.l.b16 %v5746
      %v5768 = vunpack.c.l.b16 %v5747
      %v5769 = vunpack.c.l.b16 %v5748
      %v5770 = vpack.c.b16 %v5762, %v5761
      %v5771 = vpack.c.b16 %v5764, %v5763
      %v5772 = vpack.c.b16 %v5766, %v5765
      %v5773 = vpack.c.b16 %v5768, %v5767
      %v5774 = vpack.c.b16 %v5769, %v5769
      %v5780 = vsel %vm5534, %v5751, 0
      %v5783 = vsel %vm1858, %v5774, 0
      %5785 = vmatprep.subr.bf16.mxu0 0
      %5786 = vmatpush1.bf16.msra.mxu0 %v5770
      %5787 = vmatprep.subr.bf16.mxu0 0
      %5788 = vmatpush1.bf16.msra.mxu0 %v5771
      %5789 = vmatprep.subr.bf16.mxu0 0
      %5790 = vmatpush1.bf16.msra.mxu0 %v5772
      %5791 = vmatprep.subr.bf16.mxu0 0
      %5792 = vmatpush1.bf16.msra.mxu0 %v5773
      %5793 = vmatprep.subr.bf16.mxu0 0
      %5794 = vmatpush1.bf16.msra.mxu0 %v5783
      %5795 = vmatprep.subr.bf16.mxu0 0
      %5796 = vmatpush1.bf16.msra.mxu0 0
      %5797 = vmatprep.subr.bf16.mxu0 0
      %5798 = vmatpush1.bf16.msra.mxu0 0
      %5799 = vmatprep.subr.bf16.mxu0 0
      %5800 = vmatpush1.bf16.msra.mxu0 0
      %5801 = vmatprep.subr.bf16.mxu0 0
      %5802 = vmatpush1.bf16.msra.mxu0 0
      %5803 = vmatprep.subr.bf16.mxu0 0
      %5804 = vmatpush1.bf16.msra.mxu0 0
      %5805 = vmatprep.subr.bf16.mxu0 0
      %5806 = vmatpush1.bf16.msra.mxu0 0
      %5807 = vmatprep.subr.bf16.mxu0 0
      %5808 = vmatpush1.bf16.msra.mxu0 0
      %5809 = vmatprep.subr.bf16.mxu0 0
      %5810 = vmatpush1.bf16.msra.mxu0 0
      %5811 = vmatprep.subr.bf16.mxu0 0
      %5812 = vmatpush1.bf16.msra.mxu0 0
      %5813 = vmatprep.subr.bf16.mxu0 0
      %5814 = vmatpush1.bf16.msra.mxu0 0
      %5815 = vmatprep.subr.bf16.mxu0 0
      %5816 = vmatpush1.bf16.msra.mxu0 0
      %5817 = vmatprep.mubr.bf16.mxu0 0
      %5818 = vmatmul.mubr.bf16.gmra.mrb[0].mxu0 %v5780
      %v5819 = vpop.f32.mrb[0].mxu0
      %v5820 = vadd.f32 0.0, %v5819
      %v5821 = vpop.f32.mrb[0].mxu0
      %v5822 = vpop.f32.mrb[0].mxu0
      %v5823 = vpop.f32.mrb[0].mxu0
      %5824 = vdwg.mxu0
      %v5825 = vadd.f32 %v5738, %v5820
      %s5826 = scalar_lea.vmem %s962, 144
      %v5827 = vld [vmem:[%s5826] sm:$0xf]
      %v5828 = vld [vmem:[%s5826 + $0x4] sm:$0xf]
      %v5829 = vld [vmem:[%s5826 + $0x8] sm:$0xf]
      %v5830 = vld [vmem:[%s5826 + $0xc] sm:$0xf]
      %v5831 = vld [vmem:[%s5826 + $0x10] sm:$0xf]
      %v5832 = vld [vmem:[%s5826 + $0x14] sm:$0xf]
      %v5833 = vld [vmem:[%s5826 + $0x18] sm:$0xf]
      %v5834 = vld [vmem:[%s5826 + $0x1c] sm:$0xf]
      %v5835 = vld [vmem:[%s5826 + $0x20] sm:$0xf]
      %v5836 = vrot.slane %v5480, 2
      %v5846 = vunpack.c.l.b16 %v5827
      %v5847 = vunpack.c.l.b16 %v5828
      %v5848 = vunpack.c.l.b16 %v5829
      %v5849 = vunpack.c.l.b16 %v5830
      %v5850 = vunpack.c.l.b16 %v5831
      %v5851 = vunpack.c.l.b16 %v5832
      %v5852 = vunpack.c.l.b16 %v5833
      %v5853 = vunpack.c.l.b16 %v5834
      %v5854 = vunpack.c.l.b16 %v5835
      %v5855 = vpack.c.b16 %v5847, %v5846
      %v5856 = vpack.c.b16 %v5849, %v5848
      %v5857 = vpack.c.b16 %v5851, %v5850
      %v5858 = vpack.c.b16 %v5853, %v5852
      %v5859 = vpack.c.b16 %v5854, %v5854
      %v5865 = vsel %vm5534, %v5836, 0
      %v5868 = vsel %vm1858, %v5859, 0
      %5870 = vmatprep.subr.bf16.mxu0 0
      %5871 = vmatpush1.bf16.msra.mxu0 %v5855
      %5872 = vmatprep.subr.bf16.mxu0 0
      %5873 = vmatpush1.bf16.msra.mxu0 %v5856
      %5874 = vmatprep.subr.bf16.mxu0 0
      %5875 = vmatpush1.bf16.msra.mxu0 %v5857
      %5876 = vmatprep.subr.bf16.mxu0 0
      %5877 = vmatpush1.bf16.msra.mxu0 %v5858
      %5878 = vmatprep.subr.bf16.mxu0 0
      %5879 = vmatpush1.bf16.msra.mxu0 %v5868
      %5880 = vmatprep.subr.bf16.mxu0 0
      %5881 = vmatpush1.bf16.msra.mxu0 0
      %5882 = vmatprep.subr.bf16.mxu0 0
      %5883 = vmatpush1.bf16.msra.mxu0 0
      %5884 = vmatprep.subr.bf16.mxu0 0
      %5885 = vmatpush1.bf16.msra.mxu0 0
      %5886 = vmatprep.subr.bf16.mxu0 0
      %5887 = vmatpush1.bf16.msra.mxu0 0
      %5888 = vmatprep.subr.bf16.mxu0 0
      %5889 = vmatpush1.bf16.msra.mxu0 0
      %5890 = vmatprep.subr.bf16.mxu0 0
      %5891 = vmatpush1.bf16.msra.mxu0 0
      %5892 = vmatprep.subr.bf16.mxu0 0
      %5893 = vmatpush1.bf16.msra.mxu0 0
      %5894 = vmatprep.subr.bf16.mxu0 0
      %5895 = vmatpush1.bf16.msra.mxu0 0
      %5896 = vmatprep.subr.bf16.mxu0 0
      %5897 = vmatpush1.bf16.msra.mxu0 0
      %5898 = vmatprep.subr.bf16.mxu0 0
      %5899 = vmatpush1.bf16.msra.mxu0 0
      %5900 = vmatprep.subr.bf16.mxu0 0
      %5901 = vmatpush1.bf16.msra.mxu0 0
      %5902 = vmatprep.mubr.bf16.mxu0 0
      %5903 = vmatmul.mubr.bf16.gmra.mrb[0].mxu0 %v5865
      %v5904 = vpop.f32.mrb[0].mxu0
      %v5905 = vadd.f32 0.0, %v5904
      %v5906 = vpop.f32.mrb[0].mxu0
      %v5907 = vpop.f32.mrb[0].mxu0
      %v5908 = vpop.f32.mrb[0].mxu0
      %5909 = vdwg.mxu0
      %v5910 = vadd.f32 %v5825, %v5905
      %v5911 = vld [vmem:[%s965] sm:$0x1]
      %v5913 = vlaneseq
      %v5914 = vshrl.u32 %v5913, 7
      %v5915 = vsub.s32 0, %v5914
      %v5916 = vrot.slane %v5911, %v5915
      %v5918 = vadd.f32 %v5910, %v5916
      %vm5919 = vcmp.gt.f32.partialorder %v5918, 0.0
      %v5920 = vmin.f32 %v5918, 0.0
      %v5921 = vmul.f32 %v5920, 1.442695
      %v5922 = vpow.pop %v5921
      %v5923 = vsub.f32 %v5922, 1.0
      %v5924 = vsel %vm5919, %v5918, %v5923
      %v5925 = vpack.c.bf16 %v5924, %v5924
      %v5926 = vld [vmem:[%s970] sm:$0xf]
      %v5927 = vld [vmem:[%s970 + $0x4] sm:$0xf]
      %v5928 = vld [vmem:[%s970 + $0x8] sm:$0xf]
      %v5929 = vld [vmem:[%s970 + $0xc] sm:$0xf]
      %v5930 = vld [vmem:[%s970 + $0x10] sm:$0xf]
      %s5931 = scalar_lea.vmem %s970, 20
      %v5932 = vld [vmem:[%s5931] sm:$0xf]
      %v5933 = vld [vmem:[%s5931 + $0x4] sm:$0xf]
      %v5934 = vld [vmem:[%s5931 + $0x8] sm:$0xf]
      %v5935 = vld [vmem:[%s5931 + $0xc] sm:$0xf]
      %v5936 = vld [vmem:[%s5931 + $0x10] sm:$0xf]
      %v5938 = vshrl.u32 %v5925, 16
      %v5945 = vunpack.c.l.b16 %v5932
      %v5946 = vunpack.c.l.b16 %v5933
      %v5947 = vunpack.c.l.b16 %v5934
      %v5948 = vunpack.c.l.b16 %v5935
      %v5949 = vunpack.c.l.b16 %v5936
      %v5950 = vpack.c.b16 %v5946, %v5945
      %v5951 = vpack.c.b16 %v5948, %v5947
      %v5952 = vpack.c.b16 %v5949, %v5949
      %vm5955 = vcmask 326656
      %v5957 = vsel %vm5955, %v5938, 0
      %v5960 = vsel %vm1858, %v5952, 0
      %5962 = vmatprep.subr.bf16.mxu0 0
      %5963 = vmatpush1.bf16.msra.mxu0 %v5950
      %5964 = vmatprep.subr.bf16.mxu0 0
      %5965 = vmatpush1.bf16.msra.mxu0 %v5951
      %5966 = vmatprep.subr.bf16.mxu0 0
      %5967 = vmatpush1.bf16.msra.mxu0 %v5960
      %5968 = vmatprep.subr.bf16.mxu0 0
      %5969 = vmatpush1.bf16.msra.mxu0 0
      %5970 = vmatprep.subr.bf16.mxu0 0
      %5971 = vmatpush1.bf16.msra.mxu0 0
      %5972 = vmatprep.subr.bf16.mxu0 0
      %5973 = vmatpush1.bf16.msra.mxu0 0
      %5974 = vmatprep.subr.bf16.mxu0 0
      %5975 = vmatpush1.bf16.msra.mxu0 0
      %5976 = vmatprep.subr.bf16.mxu0 0
      %5977 = vmatpush1.bf16.msra.mxu0 0
      %5978 = vmatprep.subr.bf16.mxu0 0
      %5979 = vmatpush1.bf16.msra.mxu0 0
      %5980 = vmatprep.subr.bf16.mxu0 0
      %5981 = vmatpush1.bf16.msra.mxu0 0
      %5982 = vmatprep.subr.bf16.mxu0 0
      %5983 = vmatpush1.bf16.msra.mxu0 0
      %5984 = vmatprep.subr.bf16.mxu0 0
      %5985 = vmatpush1.bf16.msra.mxu0 0
      %5986 = vmatprep.subr.bf16.mxu0 0
      %5987 = vmatpush1.bf16.msra.mxu0 0
      %5988 = vmatprep.subr.bf16.mxu0 0
      %5989 = vmatpush1.bf16.msra.mxu0 0
      %5990 = vmatprep.subr.bf16.mxu0 0
      %5991 = vmatpush1.bf16.msra.mxu0 0
      %5992 = vmatprep.subr.bf16.mxu0 0
      %5993 = vmatpush1.bf16.msra.mxu0 0
      %5994 = vmatprep.mubr.bf16.mxu0 0
      %5995 = vmatmul.mubr.bf16.gmra.mrb[0].mxu0 %v5957
      %v5996 = vpop.f32.mrb[0].mxu0
      %v5997 = vadd.f32 0.0, %v5996
      %v5998 = vpop.f32.mrb[0].mxu0
      %v5999 = vpop.f32.mrb[0].mxu0
      %v6000 = vpop.f32.mrb[0].mxu0
      %6001 = vdwg.mxu0
      %v6007 = vunpack.c.l.b16 %v5926
      %v6008 = vunpack.c.l.b16 %v5927
      %v6009 = vunpack.c.l.b16 %v5928
      %v6010 = vunpack.c.l.b16 %v5929
      %v6011 = vunpack.c.l.b16 %v5930
      %v6012 = vpack.c.b16 %v6008, %v6007
      %v6013 = vpack.c.b16 %v6010, %v6009
      %v6014 = vpack.c.b16 %v6011, %v6011
      %v6017 = vsel %vm5955, %v5925, 0
      %v6020 = vsel %vm1858, %v6014, 0
      %6022 = vmatprep.subr.bf16.mxu0 0
      %6023 = vmatpush1.bf16.msra.mxu0 %v6012
      %6024 = vmatprep.subr.bf16.mxu0 0
      %6025 = vmatpush1.bf16.msra.mxu0 %v6013
      %6026 = vmatprep.subr.bf16.mxu0 0
      %6027 = vmatpush1.bf16.msra.mxu0 %v6020
      %6028 = vmatprep.subr.bf16.mxu0 0
      %6029 = vmatpush1.bf16.msra.mxu0 0
      %6030 = vmatprep.subr.bf16.mxu0 0
      %6031 = vmatpush1.bf16.msra.mxu0 0
      %6032 = vmatprep.subr.bf16.mxu0 0
      %6033 = vmatpush1.bf16.msra.mxu0 0
      %6034 = vmatprep.subr.bf16.mxu0 0
      %6035 = vmatpush1.bf16.msra.mxu0 0
      %6036 = vmatprep.subr.bf16.mxu0 0
      %6037 = vmatpush1.bf16.msra.mxu0 0
      %6038 = vmatprep.subr.bf16.mxu0 0
      %6039 = vmatpush1.bf16.msra.mxu0 0
      %6040 = vmatprep.subr.bf16.mxu0 0
      %6041 = vmatpush1.bf16.msra.mxu0 0
      %6042 = vmatprep.subr.bf16.mxu0 0
      %6043 = vmatpush1.bf16.msra.mxu0 0
      %6044 = vmatprep.subr.bf16.mxu0 0
      %6045 = vmatpush1.bf16.msra.mxu0 0
      %6046 = vmatprep.subr.bf16.mxu0 0
      %6047 = vmatpush1.bf16.msra.mxu0 0
      %6048 = vmatprep.subr.bf16.mxu0 0
      %6049 = vmatpush1.bf16.msra.mxu0 0
      %6050 = vmatprep.subr.bf16.mxu0 0
      %6051 = vmatpush1.bf16.msra.mxu0 0
      %6052 = vmatprep.subr.bf16.mxu0 0
      %6053 = vmatpush1.bf16.msra.mxu0 0
      %6054 = vmatprep.mubr.bf16.mxu0 0
      %6055 = vmatmul.mubr.bf16.gmra.mrb[0].mxu0 %v6017
      %v6056 = vpop.f32.mrb[0].mxu0
      %v6057 = vadd.f32 %v5997, %v6056
      %v6058 = vpop.f32.mrb[0].mxu0
      %v6059 = vpop.f32.mrb[0].mxu0
      %v6060 = vpop.f32.mrb[0].mxu0
      %6061 = vdwg.mxu0
      %s6062 = scalar_lea.vmem %s970, 40
      %v6063 = vld [vmem:[%s6062] sm:$0xf]
      %v6064 = vld [vmem:[%s6062 + $0x4] sm:$0xf]
      %v6065 = vld [vmem:[%s6062 + $0x8] sm:$0xf]
      %v6066 = vld [vmem:[%s6062 + $0xc] sm:$0xf]
      %v6067 = vld [vmem:[%s6062 + $0x10] sm:$0xf]
      %v6069 = vrot.slane %v5925, 1
      %v6075 = vunpack.c.l.b16 %v6063
      %v6076 = vunpack.c.l.b16 %v6064
      %v6077 = vunpack.c.l.b16 %v6065
      %v6078 = vunpack.c.l.b16 %v6066
      %v6079 = vunpack.c.l.b16 %v6067
      %v6080 = vpack.c.b16 %v6076, %v6075
      %v6081 = vpack.c.b16 %v6078, %v6077
      %v6082 = vpack.c.b16 %v6079, %v6079
      %v6086 = vsel %vm5955, %v6069, 0
      %v6089 = vsel %vm1858, %v6082, 0
      %6091 = vmatprep.subr.bf16.mxu0 0
      %6092 = vmatpush1.bf16.msra.mxu0 %v6080
      %6093 = vmatprep.subr.bf16.mxu0 0
      %6094 = vmatpush1.bf16.msra.mxu0 %v6081
      %6095 = vmatprep.subr.bf16.mxu0 0
      %6096 = vmatpush1.bf16.msra.mxu0 %v6089
      %6097 = vmatprep.subr.bf16.mxu0 0
      %6098 = vmatpush1.bf16.msra.mxu0 0
      %6099 = vmatprep.subr.bf16.mxu0 0
      %6100 = vmatpush1.bf16.msra.mxu0 0
      %6101 = vmatprep.subr.bf16.mxu0 0
      %6102 = vmatpush1.bf16.msra.mxu0 0
      %6103 = vmatprep.subr.bf16.mxu0 0
      %6104 = vmatpush1.bf16.msra.mxu0 0
      %6105 = vmatprep.subr.bf16.mxu0 0
      %6106 = vmatpush1.bf16.msra.mxu0 0
      %6107 = vmatprep.subr.bf16.mxu0 0
      %6108 = vmatpush1.bf16.msra.mxu0 0
      %6109 = vmatprep.subr.bf16.mxu0 0
      %6110 = vmatpush1.bf16.msra.mxu0 0
      %6111 = vmatprep.subr.bf16.mxu0 0
      %6112 = vmatpush1.bf16.msra.mxu0 0
      %6113 = vmatprep.subr.bf16.mxu0 0
      %6114 = vmatpush1.bf16.msra.mxu0 0
      %6115 = vmatprep.subr.bf16.mxu0 0
      %6116 = vmatpush1.bf16.msra.mxu0 0
      %6117 = vmatprep.subr.bf16.mxu0 0
      %6118 = vmatpush1.bf16.msra.mxu0 0
      %6119 = vmatprep.subr.bf16.mxu0 0
      %6120 = vmatpush1.bf16.msra.mxu0 0
      %6121 = vmatprep.subr.bf16.mxu0 0
      %6122 = vmatpush1.bf16.msra.mxu0 0
      %6123 = vmatprep.mubr.bf16.mxu0 0
      %6124 = vmatmul.mubr.bf16.gmra.mrb[0].mxu0 %v6086
      %v6125 = vpop.f32.mrb[0].mxu0
      %v6126 = vadd.f32 0.0, %v6125
      %v6127 = vpop.f32.mrb[0].mxu0
      %v6128 = vpop.f32.mrb[0].mxu0
      %v6129 = vpop.f32.mrb[0].mxu0
      %6130 = vdwg.mxu0
      %v6131 = vadd.f32 %v6057, %v6126
      %s6132 = scalar_lea.vmem %s970, 60
      %v6133 = vld [vmem:[%s6132] sm:$0xf]
      %v6134 = vld [vmem:[%s6132 + $0x4] sm:$0xf]
      %v6135 = vld [vmem:[%s6132 + $0x8] sm:$0xf]
      %v6136 = vld [vmem:[%s6132 + $0xc] sm:$0xf]
      %v6137 = vld [vmem:[%s6132 + $0x10] sm:$0xf]
      %v6138 = vrot.slane %v5938, 1
      %v6144 = vunpack.c.l.b16 %v6133
      %v6145 = vunpack.c.l.b16 %v6134
      %v6146 = vunpack.c.l.b16 %v6135
      %v6147 = vunpack.c.l.b16 %v6136
      %v6148 = vunpack.c.l.b16 %v6137
      %v6149 = vpack.c.b16 %v6145, %v6144
      %v6150 = vpack.c.b16 %v6147, %v6146
      %v6151 = vpack.c.b16 %v6148, %v6148
      %v6155 = vsel %vm5955, %v6138, 0
      %v6158 = vsel %vm1858, %v6151, 0
      %6160 = vmatprep.subr.bf16.mxu0 0
      %6161 = vmatpush1.bf16.msra.mxu0 %v6149
      %6162 = vmatprep.subr.bf16.mxu0 0
      %6163 = vmatpush1.bf16.msra.mxu0 %v6150
      %6164 = vmatprep.subr.bf16.mxu0 0
      %6165 = vmatpush1.bf16.msra.mxu0 %v6158
      %6166 = vmatprep.subr.bf16.mxu0 0
      %6167 = vmatpush1.bf16.msra.mxu0 0
      %6168 = vmatprep.subr.bf16.mxu0 0
      %6169 = vmatpush1.bf16.msra.mxu0 0
      %6170 = vmatprep.subr.bf16.mxu0 0
      %6171 = vmatpush1.bf16.msra.mxu0 0
      %6172 = vmatprep.subr.bf16.mxu0 0
      %6173 = vmatpush1.bf16.msra.mxu0 0
      %6174 = vmatprep.subr.bf16.mxu0 0
      %6175 = vmatpush1.bf16.msra.mxu0 0
      %6176 = vmatprep.subr.bf16.mxu0 0
      %6177 = vmatpush1.bf16.msra.mxu0 0
      %6178 = vmatprep.subr.bf16.mxu0 0
      %6179 = vmatpush1.bf16.msra.mxu0 0
      %6180 = vmatprep.subr.bf16.mxu0 0
      %6181 = vmatpush1.bf16.msra.mxu0 0
      %6182 = vmatprep.subr.bf16.mxu0 0
      %6183 = vmatpush1.bf16.msra.mxu0 0
      %6184 = vmatprep.subr.bf16.mxu0 0
      %6185 = vmatpush1.bf16.msra.mxu0 0
      %6186 = vmatprep.subr.bf16.mxu0 0
      %6187 = vmatpush1.bf16.msra.mxu0 0
      %6188 = vmatprep.subr.bf16.mxu0 0
      %6189 = vmatpush1.bf16.msra.mxu0 0
      %6190 = vmatprep.subr.bf16.mxu0 0
      %6191 = vmatpush1.bf16.msra.mxu0 0
      %6192 = vmatprep.mubr.bf16.mxu0 0
      %6193 = vmatmul.mubr.bf16.gmra.mrb[0].mxu0 %v6155
      %v6194 = vpop.f32.mrb[0].mxu0
      %v6195 = vadd.f32 0.0, %v6194
      %v6196 = vpop.f32.mrb[0].mxu0
      %v6197 = vpop.f32.mrb[0].mxu0
      %v6198 = vpop.f32.mrb[0].mxu0
      %6199 = vdwg.mxu0
      %v6200 = vadd.f32 %v6131, %v6195
      %s6201 = scalar_lea.vmem %s970, 80
      %v6202 = vld [vmem:[%s6201] sm:$0xf]
      %v6203 = vld [vmem:[%s6201 + $0x4] sm:$0xf]
      %v6204 = vld [vmem:[%s6201 + $0x8] sm:$0xf]
      %v6205 = vld [vmem:[%s6201 + $0xc] sm:$0xf]
      %v6206 = vld [vmem:[%s6201 + $0x10] sm:$0xf]
      %v6207 = vrot.slane %v5925, 2
      %v6213 = vunpack.c.l.b16 %v6202
      %v6214 = vunpack.c.l.b16 %v6203
      %v6215 = vunpack.c.l.b16 %v6204
      %v6216 = vunpack.c.l.b16 %v6205
      %v6217 = vunpack.c.l.b16 %v6206
      %v6218 = vpack.c.b16 %v6214, %v6213
      %v6219 = vpack.c.b16 %v6216, %v6215
      %v6220 = vpack.c.b16 %v6217, %v6217
      %v6224 = vsel %vm5955, %v6207, 0
      %v6227 = vsel %vm1858, %v6220, 0
      %6229 = vmatprep.subr.bf16.mxu0 0
      %6230 = vmatpush1.bf16.msra.mxu0 %v6218
      %6231 = vmatprep.subr.bf16.mxu0 0
      %6232 = vmatpush1.bf16.msra.mxu0 %v6219
      %6233 = vmatprep.subr.bf16.mxu0 0
      %6234 = vmatpush1.bf16.msra.mxu0 %v6227
      %6235 = vmatprep.subr.bf16.mxu0 0
      %6236 = vmatpush1.bf16.msra.mxu0 0
      %6237 = vmatprep.subr.bf16.mxu0 0
      %6238 = vmatpush1.bf16.msra.mxu0 0
      %6239 = vmatprep.subr.bf16.mxu0 0
      %6240 = vmatpush1.bf16.msra.mxu0 0
      %6241 = vmatprep.subr.bf16.mxu0 0
      %6242 = vmatpush1.bf16.msra.mxu0 0
      %6243 = vmatprep.subr.bf16.mxu0 0
      %6244 = vmatpush1.bf16.msra.mxu0 0
      %6245 = vmatprep.subr.bf16.mxu0 0
      %6246 = vmatpush1.bf16.msra.mxu0 0
      %6247 = vmatprep.subr.bf16.mxu0 0
      %6248 = vmatpush1.bf16.msra.mxu0 0
      %6249 = vmatprep.subr.bf16.mxu0 0
      %6250 = vmatpush1.bf16.msra.mxu0 0
      %6251 = vmatprep.subr.bf16.mxu0 0
      %6252 = vmatpush1.bf16.msra.mxu0 0
      %6253 = vmatprep.subr.bf16.mxu0 0
      %6254 = vmatpush1.bf16.msra.mxu0 0
      %6255 = vmatprep.subr.bf16.mxu0 0
      %6256 = vmatpush1.bf16.msra.mxu0 0
      %6257 = vmatprep.subr.bf16.mxu0 0
      %6258 = vmatpush1.bf16.msra.mxu0 0
      %6259 = vmatprep.subr.bf16.mxu0 0
      %6260 = vmatpush1.bf16.msra.mxu0 0
      %6261 = vmatprep.mubr.bf16.mxu0 0
      %6262 = vmatmul.mubr.bf16.gmra.mrb[0].mxu0 %v6224
      %v6263 = vpop.f32.mrb[0].mxu0
      %v6264 = vadd.f32 0.0, %v6263
      %v6265 = vpop.f32.mrb[0].mxu0
      %v6266 = vpop.f32.mrb[0].mxu0
      %v6267 = vpop.f32.mrb[0].mxu0
      %6268 = vdwg.mxu0
      %v6269 = vadd.f32 %v6200, %v6264
      %v6270 = vld [vmem:[%s973] sm:$0x1]
      %v6271 = vadd.f32 %v6269, %v6270
      %v6272 = vadd.f32 %v6271, 0.0
      %v6273 = vadd.f32 %v6272, 0.0
      %v6274 = vmul.f32 %v6271, %v6271
      %v6275 = vadd.f32 %v6274, 0.0
      %v6276 = vadd.f32 %v6275, 0.0
      %s6277 = scalar_lea.vmem %s906, 64
      %v6278 = vld [vmem:[%s6277] sm:$0xff]
      %v6279 = vld [vmem:[%s6277 + $0x8] sm:$0xff]
      %v6280 = vld [vmem:[%s6277 + $0x10] sm:$0xff]
      %v6281 = vld [vmem:[%s6277 + $0x18] sm:$0xff]
      %v6282 = vld [vmem:[%s6277 + $0x20] sm:$0xff]
      %v6283 = vld [vmem:[%s6277 + $0x28] sm:$0xff]
      %v6284 = vld [vmem:[%s6277 + $0x30] sm:$0xff]
      %v6285 = vld [vmem:[%s6277 + $0x38] sm:$0xff]
      %v6286 = vmul.f32 %v6278, %v1002
      %v6287 = vmul.f32 %v6279, %v1002
      %v6288 = vmul.f32 %v6280, %v1002
      %v6289 = vmul.f32 %v6281, %v1002
      %v6290 = vmul.f32 %v6282, %v1002
      %v6291 = vmul.f32 %v6283, %v1002
      %v6292 = vmul.f32 %v6284, %v1002
      %v6293 = vmul.f32 %v6285, %v1002
      %v6294 = vadd.f32 %v6286, %v1017
      %v6295 = vadd.f32 %v6287, %v1017
      %v6296 = vadd.f32 %v6288, %v1017
      %v6297 = vadd.f32 %v6289, %v1017
      %v6298 = vadd.f32 %v6290, %v1017
      %v6299 = vadd.f32 %v6291, %v1017
      %v6300 = vadd.f32 %v6292, %v1017
      %v6301 = vadd.f32 %v6293, %v1017
      %v6302 = vpack.c.bf16 %v6295, %v6294
      %v6303 = vpack.c.bf16 %v6297, %v6296
      %v6304 = vpack.c.bf16 %v6299, %v6298
      %v6305 = vpack.c.bf16 %v6301, %v6300
      %v6307 = vshrl.u32 %v6302, 16
      %v6309 = vshll.u32 %v6302, 16
      %v6311 = vrot.slane %v6309, 1
      %v6312 = vor.u32 %v6307, %v6311
      %v6314 = vshll.u32 %v6303, 16
      %v6316 = vrot.slane %v6314, 1
      %v6317 = vsel %vm1048, %v6312, %v6316
      %v6318 = vshrl.u32 %v6303, 16
      %v6320 = vor.u32 %v6318, %v6316
      %v6322 = vshll.u32 %v6304, 16
      %v6324 = vrot.slane %v6322, 1
      %v6325 = vsel %vm1048, %v6320, %v6324
      %v6326 = vshrl.u32 %v6304, 16
      %v6328 = vor.u32 %v6326, %v6324
      %v6330 = vshll.u32 %v6305, 16
      %v6332 = vrot.slane %v6330, 1
      %v6333 = vsel %vm1048, %v6328, %v6332
      %v6334 = vshrl.u32 %v6305, 16
      %v6336 = vor.u32 %v6334, %v6332
      %v6338 = vsel %vm1120, %v6317, 0
      %v6341 = vsel %vm1120, %v6325, 0
      %v6344 = vsel %vm1120, %v6333, 0
      %v6347 = vsel %vm1120, %v6336, 0
      %6349 = vmatprep.subr.bf16.mxu0 %v1105
      %6350 = vmatpush1.bf16.msra.mxu0 %v1104
      %6351 = vmatprep.subr.bf16.mxu0 %v1107
      %6352 = vmatpush1.bf16.msra.mxu0 %v1106
      %6353 = vmatprep.subr.bf16.mxu0 %v1109
      %6354 = vmatpush1.bf16.msra.mxu0 %v1108
      %6355 = vmatprep.subr.bf16.mxu0 %v1111
      %6356 = vmatpush1.bf16.msra.mxu0 %v1110
      %6357 = vmatprep.subr.bf16.mxu0 0
      %6358 = vmatpush1.bf16.msra.mxu0 0
      %6359 = vmatprep.subr.bf16.mxu0 0
      %6360 = vmatpush1.bf16.msra.mxu0 0
      %6361 = vmatprep.subr.bf16.mxu0 0
      %6362 = vmatpush1.bf16.msra.mxu0 0
      %6363 = vmatprep.subr.bf16.mxu0 0
      %6364 = vmatpush1.bf16.msra.mxu0 0
      %6365 = vmatprep.subr.bf16.mxu0 0
      %6366 = vmatpush1.bf16.msra.mxu0 0
      %6367 = vmatprep.subr.bf16.mxu0 0
      %6368 = vmatpush1.bf16.msra.mxu0 0
      %6369 = vmatprep.subr.bf16.mxu0 0
      %6370 = vmatpush1.bf16.msra.mxu0 0
      %6371 = vmatprep.subr.bf16.mxu0 0
      %6372 = vmatpush1.bf16.msra.mxu0 0
      %6373 = vmatprep.subr.bf16.mxu0 0
      %6374 = vmatpush1.bf16.msra.mxu0 0
      %6375 = vmatprep.subr.bf16.mxu0 0
      %6376 = vmatpush1.bf16.msra.mxu0 0
      %6377 = vmatprep.subr.bf16.mxu0 0
      %6378 = vmatpush1.bf16.msra.mxu0 0
      %6379 = vmatprep.subr.bf16.mxu0 0
      %6380 = vmatpush1.bf16.msra.mxu0 0
      %6381 = vmatprep.mubr.bf16.mxu0 0
      %6382 = vmatmul.mubr.bf16.gmra.mrb[0].mxu0 %v6338
      %v6383 = vpop.f32.mrb[0].mxu0
      %v6384 = vadd.f32 0.0, %v6383
      %v6385 = vpop.f32.mrb[0].mxu0
      %v6386 = vadd.f32 0.0, %v6385
      %v6387 = vpop.f32.mrb[0].mxu0
      %v6388 = vadd.f32 0.0, %v6387
      %v6389 = vpop.f32.mrb[0].mxu0
      %v6390 = vadd.f32 0.0, %v6389
      %6391 = vmatprep.mubr.bf16.mxu0 0
      %6392 = vmatmul.mubr.bf16.gmra.mrb[0].mxu0 %v6341
      %v6393 = vpop.f32.mrb[0].mxu0
      %v6394 = vadd.f32 0.0, %v6393
      %v6395 = vpop.f32.mrb[0].mxu0
      %v6396 = vadd.f32 0.0, %v6395
      %v6397 = vpop.f32.mrb[0].mxu0
      %v6398 = vadd.f32 0.0, %v6397
      %v6399 = vpop.f32.mrb[0].mxu0
      %v6400 = vadd.f32 0.0, %v6399
      %6401 = vmatprep.mubr.bf16.mxu0 0
      %6402 = vmatmul.mubr.bf16.gmra.mrb[0].mxu0 %v6344
      %v6403 = vpop.f32.mrb[0].mxu0
      %v6404 = vadd.f32 0.0, %v6403
      %v6405 = vpop.f32.mrb[0].mxu0
      %v6406 = vadd.f32 0.0, %v6405
      %v6407 = vpop.f32.mrb[0].mxu0
      %v6408 = vadd.f32 0.0, %v6407
      %v6409 = vpop.f32.mrb[0].mxu0
      %v6410 = vadd.f32 0.0, %v6409
      %6411 = vmatprep.mubr.bf16.mxu0 0
      %6412 = vmatmul.mubr.bf16.gmra.mrb[0].mxu0 %v6347
      %v6413 = vpop.f32.mrb[0].mxu0
      %v6414 = vadd.f32 0.0, %v6413
      %v6415 = vpop.f32.mrb[0].mxu0
      %v6416 = vadd.f32 0.0, %v6415
      %v6417 = vpop.f32.mrb[0].mxu0
      %v6418 = vadd.f32 0.0, %v6417
      %v6419 = vpop.f32.mrb[0].mxu0
      %v6420 = vadd.f32 0.0, %v6419
      %6421 = vdwg.mxu0
      %v6422 = vsel %vm1120, %v6302, 0
      %v6424 = vsel %vm1120, %v6303, 0
      %v6426 = vsel %vm1120, %v6304, 0
      %v6428 = vsel %vm1120, %v6305, 0
      %6430 = vmatprep.subr.bf16.mxu0 %v1231
      %6431 = vmatpush1.bf16.msra.mxu0 %v1230
      %6432 = vmatprep.subr.bf16.mxu0 %v1233
      %6433 = vmatpush1.bf16.msra.mxu0 %v1232
      %6434 = vmatprep.subr.bf16.mxu0 %v1235
      %6435 = vmatpush1.bf16.msra.mxu0 %v1234
      %6436 = vmatprep.subr.bf16.mxu0 %v1237
      %6437 = vmatpush1.bf16.msra.mxu0 %v1236
      %6438 = vmatprep.subr.bf16.mxu0 0
      %6439 = vmatpush1.bf16.msra.mxu0 0
      %6440 = vmatprep.subr.bf16.mxu0 0
      %6441 = vmatpush1.bf16.msra.mxu0 0
      %6442 = vmatprep.subr.bf16.mxu0 0
      %6443 = vmatpush1.bf16.msra.mxu0 0
      %6444 = vmatprep.subr.bf16.mxu0 0
      %6445 = vmatpush1.bf16.msra.mxu0 0
      %6446 = vmatprep.subr.bf16.mxu0 0
      %6447 = vmatpush1.bf16.msra.mxu0 0
      %6448 = vmatprep.subr.bf16.mxu0 0
      %6449 = vmatpush1.bf16.msra.mxu0 0
      %6450 = vmatprep.subr.bf16.mxu0 0
      %6451 = vmatpush1.bf16.msra.mxu0 0
      %6452 = vmatprep.subr.bf16.mxu0 0
      %6453 = vmatpush1.bf16.msra.mxu0 0
      %6454 = vmatprep.subr.bf16.mxu0 0
      %6455 = vmatpush1.bf16.msra.mxu0 0
      %6456 = vmatprep.subr.bf16.mxu0 0
      %6457 = vmatpush1.bf16.msra.mxu0 0
      %6458 = vmatprep.subr.bf16.mxu0 0
      %6459 = vmatpush1.bf16.msra.mxu0 0
      %6460 = vmatprep.subr.bf16.mxu0 0
      %6461 = vmatpush1.bf16.msra.mxu0 0
      %6462 = vmatprep.mubr.bf16.mxu0 0
      %6463 = vmatmul.mubr.bf16.gmra.mrb[0].mxu0 %v6422
      %v6464 = vpop.f32.mrb[0].mxu0
      %v6465 = vadd.f32 %v6384, %v6464
      %v6466 = vpop.f32.mrb[0].mxu0
      %v6467 = vadd.f32 %v6386, %v6466
      %v6468 = vpop.f32.mrb[0].mxu0
      %v6469 = vadd.f32 %v6388, %v6468
      %v6470 = vpop.f32.mrb[0].mxu0
      %v6471 = vadd.f32 %v6390, %v6470
      %6472 = vmatprep.mubr.bf16.mxu0 0
      %6473 = vmatmul.mubr.bf16.gmra.mrb[0].mxu0 %v6424
      %v6474 = vpop.f32.mrb[0].mxu0
      %v6475 = vadd.f32 %v6394, %v6474
      %v6476 = vpop.f32.mrb[0].mxu0
      %v6477 = vadd.f32 %v6396, %v6476
      %v6478 = vpop.f32.mrb[0].mxu0
      %v6479 = vadd.f32 %v6398, %v6478
      %v6480 = vpop.f32.mrb[0].mxu0
      %v6481 = vadd.f32 %v6400, %v6480
      %6482 = vmatprep.mubr.bf16.mxu0 0
      %6483 = vmatmul.mubr.bf16.gmra.mrb[0].mxu0 %v6426
      %v6484 = vpop.f32.mrb[0].mxu0
      %v6485 = vadd.f32 %v6404, %v6484
      %v6486 = vpop.f32.mrb[0].mxu0
      %v6487 = vadd.f32 %v6406, %v6486
      %v6488 = vpop.f32.mrb[0].mxu0
      %v6489 = vadd.f32 %v6408, %v6488
      %v6490 = vpop.f32.mrb[0].mxu0
      %v6491 = vadd.f32 %v6410, %v6490
      %6492 = vmatprep.mubr.bf16.mxu0 0
      %6493 = vmatmul.mubr.bf16.gmra.mrb[0].mxu0 %v6428
      %v6494 = vpop.f32.mrb[0].mxu0
      %v6495 = vadd.f32 %v6414, %v6494
      %v6496 = vpop.f32.mrb[0].mxu0
      %v6497 = vadd.f32 %v6416, %v6496
      %v6498 = vpop.f32.mrb[0].mxu0
      %v6499 = vadd.f32 %v6418, %v6498
      %v6500 = vpop.f32.mrb[0].mxu0
      %v6501 = vadd.f32 %v6420, %v6500
      %6502 = vdwg.mxu0
      %v6507 = vrot.slane %v6302, 1
      %v6508 = vrot.slane %v6303, 1
      %v6509 = vsel %vm1340, %v6507, %v6508
      %v6510 = vrot.slane %v6304, 1
      %v6511 = vsel %vm1340, %v6508, %v6510
      %v6512 = vrot.slane %v6305, 1
      %v6513 = vsel %vm1340, %v6510, %v6512
      %v6515 = vsel %vm1120, %v6509, 0
      %v6518 = vsel %vm1120, %v6511, 0
      %v6521 = vsel %vm1120, %v6513, 0
      %v6524 = vsel %vm1120, %v6512, 0
      %6526 = vmatprep.subr.bf16.mxu0 %v1373
      %6527 = vmatpush1.bf16.msra.mxu0 %v1372
      %6528 = vmatprep.subr.bf16.mxu0 %v1375
      %6529 = vmatpush1.bf16.msra.mxu0 %v1374
      %6530 = vmatprep.subr.bf16.mxu0 %v1377
      %6531 = vmatpush1.bf16.msra.mxu0 %v1376
      %6532 = vmatprep.subr.bf16.mxu0 %v1379
      %6533 = vmatpush1.bf16.msra.mxu0 %v1378
      %6534 = vmatprep.subr.bf16.mxu0 0
      %6535 = vmatpush1.bf16.msra.mxu0 0
      %6536 = vmatprep.subr.bf16.mxu0 0
      %6537 = vmatpush1.bf16.msra.mxu0 0
      %6538 = vmatprep.subr.bf16.mxu0 0
      %6539 = vmatpush1.bf16.msra.mxu0 0
      %6540 = vmatprep.subr.bf16.mxu0 0
      %6541 = vmatpush1.bf16.msra.mxu0 0
      %6542 = vmatprep.subr.bf16.mxu0 0
      %6543 = vmatpush1.bf16.msra.mxu0 0
      %6544 = vmatprep.subr.bf16.mxu0 0
      %6545 = vmatpush1.bf16.msra.mxu0 0
      %6546 = vmatprep.subr.bf16.mxu0 0
      %6547 = vmatpush1.bf16.msra.mxu0 0
      %6548 = vmatprep.subr.bf16.mxu0 0
      %6549 = vmatpush1.bf16.msra.mxu0 0
      %6550 = vmatprep.subr.bf16.mxu0 0
      %6551 = vmatpush1.bf16.msra.mxu0 0
      %6552 = vmatprep.subr.bf16.mxu0 0
      %6553 = vmatpush1.bf16.msra.mxu0 0
      %6554 = vmatprep.subr.bf16.mxu0 0
      %6555 = vmatpush1.bf16.msra.mxu0 0
      %6556 = vmatprep.subr.bf16.mxu0 0
      %6557 = vmatpush1.bf16.msra.mxu0 0
      %6558 = vmatprep.mubr.bf16.mxu0 0
      %6559 = vmatmul.mubr.bf16.gmra.mrb[0].mxu0 %v6515
      %v6560 = vpop.f32.mrb[0].mxu0
      %v6561 = vadd.f32 0.0, %v6560
      %v6562 = vpop.f32.mrb[0].mxu0
      %v6563 = vadd.f32 0.0, %v6562
      %v6564 = vpop.f32.mrb[0].mxu0
      %v6565 = vadd.f32 0.0, %v6564
      %v6566 = vpop.f32.mrb[0].mxu0
      %v6567 = vadd.f32 0.0, %v6566
      %6568 = vmatprep.mubr.bf16.mxu0 0
      %6569 = vmatmul.mubr.bf16.gmra.mrb[0].mxu0 %v6518
      %v6570 = vpop.f32.mrb[0].mxu0
      %v6571 = vadd.f32 0.0, %v6570
      %v6572 = vpop.f32.mrb[0].mxu0
      %v6573 = vadd.f32 0.0, %v6572
      %v6574 = vpop.f32.mrb[0].mxu0
      %v6575 = vadd.f32 0.0, %v6574
      %v6576 = vpop.f32.mrb[0].mxu0
      %v6577 = vadd.f32 0.0, %v6576
      %6578 = vmatprep.mubr.bf16.mxu0 0
      %6579 = vmatmul.mubr.bf16.gmra.mrb[0].mxu0 %v6521
      %v6580 = vpop.f32.mrb[0].mxu0
      %v6581 = vadd.f32 0.0, %v6580
      %v6582 = vpop.f32.mrb[0].mxu0
      %v6583 = vadd.f32 0.0, %v6582
      %v6584 = vpop.f32.mrb[0].mxu0
      %v6585 = vadd.f32 0.0, %v6584
      %v6586 = vpop.f32.mrb[0].mxu0
      %v6587 = vadd.f32 0.0, %v6586
      %6588 = vmatprep.mubr.bf16.mxu0 0
      %6589 = vmatmul.mubr.bf16.gmra.mrb[0].mxu0 %v6524
      %v6590 = vpop.f32.mrb[0].mxu0
      %v6591 = vadd.f32 0.0, %v6590
      %v6592 = vpop.f32.mrb[0].mxu0
      %v6593 = vadd.f32 0.0, %v6592
      %v6594 = vpop.f32.mrb[0].mxu0
      %v6595 = vadd.f32 0.0, %v6594
      %v6596 = vpop.f32.mrb[0].mxu0
      %v6597 = vadd.f32 0.0, %v6596
      %6598 = vdwg.mxu0
      %v6599 = vadd.f32 %v6465, %v6561
      %v6600 = vadd.f32 %v6467, %v6563
      %v6601 = vadd.f32 %v6469, %v6565
      %v6602 = vadd.f32 %v6471, %v6567
      %v6603 = vadd.f32 %v6475, %v6571
      %v6604 = vadd.f32 %v6477, %v6573
      %v6605 = vadd.f32 %v6479, %v6575
      %v6606 = vadd.f32 %v6481, %v6577
      %v6607 = vadd.f32 %v6485, %v6581
      %v6608 = vadd.f32 %v6487, %v6583
      %v6609 = vadd.f32 %v6489, %v6585
      %v6610 = vadd.f32 %v6491, %v6587
      %v6611 = vadd.f32 %v6495, %v6591
      %v6612 = vadd.f32 %v6497, %v6593
      %v6613 = vadd.f32 %v6499, %v6595
      %v6614 = vadd.f32 %v6501, %v6597
      %v6615 = vrot.slane %v6307, 1
      %v6616 = vrot.slane %v6309, 2
      %v6617 = vor.u32 %v6615, %v6616
      %v6618 = vrot.slane %v6318, 1
      %v6619 = vrot.slane %v6314, 2
      %v6620 = vor.u32 %v6618, %v6619
      %v6621 = vsel %vm1498, %v6617, %v6620
      %v6622 = vrot.slane %v6326, 1
      %v6623 = vrot.slane %v6322, 2
      %v6624 = vor.u32 %v6622, %v6623
      %v6625 = vsel %vm1498, %v6620, %v6624
      %v6626 = vrot.slane %v6334, 1
      %v6627 = vrot.slane %v6330, 2
      %v6628 = vor.u32 %v6626, %v6627
      %v6629 = vsel %vm1498, %v6624, %v6628
      %v6631 = vsel %vm1120, %v6621, 0
      %v6634 = vsel %vm1120, %v6625, 0
      %v6637 = vsel %vm1120, %v6629, 0
      %v6640 = vsel %vm1120, %v6628, 0
      %6642 = vmatprep.subr.bf16.mxu0 %v1539
      %6643 = vmatpush1.bf16.msra.mxu0 %v1538
      %6644 = vmatprep.subr.bf16.mxu0 %v1541
      %6645 = vmatpush1.bf16.msra.mxu0 %v1540
      %6646 = vmatprep.subr.bf16.mxu0 %v1543
      %6647 = vmatpush1.bf16.msra.mxu0 %v1542
      %6648 = vmatprep.subr.bf16.mxu0 %v1545
      %6649 = vmatpush1.bf16.msra.mxu0 %v1544
      %6650 = vmatprep.subr.bf16.mxu0 0
      %6651 = vmatpush1.bf16.msra.mxu0 0
      %6652 = vmatprep.subr.bf16.mxu0 0
      %6653 = vmatpush1.bf16.msra.mxu0 0
      %6654 = vmatprep.subr.bf16.mxu0 0
      %6655 = vmatpush1.bf16.msra.mxu0 0
      %6656 = vmatprep.subr.bf16.mxu0 0
      %6657 = vmatpush1.bf16.msra.mxu0 0
      %6658 = vmatprep.subr.bf16.mxu0 0
      %6659 = vmatpush1.bf16.msra.mxu0 0
      %6660 = vmatprep.subr.bf16.mxu0 0
      %6661 = vmatpush1.bf16.msra.mxu0 0
      %6662 = vmatprep.subr.bf16.mxu0 0
      %6663 = vmatpush1.bf16.msra.mxu0 0
      %6664 = vmatprep.subr.bf16.mxu0 0
      %6665 = vmatpush1.bf16.msra.mxu0 0
      %6666 = vmatprep.subr.bf16.mxu0 0
      %6667 = vmatpush1.bf16.msra.mxu0 0
      %6668 = vmatprep.subr.bf16.mxu0 0
      %6669 = vmatpush1.bf16.msra.mxu0 0
      %6670 = vmatprep.subr.bf16.mxu0 0
      %6671 = vmatpush1.bf16.msra.mxu0 0
      %6672 = vmatprep.subr.bf16.mxu0 0
      %6673 = vmatpush1.bf16.msra.mxu0 0
      %6674 = vmatprep.mubr.bf16.mxu0 0
      %6675 = vmatmul.mubr.bf16.gmra.mrb[0].mxu0 %v6631
      %v6676 = vpop.f32.mrb[0].mxu0
      %v6677 = vadd.f32 0.0, %v6676
      %v6678 = vpop.f32.mrb[0].mxu0
      %v6679 = vadd.f32 0.0, %v6678
      %v6680 = vpop.f32.mrb[0].mxu0
      %v6681 = vadd.f32 0.0, %v6680
      %v6682 = vpop.f32.mrb[0].mxu0
      %v6683 = vadd.f32 0.0, %v6682
      %6684 = vmatprep.mubr.bf16.mxu0 0
      %6685 = vmatmul.mubr.bf16.gmra.mrb[0].mxu0 %v6634
      %v6686 = vpop.f32.mrb[0].mxu0
      %v6687 = vadd.f32 0.0, %v6686
      %v6688 = vpop.f32.mrb[0].mxu0
      %v6689 = vadd.f32 0.0, %v6688
      %v6690 = vpop.f32.mrb[0].mxu0
      %v6691 = vadd.f32 0.0, %v6690
      %v6692 = vpop.f32.mrb[0].mxu0
      %v6693 = vadd.f32 0.0, %v6692
      %6694 = vmatprep.mubr.bf16.mxu0 0
      %6695 = vmatmul.mubr.bf16.gmra.mrb[0].mxu0 %v6637
      %v6696 = vpop.f32.mrb[0].mxu0
      %v6697 = vadd.f32 0.0, %v6696
      %v6698 = vpop.f32.mrb[0].mxu0
      %v6699 = vadd.f32 0.0, %v6698
      %v6700 = vpop.f32.mrb[0].mxu0
      %v6701 = vadd.f32 0.0, %v6700
      %v6702 = vpop.f32.mrb[0].mxu0
      %v6703 = vadd.f32 0.0, %v6702
      %6704 = vmatprep.mubr.bf16.mxu0 0
      %6705 = vmatmul.mubr.bf16.gmra.mrb[0].mxu0 %v6640
      %v6706 = vpop.f32.mrb[0].mxu0
      %v6707 = vadd.f32 0.0, %v6706
      %v6708 = vpop.f32.mrb[0].mxu0
      %v6709 = vadd.f32 0.0, %v6708
      %v6710 = vpop.f32.mrb[0].mxu0
      %v6711 = vadd.f32 0.0, %v6710
      %v6712 = vpop.f32.mrb[0].mxu0
      %v6713 = vadd.f32 0.0, %v6712
      %6714 = vdwg.mxu0
      %v6715 = vadd.f32 %v6599, %v6677
      %v6716 = vadd.f32 %v6600, %v6679
      %v6717 = vadd.f32 %v6601, %v6681
      %v6718 = vadd.f32 %v6602, %v6683
      %v6719 = vadd.f32 %v6603, %v6687
      %v6720 = vadd.f32 %v6604, %v6689
      %v6721 = vadd.f32 %v6605, %v6691
      %v6722 = vadd.f32 %v6606, %v6693
      %v6723 = vadd.f32 %v6607, %v6697
      %v6724 = vadd.f32 %v6608, %v6699
      %v6725 = vadd.f32 %v6609, %v6701
      %v6726 = vadd.f32 %v6610, %v6703
      %v6727 = vadd.f32 %v6611, %v6707
      %v6728 = vadd.f32 %v6612, %v6709
      %v6729 = vadd.f32 %v6613, %v6711
      %v6730 = vadd.f32 %v6614, %v6713
      %v6731 = vrot.slane %v6302, 2
      %v6732 = vrot.slane %v6303, 2
      %v6733 = vsel %vm1664, %v6731, %v6732
      %v6734 = vrot.slane %v6304, 2
      %v6735 = vsel %vm1664, %v6732, %v6734
      %v6736 = vrot.slane %v6305, 2
      %v6737 = vsel %vm1664, %v6734, %v6736
      %v6739 = vsel %vm1120, %v6733, 0
      %v6742 = vsel %vm1120, %v6735, 0
      %v6745 = vsel %vm1120, %v6737, 0
      %v6748 = vsel %vm1120, %v6736, 0
      %6750 = vmatprep.subr.bf16.mxu0 %v1697
      %6751 = vmatpush1.bf16.msra.mxu0 %v1696
      %6752 = vmatprep.subr.bf16.mxu0 %v1699
      %6753 = vmatpush1.bf16.msra.mxu0 %v1698
      %6754 = vmatprep.subr.bf16.mxu0 %v1701
      %6755 = vmatpush1.bf16.msra.mxu0 %v1700
      %6756 = vmatprep.subr.bf16.mxu0 %v1703
      %6757 = vmatpush1.bf16.msra.mxu0 %v1702
      %6758 = vmatprep.subr.bf16.mxu0 0
      %6759 = vmatpush1.bf16.msra.mxu0 0
      %6760 = vmatprep.subr.bf16.mxu0 0
      %6761 = vmatpush1.bf16.msra.mxu0 0
      %6762 = vmatprep.subr.bf16.mxu0 0
      %6763 = vmatpush1.bf16.msra.mxu0 0
      %6764 = vmatprep.subr.bf16.mxu0 0
      %6765 = vmatpush1.bf16.msra.mxu0 0
      %6766 = vmatprep.subr.bf16.mxu0 0
      %6767 = vmatpush1.bf16.msra.mxu0 0
      %6768 = vmatprep.subr.bf16.mxu0 0
      %6769 = vmatpush1.bf16.msra.mxu0 0
      %6770 = vmatprep.subr.bf16.mxu0 0
      %6771 = vmatpush1.bf16.msra.mxu0 0
      %6772 = vmatprep.subr.bf16.mxu0 0
      %6773 = vmatpush1.bf16.msra.mxu0 0
      %6774 = vmatprep.subr.bf16.mxu0 0
      %6775 = vmatpush1.bf16.msra.mxu0 0
      %6776 = vmatprep.subr.bf16.mxu0 0
      %6777 = vmatpush1.bf16.msra.mxu0 0
      %6778 = vmatprep.subr.bf16.mxu0 0
      %6779 = vmatpush1.bf16.msra.mxu0 0
      %6780 = vmatprep.subr.bf16.mxu0 0
      %6781 = vmatpush1.bf16.msra.mxu0 0
      %6782 = vmatprep.mubr.bf16.mxu0 0
      %6783 = vmatmul.mubr.bf16.gmra.mrb[0].mxu0 %v6739
      %v6784 = vpop.f32.mrb[0].mxu0
      %v6785 = vadd.f32 0.0, %v6784
      %v6786 = vpop.f32.mrb[0].mxu0
      %v6787 = vadd.f32 0.0, %v6786
      %v6788 = vpop.f32.mrb[0].mxu0
      %v6789 = vadd.f32 0.0, %v6788
      %v6790 = vpop.f32.mrb[0].mxu0
      %v6791 = vadd.f32 0.0, %v6790
      %6792 = vmatprep.mubr.bf16.mxu0 0
      %6793 = vmatmul.mubr.bf16.gmra.mrb[0].mxu0 %v6742
      %v6794 = vpop.f32.mrb[0].mxu0
      %v6795 = vadd.f32 0.0, %v6794
      %v6796 = vpop.f32.mrb[0].mxu0
      %v6797 = vadd.f32 0.0, %v6796
      %v6798 = vpop.f32.mrb[0].mxu0
      %v6799 = vadd.f32 0.0, %v6798
      %v6800 = vpop.f32.mrb[0].mxu0
      %v6801 = vadd.f32 0.0, %v6800
      %6802 = vmatprep.mubr.bf16.mxu0 0
      %6803 = vmatmul.mubr.bf16.gmra.mrb[0].mxu0 %v6745
      %v6804 = vpop.f32.mrb[0].mxu0
      %v6805 = vadd.f32 0.0, %v6804
      %v6806 = vpop.f32.mrb[0].mxu0
      %v6807 = vadd.f32 0.0, %v6806
      %v6808 = vpop.f32.mrb[0].mxu0
      %v6809 = vadd.f32 0.0, %v6808
      %v6810 = vpop.f32.mrb[0].mxu0
      %v6811 = vadd.f32 0.0, %v6810
      %6812 = vmatprep.mubr.bf16.mxu0 0
      %6813 = vmatmul.mubr.bf16.gmra.mrb[0].mxu0 %v6748
      %v6814 = vpop.f32.mrb[0].mxu0
      %v6815 = vadd.f32 0.0, %v6814
      %v6816 = vpop.f32.mrb[0].mxu0
      %v6817 = vadd.f32 0.0, %v6816
      %v6818 = vpop.f32.mrb[0].mxu0
      %v6819 = vadd.f32 0.0, %v6818
      %v6820 = vpop.f32.mrb[0].mxu0
      %v6821 = vadd.f32 0.0, %v6820
      %6822 = vdwg.mxu0
      %v6823 = vadd.f32 %v6715, %v6785
      %v6824 = vadd.f32 %v6716, %v6787
      %v6825 = vadd.f32 %v6717, %v6789
      %v6826 = vadd.f32 %v6718, %v6791
      %v6827 = vadd.f32 %v6719, %v6795
      %v6828 = vadd.f32 %v6720, %v6797
      %v6829 = vadd.f32 %v6721, %v6799
      %v6830 = vadd.f32 %v6722, %v6801
      %v6831 = vadd.f32 %v6723, %v6805
      %v6832 = vadd.f32 %v6724, %v6807
      %v6833 = vadd.f32 %v6725, %v6809
      %v6834 = vadd.f32 %v6726, %v6811
      %v6835 = vadd.f32 %v6727, %v6815
      %v6836 = vadd.f32 %v6728, %v6817
      %v6837 = vadd.f32 %v6729, %v6819
      %v6838 = vadd.f32 %v6730, %v6821
      %v6839 = vadd.f32 %v6823, %v1818
      %v6840 = vadd.f32 %v6824, %v1822
      %v6841 = vadd.f32 %v6825, %v1818
      %v6842 = vadd.f32 %v6826, %v1822
      %v6843 = vadd.f32 %v6827, %v1818
      %v6844 = vadd.f32 %v6828, %v1822
      %v6845 = vadd.f32 %v6829, %v1818
      %v6846 = vadd.f32 %v6830, %v1822
      %v6847 = vadd.f32 %v6831, %v1818
      %v6848 = vadd.f32 %v6832, %v1822
      %v6849 = vadd.f32 %v6833, %v1818
      %v6850 = vadd.f32 %v6834, %v1822
      %v6851 = vadd.f32 %v6835, %v1818
      %v6852 = vadd.f32 %v6836, %v1822
      %v6853 = vadd.f32 %v6837, %v1818
      %v6854 = vadd.f32 %v6838, %v1822
      %v6856 = vsel %vm1858, %v6853, 0
      %v6859 = vsel %vm1858, %v6854, 0
      %6861 = vmatprep.subr.mxu0 %v6840
      %6862 = vmatpush1.msra.mxu0 %v6839
      %6863 = vmatprep.subr.mxu0 %v6842
      %6864 = vmatpush1.msra.mxu0 %v6841
      %6865 = vmatprep.subr.mxu0 %v6844
      %6866 = vmatpush1.msra.mxu0 %v6843
      %6867 = vmatprep.subr.mxu0 %v6846
      %6868 = vmatpush1.msra.mxu0 %v6845
      %6869 = vmatprep.subr.mxu0 %v6848
      %6870 = vmatpush1.msra.mxu0 %v6847
      %6871 = vmatprep.subr.mxu0 %v6850
      %6872 = vmatpush1.msra.mxu0 %v6849
      %6873 = vmatprep.subr.mxu0 %v6852
      %6874 = vmatpush1.msra.mxu0 %v6851
      %6875 = vmatprep.subr.mxu0 %v6859
      %6876 = vmatpush1.msra.mxu0 %v6856
      %6877 = vmatprep.subr.mxu0 0.0
      %6878 = vmatpush1.msra.mxu0 0.0
      %6879 = vmatprep.subr.mxu0 0.0
      %6880 = vmatpush1.msra.mxu0 0.0
      %6881 = vmatprep.subr.mxu0 0.0
      %6882 = vmatpush1.msra.mxu0 0.0
      %6883 = vmatprep.subr.mxu0 0.0
      %6884 = vmatpush1.msra.mxu0 0.0
      %6885 = vmatprep.subr.mxu0 0.0
      %6886 = vmatpush1.msra.mxu0 0.0
      %6887 = vmatprep.subr.mxu0 0.0
      %6888 = vmatpush1.msra.mxu0 0.0
      %6889 = vmatprep.subr.mxu0 0.0
      %6890 = vmatpush1.msra.mxu0 0.0
      %6891 = vmatprep.subr.mxu0 0.0
      %6892 = vmatpush1.msra.mxu0 0.0
      %6893 = vmatprep.subr.mxu0 0.0
      %6894 = vmatpush1.msra.mxu0 0.0
      %6895 = vmatprep.subr.mxu0 0.0
      %6896 = vmatpush1.msra.mxu0 0.0
      %6897 = vmatprep.subr.mxu0 0.0
      %6898 = vmatpush1.msra.mxu0 0.0
      %6899 = vmatprep.subr.mxu0 0.0
      %6900 = vmatpush1.msra.mxu0 0.0
      %6901 = vmatprep.subr.mxu0 0.0
      %6902 = vmatpush1.msra.mxu0 0.0
      %6903 = vmatprep.subr.mxu0 0.0
      %6904 = vmatpush1.msra.mxu0 0.0
      %6905 = vmatprep.subr.mxu0 0.0
      %6906 = vmatpush1.msra.mxu0 0.0
      %6907 = vmatprep.subr.mxu0 0.0
      %6908 = vmatpush1.msra.mxu0 0.0
      %6909 = vmatprep.subr.mxu0 0.0
      %6910 = vmatpush1.msra.mxu0 0.0
      %6911 = vmatprep.subr.mxu0 0.0
      %6912 = vmatpush1.msra.mxu0 0.0
      %6913 = vmatprep.subr.mxu0 0.0
      %6914 = vmatpush1.msra.mxu0 0.0
      %6915 = vmatprep.subr.mxu0 0.0
      %6916 = vmatpush1.msra.mxu0 0.0
      %6917 = vmatprep.subr.mxu0 0.0
      %6918 = vmatpush1.msra.mxu0 0.0
      %6919 = vmatprep.subr.mxu0 0.0
      %6920 = vmatpush1.msra.mxu0 0.0
      %6921 = vmatprep.subr.mxu0 0.0
      %6922 = vmatpush1.msra.mxu0 0.0
      %6923 = vmatprep.subr.mxu0 0.0
      %6924 = vmatpush1.msra.mxu0 0.0
      %6925 = vmatprep.mubr.f32.mxu0 0.0
      %6926 = vmatmul.mubr.f32.gmra.mrb[0].mxu0 %v1847
      %v6927 = vpop.f32.mrb[0].mxu0
      %v6928 = vadd.f32 0.0, %v6927
      %v6929 = vpop.f32.mrb[0].mxu0
      %v6930 = vadd.f32 0.0, %v6929
      %6931 = vmatprep.mubr.f32.mxu0 0.0
      %6932 = vmatmul.mubr.f32.gmra.mrb[0].mxu0 %v1850
      %v6933 = vpop.f32.mrb[0].mxu0
      %v6934 = vadd.f32 0.0, %v6933
      %v6935 = vpop.f32.mrb[0].mxu0
      %v6936 = vadd.f32 0.0, %v6935
      %6937 = vmatprep.mubr.f32.mxu0 0.0
      %6938 = vmatmul.mubr.f32.gmra.mrb[0].mxu0 %v1853
      %v6939 = vpop.f32.mrb[0].mxu0
      %v6940 = vadd.f32 0.0, %v6939
      %v6941 = vpop.f32.mrb[0].mxu0
      %v6942 = vadd.f32 0.0, %v6941
      %6943 = vmatprep.mubr.f32.mxu0 0.0
      %6944 = vmatmul.mubr.f32.gmra.mrb[0].mxu0 %v1856
      %v6945 = vpop.f32.mrb[0].mxu0
      %v6946 = vadd.f32 0.0, %v6945
      %v6947 = vpop.f32.mrb[0].mxu0
      %v6948 = vadd.f32 0.0, %v6947
      %6949 = vdwg.mxu0
      %vm6950 = vcmp.gt.f32.partialorder %v6928, 0.0
      %vm6951 = vcmp.gt.f32.partialorder %v6930, 0.0
      %vm6952 = vcmp.gt.f32.partialorder %v6934, 0.0
      %vm6953 = vcmp.gt.f32.partialorder %v6936, 0.0
      %vm6954 = vcmp.gt.f32.partialorder %v6940, 0.0
      %vm6955 = vcmp.gt.f32.partialorder %v6942, 0.0
      %vm6956 = vcmp.gt.f32.partialorder %v6946, 0.0
      %vm6957 = vcmp.gt.f32.partialorder %v6948, 0.0
      %v6958 = vmin.f32 %v6928, 0.0
      %v6959 = vmin.f32 %v6930, 0.0
      %v6960 = vmin.f32 %v6934, 0.0
      %v6961 = vmin.f32 %v6936, 0.0
      %v6962 = vmin.f32 %v6940, 0.0
      %v6963 = vmin.f32 %v6942, 0.0
      %v6964 = vmin.f32 %v6946, 0.0
      %v6965 = vmin.f32 %v6948, 0.0
      %v6966 = vmul.f32 %v6958, 1.442695
      %v6967 = vpow.pop %v6966
      %v6968 = vmul.f32 %v6959, 1.442695
      %v6969 = vpow.pop %v6968
      %v6970 = vmul.f32 %v6960, 1.442695
      %v6971 = vpow.pop %v6970
      %v6972 = vmul.f32 %v6961, 1.442695
      %v6973 = vpow.pop %v6972
      %v6974 = vmul.f32 %v6962, 1.442695
      %v6975 = vpow.pop %v6974
      %v6976 = vmul.f32 %v6963, 1.442695
      %v6977 = vpow.pop %v6976
      %v6978 = vmul.f32 %v6964, 1.442695
      %v6979 = vpow.pop %v6978
      %v6980 = vmul.f32 %v6965, 1.442695
      %v6981 = vpow.pop %v6980
      %v6982 = vsub.f32 %v6967, 1.0
      %v6983 = vsub.f32 %v6969, 1.0
      %v6984 = vsub.f32 %v6971, 1.0
      %v6985 = vsub.f32 %v6973, 1.0
      %v6986 = vsub.f32 %v6975, 1.0
      %v6987 = vsub.f32 %v6977, 1.0
      %v6988 = vsub.f32 %v6979, 1.0
      %v6989 = vsub.f32 %v6981, 1.0
      %v6990 = vsel %vm6950, %v6928, %v6982
      %v6991 = vsel %vm6951, %v6930, %v6983
      %v6992 = vsel %vm6952, %v6934, %v6984
      %v6993 = vsel %vm6953, %v6936, %v6985
      %v6994 = vsel %vm6954, %v6940, %v6986
      %v6995 = vsel %vm6955, %v6942, %v6987
      %v6996 = vsel %vm6956, %v6946, %v6988
      %v6997 = vsel %vm6957, %v6948, %v6989
      %v6998 = vpack.c.bf16 %v6992, %v6990
      %v6999 = vpack.c.bf16 %v6993, %v6991
      %v7000 = vpack.c.bf16 %v6996, %v6994
      %v7001 = vpack.c.bf16 %v6997, %v6995
      %v7003 = vshrl.u32 %v6998, 16
      %v7005 = vshll.u32 %v6998, 16
      %v7007 = vrot.slane %v7005, 1
      %v7008 = vor.u32 %v7003, %v7007
      %v7010 = vshll.u32 %v7000, 16
      %v7012 = vrot.slane %v7010, 1
      %v7013 = vsel %vm1048, %v7008, %v7012
      %v7015 = vshrl.u32 %v6999, 16
      %v7017 = vshll.u32 %v6999, 16
      %v7019 = vrot.slane %v7017, 1
      %v7020 = vor.u32 %v7015, %v7019
      %v7022 = vshll.u32 %v7001, 16
      %v7024 = vrot.slane %v7022, 1
      %v7025 = vsel %vm1048, %v7020, %v7024
      %v7026 = vshrl.u32 %v7000, 16
      %v7028 = vor.u32 %v7026, %v7012
      %v7029 = vshrl.u32 %v7001, 16
      %v7031 = vor.u32 %v7029, %v7024
      %v7035 = vsel %vm2249, %v7025, 0
      %v7038 = vsel %vm2249, %v7031, 0
      %7040 = vmatprep.subr.bf16.mxu0 %v2190
      %7041 = vmatpush1.bf16.msra.mxu0 %v2189
      %7042 = vmatprep.subr.bf16.mxu0 %v2192
      %7043 = vmatpush1.bf16.msra.mxu0 %v2191
      %7044 = vmatprep.subr.bf16.mxu0 %v2194
      %7045 = vmatpush1.bf16.msra.mxu0 %v2193
      %7046 = vmatprep.subr.bf16.mxu0 %v2196
      %7047 = vmatpush1.bf16.msra.mxu0 %v2195
      %7048 = vmatprep.subr.bf16.mxu0 %v2198
      %7049 = vmatpush1.bf16.msra.mxu0 %v2197
      %7050 = vmatprep.subr.bf16.mxu0 %v2200
      %7051 = vmatpush1.bf16.msra.mxu0 %v2199
      %7052 = vmatprep.subr.bf16.mxu0 %v2202
      %7053 = vmatpush1.bf16.msra.mxu0 %v2201
      %7054 = vmatprep.subr.bf16.mxu0 %v2204
      %7055 = vmatpush1.bf16.msra.mxu0 %v2203
      %7056 = vmatprep.subr.bf16.mxu0 %v2206
      %7057 = vmatpush1.bf16.msra.mxu0 %v2205
      %7058 = vmatprep.subr.bf16.mxu0 %v2208
      %7059 = vmatpush1.bf16.msra.mxu0 %v2207
      %7060 = vmatprep.subr.bf16.mxu0 %v2210
      %7061 = vmatpush1.bf16.msra.mxu0 %v2209
      %7062 = vmatprep.subr.bf16.mxu0 %v2212
      %7063 = vmatpush1.bf16.msra.mxu0 %v2211
      %7064 = vmatprep.subr.bf16.mxu0 %v2214
      %7065 = vmatpush1.bf16.msra.mxu0 %v2213
      %7066 = vmatprep.subr.bf16.mxu0 %v2216
      %7067 = vmatpush1.bf16.msra.mxu0 %v2215
      %7068 = vmatprep.subr.bf16.mxu0 %v2218
      %7069 = vmatpush1.bf16.msra.mxu0 %v2217
      %7070 = vmatprep.subr.bf16.mxu0 0
      %7071 = vmatpush1.bf16.msra.mxu0 0
      %7072 = vmatprep.mubr.bf16.mxu0 %v7035
      %7073 = vmatmul.mubr.bf16.gmra.mrb[0].mxu0 %v7013
      %v7074 = vpop.f32.mrb[0].mxu0
      %v7075 = vadd.f32 0.0, %v7074
      %v7076 = vpop.f32.mrb[0].mxu0
      %v7077 = vadd.f32 0.0, %v7076
      %v7078 = vpop.f32.mrb[0].mxu0
      %v7079 = vadd.f32 0.0, %v7078
      %v7080 = vpop.f32.mrb[0].mxu0
      %v7081 = vadd.f32 0.0, %v7080
      %7082 = vmatprep.mubr.bf16.mxu0 %v7038
      %7083 = vmatmul.mubr.bf16.gmra.mrb[0].mxu0 %v7028
      %v7084 = vpop.f32.mrb[0].mxu0
      %v7085 = vadd.f32 0.0, %v7084
      %v7086 = vpop.f32.mrb[0].mxu0
      %v7087 = vadd.f32 0.0, %v7086
      %v7088 = vpop.f32.mrb[0].mxu0
      %v7089 = vadd.f32 0.0, %v7088
      %v7090 = vpop.f32.mrb[0].mxu0
      %v7091 = vadd.f32 0.0, %v7090
      %7092 = vdwg.mxu0
      %v7093 = vsel %vm2249, %v6999, 0
      %v7095 = vsel %vm2249, %v7001, 0
      %7097 = vmatprep.subr.bf16.mxu0 %v2400
      %7098 = vmatpush1.bf16.msra.mxu0 %v2399
      %7099 = vmatprep.subr.bf16.mxu0 %v2402
      %7100 = vmatpush1.bf16.msra.mxu0 %v2401
      %7101 = vmatprep.subr.bf16.mxu0 %v2404
      %7102 = vmatpush1.bf16.msra.mxu0 %v2403
      %7103 = vmatprep.subr.bf16.mxu0 %v2406
      %7104 = vmatpush1.bf16.msra.mxu0 %v2405
      %7105 = vmatprep.subr.bf16.mxu0 %v2408
      %7106 = vmatpush1.bf16.msra.mxu0 %v2407
      %7107 = vmatprep.subr.bf16.mxu0 %v2410
      %7108 = vmatpush1.bf16.msra.mxu0 %v2409
      %7109 = vmatprep.subr.bf16.mxu0 %v2412
      %7110 = vmatpush1.bf16.msra.mxu0 %v2411
      %7111 = vmatprep.subr.bf16.mxu0 %v2414
      %7112 = vmatpush1.bf16.msra.mxu0 %v2413
      %7113 = vmatprep.subr.bf16.mxu0 %v2416
      %7114 = vmatpush1.bf16.msra.mxu0 %v2415
      %7115 = vmatprep.subr.bf16.mxu0 %v2418
      %7116 = vmatpush1.bf16.msra.mxu0 %v2417
      %7117 = vmatprep.subr.bf16.mxu0 %v2420
      %7118 = vmatpush1.bf16.msra.mxu0 %v2419
      %7119 = vmatprep.subr.bf16.mxu0 %v2422
      %7120 = vmatpush1.bf16.msra.mxu0 %v2421
      %7121 = vmatprep.subr.bf16.mxu0 %v2424
      %7122 = vmatpush1.bf16.msra.mxu0 %v2423
      %7123 = vmatprep.subr.bf16.mxu0 %v2426
      %7124 = vmatpush1.bf16.msra.mxu0 %v2425
      %7125 = vmatprep.subr.bf16.mxu0 %v2428
      %7126 = vmatpush1.bf16.msra.mxu0 %v2427
      %7127 = vmatprep.subr.bf16.mxu0 0
      %7128 = vmatpush1.bf16.msra.mxu0 0
      %7129 = vmatprep.mubr.bf16.mxu0 %v7093
      %7130 = vmatmul.mubr.bf16.gmra.mrb[0].mxu0 %v6998
      %v7131 = vpop.f32.mrb[0].mxu0
      %v7132 = vadd.f32 %v7075, %v7131
      %v7133 = vpop.f32.mrb[0].mxu0
      %v7134 = vadd.f32 %v7077, %v7133
      %v7135 = vpop.f32.mrb[0].mxu0
      %v7136 = vadd.f32 %v7079, %v7135
      %v7137 = vpop.f32.mrb[0].mxu0
      %v7138 = vadd.f32 %v7081, %v7137
      %7139 = vmatprep.mubr.bf16.mxu0 %v7095
      %7140 = vmatmul.mubr.bf16.gmra.mrb[0].mxu0 %v7000
      %v7141 = vpop.f32.mrb[0].mxu0
      %v7142 = vadd.f32 %v7085, %v7141
      %v7143 = vpop.f32.mrb[0].mxu0
      %v7144 = vadd.f32 %v7087, %v7143
      %v7145 = vpop.f32.mrb[0].mxu0
      %v7146 = vadd.f32 %v7089, %v7145
      %v7147 = vpop.f32.mrb[0].mxu0
      %v7148 = vadd.f32 %v7091, %v7147
      %7149 = vdwg.mxu0
      %v7154 = vrot.slane %v6998, 1
      %v7155 = vrot.slane %v7000, 1
      %v7156 = vsel %vm1340, %v7154, %v7155
      %v7157 = vrot.slane %v6999, 1
      %v7158 = vrot.slane %v7001, 1
      %v7159 = vsel %vm1340, %v7157, %v7158
      %v7163 = vsel %vm2249, %v7159, 0
      %v7166 = vsel %vm2249, %v7158, 0
      %7168 = vmatprep.subr.bf16.mxu0 %v2650
      %7169 = vmatpush1.bf16.msra.mxu0 %v2649
      %7170 = vmatprep.subr.bf16.mxu0 %v2652
      %7171 = vmatpush1.bf16.msra.mxu0 %v2651
      %7172 = vmatprep.subr.bf16.mxu0 %v2654
      %7173 = vmatpush1.bf16.msra.mxu0 %v2653
      %7174 = vmatprep.subr.bf16.mxu0 %v2656
      %7175 = vmatpush1.bf16.msra.mxu0 %v2655
      %7176 = vmatprep.subr.bf16.mxu0 %v2658
      %7177 = vmatpush1.bf16.msra.mxu0 %v2657
      %7178 = vmatprep.subr.bf16.mxu0 %v2660
      %7179 = vmatpush1.bf16.msra.mxu0 %v2659
      %7180 = vmatprep.subr.bf16.mxu0 %v2662
      %7181 = vmatpush1.bf16.msra.mxu0 %v2661
      %7182 = vmatprep.subr.bf16.mxu0 %v2664
      %7183 = vmatpush1.bf16.msra.mxu0 %v2663
      %7184 = vmatprep.subr.bf16.mxu0 %v2666
      %7185 = vmatpush1.bf16.msra.mxu0 %v2665
      %7186 = vmatprep.subr.bf16.mxu0 %v2668
      %7187 = vmatpush1.bf16.msra.mxu0 %v2667
      %7188 = vmatprep.subr.bf16.mxu0 %v2670
      %7189 = vmatpush1.bf16.msra.mxu0 %v2669
      %7190 = vmatprep.subr.bf16.mxu0 %v2672
      %7191 = vmatpush1.bf16.msra.mxu0 %v2671
      %7192 = vmatprep.subr.bf16.mxu0 %v2674
      %7193 = vmatpush1.bf16.msra.mxu0 %v2673
      %7194 = vmatprep.subr.bf16.mxu0 %v2676
      %7195 = vmatpush1.bf16.msra.mxu0 %v2675
      %7196 = vmatprep.subr.bf16.mxu0 %v2678
      %7197 = vmatpush1.bf16.msra.mxu0 %v2677
      %7198 = vmatprep.subr.bf16.mxu0 0
      %7199 = vmatpush1.bf16.msra.mxu0 0
      %7200 = vmatprep.mubr.bf16.mxu0 %v7163
      %7201 = vmatmul.mubr.bf16.gmra.mrb[0].mxu0 %v7156
      %v7202 = vpop.f32.mrb[0].mxu0
      %v7203 = vadd.f32 0.0, %v7202
      %v7204 = vpop.f32.mrb[0].mxu0
      %v7205 = vadd.f32 0.0, %v7204
      %v7206 = vpop.f32.mrb[0].mxu0
      %v7207 = vadd.f32 0.0, %v7206
      %v7208 = vpop.f32.mrb[0].mxu0
      %v7209 = vadd.f32 0.0, %v7208
      %7210 = vmatprep.mubr.bf16.mxu0 %v7166
      %7211 = vmatmul.mubr.bf16.gmra.mrb[0].mxu0 %v7155
      %v7212 = vpop.f32.mrb[0].mxu0
      %v7213 = vadd.f32 0.0, %v7212
      %v7214 = vpop.f32.mrb[0].mxu0
      %v7215 = vadd.f32 0.0, %v7214
      %v7216 = vpop.f32.mrb[0].mxu0
      %v7217 = vadd.f32 0.0, %v7216
      %v7218 = vpop.f32.mrb[0].mxu0
      %v7219 = vadd.f32 0.0, %v7218
      %7220 = vdwg.mxu0
      %v7221 = vadd.f32 %v7132, %v7203
      %v7222 = vadd.f32 %v7134, %v7205
      %v7223 = vadd.f32 %v7136, %v7207
      %v7224 = vadd.f32 %v7138, %v7209
      %v7225 = vadd.f32 %v7142, %v7213
      %v7226 = vadd.f32 %v7144, %v7215
      %v7227 = vadd.f32 %v7146, %v7217
      %v7228 = vadd.f32 %v7148, %v7219
      %v7229 = vrot.slane %v7003, 1
      %v7230 = vrot.slane %v7005, 2
      %v7231 = vor.u32 %v7229, %v7230
      %v7232 = vrot.slane %v7026, 1
      %v7233 = vrot.slane %v7010, 2
      %v7234 = vor.u32 %v7232, %v7233
      %v7235 = vsel %vm1498, %v7231, %v7234
      %v7236 = vrot.slane %v7015, 1
      %v7237 = vrot.slane %v7017, 2
      %v7238 = vor.u32 %v7236, %v7237
      %v7239 = vrot.slane %v7029, 1
      %v7240 = vrot.slane %v7022, 2
      %v7241 = vor.u32 %v7239, %v7240
      %v7242 = vsel %vm1498, %v7238, %v7241
      %v7246 = vsel %vm2249, %v7242, 0
      %v7249 = vsel %vm2249, %v7241, 0
      %7251 = vmatprep.subr.bf16.mxu0 %v2914
      %7252 = vmatpush1.bf16.msra.mxu0 %v2913
      %7253 = vmatprep.subr.bf16.mxu0 %v2916
      %7254 = vmatpush1.bf16.msra.mxu0 %v2915
      %7255 = vmatprep.subr.bf16.mxu0 %v2918
      %7256 = vmatpush1.bf16.msra.mxu0 %v2917
      %7257 = vmatprep.subr.bf16.mxu0 %v2920
      %7258 = vmatpush1.bf16.msra.mxu0 %v2919
      %7259 = vmatprep.subr.bf16.mxu0 %v2922
      %7260 = vmatpush1.bf16.msra.mxu0 %v2921
      %7261 = vmatprep.subr.bf16.mxu0 %v2924
      %7262 = vmatpush1.bf16.msra.mxu0 %v2923
      %7263 = vmatprep.subr.bf16.mxu0 %v2926
      %7264 = vmatpush1.bf16.msra.mxu0 %v2925
      %7265 = vmatprep.subr.bf16.mxu0 %v2928
      %7266 = vmatpush1.bf16.msra.mxu0 %v2927
      %7267 = vmatprep.subr.bf16.mxu0 %v2930
      %7268 = vmatpush1.bf16.msra.mxu0 %v2929
      %7269 = vmatprep.subr.bf16.mxu0 %v2932
      %7270 = vmatpush1.bf16.msra.mxu0 %v2931
      %7271 = vmatprep.subr.bf16.mxu0 %v2934
      %7272 = vmatpush1.bf16.msra.mxu0 %v2933
      %7273 = vmatprep.subr.bf16.mxu0 %v2936
      %7274 = vmatpush1.bf16.msra.mxu0 %v2935
      %7275 = vmatprep.subr.bf16.mxu0 %v2938
      %7276 = vmatpush1.bf16.msra.mxu0 %v2937
      %7277 = vmatprep.subr.bf16.mxu0 %v2940
      %7278 = vmatpush1.bf16.msra.mxu0 %v2939
      %7279 = vmatprep.subr.bf16.mxu0 %v2942
      %7280 = vmatpush1.bf16.msra.mxu0 %v2941
      %7281 = vmatprep.subr.bf16.mxu0 0
      %7282 = vmatpush1.bf16.msra.mxu0 0
      %7283 = vmatprep.mubr.bf16.mxu0 %v7246
      %7284 = vmatmul.mubr.bf16.gmra.mrb[0].mxu0 %v7235
      %v7285 = vpop.f32.mrb[0].mxu0
      %v7286 = vadd.f32 0.0, %v7285
      %v7287 = vpop.f32.mrb[0].mxu0
      %v7288 = vadd.f32 0.0, %v7287
      %v7289 = vpop.f32.mrb[0].mxu0
      %v7290 = vadd.f32 0.0, %v7289
      %v7291 = vpop.f32.mrb[0].mxu0
      %v7292 = vadd.f32 0.0, %v7291
      %7293 = vmatprep.mubr.bf16.mxu0 %v7249
      %7294 = vmatmul.mubr.bf16.gmra.mrb[0].mxu0 %v7234
      %v7295 = vpop.f32.mrb[0].mxu0
      %v7296 = vadd.f32 0.0, %v7295
      %v7297 = vpop.f32.mrb[0].mxu0
      %v7298 = vadd.f32 0.0, %v7297
      %v7299 = vpop.f32.mrb[0].mxu0
      %v7300 = vadd.f32 0.0, %v7299
      %v7301 = vpop.f32.mrb[0].mxu0
      %v7302 = vadd.f32 0.0, %v7301
      %7303 = vdwg.mxu0
      %v7304 = vadd.f32 %v7221, %v7286
      %v7305 = vadd.f32 %v7222, %v7288
      %v7306 = vadd.f32 %v7223, %v7290
      %v7307 = vadd.f32 %v7224, %v7292
      %v7308 = vadd.f32 %v7225, %v7296
      %v7309 = vadd.f32 %v7226, %v7298
      %v7310 = vadd.f32 %v7227, %v7300
      %v7311 = vadd.f32 %v7228, %v7302
      %v7312 = vrot.slane %v6998, 2
      %v7313 = vrot.slane %v7000, 2
      %v7314 = vsel %vm1664, %v7312, %v7313
      %v7315 = vrot.slane %v6999, 2
      %v7316 = vrot.slane %v7001, 2
      %v7317 = vsel %vm1664, %v7315, %v7316
      %v7321 = vsel %vm2249, %v7317, 0
      %v7324 = vsel %vm2249, %v7316, 0
      %7326 = vmatprep.subr.bf16.mxu0 %v3170
      %7327 = vmatpush1.bf16.msra.mxu0 %v3169
      %7328 = vmatprep.subr.bf16.mxu0 %v3172
      %7329 = vmatpush1.bf16.msra.mxu0 %v3171
      %7330 = vmatprep.subr.bf16.mxu0 %v3174
      %7331 = vmatpush1.bf16.msra.mxu0 %v3173
      %7332 = vmatprep.subr.bf16.mxu0 %v3176
      %7333 = vmatpush1.bf16.msra.mxu0 %v3175
      %7334 = vmatprep.subr.bf16.mxu0 %v3178
      %7335 = vmatpush1.bf16.msra.mxu0 %v3177
      %7336 = vmatprep.subr.bf16.mxu0 %v3180
      %7337 = vmatpush1.bf16.msra.mxu0 %v3179
      %7338 = vmatprep.subr.bf16.mxu0 %v3182
      %7339 = vmatpush1.bf16.msra.mxu0 %v3181
      %7340 = vmatprep.subr.bf16.mxu0 %v3184
      %7341 = vmatpush1.bf16.msra.mxu0 %v3183
      %7342 = vmatprep.subr.bf16.mxu0 %v3186
      %7343 = vmatpush1.bf16.msra.mxu0 %v3185
      %7344 = vmatprep.subr.bf16.mxu0 %v3188
      %7345 = vmatpush1.bf16.msra.mxu0 %v3187
      %7346 = vmatprep.subr.bf16.mxu0 %v3190
      %7347 = vmatpush1.bf16.msra.mxu0 %v3189
      %7348 = vmatprep.subr.bf16.mxu0 %v3192
      %7349 = vmatpush1.bf16.msra.mxu0 %v3191
      %7350 = vmatprep.subr.bf16.mxu0 %v3194
      %7351 = vmatpush1.bf16.msra.mxu0 %v3193
      %7352 = vmatprep.subr.bf16.mxu0 %v3196
      %7353 = vmatpush1.bf16.msra.mxu0 %v3195
      %7354 = vmatprep.subr.bf16.mxu0 %v3198
      %7355 = vmatpush1.bf16.msra.mxu0 %v3197
      %7356 = vmatprep.subr.bf16.mxu0 0
      %7357 = vmatpush1.bf16.msra.mxu0 0
      %7358 = vmatprep.mubr.bf16.mxu0 %v7321
      %7359 = vmatmul.mubr.bf16.gmra.mrb[0].mxu0 %v7314
      %v7360 = vpop.f32.mrb[0].mxu0
      %v7361 = vadd.f32 0.0, %v7360
      %v7362 = vpop.f32.mrb[0].mxu0
      %v7363 = vadd.f32 0.0, %v7362
      %v7364 = vpop.f32.mrb[0].mxu0
      %v7365 = vadd.f32 0.0, %v7364
      %v7366 = vpop.f32.mrb[0].mxu0
      %v7367 = vadd.f32 0.0, %v7366
      %7368 = vmatprep.mubr.bf16.mxu0 %v7324
      %7369 = vmatmul.mubr.bf16.gmra.mrb[0].mxu0 %v7313
      %v7370 = vpop.f32.mrb[0].mxu0
      %v7371 = vadd.f32 0.0, %v7370
      %v7372 = vpop.f32.mrb[0].mxu0
      %v7373 = vadd.f32 0.0, %v7372
      %v7374 = vpop.f32.mrb[0].mxu0
      %v7375 = vadd.f32 0.0, %v7374
      %v7376 = vpop.f32.mrb[0].mxu0
      %v7377 = vadd.f32 0.0, %v7376
      %7378 = vdwg.mxu0
      %v7379 = vadd.f32 %v7304, %v7361
      %v7380 = vadd.f32 %v7305, %v7363
      %v7381 = vadd.f32 %v7306, %v7365
      %v7382 = vadd.f32 %v7307, %v7367
      %v7383 = vadd.f32 %v7308, %v7371
      %v7384 = vadd.f32 %v7309, %v7373
      %v7385 = vadd.f32 %v7310, %v7375
      %v7386 = vadd.f32 %v7311, %v7377
      %v7387 = vadd.f32 %v7379, %v3301
      %v7388 = vadd.f32 %v7380, %v3305
      %v7389 = vadd.f32 %v7381, %v3301
      %v7390 = vadd.f32 %v7382, %v3305
      %v7391 = vadd.f32 %v7383, %v3301
      %v7392 = vadd.f32 %v7384, %v3305
      %v7393 = vadd.f32 %v7385, %v3301
      %v7394 = vadd.f32 %v7386, %v3305
      %vm7395 = vcmp.gt.f32.partialorder %v7387, 0.0
      %vm7396 = vcmp.gt.f32.partialorder %v7388, 0.0
      %vm7397 = vcmp.gt.f32.partialorder %v7389, 0.0
      %vm7398 = vcmp.gt.f32.partialorder %v7390, 0.0
      %vm7399 = vcmp.gt.f32.partialorder %v7391, 0.0
      %vm7400 = vcmp.gt.f32.partialorder %v7392, 0.0
      %vm7401 = vcmp.gt.f32.partialorder %v7393, 0.0
      %vm7402 = vcmp.gt.f32.partialorder %v7394, 0.0
      %v7403 = vmin.f32 %v7387, 0.0
      %v7404 = vmin.f32 %v7388, 0.0
      %v7405 = vmin.f32 %v7389, 0.0
      %v7406 = vmin.f32 %v7390, 0.0
      %v7407 = vmin.f32 %v7391, 0.0
      %v7408 = vmin.f32 %v7392, 0.0
      %v7409 = vmin.f32 %v7393, 0.0
      %v7410 = vmin.f32 %v7394, 0.0
      %v7411 = vmul.f32 %v7403, 1.442695
      %v7412 = vpow.pop %v7411
      %v7413 = vmul.f32 %v7404, 1.442695
      %v7414 = vpow.pop %v7413
      %v7415 = vmul.f32 %v7405, 1.442695
      %v7416 = vpow.pop %v7415
      %v7417 = vmul.f32 %v7406, 1.442695
      %v7418 = vpow.pop %v7417
      %v7419 = vmul.f32 %v7407, 1.442695
      %v7420 = vpow.pop %v7419
      %v7421 = vmul.f32 %v7408, 1.442695
      %v7422 = vpow.pop %v7421
      %v7423 = vmul.f32 %v7409, 1.442695
      %v7424 = vpow.pop %v7423
      %v7425 = vmul.f32 %v7410, 1.442695
      %v7426 = vpow.pop %v7425
      %v7427 = vsub.f32 %v7412, 1.0
      %v7428 = vsub.f32 %v7414, 1.0
      %v7429 = vsub.f32 %v7416, 1.0
      %v7430 = vsub.f32 %v7418, 1.0
      %v7431 = vsub.f32 %v7420, 1.0
      %v7432 = vsub.f32 %v7422, 1.0
      %v7433 = vsub.f32 %v7424, 1.0
      %v7434 = vsub.f32 %v7426, 1.0
      %v7435 = vsel %vm7395, %v7387, %v7427
      %v7436 = vsel %vm7396, %v7388, %v7428
      %v7437 = vsel %vm7397, %v7389, %v7429
      %v7438 = vsel %vm7398, %v7390, %v7430
      %v7439 = vsel %vm7399, %v7391, %v7431
      %v7440 = vsel %vm7400, %v7392, %v7432
      %v7441 = vsel %vm7401, %v7393, %v7433
      %v7442 = vsel %vm7402, %v7394, %v7434
      %v7443 = vpack.c.bf16 %v7437, %v7435
      %v7444 = vpack.c.bf16 %v7438, %v7436
      %v7445 = vpack.c.bf16 %v7441, %v7439
      %v7446 = vpack.c.bf16 %v7442, %v7440
      %v7448 = vshrl.u32 %v7443, 16
      %v7450 = vshll.u32 %v7443, 16
      %v7452 = vrot.slane %v7450, 1
      %v7453 = vor.u32 %v7448, %v7452
      %v7455 = vshll.u32 %v7445, 16
      %v7457 = vrot.slane %v7455, 1
      %v7458 = vsel %vm1048, %v7453, %v7457
      %v7460 = vshrl.u32 %v7444, 16
      %v7462 = vshll.u32 %v7444, 16
      %v7464 = vrot.slane %v7462, 1
      %v7465 = vor.u32 %v7460, %v7464
      %v7467 = vshll.u32 %v7446, 16
      %v7469 = vrot.slane %v7467, 1
      %v7470 = vsel %vm1048, %v7465, %v7469
      %v7471 = vshrl.u32 %v7445, 16
      %v7473 = vor.u32 %v7471, %v7457
      %v7474 = vshrl.u32 %v7446, 16
      %v7476 = vor.u32 %v7474, %v7469
      %v7480 = vsel %vm3583, %v7470, 0
      %v7483 = vsel %vm3583, %v7476, 0
      %7485 = vmatprep.subr.bf16.mxu0 %v3532
      %7486 = vmatpush1.bf16.msra.mxu0 %v3531
      %7487 = vmatprep.subr.bf16.mxu0 %v3534
      %7488 = vmatpush1.bf16.msra.mxu0 %v3533
      %7489 = vmatprep.subr.bf16.mxu0 %v3536
      %7490 = vmatpush1.bf16.msra.mxu0 %v3535
      %7491 = vmatprep.subr.bf16.mxu0 %v3538
      %7492 = vmatpush1.bf16.msra.mxu0 %v3537
      %7493 = vmatprep.subr.bf16.mxu0 %v3540
      %7494 = vmatpush1.bf16.msra.mxu0 %v3539
      %7495 = vmatprep.subr.bf16.mxu0 %v3542
      %7496 = vmatpush1.bf16.msra.mxu0 %v3541
      %7497 = vmatprep.subr.bf16.mxu0 %v3544
      %7498 = vmatpush1.bf16.msra.mxu0 %v3543
      %7499 = vmatprep.subr.bf16.mxu0 %v3546
      %7500 = vmatpush1.bf16.msra.mxu0 %v3545
      %7501 = vmatprep.subr.bf16.mxu0 %v3548
      %7502 = vmatpush1.bf16.msra.mxu0 %v3547
      %7503 = vmatprep.subr.bf16.mxu0 %v3550
      %7504 = vmatpush1.bf16.msra.mxu0 %v3549
      %7505 = vmatprep.subr.bf16.mxu0 %v3552
      %7506 = vmatpush1.bf16.msra.mxu0 %v3551
      %7507 = vmatprep.subr.bf16.mxu0 %v3554
      %7508 = vmatpush1.bf16.msra.mxu0 %v3553
      %7509 = vmatprep.subr.bf16.mxu0 %v3556
      %7510 = vmatpush1.bf16.msra.mxu0 %v3555
      %7511 = vmatprep.subr.bf16.mxu0 0
      %7512 = vmatpush1.bf16.msra.mxu0 0
      %7513 = vmatprep.subr.bf16.mxu0 0
      %7514 = vmatpush1.bf16.msra.mxu0 0
      %7515 = vmatprep.subr.bf16.mxu0 0
      %7516 = vmatpush1.bf16.msra.mxu0 0
      %7517 = vmatprep.mubr.bf16.mxu0 %v7480
      %7518 = vmatmul.mubr.bf16.gmra.mrb[0].mxu0 %v7458
      %v7519 = vpop.f32.mrb[0].mxu0
      %v7520 = vadd.f32 0.0, %v7519
      %v7521 = vpop.f32.mrb[0].mxu0
      %v7522 = vadd.f32 0.0, %v7521
      %v7523 = vpop.f32.mrb[0].mxu0
      %v7524 = vadd.f32 0.0, %v7523
      %v7525 = vpop.f32.mrb[0].mxu0
      %v7526 = vadd.f32 0.0, %v7525
      %7527 = vmatprep.mubr.bf16.mxu0 %v7483
      %7528 = vmatmul.mubr.bf16.gmra.mrb[0].mxu0 %v7473
      %v7529 = vpop.f32.mrb[0].mxu0
      %v7530 = vadd.f32 0.0, %v7529
      %v7531 = vpop.f32.mrb[0].mxu0
      %v7532 = vadd.f32 0.0, %v7531
      %v7533 = vpop.f32.mrb[0].mxu0
      %v7534 = vpop.f32.mrb[0].mxu0
      %7535 = vdwg.mxu0
      %v7536 = vsel %vm3583, %v7444, 0
      %v7538 = vsel %vm3583, %v7446, 0
      %7540 = vmatprep.subr.bf16.mxu0 %v3720
      %7541 = vmatpush1.bf16.msra.mxu0 %v3719
      %7542 = vmatprep.subr.bf16.mxu0 %v3722
      %7543 = vmatpush1.bf16.msra.mxu0 %v3721
      %7544 = vmatprep.subr.bf16.mxu0 %v3724
      %7545 = vmatpush1.bf16.msra.mxu0 %v3723
      %7546 = vmatprep.subr.bf16.mxu0 %v3726
      %7547 = vmatpush1.bf16.msra.mxu0 %v3725
      %7548 = vmatprep.subr.bf16.mxu0 %v3728
      %7549 = vmatpush1.bf16.msra.mxu0 %v3727
      %7550 = vmatprep.subr.bf16.mxu0 %v3730
      %7551 = vmatpush1.bf16.msra.mxu0 %v3729
      %7552 = vmatprep.subr.bf16.mxu0 %v3732
      %7553 = vmatpush1.bf16.msra.mxu0 %v3731
      %7554 = vmatprep.subr.bf16.mxu0 %v3734
      %7555 = vmatpush1.bf16.msra.mxu0 %v3733
      %7556 = vmatprep.subr.bf16.mxu0 %v3736
      %7557 = vmatpush1.bf16.msra.mxu0 %v3735
      %7558 = vmatprep.subr.bf16.mxu0 %v3738
      %7559 = vmatpush1.bf16.msra.mxu0 %v3737
      %7560 = vmatprep.subr.bf16.mxu0 %v3740
      %7561 = vmatpush1.bf16.msra.mxu0 %v3739
      %7562 = vmatprep.subr.bf16.mxu0 %v3742
      %7563 = vmatpush1.bf16.msra.mxu0 %v3741
      %7564 = vmatprep.subr.bf16.mxu0 %v3744
      %7565 = vmatpush1.bf16.msra.mxu0 %v3743
      %7566 = vmatprep.subr.bf16.mxu0 0
      %7567 = vmatpush1.bf16.msra.mxu0 0
      %7568 = vmatprep.subr.bf16.mxu0 0
      %7569 = vmatpush1.bf16.msra.mxu0 0
      %7570 = vmatprep.subr.bf16.mxu0 0
      %7571 = vmatpush1.bf16.msra.mxu0 0
      %7572 = vmatprep.mubr.bf16.mxu0 %v7536
      %7573 = vmatmul.mubr.bf16.gmra.mrb[0].mxu0 %v7443
      %v7574 = vpop.f32.mrb[0].mxu0
      %v7575 = vadd.f32 %v7520, %v7574
      %v7576 = vpop.f32.mrb[0].mxu0
      %v7577 = vadd.f32 %v7522, %v7576
      %v7578 = vpop.f32.mrb[0].mxu0
      %v7579 = vadd.f32 %v7524, %v7578
      %v7580 = vpop.f32.mrb[0].mxu0
      %v7581 = vadd.f32 %v7526, %v7580
      %7582 = vmatprep.mubr.bf16.mxu0 %v7538
      %7583 = vmatmul.mubr.bf16.gmra.mrb[0].mxu0 %v7445
      %v7584 = vpop.f32.mrb[0].mxu0
      %v7585 = vadd.f32 %v7530, %v7584
      %v7586 = vpop.f32.mrb[0].mxu0
      %v7587 = vadd.f32 %v7532, %v7586
      %v7588 = vpop.f32.mrb[0].mxu0
      %v7589 = vpop.f32.mrb[0].mxu0
      %7590 = vdwg.mxu0
      %v7595 = vrot.slane %v7443, 1
      %v7596 = vrot.slane %v7445, 1
      %v7597 = vsel %vm1340, %v7595, %v7596
      %v7598 = vrot.slane %v7444, 1
      %v7599 = vrot.slane %v7446, 1
      %v7600 = vsel %vm1340, %v7598, %v7599
      %v7604 = vsel %vm3583, %v7600, 0
      %v7607 = vsel %vm3583, %v7599, 0
      %7609 = vmatprep.subr.bf16.mxu0 %v3944
      %7610 = vmatpush1.bf16.msra.mxu0 %v3943
      %7611 = vmatprep.subr.bf16.mxu0 %v3946
      %7612 = vmatpush1.bf16.msra.mxu0 %v3945
      %7613 = vmatprep.subr.bf16.mxu0 %v3948
      %7614 = vmatpush1.bf16.msra.mxu0 %v3947
      %7615 = vmatprep.subr.bf16.mxu0 %v3950
      %7616 = vmatpush1.bf16.msra.mxu0 %v3949
      %7617 = vmatprep.subr.bf16.mxu0 %v3952
      %7618 = vmatpush1.bf16.msra.mxu0 %v3951
      %7619 = vmatprep.subr.bf16.mxu0 %v3954
      %7620 = vmatpush1.bf16.msra.mxu0 %v3953
      %7621 = vmatprep.subr.bf16.mxu0 %v3956
      %7622 = vmatpush1.bf16.msra.mxu0 %v3955
      %7623 = vmatprep.subr.bf16.mxu0 %v3958
      %7624 = vmatpush1.bf16.msra.mxu0 %v3957
      %7625 = vmatprep.subr.bf16.mxu0 %v3960
      %7626 = vmatpush1.bf16.msra.mxu0 %v3959
      %7627 = vmatprep.subr.bf16.mxu0 %v3962
      %7628 = vmatpush1.bf16.msra.mxu0 %v3961
      %7629 = vmatprep.subr.bf16.mxu0 %v3964
      %7630 = vmatpush1.bf16.msra.mxu0 %v3963
      %7631 = vmatprep.subr.bf16.mxu0 %v3966
      %7632 = vmatpush1.bf16.msra.mxu0 %v3965
      %7633 = vmatprep.subr.bf16.mxu0 %v3968
      %7634 = vmatpush1.bf16.msra.mxu0 %v3967
      %7635 = vmatprep.subr.bf16.mxu0 0
      %7636 = vmatpush1.bf16.msra.mxu0 0
      %7637 = vmatprep.subr.bf16.mxu0 0
      %7638 = vmatpush1.bf16.msra.mxu0 0
      %7639 = vmatprep.subr.bf16.mxu0 0
      %7640 = vmatpush1.bf16.msra.mxu0 0
      %7641 = vmatprep.mubr.bf16.mxu0 %v7604
      %7642 = vmatmul.mubr.bf16.gmra.mrb[0].mxu0 %v7597
      %v7643 = vpop.f32.mrb[0].mxu0
      %v7644 = vadd.f32 0.0, %v7643
      %v7645 = vpop.f32.mrb[0].mxu0
      %v7646 = vadd.f32 0.0, %v7645
      %v7647 = vpop.f32.mrb[0].mxu0
      %v7648 = vadd.f32 0.0, %v7647
      %v7649 = vpop.f32.mrb[0].mxu0
      %v7650 = vadd.f32 0.0, %v7649
      %7651 = vmatprep.mubr.bf16.mxu0 %v7607
      %7652 = vmatmul.mubr.bf16.gmra.mrb[0].mxu0 %v7596
      %v7653 = vpop.f32.mrb[0].mxu0
      %v7654 = vadd.f32 0.0, %v7653
      %v7655 = vpop.f32.mrb[0].mxu0
      %v7656 = vadd.f32 0.0, %v7655
      %v7657 = vpop.f32.mrb[0].mxu0
      %v7658 = vpop.f32.mrb[0].mxu0
      %7659 = vdwg.mxu0
      %v7660 = vadd.f32 %v7575, %v7644
      %v7661 = vadd.f32 %v7577, %v7646
      %v7662 = vadd.f32 %v7579, %v7648
      %v7663 = vadd.f32 %v7581, %v7650
      %v7664 = vadd.f32 %v7585, %v7654
      %v7665 = vadd.f32 %v7587, %v7656
      %v7666 = vrot.slane %v7448, 1
      %v7667 = vrot.slane %v7450, 2
      %v7668 = vor.u32 %v7666, %v7667
      %v7669 = vrot.slane %v7471, 1
      %v7670 = vrot.slane %v7455, 2
      %v7671 = vor.u32 %v7669, %v7670
      %v7672 = vsel %vm1498, %v7668, %v7671
      %v7673 = vrot.slane %v7460, 1
      %v7674 = vrot.slane %v7462, 2
      %v7675 = vor.u32 %v7673, %v7674
      %v7676 = vrot.slane %v7474, 1
      %v7677 = vrot.slane %v7467, 2
      %v7678 = vor.u32 %v7676, %v7677
      %v7679 = vsel %vm1498, %v7675, %v7678
      %v7683 = vsel %vm3583, %v7679, 0
      %v7686 = vsel %vm3583, %v7678, 0
      %7688 = vmatprep.subr.bf16.mxu0 %v4180
      %7689 = vmatpush1.bf16.msra.mxu0 %v4179
      %7690 = vmatprep.subr.bf16.mxu0 %v4182
      %7691 = vmatpush1.bf16.msra.mxu0 %v4181
      %7692 = vmatprep.subr.bf16.mxu0 %v4184
      %7693 = vmatpush1.bf16.msra.mxu0 %v4183
      %7694 = vmatprep.subr.bf16.mxu0 %v4186
      %7695 = vmatpush1.bf16.msra.mxu0 %v4185
      %7696 = vmatprep.subr.bf16.mxu0 %v4188
      %7697 = vmatpush1.bf16.msra.mxu0 %v4187
      %7698 = vmatprep.subr.bf16.mxu0 %v4190
      %7699 = vmatpush1.bf16.msra.mxu0 %v4189
      %7700 = vmatprep.subr.bf16.mxu0 %v4192
      %7701 = vmatpush1.bf16.msra.mxu0 %v4191
      %7702 = vmatprep.subr.bf16.mxu0 %v4194
      %7703 = vmatpush1.bf16.msra.mxu0 %v4193
      %7704 = vmatprep.subr.bf16.mxu0 %v4196
      %7705 = vmatpush1.bf16.msra.mxu0 %v4195
      %7706 = vmatprep.subr.bf16.mxu0 %v4198
      %7707 = vmatpush1.bf16.msra.mxu0 %v4197
      %7708 = vmatprep.subr.bf16.mxu0 %v4200
      %7709 = vmatpush1.bf16.msra.mxu0 %v4199
      %7710 = vmatprep.subr.bf16.mxu0 %v4202
      %7711 = vmatpush1.bf16.msra.mxu0 %v4201
      %7712 = vmatprep.subr.bf16.mxu0 %v4204
      %7713 = vmatpush1.bf16.msra.mxu0 %v4203
      %7714 = vmatprep.subr.bf16.mxu0 0
      %7715 = vmatpush1.bf16.msra.mxu0 0
      %7716 = vmatprep.subr.bf16.mxu0 0
      %7717 = vmatpush1.bf16.msra.mxu0 0
      %7718 = vmatprep.subr.bf16.mxu0 0
      %7719 = vmatpush1.bf16.msra.mxu0 0
      %7720 = vmatprep.mubr.bf16.mxu0 %v7683
      %7721 = vmatmul.mubr.bf16.gmra.mrb[0].mxu0 %v7672
      %v7722 = vpop.f32.mrb[0].mxu0
      %v7723 = vadd.f32 0.0, %v7722
      %v7724 = vpop.f32.mrb[0].mxu0
      %v7725 = vadd.f32 0.0, %v7724
      %v7726 = vpop.f32.mrb[0].mxu0
      %v7727 = vadd.f32 0.0, %v7726
      %v7728 = vpop.f32.mrb[0].mxu0
      %v7729 = vadd.f32 0.0, %v7728
      %7730 = vmatprep.mubr.bf16.mxu0 %v7686
      %7731 = vmatmul.mubr.bf16.gmra.mrb[0].mxu0 %v7671
      %v7732 = vpop.f32.mrb[0].mxu0
      %v7733 = vadd.f32 0.0, %v7732
      %v7734 = vpop.f32.mrb[0].mxu0
      %v7735 = vadd.f32 0.0, %v7734
      %v7736 = vpop.f32.mrb[0].mxu0
      %v7737 = vpop.f32.mrb[0].mxu0
      %7738 = vdwg.mxu0
      %v7739 = vadd.f32 %v7660, %v7723
      %v7740 = vadd.f32 %v7661, %v7725
      %v7741 = vadd.f32 %v7662, %v7727
      %v7742 = vadd.f32 %v7663, %v7729
      %v7743 = vadd.f32 %v7664, %v7733
      %v7744 = vadd.f32 %v7665, %v7735
      %v7745 = vrot.slane %v7443, 2
      %v7746 = vrot.slane %v7445, 2
      %v7747 = vsel %vm1664, %v7745, %v7746
      %v7748 = vrot.slane %v7444, 2
      %v7749 = vrot.slane %v7446, 2
      %v7750 = vsel %vm1664, %v7748, %v7749
      %v7754 = vsel %vm3583, %v7750, 0
      %v7757 = vsel %vm3583, %v7749, 0
      %7759 = vmatprep.subr.bf16.mxu0 %v4408
      %7760 = vmatpush1.bf16.msra.mxu0 %v4407
      %7761 = vmatprep.subr.bf16.mxu0 %v4410
      %7762 = vmatpush1.bf16.msra.mxu0 %v4409
      %7763 = vmatprep.subr.bf16.mxu0 %v4412
      %7764 = vmatpush1.bf16.msra.mxu0 %v4411
      %7765 = vmatprep.subr.bf16.mxu0 %v4414
      %7766 = vmatpush1.bf16.msra.mxu0 %v4413
      %7767 = vmatprep.subr.bf16.mxu0 %v4416
      %7768 = vmatpush1.bf16.msra.mxu0 %v4415
      %7769 = vmatprep.subr.bf16.mxu0 %v4418
      %7770 = vmatpush1.bf16.msra.mxu0 %v4417
      %7771 = vmatprep.subr.bf16.mxu0 %v4420
      %7772 = vmatpush1.bf16.msra.mxu0 %v4419
      %7773 = vmatprep.subr.bf16.mxu0 %v4422
      %7774 = vmatpush1.bf16.msra.mxu0 %v4421
      %7775 = vmatprep.subr.bf16.mxu0 %v4424
      %7776 = vmatpush1.bf16.msra.mxu0 %v4423
      %7777 = vmatprep.subr.bf16.mxu0 %v4426
      %7778 = vmatpush1.bf16.msra.mxu0 %v4425
      %7779 = vmatprep.subr.bf16.mxu0 %v4428
      %7780 = vmatpush1.bf16.msra.mxu0 %v4427
      %7781 = vmatprep.subr.bf16.mxu0 %v4430
      %7782 = vmatpush1.bf16.msra.mxu0 %v4429
      %7783 = vmatprep.subr.bf16.mxu0 %v4432
      %7784 = vmatpush1.bf16.msra.mxu0 %v4431
      %7785 = vmatprep.subr.bf16.mxu0 0
      %7786 = vmatpush1.bf16.msra.mxu0 0
      %7787 = vmatprep.subr.bf16.mxu0 0
      %7788 = vmatpush1.bf16.msra.mxu0 0
      %7789 = vmatprep.subr.bf16.mxu0 0
      %7790 = vmatpush1.bf16.msra.mxu0 0
      %7791 = vmatprep.mubr.bf16.mxu0 %v7754
      %7792 = vmatmul.mubr.bf16.gmra.mrb[0].mxu0 %v7747
      %v7793 = vpop.f32.mrb[0].mxu0
      %v7794 = vadd.f32 0.0, %v7793
      %v7795 = vpop.f32.mrb[0].mxu0
      %v7796 = vadd.f32 0.0, %v7795
      %v7797 = vpop.f32.mrb[0].mxu0
      %v7798 = vadd.f32 0.0, %v7797
      %v7799 = vpop.f32.mrb[0].mxu0
      %v7800 = vadd.f32 0.0, %v7799
      %7801 = vmatprep.mubr.bf16.mxu0 %v7757
      %7802 = vmatmul.mubr.bf16.gmra.mrb[0].mxu0 %v7746
      %v7803 = vpop.f32.mrb[0].mxu0
      %v7804 = vadd.f32 0.0, %v7803
      %v7805 = vpop.f32.mrb[0].mxu0
      %v7806 = vadd.f32 0.0, %v7805
      %v7807 = vpop.f32.mrb[0].mxu0
      %v7808 = vpop.f32.mrb[0].mxu0
      %7809 = vdwg.mxu0
      %v7810 = vadd.f32 %v7739, %v7794
      %v7811 = vadd.f32 %v7740, %v7796
      %v7812 = vadd.f32 %v7741, %v7798
      %v7813 = vadd.f32 %v7742, %v7800
      %v7814 = vadd.f32 %v7743, %v7804
      %v7815 = vadd.f32 %v7744, %v7806
      %v7816 = vadd.f32 %v7810, %v4527
      %v7817 = vadd.f32 %v7811, %v4531
      %v7818 = vadd.f32 %v7812, %v4527
      %v7819 = vadd.f32 %v7813, %v4531
      %v7820 = vadd.f32 %v7814, %v4527
      %v7821 = vadd.f32 %v7815, %v4531
      %vm7822 = vcmp.gt.f32.partialorder %v7816, 0.0
      %vm7823 = vcmp.gt.f32.partialorder %v7817, 0.0
      %vm7824 = vcmp.gt.f32.partialorder %v7818, 0.0
      %vm7825 = vcmp.gt.f32.partialorder %v7819, 0.0
      %vm7826 = vcmp.gt.f32.partialorder %v7820, 0.0
      %vm7827 = vcmp.gt.f32.partialorder %v7821, 0.0
      %v7828 = vmin.f32 %v7816, 0.0
      %v7829 = vmin.f32 %v7817, 0.0
      %v7830 = vmin.f32 %v7818, 0.0
      %v7831 = vmin.f32 %v7819, 0.0
      %v7832 = vmin.f32 %v7820, 0.0
      %v7833 = vmin.f32 %v7821, 0.0
      %v7834 = vmul.f32 %v7828, 1.442695
      %v7835 = vpow.pop %v7834
      %v7836 = vmul.f32 %v7829, 1.442695
      %v7837 = vpow.pop %v7836
      %v7838 = vmul.f32 %v7830, 1.442695
      %v7839 = vpow.pop %v7838
      %v7840 = vmul.f32 %v7831, 1.442695
      %v7841 = vpow.pop %v7840
      %v7842 = vmul.f32 %v7832, 1.442695
      %v7843 = vpow.pop %v7842
      %v7844 = vmul.f32 %v7833, 1.442695
      %v7845 = vpow.pop %v7844
      %v7846 = vsub.f32 %v7835, 1.0
      %v7847 = vsub.f32 %v7837, 1.0
      %v7848 = vsub.f32 %v7839, 1.0
      %v7849 = vsub.f32 %v7841, 1.0
      %v7850 = vsub.f32 %v7843, 1.0
      %v7851 = vsub.f32 %v7845, 1.0
      %v7852 = vsel %vm7822, %v7816, %v7846
      %v7853 = vsel %vm7823, %v7817, %v7847
      %v7854 = vsel %vm7824, %v7818, %v7848
      %v7855 = vsel %vm7825, %v7819, %v7849
      %v7856 = vsel %vm7826, %v7820, %v7850
      %v7857 = vsel %vm7827, %v7821, %v7851
      %v7858 = vpack.c.bf16 %v7854, %v7852
      %v7859 = vpack.c.bf16 %v7855, %v7853
      %v7860 = vpack.c.bf16 %v7856, %v7856
      %v7861 = vpack.c.bf16 %v7857, %v7857
      %v7863 = vshrl.u32 %v7858, 16
      %v7865 = vshll.u32 %v7858, 16
      %v7867 = vrot.slane %v7865, 1
      %v7868 = vor.u32 %v7863, %v7867
      %v7870 = vshll.u32 %v7860, 16
      %v7872 = vrot.slane %v7870, 1
      %v7873 = vsel %vm1048, %v7868, %v7872
      %v7875 = vshrl.u32 %v7859, 16
      %v7877 = vshll.u32 %v7859, 16
      %v7879 = vrot.slane %v7877, 1
      %v7880 = vor.u32 %v7875, %v7879
      %v7882 = vshll.u32 %v7861, 16
      %v7884 = vrot.slane %v7882, 1
      %v7885 = vsel %vm1048, %v7880, %v7884
      %v7886 = vshrl.u32 %v7860, 16
      %v7888 = vor.u32 %v7886, %v7872
      %v7889 = vshrl.u32 %v7861, 16
      %v7891 = vor.u32 %v7889, %v7884
      %v7895 = vsel %vm4723, %v7885, 0
      %v7898 = vsel %vm4723, %v7891, 0
      %7900 = vmatprep.subr.bf16.mxu0 0
      %7901 = vmatpush1.bf16.msra.mxu0 %v4701
      %7902 = vmatprep.subr.bf16.mxu0 0
      %7903 = vmatpush1.bf16.msra.mxu0 %v4702
      %7904 = vmatprep.subr.bf16.mxu0 0
      %7905 = vmatpush1.bf16.msra.mxu0 %v4703
      %7906 = vmatprep.subr.bf16.mxu0 0
      %7907 = vmatpush1.bf16.msra.mxu0 %v4704
      %7908 = vmatprep.subr.bf16.mxu0 0
      %7909 = vmatpush1.bf16.msra.mxu0 %v4705
      %7910 = vmatprep.subr.bf16.mxu0 0
      %7911 = vmatpush1.bf16.msra.mxu0 %v4706
      %7912 = vmatprep.subr.bf16.mxu0 0
      %7913 = vmatpush1.bf16.msra.mxu0 %v4707
      %7914 = vmatprep.subr.bf16.mxu0 0
      %7915 = vmatpush1.bf16.msra.mxu0 %v4708
      %7916 = vmatprep.subr.bf16.mxu0 0
      %7917 = vmatpush1.bf16.msra.mxu0 %v4709
      %7918 = vmatprep.subr.bf16.mxu0 0
      %7919 = vmatpush1.bf16.msra.mxu0 %v4710
      %7920 = vmatprep.subr.bf16.mxu0 0
      %7921 = vmatpush1.bf16.msra.mxu0 %v4711
      %7922 = vmatprep.subr.bf16.mxu0 0
      %7923 = vmatpush1.bf16.msra.mxu0 0
      %7924 = vmatprep.subr.bf16.mxu0 0
      %7925 = vmatpush1.bf16.msra.mxu0 0
      %7926 = vmatprep.subr.bf16.mxu0 0
      %7927 = vmatpush1.bf16.msra.mxu0 0
      %7928 = vmatprep.subr.bf16.mxu0 0
      %7929 = vmatpush1.bf16.msra.mxu0 0
      %7930 = vmatprep.subr.bf16.mxu0 0
      %7931 = vmatpush1.bf16.msra.mxu0 0
      %7932 = vmatprep.mubr.bf16.mxu0 %v7895
      %7933 = vmatmul.mubr.bf16.gmra.mrb[0].mxu0 %v7873
      %v7934 = vpop.f32.mrb[0].mxu0
      %v7935 = vadd.f32 0.0, %v7934
      %v7936 = vpop.f32.mrb[0].mxu0
      %v7937 = vpop.f32.mrb[0].mxu0
      %v7938 = vadd.f32 0.0, %v7937
      %v7939 = vpop.f32.mrb[0].mxu0
      %7940 = vmatprep.mubr.bf16.mxu0 %v7898
      %7941 = vmatmul.mubr.bf16.gmra.mrb[0].mxu0 %v7888
      %v7942 = vpop.f32.mrb[0].mxu0
      %v7943 = vadd.f32 0.0, %v7942
      %v7944 = vpop.f32.mrb[0].mxu0
      %v7945 = vpop.f32.mrb[0].mxu0
      %v7946 = vpop.f32.mrb[0].mxu0
      %7947 = vdwg.mxu0
      %v7948 = vsel %vm4723, %v7859, 0
      %v7950 = vsel %vm4723, %v7861, 0
      %7952 = vmatprep.subr.bf16.mxu0 0
      %7953 = vmatpush1.bf16.msra.mxu0 %v4822
      %7954 = vmatprep.subr.bf16.mxu0 0
      %7955 = vmatpush1.bf16.msra.mxu0 %v4823
      %7956 = vmatprep.subr.bf16.mxu0 0
      %7957 = vmatpush1.bf16.msra.mxu0 %v4824
      %7958 = vmatprep.subr.bf16.mxu0 0
      %7959 = vmatpush1.bf16.msra.mxu0 %v4825
      %7960 = vmatprep.subr.bf16.mxu0 0
      %7961 = vmatpush1.bf16.msra.mxu0 %v4826
      %7962 = vmatprep.subr.bf16.mxu0 0
      %7963 = vmatpush1.bf16.msra.mxu0 %v4827
      %7964 = vmatprep.subr.bf16.mxu0 0
      %7965 = vmatpush1.bf16.msra.mxu0 %v4828
      %7966 = vmatprep.subr.bf16.mxu0 0
      %7967 = vmatpush1.bf16.msra.mxu0 %v4829
      %7968 = vmatprep.subr.bf16.mxu0 0
      %7969 = vmatpush1.bf16.msra.mxu0 %v4830
      %7970 = vmatprep.subr.bf16.mxu0 0
      %7971 = vmatpush1.bf16.msra.mxu0 %v4831
      %7972 = vmatprep.subr.bf16.mxu0 0
      %7973 = vmatpush1.bf16.msra.mxu0 %v4832
      %7974 = vmatprep.subr.bf16.mxu0 0
      %7975 = vmatpush1.bf16.msra.mxu0 0
      %7976 = vmatprep.subr.bf16.mxu0 0
      %7977 = vmatpush1.bf16.msra.mxu0 0
      %7978 = vmatprep.subr.bf16.mxu0 0
      %7979 = vmatpush1.bf16.msra.mxu0 0
      %7980 = vmatprep.subr.bf16.mxu0 0
      %7981 = vmatpush1.bf16.msra.mxu0 0
      %7982 = vmatprep.subr.bf16.mxu0 0
      %7983 = vmatpush1.bf16.msra.mxu0 0
      %7984 = vmatprep.mubr.bf16.mxu0 %v7948
      %7985 = vmatmul.mubr.bf16.gmra.mrb[0].mxu0 %v7858
      %v7986 = vpop.f32.mrb[0].mxu0
      %v7987 = vadd.f32 %v7935, %v7986
      %v7988 = vpop.f32.mrb[0].mxu0
      %v7989 = vpop.f32.mrb[0].mxu0
      %v7990 = vadd.f32 %v7938, %v7989
      %v7991 = vpop.f32.mrb[0].mxu0
      %7992 = vmatprep.mubr.bf16.mxu0 %v7950
      %7993 = vmatmul.mubr.bf16.gmra.mrb[0].mxu0 %v7860
      %v7994 = vpop.f32.mrb[0].mxu0
      %v7995 = vadd.f32 %v7943, %v7994
      %v7996 = vpop.f32.mrb[0].mxu0
      %v7997 = vpop.f32.mrb[0].mxu0
      %v7998 = vpop.f32.mrb[0].mxu0
      %7999 = vdwg.mxu0
      %v8004 = vrot.slane %v7858, 1
      %v8005 = vrot.slane %v7860, 1
      %v8006 = vsel %vm1340, %v8004, %v8005
      %v8007 = vrot.slane %v7859, 1
      %v8008 = vrot.slane %v7861, 1
      %v8009 = vsel %vm1340, %v8007, %v8008
      %v8013 = vsel %vm4723, %v8009, 0
      %v8016 = vsel %vm4723, %v8008, 0
      %8018 = vmatprep.subr.bf16.mxu0 0
      %8019 = vmatpush1.bf16.msra.mxu0 %v4975
      %8020 = vmatprep.subr.bf16.mxu0 0
      %8021 = vmatpush1.bf16.msra.mxu0 %v4976
      %8022 = vmatprep.subr.bf16.mxu0 0
      %8023 = vmatpush1.bf16.msra.mxu0 %v4977
      %8024 = vmatprep.subr.bf16.mxu0 0
      %8025 = vmatpush1.bf16.msra.mxu0 %v4978
      %8026 = vmatprep.subr.bf16.mxu0 0
      %8027 = vmatpush1.bf16.msra.mxu0 %v4979
      %8028 = vmatprep.subr.bf16.mxu0 0
      %8029 = vmatpush1.bf16.msra.mxu0 %v4980
      %8030 = vmatprep.subr.bf16.mxu0 0
      %8031 = vmatpush1.bf16.msra.mxu0 %v4981
      %8032 = vmatprep.subr.bf16.mxu0 0
      %8033 = vmatpush1.bf16.msra.mxu0 %v4982
      %8034 = vmatprep.subr.bf16.mxu0 0
      %8035 = vmatpush1.bf16.msra.mxu0 %v4983
      %8036 = vmatprep.subr.bf16.mxu0 0
      %8037 = vmatpush1.bf16.msra.mxu0 %v4984
      %8038 = vmatprep.subr.bf16.mxu0 0
      %8039 = vmatpush1.bf16.msra.mxu0 %v4985
      %8040 = vmatprep.subr.bf16.mxu0 0
      %8041 = vmatpush1.bf16.msra.mxu0 0
      %8042 = vmatprep.subr.bf16.mxu0 0
      %8043 = vmatpush1.bf16.msra.mxu0 0
      %8044 = vmatprep.subr.bf16.mxu0 0
      %8045 = vmatpush1.bf16.msra.mxu0 0
      %8046 = vmatprep.subr.bf16.mxu0 0
      %8047 = vmatpush1.bf16.msra.mxu0 0
      %8048 = vmatprep.subr.bf16.mxu0 0
      %8049 = vmatpush1.bf16.msra.mxu0 0
      %8050 = vmatprep.mubr.bf16.mxu0 %v8013
      %8051 = vmatmul.mubr.bf16.gmra.mrb[0].mxu0 %v8006
      %v8052 = vpop.f32.mrb[0].mxu0
      %v8053 = vadd.f32 0.0, %v8052
      %v8054 = vpop.f32.mrb[0].mxu0
      %v8055 = vpop.f32.mrb[0].mxu0
      %v8056 = vadd.f32 0.0, %v8055
      %v8057 = vpop.f32.mrb[0].mxu0
      %8058 = vmatprep.mubr.bf16.mxu0 %v8016
      %8059 = vmatmul.mubr.bf16.gmra.mrb[0].mxu0 %v8005
      %v8060 = vpop.f32.mrb[0].mxu0
      %v8061 = vadd.f32 0.0, %v8060
      %v8062 = vpop.f32.mrb[0].mxu0
      %v8063 = vpop.f32.mrb[0].mxu0
      %v8064 = vpop.f32.mrb[0].mxu0
      %8065 = vdwg.mxu0
      %v8066 = vadd.f32 %v7987, %v8053
      %v8067 = vadd.f32 %v7990, %v8056
      %v8068 = vadd.f32 %v7995, %v8061
      %v8069 = vrot.slane %v7863, 1
      %v8070 = vrot.slane %v7865, 2
      %v8071 = vor.u32 %v8069, %v8070
      %v8072 = vrot.slane %v7886, 1
      %v8073 = vrot.slane %v7870, 2
      %v8074 = vor.u32 %v8072, %v8073
      %v8075 = vsel %vm1498, %v8071, %v8074
      %v8076 = vrot.slane %v7875, 1
      %v8077 = vrot.slane %v7877, 2
      %v8078 = vor.u32 %v8076, %v8077
      %v8079 = vrot.slane %v7889, 1
      %v8080 = vrot.slane %v7882, 2
      %v8081 = vor.u32 %v8079, %v8080
      %v8082 = vsel %vm1498, %v8078, %v8081
      %v8086 = vsel %vm4723, %v8082, 0
      %v8089 = vsel %vm4723, %v8081, 0
      %8091 = vmatprep.subr.bf16.mxu0 0
      %8092 = vmatpush1.bf16.msra.mxu0 %v5137
      %8093 = vmatprep.subr.bf16.mxu0 0
      %8094 = vmatpush1.bf16.msra.mxu0 %v5138
      %8095 = vmatprep.subr.bf16.mxu0 0
      %8096 = vmatpush1.bf16.msra.mxu0 %v5139
      %8097 = vmatprep.subr.bf16.mxu0 0
      %8098 = vmatpush1.bf16.msra.mxu0 %v5140
      %8099 = vmatprep.subr.bf16.mxu0 0
      %8100 = vmatpush1.bf16.msra.mxu0 %v5141
      %8101 = vmatprep.subr.bf16.mxu0 0
      %8102 = vmatpush1.bf16.msra.mxu0 %v5142
      %8103 = vmatprep.subr.bf16.mxu0 0
      %8104 = vmatpush1.bf16.msra.mxu0 %v5143
      %8105 = vmatprep.subr.bf16.mxu0 0
      %8106 = vmatpush1.bf16.msra.mxu0 %v5144
      %8107 = vmatprep.subr.bf16.mxu0 0
      %8108 = vmatpush1.bf16.msra.mxu0 %v5145
      %8109 = vmatprep.subr.bf16.mxu0 0
      %8110 = vmatpush1.bf16.msra.mxu0 %v5146
      %8111 = vmatprep.subr.bf16.mxu0 0
      %8112 = vmatpush1.bf16.msra.mxu0 %v5147
      %8113 = vmatprep.subr.bf16.mxu0 0
      %8114 = vmatpush1.bf16.msra.mxu0 0
      %8115 = vmatprep.subr.bf16.mxu0 0
      %8116 = vmatpush1.bf16.msra.mxu0 0
      %8117 = vmatprep.subr.bf16.mxu0 0
      %8118 = vmatpush1.bf16.msra.mxu0 0
      %8119 = vmatprep.subr.bf16.mxu0 0
      %8120 = vmatpush1.bf16.msra.mxu0 0
      %8121 = vmatprep.subr.bf16.mxu0 0
      %8122 = vmatpush1.bf16.msra.mxu0 0
      %8123 = vmatprep.mubr.bf16.mxu0 %v8086
      %8124 = vmatmul.mubr.bf16.gmra.mrb[0].mxu0 %v8075
      %v8125 = vpop.f32.mrb[0].mxu0
      %v8126 = vadd.f32 0.0, %v8125
      %v8127 = vpop.f32.mrb[0].mxu0
      %v8128 = vpop.f32.mrb[0].mxu0
      %v8129 = vadd.f32 0.0, %v8128
      %v8130 = vpop.f32.mrb[0].mxu0
      %8131 = vmatprep.mubr.bf16.mxu0 %v8089
      %8132 = vmatmul.mubr.bf16.gmra.mrb[0].mxu0 %v8074
      %v8133 = vpop.f32.mrb[0].mxu0
      %v8134 = vadd.f32 0.0, %v8133
      %v8135 = vpop.f32.mrb[0].mxu0
      %v8136 = vpop.f32.mrb[0].mxu0
      %v8137 = vpop.f32.mrb[0].mxu0
      %8138 = vdwg.mxu0
      %v8139 = vadd.f32 %v8066, %v8126
      %v8140 = vadd.f32 %v8067, %v8129
      %v8141 = vadd.f32 %v8068, %v8134
      %v8142 = vrot.slane %v7858, 2
      %v8143 = vrot.slane %v7860, 2
      %v8144 = vsel %vm1664, %v8142, %v8143
      %v8145 = vrot.slane %v7859, 2
      %v8146 = vrot.slane %v7861, 2
      %v8147 = vsel %vm1664, %v8145, %v8146
      %v8151 = vsel %vm4723, %v8147, 0
      %v8154 = vsel %vm4723, %v8146, 0
      %8156 = vmatprep.subr.bf16.mxu0 0
      %8157 = vmatpush1.bf16.msra.mxu0 %v5291
      %8158 = vmatprep.subr.bf16.mxu0 0
      %8159 = vmatpush1.bf16.msra.mxu0 %v5292
      %8160 = vmatprep.subr.bf16.mxu0 0
      %8161 = vmatpush1.bf16.msra.mxu0 %v5293
      %8162 = vmatprep.subr.bf16.mxu0 0
      %8163 = vmatpush1.bf16.msra.mxu0 %v5294
      %8164 = vmatprep.subr.bf16.mxu0 0
      %8165 = vmatpush1.bf16.msra.mxu0 %v5295
      %8166 = vmatprep.subr.bf16.mxu0 0
      %8167 = vmatpush1.bf16.msra.mxu0 %v5296
      %8168 = vmatprep.subr.bf16.mxu0 0
      %8169 = vmatpush1.bf16.msra.mxu0 %v5297
      %8170 = vmatprep.subr.bf16.mxu0 0
      %8171 = vmatpush1.bf16.msra.mxu0 %v5298
      %8172 = vmatprep.subr.bf16.mxu0 0
      %8173 = vmatpush1.bf16.msra.mxu0 %v5299
      %8174 = vmatprep.subr.bf16.mxu0 0
      %8175 = vmatpush1.bf16.msra.mxu0 %v5300
      %8176 = vmatprep.subr.bf16.mxu0 0
      %8177 = vmatpush1.bf16.msra.mxu0 %v5301
      %8178 = vmatprep.subr.bf16.mxu0 0
      %8179 = vmatpush1.bf16.msra.mxu0 0
      %8180 = vmatprep.subr.bf16.mxu0 0
      %8181 = vmatpush1.bf16.msra.mxu0 0
      %8182 = vmatprep.subr.bf16.mxu0 0
      %8183 = vmatpush1.bf16.msra.mxu0 0
      %8184 = vmatprep.subr.bf16.mxu0 0
      %8185 = vmatpush1.bf16.msra.mxu0 0
      %8186 = vmatprep.subr.bf16.mxu0 0
      %8187 = vmatpush1.bf16.msra.mxu0 0
      %8188 = vmatprep.mubr.bf16.mxu0 %v8151
      %8189 = vmatmul.mubr.bf16.gmra.mrb[0].mxu0 %v8144
      %v8190 = vpop.f32.mrb[0].mxu0
      %v8191 = vadd.f32 0.0, %v8190
      %v8192 = vpop.f32.mrb[0].mxu0
      %v8193 = vpop.f32.mrb[0].mxu0
      %v8194 = vadd.f32 0.0, %v8193
      %v8195 = vpop.f32.mrb[0].mxu0
      %8196 = vmatprep.mubr.bf16.mxu0 %v8154
      %8197 = vmatmul.mubr.bf16.gmra.mrb[0].mxu0 %v8143
      %v8198 = vpop.f32.mrb[0].mxu0
      %v8199 = vadd.f32 0.0, %v8198
      %v8200 = vpop.f32.mrb[0].mxu0
      %v8201 = vpop.f32.mrb[0].mxu0
      %v8202 = vpop.f32.mrb[0].mxu0
      %8203 = vdwg.mxu0
      %v8204 = vadd.f32 %v8139, %v8191
      %v8205 = vadd.f32 %v8140, %v8194
      %v8206 = vadd.f32 %v8141, %v8199
      %v8207 = vadd.f32 %v8204, %v5375
      %v8208 = vadd.f32 %v8205, %v5375
      %v8209 = vadd.f32 %v8206, %v5375
      %v8211 = vsel %vm5389, %v8209, 0
      %8213 = vmatprep.subr.mxu0 0.0
      %8214 = vmatpush1.msra.mxu0 %v8207
      %8215 = vmatprep.subr.mxu0 0.0
      %8216 = vmatpush1.msra.mxu0 %v8208
      %8217 = vmatprep.subr.mxu0 0.0
      %8218 = vmatpush1.msra.mxu0 %v8211
      %8219 = vmatprep.subr.mxu0 0.0
      %8220 = vmatpush1.msra.mxu0 0.0
      %8221 = vmatprep.subr.mxu0 0.0
      %8222 = vmatpush1.msra.mxu0 0.0
      %8223 = vmatprep.subr.mxu0 0.0
      %8224 = vmatpush1.msra.mxu0 0.0
      %8225 = vmatprep.subr.mxu0 0.0
      %8226 = vmatpush1.msra.mxu0 0.0
      %8227 = vmatprep.subr.mxu0 0.0
      %8228 = vmatpush1.msra.mxu0 0.0
      %8229 = vmatprep.subr.mxu0 0.0
      %8230 = vmatpush1.msra.mxu0 0.0
      %8231 = vmatprep.subr.mxu0 0.0
      %8232 = vmatpush1.msra.mxu0 0.0
      %8233 = vmatprep.subr.mxu0 0.0
      %8234 = vmatpush1.msra.mxu0 0.0
      %8235 = vmatprep.subr.mxu0 0.0
      %8236 = vmatpush1.msra.mxu0 0.0
      %8237 = vmatprep.subr.mxu0 0.0
      %8238 = vmatpush1.msra.mxu0 0.0
      %8239 = vmatprep.subr.mxu0 0.0
      %8240 = vmatpush1.msra.mxu0 0.0
      %8241 = vmatprep.subr.mxu0 0.0
      %8242 = vmatpush1.msra.mxu0 0.0
      %8243 = vmatprep.subr.mxu0 0.0
      %8244 = vmatpush1.msra.mxu0 0.0
      %8245 = vmatprep.subr.mxu0 0.0
      %8246 = vmatpush1.msra.mxu0 0.0
      %8247 = vmatprep.subr.mxu0 0.0
      %8248 = vmatpush1.msra.mxu0 0.0
      %8249 = vmatprep.subr.mxu0 0.0
      %8250 = vmatpush1.msra.mxu0 0.0
      %8251 = vmatprep.subr.mxu0 0.0
      %8252 = vmatpush1.msra.mxu0 0.0
      %8253 = vmatprep.subr.mxu0 0.0
      %8254 = vmatpush1.msra.mxu0 0.0
      %8255 = vmatprep.subr.mxu0 0.0
      %8256 = vmatpush1.msra.mxu0 0.0
      %8257 = vmatprep.subr.mxu0 0.0
      %8258 = vmatpush1.msra.mxu0 0.0
      %8259 = vmatprep.subr.mxu0 0.0
      %8260 = vmatpush1.msra.mxu0 0.0
      %8261 = vmatprep.subr.mxu0 0.0
      %8262 = vmatpush1.msra.mxu0 0.0
      %8263 = vmatprep.subr.mxu0 0.0
      %8264 = vmatpush1.msra.mxu0 0.0
      %8265 = vmatprep.subr.mxu0 0.0
      %8266 = vmatpush1.msra.mxu0 0.0
      %8267 = vmatprep.subr.mxu0 0.0
      %8268 = vmatpush1.msra.mxu0 0.0
      %8269 = vmatprep.subr.mxu0 0.0
      %8270 = vmatpush1.msra.mxu0 0.0
      %8271 = vmatprep.subr.mxu0 0.0
      %8272 = vmatpush1.msra.mxu0 0.0
      %8273 = vmatprep.subr.mxu0 0.0
      %8274 = vmatpush1.msra.mxu0 0.0
      %8275 = vmatprep.subr.mxu0 0.0
      %8276 = vmatpush1.msra.mxu0 0.0
      %8277 = vmatprep.mubr.f32.mxu0 0.0
      %8278 = vmatmul.mubr.f32.gmra.mrb[0].mxu0 %v5384
      %v8279 = vpop.f32.mrb[0].mxu0
      %v8280 = vadd.f32 0.0, %v8279
      %v8281 = vpop.f32.mrb[0].mxu0
      %8282 = vmatprep.mubr.f32.mxu0 0.0
      %8283 = vmatmul.mubr.f32.gmra.mrb[0].mxu0 %v5387
      %v8284 = vpop.f32.mrb[0].mxu0
      %v8285 = vadd.f32 0.0, %v8284
      %v8286 = vpop.f32.mrb[0].mxu0
      %8287 = vdwg.mxu0
      %vm8288 = vcmp.gt.f32.partialorder %v8280, 0.0
      %vm8289 = vcmp.gt.f32.partialorder %v8285, 0.0
      %v8290 = vmin.f32 %v8280, 0.0
      %v8291 = vmin.f32 %v8285, 0.0
      %v8292 = vmul.f32 %v8290, 1.442695
      %v8293 = vpow.pop %v8292
      %v8294 = vmul.f32 %v8291, 1.442695
      %v8295 = vpow.pop %v8294
      %v8296 = vsub.f32 %v8293, 1.0
      %v8297 = vsub.f32 %v8295, 1.0
      %v8298 = vsel %vm8288, %v8280, %v8296
      %v8299 = vsel %vm8289, %v8285, %v8297
      %v8300 = vpack.c.bf16 %v8299, %v8298
      %v8302 = vshrl.u32 %v8300, 16
      %v8304 = vshll.u32 %v8300, 16
      %v8306 = vrot.slane %v8304, 1
      %v8307 = vor.u32 %v8302, %v8306
      %v8309 = vsel %vm5534, %v8307, 0
      %8311 = vmatprep.subr.bf16.mxu0 0
      %8312 = vmatpush1.bf16.msra.mxu0 %v5525
      %8313 = vmatprep.subr.bf16.mxu0 0
      %8314 = vmatpush1.bf16.msra.mxu0 %v5526
      %8315 = vmatprep.subr.bf16.mxu0 0
      %8316 = vmatpush1.bf16.msra.mxu0 %v5527
      %8317 = vmatprep.subr.bf16.mxu0 0
      %8318 = vmatpush1.bf16.msra.mxu0 %v5528
      %8319 = vmatprep.subr.bf16.mxu0 0
      %8320 = vmatpush1.bf16.msra.mxu0 %v5539
      %8321 = vmatprep.subr.bf16.mxu0 0
      %8322 = vmatpush1.bf16.msra.mxu0 0
      %8323 = vmatprep.subr.bf16.mxu0 0
      %8324 = vmatpush1.bf16.msra.mxu0 0
      %8325 = vmatprep.subr.bf16.mxu0 0
      %8326 = vmatpush1.bf16.msra.mxu0 0
      %8327 = vmatprep.subr.bf16.mxu0 0
      %8328 = vmatpush1.bf16.msra.mxu0 0
      %8329 = vmatprep.subr.bf16.mxu0 0
      %8330 = vmatpush1.bf16.msra.mxu0 0
      %8331 = vmatprep.subr.bf16.mxu0 0
      %8332 = vmatpush1.bf16.msra.mxu0 0
      %8333 = vmatprep.subr.bf16.mxu0 0
      %8334 = vmatpush1.bf16.msra.mxu0 0
      %8335 = vmatprep.subr.bf16.mxu0 0
      %8336 = vmatpush1.bf16.msra.mxu0 0
      %8337 = vmatprep.subr.bf16.mxu0 0
      %8338 = vmatpush1.bf16.msra.mxu0 0
      %8339 = vmatprep.subr.bf16.mxu0 0
      %8340 = vmatpush1.bf16.msra.mxu0 0
      %8341 = vmatprep.subr.bf16.mxu0 0
      %8342 = vmatpush1.bf16.msra.mxu0 0
      %8343 = vmatprep.mubr.bf16.mxu0 0
      %8344 = vmatmul.mubr.bf16.gmra.mrb[0].mxu0 %v8309
      %v8345 = vpop.f32.mrb[0].mxu0
      %v8346 = vadd.f32 0.0, %v8345
      %v8347 = vpop.f32.mrb[0].mxu0
      %v8348 = vpop.f32.mrb[0].mxu0
      %v8349 = vpop.f32.mrb[0].mxu0
      %8350 = vdwg.mxu0
      %v8351 = vsel %vm5534, %v8300, 0
      %8353 = vmatprep.subr.bf16.mxu0 0
      %8354 = vmatpush1.bf16.msra.mxu0 %v5599
      %8355 = vmatprep.subr.bf16.mxu0 0
      %8356 = vmatpush1.bf16.msra.mxu0 %v5600
      %8357 = vmatprep.subr.bf16.mxu0 0
      %8358 = vmatpush1.bf16.msra.mxu0 %v5601
      %8359 = vmatprep.subr.bf16.mxu0 0
      %8360 = vmatpush1.bf16.msra.mxu0 %v5602
      %8361 = vmatprep.subr.bf16.mxu0 0
      %8362 = vmatpush1.bf16.msra.mxu0 %v5611
      %8363 = vmatprep.subr.bf16.mxu0 0
      %8364 = vmatpush1.bf16.msra.mxu0 0
      %8365 = vmatprep.subr.bf16.mxu0 0
      %8366 = vmatpush1.bf16.msra.mxu0 0
      %8367 = vmatprep.subr.bf16.mxu0 0
      %8368 = vmatpush1.bf16.msra.mxu0 0
      %8369 = vmatprep.subr.bf16.mxu0 0
      %8370 = vmatpush1.bf16.msra.mxu0 0
      %8371 = vmatprep.subr.bf16.mxu0 0
      %8372 = vmatpush1.bf16.msra.mxu0 0
      %8373 = vmatprep.subr.bf16.mxu0 0
      %8374 = vmatpush1.bf16.msra.mxu0 0
      %8375 = vmatprep.subr.bf16.mxu0 0
      %8376 = vmatpush1.bf16.msra.mxu0 0
      %8377 = vmatprep.subr.bf16.mxu0 0
      %8378 = vmatpush1.bf16.msra.mxu0 0
      %8379 = vmatprep.subr.bf16.mxu0 0
      %8380 = vmatpush1.bf16.msra.mxu0 0
      %8381 = vmatprep.subr.bf16.mxu0 0
      %8382 = vmatpush1.bf16.msra.mxu0 0
      %8383 = vmatprep.subr.bf16.mxu0 0
      %8384 = vmatpush1.bf16.msra.mxu0 0
      %8385 = vmatprep.mubr.bf16.mxu0 0
      %8386 = vmatmul.mubr.bf16.gmra.mrb[0].mxu0 %v8351
      %v8387 = vpop.f32.mrb[0].mxu0
      %v8388 = vadd.f32 %v8346, %v8387
      %v8389 = vpop.f32.mrb[0].mxu0
      %v8390 = vpop.f32.mrb[0].mxu0
      %v8391 = vpop.f32.mrb[0].mxu0
      %8392 = vdwg.mxu0
      %v8394 = vrot.slane %v8300, 1
      %v8396 = vsel %vm5534, %v8394, 0
      %8398 = vmatprep.subr.bf16.mxu0 0
      %8399 = vmatpush1.bf16.msra.mxu0 %v5683
      %8400 = vmatprep.subr.bf16.mxu0 0
      %8401 = vmatpush1.bf16.msra.mxu0 %v5684
      %8402 = vmatprep.subr.bf16.mxu0 0
      %8403 = vmatpush1.bf16.msra.mxu0 %v5685
      %8404 = vmatprep.subr.bf16.mxu0 0
      %8405 = vmatpush1.bf16.msra.mxu0 %v5686
      %8406 = vmatprep.subr.bf16.mxu0 0
      %8407 = vmatpush1.bf16.msra.mxu0 %v5696
      %8408 = vmatprep.subr.bf16.mxu0 0
      %8409 = vmatpush1.bf16.msra.mxu0 0
      %8410 = vmatprep.subr.bf16.mxu0 0
      %8411 = vmatpush1.bf16.msra.mxu0 0
      %8412 = vmatprep.subr.bf16.mxu0 0
      %8413 = vmatpush1.bf16.msra.mxu0 0
      %8414 = vmatprep.subr.bf16.mxu0 0
      %8415 = vmatpush1.bf16.msra.mxu0 0
      %8416 = vmatprep.subr.bf16.mxu0 0
      %8417 = vmatpush1.bf16.msra.mxu0 0
      %8418 = vmatprep.subr.bf16.mxu0 0
      %8419 = vmatpush1.bf16.msra.mxu0 0
      %8420 = vmatprep.subr.bf16.mxu0 0
      %8421 = vmatpush1.bf16.msra.mxu0 0
      %8422 = vmatprep.subr.bf16.mxu0 0
      %8423 = vmatpush1.bf16.msra.mxu0 0
      %8424 = vmatprep.subr.bf16.mxu0 0
      %8425 = vmatpush1.bf16.msra.mxu0 0
      %8426 = vmatprep.subr.bf16.mxu0 0
      %8427 = vmatpush1.bf16.msra.mxu0 0
      %8428 = vmatprep.subr.bf16.mxu0 0
      %8429 = vmatpush1.bf16.msra.mxu0 0
      %8430 = vmatprep.mubr.bf16.mxu0 0
      %8431 = vmatmul.mubr.bf16.gmra.mrb[0].mxu0 %v8396
      %v8432 = vpop.f32.mrb[0].mxu0
      %v8433 = vadd.f32 0.0, %v8432
      %v8434 = vpop.f32.mrb[0].mxu0
      %v8435 = vpop.f32.mrb[0].mxu0
      %v8436 = vpop.f32.mrb[0].mxu0
      %8437 = vdwg.mxu0
      %v8438 = vadd.f32 %v8388, %v8433
      %v8439 = vrot.slane %v8302, 1
      %v8440 = vrot.slane %v8304, 2
      %v8441 = vor.u32 %v8439, %v8440
      %v8443 = vsel %vm5534, %v8441, 0
      %8445 = vmatprep.subr.bf16.mxu0 0
      %8446 = vmatpush1.bf16.msra.mxu0 %v5770
      %8447 = vmatprep.subr.bf16.mxu0 0
      %8448 = vmatpush1.bf16.msra.mxu0 %v5771
      %8449 = vmatprep.subr.bf16.mxu0 0
      %8450 = vmatpush1.bf16.msra.mxu0 %v5772
      %8451 = vmatprep.subr.bf16.mxu0 0
      %8452 = vmatpush1.bf16.msra.mxu0 %v5773
      %8453 = vmatprep.subr.bf16.mxu0 0
      %8454 = vmatpush1.bf16.msra.mxu0 %v5783
      %8455 = vmatprep.subr.bf16.mxu0 0
      %8456 = vmatpush1.bf16.msra.mxu0 0
      %8457 = vmatprep.subr.bf16.mxu0 0
      %8458 = vmatpush1.bf16.msra.mxu0 0
      %8459 = vmatprep.subr.bf16.mxu0 0
      %8460 = vmatpush1.bf16.msra.mxu0 0
      %8461 = vmatprep.subr.bf16.mxu0 0
      %8462 = vmatpush1.bf16.msra.mxu0 0
      %8463 = vmatprep.subr.bf16.mxu0 0
      %8464 = vmatpush1.bf16.msra.mxu0 0
      %8465 = vmatprep.subr.bf16.mxu0 0
      %8466 = vmatpush1.bf16.msra.mxu0 0
      %8467 = vmatprep.subr.bf16.mxu0 0
      %8468 = vmatpush1.bf16.msra.mxu0 0
      %8469 = vmatprep.subr.bf16.mxu0 0
      %8470 = vmatpush1.bf16.msra.mxu0 0
      %8471 = vmatprep.subr.bf16.mxu0 0
      %8472 = vmatpush1.bf16.msra.mxu0 0
      %8473 = vmatprep.subr.bf16.mxu0 0
      %8474 = vmatpush1.bf16.msra.mxu0 0
      %8475 = vmatprep.subr.bf16.mxu0 0
      %8476 = vmatpush1.bf16.msra.mxu0 0
      %8477 = vmatprep.mubr.bf16.mxu0 0
      %8478 = vmatmul.mubr.bf16.gmra.mrb[0].mxu0 %v8443
      %v8479 = vpop.f32.mrb[0].mxu0
      %v8480 = vadd.f32 0.0, %v8479
      %v8481 = vpop.f32.mrb[0].mxu0
      %v8482 = vpop.f32.mrb[0].mxu0
      %v8483 = vpop.f32.mrb[0].mxu0
      %8484 = vdwg.mxu0
      %v8485 = vadd.f32 %v8438, %v8480
      %v8486 = vrot.slane %v8300, 2
      %v8488 = vsel %vm5534, %v8486, 0
      %8490 = vmatprep.subr.bf16.mxu0 0
      %8491 = vmatpush1.bf16.msra.mxu0 %v5855
      %8492 = vmatprep.subr.bf16.mxu0 0
      %8493 = vmatpush1.bf16.msra.mxu0 %v5856
      %8494 = vmatprep.subr.bf16.mxu0 0
      %8495 = vmatpush1.bf16.msra.mxu0 %v5857
      %8496 = vmatprep.subr.bf16.mxu0 0
      %8497 = vmatpush1.bf16.msra.mxu0 %v5858
      %8498 = vmatprep.subr.bf16.mxu0 0
      %8499 = vmatpush1.bf16.msra.mxu0 %v5868
      %8500 = vmatprep.subr.bf16.mxu0 0
      %8501 = vmatpush1.bf16.msra.mxu0 0
      %8502 = vmatprep.subr.bf16.mxu0 0
      %8503 = vmatpush1.bf16.msra.mxu0 0
      %8504 = vmatprep.subr.bf16.mxu0 0
      %8505 = vmatpush1.bf16.msra.mxu0 0
      %8506 = vmatprep.subr.bf16.mxu0 0
      %8507 = vmatpush1.bf16.msra.mxu0 0
      %8508 = vmatprep.subr.bf16.mxu0 0
      %8509 = vmatpush1.bf16.msra.mxu0 0
      %8510 = vmatprep.subr.bf16.mxu0 0
      %8511 = vmatpush1.bf16.msra.mxu0 0
      %8512 = vmatprep.subr.bf16.mxu0 0
      %8513 = vmatpush1.bf16.msra.mxu0 0
      %8514 = vmatprep.subr.bf16.mxu0 0
      %8515 = vmatpush1.bf16.msra.mxu0 0
      %8516 = vmatprep.subr.bf16.mxu0 0
      %8517 = vmatpush1.bf16.msra.mxu0 0
      %8518 = vmatprep.subr.bf16.mxu0 0
      %8519 = vmatpush1.bf16.msra.mxu0 0
      %8520 = vmatprep.subr.bf16.mxu0 0
      %8521 = vmatpush1.bf16.msra.mxu0 0
      %8522 = vmatprep.mubr.bf16.mxu0 0
      %8523 = vmatmul.mubr.bf16.gmra.mrb[0].mxu0 %v8488
      %v8524 = vpop.f32.mrb[0].mxu0
      %v8525 = vadd.f32 0.0, %v8524
      %v8526 = vpop.f32.mrb[0].mxu0
      %v8527 = vpop.f32.mrb[0].mxu0
      %v8528 = vpop.f32.mrb[0].mxu0
      %8529 = vdwg.mxu0
      %v8530 = vadd.f32 %v8485, %v8525
      %v8531 = vadd.f32 %v8530, %v5916
      %vm8532 = vcmp.gt.f32.partialorder %v8531, 0.0
      %v8533 = vmin.f32 %v8531, 0.0
      %v8534 = vmul.f32 %v8533, 1.442695
      %v8535 = vpow.pop %v8534
      %v8536 = vsub.f32 %v8535, 1.0
      %v8537 = vsel %vm8532, %v8531, %v8536
      %v8538 = vpack.c.bf16 %v8537, %v8537
      %v8540 = vshrl.u32 %v8538, 16
      %v8543 = vsel %vm5955, %v8540, 0
      %8545 = vmatprep.subr.bf16.mxu0 0
      %8546 = vmatpush1.bf16.msra.mxu0 %v5950
      %8547 = vmatprep.subr.bf16.mxu0 0
      %8548 = vmatpush1.bf16.msra.mxu0 %v5951
      %8549 = vmatprep.subr.bf16.mxu0 0
      %8550 = vmatpush1.bf16.msra.mxu0 %v5960
      %8551 = vmatprep.subr.bf16.mxu0 0
      %8552 = vmatpush1.bf16.msra.mxu0 0
      %8553 = vmatprep.subr.bf16.mxu0 0
      %8554 = vmatpush1.bf16.msra.mxu0 0
      %8555 = vmatprep.subr.bf16.mxu0 0
      %8556 = vmatpush1.bf16.msra.mxu0 0
      %8557 = vmatprep.subr.bf16.mxu0 0
      %8558 = vmatpush1.bf16.msra.mxu0 0
      %8559 = vmatprep.subr.bf16.mxu0 0
      %8560 = vmatpush1.bf16.msra.mxu0 0
      %8561 = vmatprep.subr.bf16.mxu0 0
      %8562 = vmatpush1.bf16.msra.mxu0 0
      %8563 = vmatprep.subr.bf16.mxu0 0
      %8564 = vmatpush1.bf16.msra.mxu0 0
      %8565 = vmatprep.subr.bf16.mxu0 0
      %8566 = vmatpush1.bf16.msra.mxu0 0
      %8567 = vmatprep.subr.bf16.mxu0 0
      %8568 = vmatpush1.bf16.msra.mxu0 0
      %8569 = vmatprep.subr.bf16.mxu0 0
      %8570 = vmatpush1.bf16.msra.mxu0 0
      %8571 = vmatprep.subr.bf16.mxu0 0
      %8572 = vmatpush1.bf16.msra.mxu0 0
      %8573 = vmatprep.subr.bf16.mxu0 0
      %8574 = vmatpush1.bf16.msra.mxu0 0
      %8575 = vmatprep.subr.bf16.mxu0 0
      %8576 = vmatpush1.bf16.msra.mxu0 0
      %8577 = vmatprep.mubr.bf16.mxu0 0
      %8578 = vmatmul.mubr.bf16.gmra.mrb[0].mxu0 %v8543
      %v8579 = vpop.f32.mrb[0].mxu0
      %v8580 = vadd.f32 0.0, %v8579
      %v8581 = vpop.f32.mrb[0].mxu0
      %v8582 = vpop.f32.mrb[0].mxu0
      %v8583 = vpop.f32.mrb[0].mxu0
      %8584 = vdwg.mxu0
      %v8585 = vsel %vm5955, %v8538, 0
      %8587 = vmatprep.subr.bf16.mxu0 0
      %8588 = vmatpush1.bf16.msra.mxu0 %v6012
      %8589 = vmatprep.subr.bf16.mxu0 0
      %8590 = vmatpush1.bf16.msra.mxu0 %v6013
      %8591 = vmatprep.subr.bf16.mxu0 0
      %8592 = vmatpush1.bf16.msra.mxu0 %v6020
      %8593 = vmatprep.subr.bf16.mxu0 0
      %8594 = vmatpush1.bf16.msra.mxu0 0
      %8595 = vmatprep.subr.bf16.mxu0 0
      %8596 = vmatpush1.bf16.msra.mxu0 0
      %8597 = vmatprep.subr.bf16.mxu0 0
      %8598 = vmatpush1.bf16.msra.mxu0 0
      %8599 = vmatprep.subr.bf16.mxu0 0
      %8600 = vmatpush1.bf16.msra.mxu0 0
      %8601 = vmatprep.subr.bf16.mxu0 0
      %8602 = vmatpush1.bf16.msra.mxu0 0
      %8603 = vmatprep.subr.bf16.mxu0 0
      %8604 = vmatpush1.bf16.msra.mxu0 0
      %8605 = vmatprep.subr.bf16.mxu0 0
      %8606 = vmatpush1.bf16.msra.mxu0 0
      %8607 = vmatprep.subr.bf16.mxu0 0
      %8608 = vmatpush1.bf16.msra.mxu0 0
      %8609 = vmatprep.subr.bf16.mxu0 0
      %8610 = vmatpush1.bf16.msra.mxu0 0
      %8611 = vmatprep.subr.bf16.mxu0 0
      %8612 = vmatpush1.bf16.msra.mxu0 0
      %8613 = vmatprep.subr.bf16.mxu0 0
      %8614 = vmatpush1.bf16.msra.mxu0 0
      %8615 = vmatprep.subr.bf16.mxu0 0
      %8616 = vmatpush1.bf16.msra.mxu0 0
      %8617 = vmatprep.subr.bf16.mxu0 0
      %8618 = vmatpush1.bf16.msra.mxu0 0
      %8619 = vmatprep.mubr.bf16.mxu0 0
      %8620 = vmatmul.mubr.bf16.gmra.mrb[0].mxu0 %v8585
      %v8621 = vpop.f32.mrb[0].mxu0
      %v8622 = vadd.f32 %v8580, %v8621
      %v8623 = vpop.f32.mrb[0].mxu0
      %v8624 = vpop.f32.mrb[0].mxu0
      %v8625 = vpop.f32.mrb[0].mxu0
      %8626 = vdwg.mxu0
      %v8628 = vrot.slane %v8538, 1
      %v8630 = vsel %vm5955, %v8628, 0
      %8632 = vmatprep.subr.bf16.mxu0 0
      %8633 = vmatpush1.bf16.msra.mxu0 %v6080
      %8634 = vmatprep.subr.bf16.mxu0 0
      %8635 = vmatpush1.bf16.msra.mxu0 %v6081
      %8636 = vmatprep.subr.bf16.mxu0 0
      %8637 = vmatpush1.bf16.msra.mxu0 %v6089
      %8638 = vmatprep.subr.bf16.mxu0 0
      %8639 = vmatpush1.bf16.msra.mxu0 0
      %8640 = vmatprep.subr.bf16.mxu0 0
      %8641 = vmatpush1.bf16.msra.mxu0 0
      %8642 = vmatprep.subr.bf16.mxu0 0
      %8643 = vmatpush1.bf16.msra.mxu0 0
      %8644 = vmatprep.subr.bf16.mxu0 0
      %8645 = vmatpush1.bf16.msra.mxu0 0
      %8646 = vmatprep.subr.bf16.mxu0 0
      %8647 = vmatpush1.bf16.msra.mxu0 0
      %8648 = vmatprep.subr.bf16.mxu0 0
      %8649 = vmatpush1.bf16.msra.mxu0 0
      %8650 = vmatprep.subr.bf16.mxu0 0
      %8651 = vmatpush1.bf16.msra.mxu0 0
      %8652 = vmatprep.subr.bf16.mxu0 0
      %8653 = vmatpush1.bf16.msra.mxu0 0
      %8654 = vmatprep.subr.bf16.mxu0 0
      %8655 = vmatpush1.bf16.msra.mxu0 0
      %8656 = vmatprep.subr.bf16.mxu0 0
      %8657 = vmatpush1.bf16.msra.mxu0 0
      %8658 = vmatprep.subr.bf16.mxu0 0
      %8659 = vmatpush1.bf16.msra.mxu0 0
      %8660 = vmatprep.subr.bf16.mxu0 0
      %8661 = vmatpush1.bf16.msra.mxu0 0
      %8662 = vmatprep.subr.bf16.mxu0 0
      %8663 = vmatpush1.bf16.msra.mxu0 0
      %8664 = vmatprep.mubr.bf16.mxu0 0
      %8665 = vmatmul.mubr.bf16.gmra.mrb[0].mxu0 %v8630
      %v8666 = vpop.f32.mrb[0].mxu0
      %v8667 = vadd.f32 0.0, %v8666
      %v8668 = vpop.f32.mrb[0].mxu0
      %v8669 = vpop.f32.mrb[0].mxu0
      %v8670 = vpop.f32.mrb[0].mxu0
      %8671 = vdwg.mxu0
      %v8672 = vadd.f32 %v8622, %v8667
      %v8673 = vrot.slane %v8540, 1
      %v8675 = vsel %vm5955, %v8673, 0
      %8677 = vmatprep.subr.bf16.mxu0 0
      %8678 = vmatpush1.bf16.msra.mxu0 %v6149
      %8679 = vmatprep.subr.bf16.mxu0 0
      %8680 = vmatpush1.bf16.msra.mxu0 %v6150
      %8681 = vmatprep.subr.bf16.mxu0 0
      %8682 = vmatpush1.bf16.msra.mxu0 %v6158
      %8683 = vmatprep.subr.bf16.mxu0 0
      %8684 = vmatpush1.bf16.msra.mxu0 0
      %8685 = vmatprep.subr.bf16.mxu0 0
      %8686 = vmatpush1.bf16.msra.mxu0 0
      %8687 = vmatprep.subr.bf16.mxu0 0
      %8688 = vmatpush1.bf16.msra.mxu0 0
      %8689 = vmatprep.subr.bf16.mxu0 0
      %8690 = vmatpush1.bf16.msra.mxu0 0
      %8691 = vmatprep.subr.bf16.mxu0 0
      %8692 = vmatpush1.bf16.msra.mxu0 0
      %8693 = vmatprep.subr.bf16.mxu0 0
      %8694 = vmatpush1.bf16.msra.mxu0 0
      %8695 = vmatprep.subr.bf16.mxu0 0
      %8696 = vmatpush1.bf16.msra.mxu0 0
      %8697 = vmatprep.subr.bf16.mxu0 0
      %8698 = vmatpush1.bf16.msra.mxu0 0
      %8699 = vmatprep.subr.bf16.mxu0 0
      %8700 = vmatpush1.bf16.msra.mxu0 0
      %8701 = vmatprep.subr.bf16.mxu0 0
      %8702 = vmatpush1.bf16.msra.mxu0 0
      %8703 = vmatprep.subr.bf16.mxu0 0
      %8704 = vmatpush1.bf16.msra.mxu0 0
      %8705 = vmatprep.subr.bf16.mxu0 0
      %8706 = vmatpush1.bf16.msra.mxu0 0
      %8707 = vmatprep.subr.bf16.mxu0 0
      %8708 = vmatpush1.bf16.msra.mxu0 0
      %8709 = vmatprep.mubr.bf16.mxu0 0
      %8710 = vmatmul.mubr.bf16.gmra.mrb[0].mxu0 %v8675
      %v8711 = vpop.f32.mrb[0].mxu0
      %v8712 = vadd.f32 0.0, %v8711
      %v8713 = vpop.f32.mrb[0].mxu0
      %v8714 = vpop.f32.mrb[0].mxu0
      %v8715 = vpop.f32.mrb[0].mxu0
      %8716 = vdwg.mxu0
      %v8717 = vadd.f32 %v8672, %v8712
      %v8718 = vrot.slane %v8538, 2
      %v8720 = vsel %vm5955, %v8718, 0
      %8722 = vmatprep.subr.bf16.mxu0 0
      %8723 = vmatpush1.bf16.msra.mxu0 %v6218
      %8724 = vmatprep.subr.bf16.mxu0 0
      %8725 = vmatpush1.bf16.msra.mxu0 %v6219
      %8726 = vmatprep.subr.bf16.mxu0 0
      %8727 = vmatpush1.bf16.msra.mxu0 %v6227
      %8728 = vmatprep.subr.bf16.mxu0 0
      %8729 = vmatpush1.bf16.msra.mxu0 0
      %8730 = vmatprep.subr.bf16.mxu0 0
      %8731 = vmatpush1.bf16.msra.mxu0 0
      %8732 = vmatprep.subr.bf16.mxu0 0
      %8733 = vmatpush1.bf16.msra.mxu0 0
      %8734 = vmatprep.subr.bf16.mxu0 0
      %8735 = vmatpush1.bf16.msra.mxu0 0
      %8736 = vmatprep.subr.bf16.mxu0 0
      %8737 = vmatpush1.bf16.msra.mxu0 0
      %8738 = vmatprep.subr.bf16.mxu0 0
      %8739 = vmatpush1.bf16.msra.mxu0 0
      %8740 = vmatprep.subr.bf16.mxu0 0
      %8741 = vmatpush1.bf16.msra.mxu0 0
      %8742 = vmatprep.subr.bf16.mxu0 0
      %8743 = vmatpush1.bf16.msra.mxu0 0
      %8744 = vmatprep.subr.bf16.mxu0 0
      %8745 = vmatpush1.bf16.msra.mxu0 0
      %8746 = vmatprep.subr.bf16.mxu0 0
      %8747 = vmatpush1.bf16.msra.mxu0 0
      %8748 = vmatprep.subr.bf16.mxu0 0
      %8749 = vmatpush1.bf16.msra.mxu0 0
      %8750 = vmatprep.subr.bf16.mxu0 0
      %8751 = vmatpush1.bf16.msra.mxu0 0
      %8752 = vmatprep.subr.bf16.mxu0 0
      %8753 = vmatpush1.bf16.msra.mxu0 0
      %8754 = vmatprep.mubr.bf16.mxu0 0
      %8755 = vmatmul.mubr.bf16.gmra.mrb[0].mxu0 %v8720
      %v8756 = vpop.f32.mrb[0].mxu0
      %v8757 = vadd.f32 0.0, %v8756
      %v8758 = vpop.f32.mrb[0].mxu0
      %v8759 = vpop.f32.mrb[0].mxu0
      %v8760 = vpop.f32.mrb[0].mxu0
      %8761 = vdwg.mxu0
      %v8762 = vadd.f32 %v8717, %v8757
      %v8763 = vadd.f32 %v8762, %v6270
      %v8764 = vadd.f32 %v8763, 0.0
      %v8765 = vadd.f32 %v6273, %v8764
      %v8766 = vmul.f32 %v8763, %v8763
      %v8767 = vadd.f32 %v8766, 0.0
      %v8768 = vadd.f32 %v6276, %v8767
      %v8769 = vld [vmem:[%s19] sm:$0xff]
      %vm8770 = vcmask 64512
      %v8772 = vsel %vm8770, %v8765, 0
      %8774 = vmatprep.subr.mxu0 0.0
      %8775 = vmatpush1.msra.mxu0 %v8769
      %8776 = vmatprep.subr.mxu0 0.0
      %8777 = vmatpush1.msra.mxu0 0.0
      %8778 = vmatprep.subr.mxu0 0.0
      %8779 = vmatpush1.msra.mxu0 0.0
      %8780 = vmatprep.subr.mxu0 0.0
      %8781 = vmatpush1.msra.mxu0 0.0
      %8782 = vmatprep.subr.mxu0 0.0
      %8783 = vmatpush1.msra.mxu0 0.0
      %8784 = vmatprep.subr.mxu0 0.0
      %8785 = vmatpush1.msra.mxu0 0.0
      %8786 = vmatprep.subr.mxu0 0.0
      %8787 = vmatpush1.msra.mxu0 0.0
      %8788 = vmatprep.subr.mxu0 0.0
      %8789 = vmatpush1.msra.mxu0 0.0
      %8790 = vmatprep.subr.mxu0 0.0
      %8791 = vmatpush1.msra.mxu0 0.0
      %8792 = vmatprep.subr.mxu0 0.0
      %8793 = vmatpush1.msra.mxu0 0.0
      %8794 = vmatprep.subr.mxu0 0.0
      %8795 = vmatpush1.msra.mxu0 0.0
      %8796 = vmatprep.subr.mxu0 0.0
      %8797 = vmatpush1.msra.mxu0 0.0
      %8798 = vmatprep.subr.mxu0 0.0
      %8799 = vmatpush1.msra.mxu0 0.0
      %8800 = vmatprep.subr.mxu0 0.0
      %8801 = vmatpush1.msra.mxu0 0.0
      %8802 = vmatprep.subr.mxu0 0.0
      %8803 = vmatpush1.msra.mxu0 0.0
      %8804 = vmatprep.subr.mxu0 0.0
      %8805 = vmatpush1.msra.mxu0 0.0
      %8806 = vmatprep.subr.mxu0 0.0
      %8807 = vmatpush1.msra.mxu0 0.0
      %8808 = vmatprep.subr.mxu0 0.0
      %8809 = vmatpush1.msra.mxu0 0.0
      %8810 = vmatprep.subr.mxu0 0.0
      %8811 = vmatpush1.msra.mxu0 0.0
      %8812 = vmatprep.subr.mxu0 0.0
      %8813 = vmatpush1.msra.mxu0 0.0
      %8814 = vmatprep.subr.mxu0 0.0
      %8815 = vmatpush1.msra.mxu0 0.0
      %8816 = vmatprep.subr.mxu0 0.0
      %8817 = vmatpush1.msra.mxu0 0.0
      %8818 = vmatprep.subr.mxu0 0.0
      %8819 = vmatpush1.msra.mxu0 0.0
      %8820 = vmatprep.subr.mxu0 0.0
      %8821 = vmatpush1.msra.mxu0 0.0
      %8822 = vmatprep.subr.mxu0 0.0
      %8823 = vmatpush1.msra.mxu0 0.0
      %8824 = vmatprep.subr.mxu0 0.0
      %8825 = vmatpush1.msra.mxu0 0.0
      %8826 = vmatprep.subr.mxu0 0.0
      %8827 = vmatpush1.msra.mxu0 0.0
      %8828 = vmatprep.subr.mxu0 0.0
      %8829 = vmatpush1.msra.mxu0 0.0
      %8830 = vmatprep.subr.mxu0 0.0
      %8831 = vmatpush1.msra.mxu0 0.0
      %8832 = vmatprep.subr.mxu0 0.0
      %8833 = vmatpush1.msra.mxu0 0.0
      %8834 = vmatprep.subr.mxu0 0.0
      %8835 = vmatpush1.msra.mxu0 0.0
      %8836 = vmatprep.subr.mxu0 0.0
      %8837 = vmatpush1.msra.mxu0 0.0
      %8838 = vmatprep.mubr.f32.mxu0 0.0
      %8839 = vmatmul.mubr.f32.gmra.mrb[0].mxu0 %v8772
      %v8840 = vpop.f32.mrb[0].mxu0
      %v8841 = vadd.f32 0.0, %v8840
      %v8842 = vpop.f32.mrb[0].mxu0
      %8843 = vdwg.mxu0
      %v8844 = vrcp.pop 2.0
      %v8845 = vmul.f32 %v8841, %v8844
      %v8847 = vsel %vm8770, %v8768, 0
      %8849 = vmatprep.subr.mxu0 0.0
      %8850 = vmatpush1.msra.mxu0 %v8769
      %8851 = vmatprep.subr.mxu0 0.0
      %8852 = vmatpush1.msra.mxu0 0.0
      %8853 = vmatprep.subr.mxu0 0.0
      %8854 = vmatpush1.msra.mxu0 0.0
      %8855 = vmatprep.subr.mxu0 0.0
      %8856 = vmatpush1.msra.mxu0 0.0
      %8857 = vmatprep.subr.mxu0 0.0
      %8858 = vmatpush1.msra.mxu0 0.0
      %8859 = vmatprep.subr.mxu0 0.0
      %8860 = vmatpush1.msra.mxu0 0.0
      %8861 = vmatprep.subr.mxu0 0.0
      %8862 = vmatpush1.msra.mxu0 0.0
      %8863 = vmatprep.subr.mxu0 0.0
      %8864 = vmatpush1.msra.mxu0 0.0
      %8865 = vmatprep.subr.mxu0 0.0
      %8866 = vmatpush1.msra.mxu0 0.0
      %8867 = vmatprep.subr.mxu0 0.0
      %8868 = vmatpush1.msra.mxu0 0.0
      %8869 = vmatprep.subr.mxu0 0.0
      %8870 = vmatpush1.msra.mxu0 0.0
      %8871 = vmatprep.subr.mxu0 0.0
      %8872 = vmatpush1.msra.mxu0 0.0
      %8873 = vmatprep.subr.mxu0 0.0
      %8874 = vmatpush1.msra.mxu0 0.0
      %8875 = vmatprep.subr.mxu0 0.0
      %8876 = vmatpush1.msra.mxu0 0.0
      %8877 = vmatprep.subr.mxu0 0.0
      %8878 = vmatpush1.msra.mxu0 0.0
      %8879 = vmatprep.subr.mxu0 0.0
      %8880 = vmatpush1.msra.mxu0 0.0
      %8881 = vmatprep.subr.mxu0 0.0
      %8882 = vmatpush1.msra.mxu0 0.0
      %8883 = vmatprep.subr.mxu0 0.0
      %8884 = vmatpush1.msra.mxu0 0.0
      %8885 = vmatprep.subr.mxu0 0.0
      %8886 = vmatpush1.msra.mxu0 0.0
      %8887 = vmatprep.subr.mxu0 0.0
      %8888 = vmatpush1.msra.mxu0 0.0
      %8889 = vmatprep.subr.mxu0 0.0
      %8890 = vmatpush1.msra.mxu0 0.0
      %8891 = vmatprep.subr.mxu0 0.0
      %8892 = vmatpush1.msra.mxu0 0.0
      %8893 = vmatprep.subr.mxu0 0.0
      %8894 = vmatpush1.msra.mxu0 0.0
      %8895 = vmatprep.subr.mxu0 0.0
      %8896 = vmatpush1.msra.mxu0 0.0
      %8897 = vmatprep.subr.mxu0 0.0
      %8898 = vmatpush1.msra.mxu0 0.0
      %8899 = vmatprep.subr.mxu0 0.0
      %8900 = vmatpush1.msra.mxu0 0.0
      %8901 = vmatprep.subr.mxu0 0.0
      %8902 = vmatpush1.msra.mxu0 0.0
      %8903 = vmatprep.subr.mxu0 0.0
      %8904 = vmatpush1.msra.mxu0 0.0
      %8905 = vmatprep.subr.mxu0 0.0
      %8906 = vmatpush1.msra.mxu0 0.0
      %8907 = vmatprep.subr.mxu0 0.0
      %8908 = vmatpush1.msra.mxu0 0.0
      %8909 = vmatprep.subr.mxu0 0.0
      %8910 = vmatpush1.msra.mxu0 0.0
      %8911 = vmatprep.subr.mxu0 0.0
      %8912 = vmatpush1.msra.mxu0 0.0
      %8913 = vmatprep.mubr.f32.mxu0 0.0
      %8914 = vmatmul.mubr.f32.gmra.mrb[0].mxu0 %v8847
      %v8915 = vpop.f32.mrb[0].mxu0
      %v8916 = vadd.f32 0.0, %v8915
      %v8917 = vpop.f32.mrb[0].mxu0
      %8918 = vdwg.mxu0
      %v8919 = vmul.f32 %v8916, %v8844
      %v8920 = vmul.f32 %v8845, %v8845
      %v8921 = vsub.f32 %v8919, %v8920
      %v8922 = vld [vmem:[%s976] sm:$0x1]
      %v8923 = vadd.f32 %v8921, 1e-05
      %v8924 = vrsqrt.pop %v8923
      %v8925 = vmul.f32 %v8922, %v8924
      %v8926 = vld [vmem:[%s979] sm:$0x1]
      %v8927 = vmul.f32 %v8845, %v8925
      %v8928 = vsub.f32 %v8926, %v8927
      %v8929 = vld [vmem:[%s20] sm:$0xff]
      %v8931 = vsel %vm8770, %v8925, 0
      %8933 = vmatprep.subr.mxu0 0.0
      %8934 = vmatpush1.msra.mxu0 %v8929
      %8935 = vmatprep.subr.mxu0 0.0
      %8936 = vmatpush1.msra.mxu0 0.0
      %8937 = vmatprep.subr.mxu0 0.0
      %8938 = vmatpush1.msra.mxu0 0.0
      %8939 = vmatprep.subr.mxu0 0.0
      %8940 = vmatpush1.msra.mxu0 0.0
      %8941 = vmatprep.subr.mxu0 0.0
      %8942 = vmatpush1.msra.mxu0 0.0
      %8943 = vmatprep.subr.mxu0 0.0
      %8944 = vmatpush1.msra.mxu0 0.0
      %8945 = vmatprep.subr.mxu0 0.0
      %8946 = vmatpush1.msra.mxu0 0.0
      %8947 = vmatprep.subr.mxu0 0.0
      %8948 = vmatpush1.msra.mxu0 0.0
      %8949 = vmatprep.subr.mxu0 0.0
      %8950 = vmatpush1.msra.mxu0 0.0
      %8951 = vmatprep.subr.mxu0 0.0
      %8952 = vmatpush1.msra.mxu0 0.0
      %8953 = vmatprep.subr.mxu0 0.0
      %8954 = vmatpush1.msra.mxu0 0.0
      %8955 = vmatprep.subr.mxu0 0.0
      %8956 = vmatpush1.msra.mxu0 0.0
      %8957 = vmatprep.subr.mxu0 0.0
      %8958 = vmatpush1.msra.mxu0 0.0
      %8959 = vmatprep.subr.mxu0 0.0
      %8960 = vmatpush1.msra.mxu0 0.0
      %8961 = vmatprep.subr.mxu0 0.0
      %8962 = vmatpush1.msra.mxu0 0.0
      %8963 = vmatprep.subr.mxu0 0.0
      %8964 = vmatpush1.msra.mxu0 0.0
      %8965 = vmatprep.subr.mxu0 0.0
      %8966 = vmatpush1.msra.mxu0 0.0
      %8967 = vmatprep.subr.mxu0 0.0
      %8968 = vmatpush1.msra.mxu0 0.0
      %8969 = vmatprep.subr.mxu0 0.0
      %8970 = vmatpush1.msra.mxu0 0.0
      %8971 = vmatprep.subr.mxu0 0.0
      %8972 = vmatpush1.msra.mxu0 0.0
      %8973 = vmatprep.subr.mxu0 0.0
      %8974 = vmatpush1.msra.mxu0 0.0
      %8975 = vmatprep.subr.mxu0 0.0
      %8976 = vmatpush1.msra.mxu0 0.0
      %8977 = vmatprep.subr.mxu0 0.0
      %8978 = vmatpush1.msra.mxu0 0.0
      %8979 = vmatprep.subr.mxu0 0.0
      %8980 = vmatpush1.msra.mxu0 0.0
      %8981 = vmatprep.subr.mxu0 0.0
      %8982 = vmatpush1.msra.mxu0 0.0
      %8983 = vmatprep.subr.mxu0 0.0
      %8984 = vmatpush1.msra.mxu0 0.0
      %8985 = vmatprep.subr.mxu0 0.0
      %8986 = vmatpush1.msra.mxu0 0.0
      %8987 = vmatprep.subr.mxu0 0.0
      %8988 = vmatpush1.msra.mxu0 0.0
      %8989 = vmatprep.subr.mxu0 0.0
      %8990 = vmatpush1.msra.mxu0 0.0
      %8991 = vmatprep.subr.mxu0 0.0
      %8992 = vmatpush1.msra.mxu0 0.0
      %8993 = vmatprep.subr.mxu0 0.0
      %8994 = vmatpush1.msra.mxu0 0.0
      %8995 = vmatprep.subr.mxu0 0.0
      %8996 = vmatpush1.msra.mxu0 0.0
      %8997 = vmatprep.mubr.f32.mxu0 0.0
      %8998 = vmatmul.mubr.f32.gmra.mrb[0].mxu0 %v8931
      %v8999 = vpop.f32.mrb[0].mxu0
      %v9000 = vadd.f32 0.0, %v8999
      %v9001 = vpop.f32.mrb[0].mxu0
      %9002 = vdwg.mxu0
      %v9004 = vsel %vm8770, %v8928, 0
      %9006 = vmatprep.subr.mxu0 0.0
      %9007 = vmatpush1.msra.mxu0 %v8929
      %9008 = vmatprep.subr.mxu0 0.0
      %9009 = vmatpush1.msra.mxu0 0.0
      %9010 = vmatprep.subr.mxu0 0.0
      %9011 = vmatpush1.msra.mxu0 0.0
      %9012 = vmatprep.subr.mxu0 0.0
      %9013 = vmatpush1.msra.mxu0 0.0
      %9014 = vmatprep.subr.mxu0 0.0
      %9015 = vmatpush1.msra.mxu0 0.0
      %9016 = vmatprep.subr.mxu0 0.0
      %9017 = vmatpush1.msra.mxu0 0.0
      %9018 = vmatprep.subr.mxu0 0.0
      %9019 = vmatpush1.msra.mxu0 0.0
      %9020 = vmatprep.subr.mxu0 0.0
      %9021 = vmatpush1.msra.mxu0 0.0
      %9022 = vmatprep.subr.mxu0 0.0
      %9023 = vmatpush1.msra.mxu0 0.0
      %9024 = vmatprep.subr.mxu0 0.0
      %9025 = vmatpush1.msra.mxu0 0.0
      %9026 = vmatprep.subr.mxu0 0.0
      %9027 = vmatpush1.msra.mxu0 0.0
      %9028 = vmatprep.subr.mxu0 0.0
      %9029 = vmatpush1.msra.mxu0 0.0
      %9030 = vmatprep.subr.mxu0 0.0
      %9031 = vmatpush1.msra.mxu0 0.0
      %9032 = vmatprep.subr.mxu0 0.0
      %9033 = vmatpush1.msra.mxu0 0.0
      %9034 = vmatprep.subr.mxu0 0.0
      %9035 = vmatpush1.msra.mxu0 0.0
      %9036 = vmatprep.subr.mxu0 0.0
      %9037 = vmatpush1.msra.mxu0 0.0
      %9038 = vmatprep.subr.mxu0 0.0
      %9039 = vmatpush1.msra.mxu0 0.0
      %9040 = vmatprep.subr.mxu0 0.0
      %9041 = vmatpush1.msra.mxu0 0.0
      %9042 = vmatprep.subr.mxu0 0.0
      %9043 = vmatpush1.msra.mxu0 0.0
      %9044 = vmatprep.subr.mxu0 0.0
      %9045 = vmatpush1.msra.mxu0 0.0
      %9046 = vmatprep.subr.mxu0 0.0
      %9047 = vmatpush1.msra.mxu0 0.0
      %9048 = vmatprep.subr.mxu0 0.0
      %9049 = vmatpush1.msra.mxu0 0.0
      %9050 = vmatprep.subr.mxu0 0.0
      %9051 = vmatpush1.msra.mxu0 0.0
      %9052 = vmatprep.subr.mxu0 0.0
      %9053 = vmatpush1.msra.mxu0 0.0
      %9054 = vmatprep.subr.mxu0 0.0
      %9055 = vmatpush1.msra.mxu0 0.0
      %9056 = vmatprep.subr.mxu0 0.0
      %9057 = vmatpush1.msra.mxu0 0.0
      %9058 = vmatprep.subr.mxu0 0.0
      %9059 = vmatpush1.msra.mxu0 0.0
      %9060 = vmatprep.subr.mxu0 0.0
      %9061 = vmatpush1.msra.mxu0 0.0
      %9062 = vmatprep.subr.mxu0 0.0
      %9063 = vmatpush1.msra.mxu0 0.0
      %9064 = vmatprep.subr.mxu0 0.0
      %9065 = vmatpush1.msra.mxu0 0.0
      %9066 = vmatprep.subr.mxu0 0.0
      %9067 = vmatpush1.msra.mxu0 0.0
      %9068 = vmatprep.subr.mxu0 0.0
      %9069 = vmatpush1.msra.mxu0 0.0
      %9070 = vmatprep.mubr.f32.mxu0 0.0
      %9071 = vmatmul.mubr.f32.gmra.mrb[0].mxu0 %v9004
      %v9072 = vpop.f32.mrb[0].mxu0
      %v9073 = vadd.f32 0.0, %v9072
      %v9074 = vpop.f32.mrb[0].mxu0
      %9075 = vdwg.mxu0
      %v9076 = vmul.f32 %v6271, %v9000
      %v9077 = vadd.f32 %v9076, %v9073
      %vm9078 = vcmp.gt.f32.partialorder %v9077, 0.0
      %v9079 = vmin.f32 %v9077, 0.0
      %v9080 = vmul.f32 %v9079, 1.442695
      %v9081 = vpow.pop %v9080
      %v9082 = vsub.f32 %v9081, 1.0
      %v9083 = vsel %vm9078, %v9077, %v9082
      %vm9084 = vcmask 57344
      %9085 = vst.msk [vmem:[%s985] sm:$0x1] %vm9084, %v9083
      %v9086 = vmul.f32 %v8763, %v9000
      %v9087 = vadd.f32 %v9086, %v9073
      %vm9088 = vcmp.gt.f32.partialorder %v9087, 0.0
      %v9089 = vmin.f32 %v9087, 0.0
      %v9090 = vmul.f32 %v9089, 1.442695
      %v9091 = vpow.pop %v9090
      %v9092 = vsub.f32 %v9091, 1.0
      %v9093 = vsel %vm9088, %v9087, %v9092
      %s9094 = scalar_lea.vmem %s985, 1
      %9095 = vst.msk [vmem:[%s9094] sm:$0x1] %vm9084, %v9093
      %s9096 = smul.u32 %s37, 2
      %s9097 = sadd.s32 %s9096, %s36
      %p9098 = scmp.lt.s32.totalorder %s9097, 3
      %s9099 = scalar_select %p9098, %s9097, 3
      %s9100 = smul.addr %s9099, 2
      %s9101 = scalar_lea.vmem %s21, %s9100
      // Predicated region
      $region105: #{_lambda_.2} parent=103 // pred_check
        %p9102 = pneg %p604
      $region106: #{_lambda_.2} parent=103 // pred_check_branch
        %9104 = sbr.rel (%p9102) target = $region108
      $region107: #{_lambda_.2} parent=103 // pred_region
        %s9105 = smul.u32 %s37, 2
        %s9106 = sadd.s32 %s9105, %s36
      $region108: #{_lambda_.2} parent=103 // pred_fallthru
        _
    $region104: #{_lambda_.2} parent=5 // pred_fallthru
      _
    %p9107 = scmp.le.s32.totalorder 2, %s27
    // Predicated region
    $region109: #{_lambda_.2} parent=5 // pred_check
      %p9108 = pneg %p9107
    $region110: #{_lambda_.2} parent=5 // pred_check_branch
      %9110 = sbr.rel (%p9108) target = $region112
    $region111: #{_lambda_.2} parent=5 // pred_region
      %s9111 = ssub.s32 %s27, 2
      // Predicated region
      $region113: #{_lambda_.2} parent=111 // pred_check
        %p9112 = pneg %p610
      $region114: #{_lambda_.2} parent=111 // pred_check_branch
        %9114 = sbr.rel (%p9112) target = $region116
      $region115: #{_lambda_.2} parent=111 // pred_region
        %s9115 = smul.u32 %s39, 2
        %s9116 = sadd.s32 %s9115, %s38
        %p9117 = scmp.lt.s32.totalorder %s9116, 3
        %s9118 = scalar_select %p9117, %s9116, 3
        %s9119 = smul.addr %s9118, 2
        %s9120 = scalar_lea.vmem %s21, %s9119
      $region116: #{_lambda_.2} parent=111 // pred_fallthru
        _
    $region112: #{_lambda_.2} parent=5 // pred_fallthru
      _
  $region6: #{_lambda_.2} parent=0 // loop_footer
    %s31 = sadd.s32 1, %s27
  $region7: #{_lambda_.2} parent=0 // loop_footer_branch
    %26 = sbr.rel target = $region3
  $region8: #{_lambda_.2} parent=0 // loop_exit
    _

</llo_original>
